<compile_context>
chip_gen: v7x
topology: tpu7x:2x2x1
jax: 0.10.0
libtpu: 0.0.40
codegen_flags: <defaults>
</compile_context>

<pallas_src>
import functools
import numpy as np
import jax
import jax.numpy as jnp
from jax.experimental import pallas as pl
from jax.experimental.pallas import tpu as pltpu

_EPS = 1e-6
_MASK_FILL = -1e9


# ----------------------------------------------------------------------------
# In-kernel building blocks
# ----------------------------------------------------------------------------
def _layer_norm_f32(y, gamma, beta):
    mean = jnp.mean(y, axis=-1, keepdims=True)
    c = y - mean
    var = jnp.mean(c * c, axis=-1, keepdims=True)
    return c * jax.lax.rsqrt(var + _EPS) * gamma + beta


def _attention_sublayer(x, wq_ref, k_scr, v_scr, bias, wo_ref, g_ref, b_ref,
                        *, n_head, d_k, d_v):
    """Post-norm multi-head attention sublayer.

    x      : [Tq, D]  f32 (query-side activation, also the residual)
    wq_ref : [D, H*dk] bf16 (1/sqrt(dk) already folded in)
    k_scr  : VMEM ref [Lk, H*dk] bf16  (precomputed keys, lane-dense)
    v_scr  : VMEM ref [Lk, H*dv] bf16  (precomputed values, lane-dense)
    bias   : [Tq or 1, Lk] f32 additive mask (0 keep / -1e9 drop)
    wo_ref : [H*dv, D] bf16 ; g_ref/b_ref: [1, D] f32
    """
    # Single lane-dense Q projection for all heads.
    q = jnp.dot(x.astype(jnp.bfloat16), wq_ref[...],
                preferred_element_type=jnp.float32)               # [Tq, H*dk]
    q = q.astype(jnp.bfloat16)

    heads = []
    for h in range(n_head):                                       # statically unrolled
        qh = q[:, h * d_k:(h + 1) * d_k]                          # [Tq, dk]
        kh = k_scr[:, h * d_k:(h + 1) * d_k]                      # [Lk, dk] bf16
        vh = v_scr[:, h * d_v:(h + 1) * d_v]                      # [Lk, dv] bf16
        s = jnp.einsum('qe,ke->qk', qh, kh,
                       preferred_element_type=jnp.float32)        # [Tq, Lk]
        s = s + bias
        # Numerically-stable softmax in f32; reciprocal on the EUP.
        s = s - jnp.max(s, axis=-1, keepdims=True)
        p = jnp.exp(s)
        p = p * pl.reciprocal(jnp.sum(p, axis=-1, keepdims=True), approx=True)
        heads.append(jnp.dot(p.astype(jnp.bfloat16), vh,
                             preferred_element_type=jnp.float32))  # [Tq, dv]

    # Fused "concat heads @ Wo" output projection (head dim = MXU K dim).
    o = jnp.concatenate(heads, axis=-1).astype(jnp.bfloat16)       # [Tq, H*dv]
    y = jnp.dot(o, wo_ref[...], preferred_element_type=jnp.float32) + x
    return _layer_norm_f32(y, g_ref[...], b_ref[...])


def _ffn_sublayer(x, w1_ref, b1_ref, w2_ref, b2_ref, g_ref, b_ref):
    h = jnp.dot(x.astype(jnp.bfloat16), w1_ref[...],
                preferred_element_type=jnp.float32) + b1_ref[...]
    h = jnp.maximum(h, 0.0)
    y = jnp.dot(h.astype(jnp.bfloat16), w2_ref[...],
                preferred_element_type=jnp.float32) + b2_ref[...] + x
    return _layer_norm_f32(y, g_ref[...], b_ref[...])


# ----------------------------------------------------------------------------
# Fused DecoderLayer kernel (one grid step = one (batch, query-tile))
# ----------------------------------------------------------------------------
def _decoder_layer_kernel(
        xfull_ref, enc_ref, tbias_ref, sbias_ref,
        s_wq, s_wk, s_wv, s_wo, s_g, s_b,
        e_wq, e_wk, e_wv, e_wo, e_g, e_b,
        f_w1, f_b1, f_w2, f_b2, f_g, f_b,
        out_ref,
        ks_scr, vs_scr, ke_scr, ve_scr,
        *, tq, n_head, d_k, d_v):
    t = pl.program_id(1)

    # K/V for the whole sequence are projected ONCE per batch element (t == 0)
    # into lane-dense bf16 VMEM scratch and reused by every query tile
    # (the query-tile grid axis is "arbitrary" so the scratch persists).
    @pl.when(t == 0)
    def _():
        xf = xfull_ref[0]                                         # [Lq, D] bf16
        ks_scr[...] = jnp.dot(
            xf, s_wk[...], preferred_element_type=jnp.float32).astype(jnp.bfloat16)
        vs_scr[...] = jnp.dot(
            xf, s_wv[...], preferred_element_type=jnp.float32).astype(jnp.bfloat16)
        en = enc_ref[0]                                           # [Lk, D] bf16
        ke_scr[...] = jnp.dot(
            en, e_wk[...], preferred_element_type=jnp.float32).astype(jnp.bfloat16)
        ve_scr[...] = jnp.dot(
            en, e_wv[...], preferred_element_type=jnp.float32).astype(jnp.bfloat16)

    # Query tile sliced from the resident full-sequence block (no duplicate
    # activation stream from HBM).
    start = pl.multiple_of(t * tq, tq)
    x = xfull_ref[0, pl.ds(start, tq), :].astype(jnp.float32)     # [tq, D]
    tbias = tbias_ref[0].astype(jnp.float32)                      # [tq, Lq]
    sbias = sbias_ref[0].astype(jnp.float32)                      # [1, Lk]

    # Self-attention -> enc-dec attention -> FFN, all VMEM-resident.
    x = _attention_sublayer(x, s_wq, ks_scr, vs_scr, tbias, s_wo, s_g, s_b,
                            n_head=n_head, d_k=d_k, d_v=d_v)
    x = _attention_sublayer(x, e_wq, ke_scr, ve_scr, sbias, e_wo, e_g, e_b,
                            n_head=n_head, d_k=d_k, d_v=d_v)
    x = _ffn_sublayer(x, f_w1, f_b1, f_w2, f_b2, f_g, f_b)
    out_ref[0] = x.astype(out_ref.dtype)


# ----------------------------------------------------------------------------
# Wrapper
# ----------------------------------------------------------------------------
def _pick_q_tile(lq):
    cap = 512
    try:
        # v7x has only 64 MiB VMEM per TensorCore -> cap the query tile at 256.
        if int(pltpu.get_tpu_info().vmem_capacity_bytes) <= (64 << 20):
            cap = 256
    except Exception:
        pass
    for t in (cap, 256, 128):
        if t <= cap and lq >= t and lq % t == 0:
            return t
    if lq > 128:
        return 128                          # caller pads Lq up to a multiple
    return max(16, -(-lq // 16) * 16)       # tiny sequences: one (padded) tile


def _pick_vmem_limit_bytes():
    # Re-derive the VMEM budget per chip (64 MiB physical on v7x, 128 MiB on
    # v5e/v6e). Fall back to the compiler default if the query is unavailable.
    try:
        cap = int(pltpu.get_tpu_info().vmem_capacity_bytes)
        return min((cap * 3) // 4, 100 * 1024 * 1024)
    except Exception:
        return None


def decoder_layer_fused(x, enc_output, trg_bias, src_bias, lw, *,
                        n_head, d_k, d_v, tq):
    """One DecoderLayer (self-attn + cross-attn + FFN) as a single pallas_call."""
    B, Lq, D = x.shape
    Lk = enc_output.shape[1]
    s, e, f = lw["slf"], lw["enc"], lw["ffn"]
    d_inner = f["w1"].shape[1]
    nqt = Lq // tq
    tb_one = trg_bias.shape[0] == 1
    sb_one = src_bias.shape[0] == 1

    def seq_map(b, t):
        return (b, 0, 0)

    def out_map(b, t):
        return (b, t, 0)

    def tb_map(b, t):
        return (0 if tb_one else b, t, 0)

    def sb_map(b, t):
        return (0 if sb_one else b, 0, 0)

    def w_map(b, t):
        return (0, 0)

    in_specs = [
        pl.BlockSpec((1, Lq, D), seq_map),     # full x (queries + self-attn K/V)
        pl.BlockSpec((1, Lk, D), seq_map),     # encoder output (cross-attn K/V)
        pl.BlockSpec((1, tq, Lq), tb_map),     # self-attn additive-bias row tile
        pl.BlockSpec((1, 1, Lk), sb_map),      # compact cross-attn additive bias
    ]
    for _ in range(2):                          # self-attn, then enc-dec attn
        in_specs += [
            pl.BlockSpec((D, n_head * d_k), w_map),      # wq (scale folded in)
            pl.BlockSpec((D, n_head * d_k), w_map),      # wk
            pl.BlockSpec((D, n_head * d_v), w_map),      # wv
            pl.BlockSpec((n_head * d_v, D), w_map),      # wo
            pl.BlockSpec((1, D), w_map),                 # gamma
            pl.BlockSpec((1, D), w_map),                 # beta
        ]
    in_specs += [
        pl.BlockSpec((D, d_inner), w_map), pl.BlockSpec((1, d_inner), w_map),
        pl.BlockSpec((d_inner, D), w_map), pl.BlockSpec((1, D), w_map),
        pl.BlockSpec((1, D), w_map), pl.BlockSpec((1, D), w_map),
    ]

    cp_kwargs = dict(dimension_semantics=("parallel", "arbitrary"))
    vmem_limit = _pick_vmem_limit_bytes()
    if vmem_limit is not None:
        cp_kwargs["vmem_limit_bytes"] = vmem_limit

    kernel = functools.partial(_decoder_layer_kernel, tq=tq,
                               n_head=n_head, d_k=d_k, d_v=d_v)
    return pl.pallas_call(
        kernel,
        out_shape=jax.ShapeDtypeStruct((B, Lq, D), jnp.bfloat16),
        grid_spec=pltpu.PrefetchScalarGridSpec(
            num_scalar_prefetch=0,
            grid=(B, nqt),
            in_specs=in_specs,
            out_specs=pl.BlockSpec((1, tq, D), out_map),
            scratch_shapes=[
                pltpu.VMEM((Lq, n_head * d_k), jnp.bfloat16),   # self-attn K
                pltpu.VMEM((Lq, n_head * d_v), jnp.bfloat16),   # self-attn V
                pltpu.VMEM((Lk, n_head * d_k), jnp.bfloat16),   # cross-attn K
                pltpu.VMEM((Lk, n_head * d_v), jnp.bfloat16),   # cross-attn V
            ]),
        compiler_params=pltpu.CompilerParams(**cp_kwargs),
    )(x, enc_output, trg_bias, src_bias,
      s["wq"], s["wk"], s["wv"], s["wo"], s["gamma"], s["beta"],
      e["wq"], e["wk"], e["wv"], e["wo"], e["gamma"], e["beta"],
      f["w1"], f["b1"], f["w2"], f["b2"], f["gamma"], f["beta"])


def decoder_forward(prepped_params, trg_seq, trg_mask, enc_output, src_mask,
                    *, n_head, d_k, d_v):
    B, Lq, D = trg_seq.shape
    Lk = enc_output.shape[1]

    # Masks -> compact additive bf16 biases (0 keep, -1e9 drop); never
    # broadcast the [*, 1, Lk] padding mask over queries in HBM.
    trg_mask = jnp.asarray(trg_mask)
    if trg_mask.ndim == 2:
        trg_mask = trg_mask[None]
    src_mask = jnp.asarray(src_mask)
    if src_mask.ndim == 2:
        src_mask = src_mask[None]
    trg_bias = jnp.where(trg_mask == 0, jnp.float32(_MASK_FILL),
                         jnp.float32(0.0)).astype(jnp.bfloat16)
    src_bias = jnp.where(src_mask == 0, jnp.float32(_MASK_FILL),
                         jnp.float32(0.0)).astype(jnp.bfloat16)
    if trg_bias.shape[1] == 1:
        trg_bias = jnp.broadcast_to(trg_bias, (trg_bias.shape[0], Lq, Lq))

    # Pick the query tile and pad Lq up to a multiple of it (tail is masked).
    tq = _pick_q_tile(Lq)
    lq_p = -(-Lq // tq) * tq
    x = trg_seq.astype(jnp.bfloat16)       # bf16 activations between layers
    enc = enc_output.astype(jnp.bfloat16)
    if lq_p != Lq:
        pad = lq_p - Lq
        x = jnp.pad(x, ((0, 0), (0, pad), (0, 0)))
        trg_bias = jnp.pad(trg_bias, ((0, 0), (0, pad), (0, pad)),
                           constant_values=_MASK_FILL)

    for lw in prepped_params:
        x = decoder_layer_fused(x, enc, trg_bias, src_bias, lw,
                                n_head=n_head, d_k=d_k, d_v=d_v, tq=tq)
    if lq_p != Lq:
        x = x[:, :Lq, :]
    return x.astype(jnp.float32), []   # matches `return dec_output, dec_enc_attn_list`


# ----------------------------------------------------------------------------
# Parameters (math-oriented f32) + kernel-layout preparation (bf16)
# ----------------------------------------------------------------------------
def init_decoder_params(key, *, n_layers, n_head, d_k, d_v, d_model, d_inner):
    params = []
    for _ in range(n_layers):
        layer = {}
        for name in ("slf", "enc"):
            key, k1, k2, k3, k4, k5, k6 = jax.random.split(key, 7)
            layer[name] = dict(
                wq=0.1 * jax.random.normal(k1, (d_model, n_head * d_k), jnp.float32),
                wk=0.1 * jax.random.normal(k2, (d_model, n_head * d_k), jnp.float32),
                wv=0.1 * jax.random.normal(k3, (d_model, n_head * d_v), jnp.float32),
                wo=0.1 * jax.random.normal(k4, (n_head * d_v, d_model), jnp.float32),
                gamma=1.0 + 0.1 * jax.random.normal(k5, (d_model,), jnp.float32),
                beta=0.1 * jax.random.normal(k6, (d_model,), jnp.float32),
            )
        key, k1, k2, k3, k4, k5, k6 = jax.random.split(key, 7)
        layer["ffn"] = dict(
            w1=0.1 * jax.random.normal(k1, (d_model, d_inner), jnp.float32),
            b1=0.1 * jax.random.normal(k2, (d_inner,), jnp.float32),
            w2=0.1 * jax.random.normal(k3, (d_inner, d_model), jnp.float32),
            b2=0.1 * jax.random.normal(k4, (d_model,), jnp.float32),
            gamma=1.0 + 0.1 * jax.random.normal(k5, (d_model,), jnp.float32),
            beta=0.1 * jax.random.normal(k6, (d_model,), jnp.float32),
        )
        params.append(layer)
    return params


def prepare_decoder_params(params, *, n_head, d_k, d_v):
    """Keep stacked [D, H*dk] layouts, fold 1/sqrt(dk) into wq, cast to bf16."""
    del n_head, d_v
    scale = 1.0 / float(d_k) ** 0.5
    prepped = []
    for layer in params:
        out = {}
        for name in ("slf", "enc"):
            w = layer[name]
            D = w["wq"].shape[0]
            out[name] = dict(
                wq=(w["wq"] * scale).astype(jnp.bfloat16),
                wk=w["wk"].astype(jnp.bfloat16),
                wv=w["wv"].astype(jnp.bfloat16),
                wo=w["wo"].astype(jnp.bfloat16),
                gamma=w["gamma"].reshape(1, D).astype(jnp.float32),
                beta=w["beta"].reshape(1, D).astype(jnp.float32),
            )
        f = layer["ffn"]
        D, d_inner = f["w1"].shape
        out["ffn"] = dict(
            w1=f["w1"].astype(jnp.bfloat16),
            b1=f["b1"].reshape(1, d_inner).astype(jnp.float32),
            w2=f["w2"].astype(jnp.bfloat16),
            b2=f["b2"].reshape(1, D).astype(jnp.float32),
            gamma=f["gamma"].reshape(1, D).astype(jnp.float32),
            beta=f["beta"].reshape(1, D).astype(jnp.float32),
        )
        prepped.append(out)
    return prepped


# ----------------------------------------------------------------------------
# Pure-JAX f32 reference (PyTorch module semantics) for the correctness check
# ----------------------------------------------------------------------------
def _ln_ref(y, g, b, eps=_EPS):
    m = jnp.mean(y, -1, keepdims=True)
    v = jnp.mean((y - m) ** 2, -1, keepdims=True)
    return (y - m) / jnp.sqrt(v + eps) * g + b


def _mha_ref(xq, xkv, mask, p, n_head, d_k, d_v):
    B, Lq, D = xq.shape
    Lk = xkv.shape[1]
    q = (xq @ p["wq"]).reshape(B, Lq, n_head, d_k).transpose(0, 2, 1, 3)
    k = (xkv @ p["wk"]).reshape(B, Lk, n_head, d_k).transpose(0, 2, 1, 3)
    v = (xkv @ p["wv"]).reshape(B, Lk, n_head, d_v).transpose(0, 2, 1, 3)
    attn = (q / d_k ** 0.5) @ k.transpose(0, 1, 3, 2)
    m = jnp.broadcast_to(mask, (B, Lq, Lk))[:, None, :, :]
    attn = jnp.where(m == 0, _MASK_FILL, attn)
    attn = jax.nn.softmax(attn, axis=-1)
    o = (attn @ v).transpose(0, 2, 1, 3).reshape(B, Lq, n_head * d_v)
    o = o @ p["wo"] + xq
    return _ln_ref(o, p["gamma"], p["beta"])


def _decoder_ref(params, trg_seq, trg_mask, enc_output, src_mask, n_head, d_k, d_v):
    x = trg_seq
    for layer in params:
        x = _mha_ref(x, x, trg_mask, layer["slf"], n_head, d_k, d_v)
        x = _mha_ref(x, enc_output, src_mask, layer["enc"], n_head, d_k, d_v)
        f = layer["ffn"]
        y = jnp.maximum(x @ f["w1"] + f["b1"], 0.0) @ f["w2"] + f["b2"] + x
        x = _ln_ref(y, f["gamma"], f["beta"])
    return x


# ----------------------------------------------------------------------------
if __name__ == "__main__":
    # Small but lane-dense shapes consistent with the module.
    B, Lq, Lk = 2, 16, 16
    d_model = d_word_vec = 128
    n_head, d_k, d_v = 4, 32, 32
    d_inner = 256
    n_layers = 2

    key = jax.random.PRNGKey(0)
    key, kp, k1, k2 = jax.random.split(key, 4)
    params = init_decoder_params(kp, n_layers=n_layers, n_head=n_head, d_k=d_k,
                                 d_v=d_v, d_model=d_model, d_inner=d_inner)
    prepped = prepare_decoder_params(params, n_head=n_head, d_k=d_k, d_v=d_v)

    trg_seq = jax.random.normal(k1, (B, Lq, d_model), jnp.float32)
    enc_output = jax.random.normal(k2, (B, Lk, d_model), jnp.float32)
    # causal self-attn mask [B, Lq, Lq]; compact padding mask [B, 1, Lk]
    trg_mask = jnp.broadcast_to(jnp.tril(jnp.ones((Lq, Lq), jnp.float32)),
                                (B, Lq, Lq))
    src_mask = jnp.ones((B, 1, Lk), jnp.float32).at[:, :, -3:].set(0.0)

    forward = jax.jit(functools.partial(decoder_forward, n_head=n_head,
                                        d_k=d_k, d_v=d_v))
    dec_out, attn_list = forward(prepped, trg_seq, trg_mask, enc_output, src_mask)
    dec_out = jax.block_until_ready(dec_out)

    ref = _decoder_ref(params, trg_seq, trg_mask, enc_output, src_mask,
                       n_head, d_k, d_v)
    # bf16 matmuls / bf16 inter-layer activations (f32 accumulation and f32
    # softmax/LayerNorm stats) vs the f32 reference -> relaxed tolerance.
    np.testing.assert_allclose(np.asarray(dec_out), np.asarray(ref),
                               rtol=5e-2, atol=5e-2)
    print("KERNEL_OK")
</pallas_src>

<mosaic_0001>
module attributes {stable_mosaic.version = 11 : i64} {
  func.func @_decoder_layer_kernel(%arg0: i32, %arg1: i32, %arg2: memref<1x16x128xbf16, #tpu.memory_space<vmem>>, %arg3: memref<1x16x128xbf16, #tpu.memory_space<vmem>>, %arg4: memref<1x16x16xbf16, #tpu.memory_space<vmem>>, %arg5: memref<1x1x16xbf16, #tpu.memory_space<vmem>>, %arg6: memref<128x128xbf16, #tpu.memory_space<vmem>>, %arg7: memref<128x128xbf16, #tpu.memory_space<vmem>>, %arg8: memref<128x128xbf16, #tpu.memory_space<vmem>>, %arg9: memref<128x128xbf16, #tpu.memory_space<vmem>>, %arg10: memref<1x128xf32, #tpu.memory_space<vmem>>, %arg11: memref<1x128xf32, #tpu.memory_space<vmem>>, %arg12: memref<128x128xbf16, #tpu.memory_space<vmem>>, %arg13: memref<128x128xbf16, #tpu.memory_space<vmem>>, %arg14: memref<128x128xbf16, #tpu.memory_space<vmem>>, %arg15: memref<128x128xbf16, #tpu.memory_space<vmem>>, %arg16: memref<1x128xf32, #tpu.memory_space<vmem>>, %arg17: memref<1x128xf32, #tpu.memory_space<vmem>>, %arg18: memref<128x256xbf16, #tpu.memory_space<vmem>>, %arg19: memref<1x256xf32, #tpu.memory_space<vmem>>, %arg20: memref<256x128xbf16, #tpu.memory_space<vmem>>, %arg21: memref<1x128xf32, #tpu.memory_space<vmem>>, %arg22: memref<1x128xf32, #tpu.memory_space<vmem>>, %arg23: memref<1x128xf32, #tpu.memory_space<vmem>>, %arg24: memref<1x16x128xbf16, #tpu.memory_space<vmem>>, %arg25: memref<16x128xbf16, #tpu.memory_space<vmem>>, %arg26: memref<16x128xbf16, #tpu.memory_space<vmem>>, %arg27: memref<16x128xbf16, #tpu.memory_space<vmem>>, %arg28: memref<16x128xbf16, #tpu.memory_space<vmem>>) attributes {dimension_semantics = [#tpu.dimension_semantics<parallel>, #tpu.dimension_semantics<arbitrary>], iteration_bounds = array<i64: 2, 1>, scalar_prefetch = 0 : i64, scratch_operands = 4 : i64, tpu.core_type = #tpu.core_type<tc>, window_params = [{transform_indices = @transform_0, window_bounds = array<i64: 1, 16, 128>}, {transform_indices = @transform_1, window_bounds = array<i64: 1, 16, 128>}, {transform_indices = @transform_2, window_bounds = array<i64: 1, 16, 16>}, {transform_indices = @transform_3, window_bounds = array<i64: 1, 1, 16>}, {pipeline_mode = #tpu.pipeline_mode<synchronous>, transform_indices = @transform_4, window_bounds = array<i64: 128, 128>}, {pipeline_mode = #tpu.pipeline_mode<synchronous>, transform_indices = @transform_5, window_bounds = array<i64: 128, 128>}, {pipeline_mode = #tpu.pipeline_mode<synchronous>, transform_indices = @transform_6, window_bounds = array<i64: 128, 128>}, {pipeline_mode = #tpu.pipeline_mode<synchronous>, transform_indices = @transform_7, window_bounds = array<i64: 128, 128>}, {pipeline_mode = #tpu.pipeline_mode<synchronous>, transform_indices = @transform_8, window_bounds = array<i64: 1, 128>}, {pipeline_mode = #tpu.pipeline_mode<synchronous>, transform_indices = @transform_9, window_bounds = array<i64: 1, 128>}, {pipeline_mode = #tpu.pipeline_mode<synchronous>, transform_indices = @transform_10, window_bounds = array<i64: 128, 128>}, {pipeline_mode = #tpu.pipeline_mode<synchronous>, transform_indices = @transform_11, window_bounds = array<i64: 128, 128>}, {pipeline_mode = #tpu.pipeline_mode<synchronous>, transform_indices = @transform_12, window_bounds = array<i64: 128, 128>}, {pipeline_mode = #tpu.pipeline_mode<synchronous>, transform_indices = @transform_13, window_bounds = array<i64: 128, 128>}, {pipeline_mode = #tpu.pipeline_mode<synchronous>, transform_indices = @transform_14, window_bounds = array<i64: 1, 128>}, {pipeline_mode = #tpu.pipeline_mode<synchronous>, transform_indices = @transform_15, window_bounds = array<i64: 1, 128>}, {pipeline_mode = #tpu.pipeline_mode<synchronous>, transform_indices = @transform_16, window_bounds = array<i64: 128, 256>}, {pipeline_mode = #tpu.pipeline_mode<synchronous>, transform_indices = @transform_17, window_bounds = array<i64: 1, 256>}, {pipeline_mode = #tpu.pipeline_mode<synchronous>, transform_indices = @transform_18, window_bounds = array<i64: 256, 128>}, {pipeline_mode = #tpu.pipeline_mode<synchronous>, transform_indices = @transform_19, window_bounds = array<i64: 1, 128>}, {pipeline_mode = #tpu.pipeline_mode<synchronous>, transform_indices = @transform_20, window_bounds = array<i64: 1, 128>}, {pipeline_mode = #tpu.pipeline_mode<synchronous>, transform_indices = @transform_21, window_bounds = array<i64: 1, 128>}, {transform_indices = @transform_22, window_bounds = array<i64: 1, 16, 128>}]} {
    %c0_i32 = arith.constant 0 : i32
    %0 = arith.cmpi eq, %arg1, %c0_i32 : i32
    %1 = arith.extui %0 : i1 to i32
    %c0_i32_0 = arith.constant 0 : i32
    %2 = arith.cmpi ne, %1, %c0_i32_0 : i32
    scf.if %2 {
      %c0_121 = arith.constant 0 : index
      %c0_122 = arith.constant 0 : index
      %c0_123 = arith.constant 0 : index
      %258 = vector.load %arg2[%c0_121, %c0_122, %c0_123] : memref<1x16x128xbf16, #tpu.memory_space<vmem>>, vector<1x16x128xbf16>
      %259 = vector.shape_cast %258 : vector<1x16x128xbf16> to vector<16x128xbf16>
      %c0_124 = arith.constant 0 : index
      %c0_125 = arith.constant 0 : index
      %260 = vector.load %arg7[%c0_124, %c0_125] : memref<128x128xbf16, #tpu.memory_space<vmem>>, vector<128x128xbf16>
      %cst_126 = arith.constant dense<0.000000e+00> : vector<16x128xf32>
      %261 = tpu.matmul %259, %260, %cst_126 {dimension_numbers = #tpu.dot_dimension_numbers<[1], [0], [0], [1], [0, 0, 1, 1], [], []>} : vector<16x128xbf16>, vector<128x128xbf16>, vector<16x128xf32> -> vector<16x128xf32>
      %262 = arith.truncf %261 : vector<16x128xf32> to vector<16x128xbf16>
      %c0_127 = arith.constant 0 : index
      %c0_128 = arith.constant 0 : index
      %263 = vector.load %arg25[%c0_127, %c0_128] : memref<16x128xbf16, #tpu.memory_space<vmem>>, vector<16x128xbf16>
      tpu.vector_store %arg25[%c0_127, %c0_128], %262 {strides = array<i32>} : memref<16x128xbf16, #tpu.memory_space<vmem>>, vector<16x128xbf16>,
      %c0_129 = arith.constant 0 : index
      %c0_130 = arith.constant 0 : index
      %264 = vector.load %arg8[%c0_129, %c0_130] : memref<128x128xbf16, #tpu.memory_space<vmem>>, vector<128x128xbf16>
      %cst_131 = arith.constant dense<0.000000e+00> : vector<16x128xf32>
      %265 = tpu.matmul %259, %264, %cst_131 {dimension_numbers = #tpu.dot_dimension_numbers<[1], [0], [0], [1], [0, 0, 1, 1], [], []>} : vector<16x128xbf16>, vector<128x128xbf16>, vector<16x128xf32> -> vector<16x128xf32>
      %266 = arith.truncf %265 : vector<16x128xf32> to vector<16x128xbf16>
      %c0_132 = arith.constant 0 : index
      %c0_133 = arith.constant 0 : index
      %267 = vector.load %arg26[%c0_132, %c0_133] : memref<16x128xbf16, #tpu.memory_space<vmem>>, vector<16x128xbf16>
      tpu.vector_store %arg26[%c0_132, %c0_133], %266 {strides = array<i32>} : memref<16x128xbf16, #tpu.memory_space<vmem>>, vector<16x128xbf16>,
      %c0_134 = arith.constant 0 : index
      %c0_135 = arith.constant 0 : index
      %c0_136 = arith.constant 0 : index
      %268 = vector.load %arg3[%c0_134, %c0_135, %c0_136] : memref<1x16x128xbf16, #tpu.memory_space<vmem>>, vector<1x16x128xbf16>
      %269 = vector.shape_cast %268 : vector<1x16x128xbf16> to vector<16x128xbf16>
      %c0_137 = arith.constant 0 : index
      %c0_138 = arith.constant 0 : index
      %270 = vector.load %arg13[%c0_137, %c0_138] : memref<128x128xbf16, #tpu.memory_space<vmem>>, vector<128x128xbf16>
      %cst_139 = arith.constant dense<0.000000e+00> : vector<16x128xf32>
      %271 = tpu.matmul %269, %270, %cst_139 {dimension_numbers = #tpu.dot_dimension_numbers<[1], [0], [0], [1], [0, 0, 1, 1], [], []>} : vector<16x128xbf16>, vector<128x128xbf16>, vector<16x128xf32> -> vector<16x128xf32>
      %272 = arith.truncf %271 : vector<16x128xf32> to vector<16x128xbf16>
      %c0_140 = arith.constant 0 : index
      %c0_141 = arith.constant 0 : index
      %273 = vector.load %arg27[%c0_140, %c0_141] : memref<16x128xbf16, #tpu.memory_space<vmem>>, vector<16x128xbf16>
      tpu.vector_store %arg27[%c0_140, %c0_141], %272 {strides = array<i32>} : memref<16x128xbf16, #tpu.memory_space<vmem>>, vector<16x128xbf16>,
      %c0_142 = arith.constant 0 : index
      %c0_143 = arith.constant 0 : index
      %274 = vector.load %arg14[%c0_142, %c0_143] : memref<128x128xbf16, #tpu.memory_space<vmem>>, vector<128x128xbf16>
      %cst_144 = arith.constant dense<0.000000e+00> : vector<16x128xf32>
      %275 = tpu.matmul %269, %274, %cst_144 {dimension_numbers = #tpu.dot_dimension_numbers<[1], [0], [0], [1], [0, 0, 1, 1], [], []>} : vector<16x128xbf16>, vector<128x128xbf16>, vector<16x128xf32> -> vector<16x128xf32>
      %276 = arith.truncf %275 : vector<16x128xf32> to vector<16x128xbf16>
      %c0_145 = arith.constant 0 : index
      %c0_146 = arith.constant 0 : index
      %277 = vector.load %arg28[%c0_145, %c0_146] : memref<16x128xbf16, #tpu.memory_space<vmem>>, vector<16x128xbf16>
      tpu.vector_store %arg28[%c0_145, %c0_146], %276 {strides = array<i32>} : memref<16x128xbf16, #tpu.memory_space<vmem>>, vector<16x128xbf16>,
    } else {
    }
    %c16_i32 = arith.constant 16 : i32
    %3 = arith.muli %arg1, %c16_i32 : i32
    %4 = tpu.assume_multiple %3, 16 : i32
    %c0 = arith.constant 0 : index
    %5 = arith.index_cast %4 : i32 to index
    %c0_1 = arith.constant 0 : index
    %6 = vector.load %arg2[%c0, %5, %c0_1] : memref<1x16x128xbf16, #tpu.memory_space<vmem>>, vector<1x16x128xbf16>
    %7 = vector.shape_cast %6 : vector<1x16x128xbf16> to vector<16x128xbf16>
    %8 = arith.extf %7 : vector<16x128xbf16> to vector<16x128xf32>
    %c0_2 = arith.constant 0 : index
    %c0_3 = arith.constant 0 : index
    %c0_4 = arith.constant 0 : index
    %9 = vector.load %arg4[%c0_2, %c0_3, %c0_4] : memref<1x16x16xbf16, #tpu.memory_space<vmem>>, vector<1x16x16xbf16>
    %10 = vector.shape_cast %9 : vector<1x16x16xbf16> to vector<16x16xbf16>
    %11 = arith.extf %10 : vector<16x16xbf16> to vector<16x16xf32>
    %c0_5 = arith.constant 0 : index
    %c0_6 = arith.constant 0 : index
    %c0_7 = arith.constant 0 : index
    %12 = vector.load %arg5[%c0_5, %c0_6, %c0_7] : memref<1x1x16xbf16, #tpu.memory_space<vmem>>, vector<1x1x16xbf16>
    %13 = vector.shape_cast %12 : vector<1x1x16xbf16> to vector<1x16xbf16>
    %14 = arith.extf %13 : vector<1x16xbf16> to vector<1x16xf32>
    %15 = arith.truncf %8 : vector<16x128xf32> to vector<16x128xbf16>
    %c0_8 = arith.constant 0 : index
    %c0_9 = arith.constant 0 : index
    %16 = vector.load %arg6[%c0_8, %c0_9] : memref<128x128xbf16, #tpu.memory_space<vmem>>, vector<128x128xbf16>
    %cst = arith.constant dense<0.000000e+00> : vector<16x128xf32>
    %17 = tpu.matmul %15, %16, %cst {dimension_numbers = #tpu.dot_dimension_numbers<[1], [0], [0], [1], [0, 0, 1, 1], [], []>} : vector<16x128xbf16>, vector<128x128xbf16>, vector<16x128xf32> -> vector<16x128xf32>
    %18 = arith.truncf %17 : vector<16x128xf32> to vector<16x128xbf16>
    %19 = vector.extract_strided_slice %18 {offsets = [0, 0], sizes = [16, 32], strides = [1, 1]} : vector<16x128xbf16> to vector<16x32xbf16>
    %c0_10 = arith.constant 0 : index
    %c0_11 = arith.constant 0 : index
    %20 = vector.load %arg25[%c0_10, %c0_11] : memref<16x128xbf16, #tpu.memory_space<vmem>>, vector<16x32xbf16>
    %c0_12 = arith.constant 0 : index
    %c0_13 = arith.constant 0 : index
    %21 = vector.load %arg26[%c0_12, %c0_13] : memref<16x128xbf16, #tpu.memory_space<vmem>>, vector<16x32xbf16>
    "tpu.trace_start"() <{level = 10 : i32, message = "qe,ke->qk"}> : () -> ()
    %cst_14 = arith.constant dense<0.000000e+00> : vector<16x16xf32>
    %22 = tpu.matmul %19, %20, %cst_14 {dimension_numbers = #tpu.dot_dimension_numbers<[1], [1], [0], [0], [0, 0, 1, 0], [], []>} : vector<16x32xbf16>, vector<16x32xbf16>, vector<16x16xf32> -> vector<16x16xf32>
    "tpu.trace_stop"() : () -> ()
    %23 = arith.addf %22, %11 : vector<16x16xf32>
    %cst_15 = arith.constant dense<0xFF800000> : vector<16xf32>
    %24 = vector.multi_reduction <maximumf>, %23, %cst_15 [1] : vector<16x16xf32> to vector<16xf32>
    %25 = vector.shape_cast %24 : vector<16xf32> to vector<16x1xf32>
    %26 = vector.broadcast %25 : vector<16x1xf32> to vector<16x16xf32>
    %27 = arith.subf %23, %26 : vector<16x16xf32>
    %28 = math.exp %27 : vector<16x16xf32>
    %cst_16 = arith.constant dense<0.000000e+00> : vector<16xf32>
    %29 = vector.multi_reduction <add>, %28, %cst_16 [1] : vector<16x16xf32> to vector<16xf32>
    %30 = vector.shape_cast %29 : vector<16xf32> to vector<16x1xf32>
    %31 = tpu.reciprocal %30 {approx = true} : vector<16x1xf32> -> vector<16x1xf32>
    %32 = vector.broadcast %31 : vector<16x1xf32> to vector<16x16xf32>
    %33 = arith.mulf %28, %32 : vector<16x16xf32>
    %34 = arith.truncf %33 : vector<16x16xf32> to vector<16x16xbf16>
    %cst_17 = arith.constant dense<0.000000e+00> : vector<16x32xf32>
    %35 = tpu.matmul %34, %21, %cst_17 {dimension_numbers = #tpu.dot_dimension_numbers<[1], [0], [0], [1], [0, 0, 1, 1], [], []>} : vector<16x16xbf16>, vector<16x32xbf16>, vector<16x32xf32> -> vector<16x32xf32>
    %36 = vector.extract_strided_slice %18 {offsets = [0, 32], sizes = [16, 32], strides = [1, 1]} : vector<16x128xbf16> to vector<16x32xbf16>
    %c0_18 = arith.constant 0 : index
    %c32 = arith.constant 32 : index
    %37 = vector.load %arg25[%c0_18, %c32] : memref<16x128xbf16, #tpu.memory_space<vmem>>, vector<16x32xbf16>
    %c0_19 = arith.constant 0 : index
    %c32_20 = arith.constant 32 : index
    %38 = vector.load %arg26[%c0_19, %c32_20] : memref<16x128xbf16, #tpu.memory_space<vmem>>, vector<16x32xbf16>
    "tpu.trace_start"() <{level = 10 : i32, message = "qe,ke->qk"}> : () -> ()
    %cst_21 = arith.constant dense<0.000000e+00> : vector<16x16xf32>
    %39 = tpu.matmul %36, %37, %cst_21 {dimension_numbers = #tpu.dot_dimension_numbers<[1], [1], [0], [0], [0, 0, 1, 0], [], []>} : vector<16x32xbf16>, vector<16x32xbf16>, vector<16x16xf32> -> vector<16x16xf32>
    "tpu.trace_stop"() : () -> ()
    %40 = arith.addf %39, %11 : vector<16x16xf32>
    %cst_22 = arith.constant dense<0xFF800000> : vector<16xf32>
    %41 = vector.multi_reduction <maximumf>, %40, %cst_22 [1] : vector<16x16xf32> to vector<16xf32>
    %42 = vector.shape_cast %41 : vector<16xf32> to vector<16x1xf32>
    %43 = vector.broadcast %42 : vector<16x1xf32> to vector<16x16xf32>
    %44 = arith.subf %40, %43 : vector<16x16xf32>
    %45 = math.exp %44 : vector<16x16xf32>
    %cst_23 = arith.constant dense<0.000000e+00> : vector<16xf32>
    %46 = vector.multi_reduction <add>, %45, %cst_23 [1] : vector<16x16xf32> to vector<16xf32>
    %47 = vector.shape_cast %46 : vector<16xf32> to vector<16x1xf32>
    %48 = tpu.reciprocal %47 {approx = true} : vector<16x1xf32> -> vector<16x1xf32>
    %49 = vector.broadcast %48 : vector<16x1xf32> to vector<16x16xf32>
    %50 = arith.mulf %45, %49 : vector<16x16xf32>
    %51 = arith.truncf %50 : vector<16x16xf32> to vector<16x16xbf16>
    %cst_24 = arith.constant dense<0.000000e+00> : vector<16x32xf32>
    %52 = tpu.matmul %51, %38, %cst_24 {dimension_numbers = #tpu.dot_dimension_numbers<[1], [0], [0], [1], [0, 0, 1, 1], [], []>} : vector<16x16xbf16>, vector<16x32xbf16>, vector<16x32xf32> -> vector<16x32xf32>
    %53 = vector.extract_strided_slice %18 {offsets = [0, 64], sizes = [16, 32], strides = [1, 1]} : vector<16x128xbf16> to vector<16x32xbf16>
    %c0_25 = arith.constant 0 : index
    %c64 = arith.constant 64 : index
    %54 = vector.load %arg25[%c0_25, %c64] : memref<16x128xbf16, #tpu.memory_space<vmem>>, vector<16x32xbf16>
    %c0_26 = arith.constant 0 : index
    %c64_27 = arith.constant 64 : index
    %55 = vector.load %arg26[%c0_26, %c64_27] : memref<16x128xbf16, #tpu.memory_space<vmem>>, vector<16x32xbf16>
    "tpu.trace_start"() <{level = 10 : i32, message = "qe,ke->qk"}> : () -> ()
    %cst_28 = arith.constant dense<0.000000e+00> : vector<16x16xf32>
    %56 = tpu.matmul %53, %54, %cst_28 {dimension_numbers = #tpu.dot_dimension_numbers<[1], [1], [0], [0], [0, 0, 1, 0], [], []>} : vector<16x32xbf16>, vector<16x32xbf16>, vector<16x16xf32> -> vector<16x16xf32>
    "tpu.trace_stop"() : () -> ()
    %57 = arith.addf %56, %11 : vector<16x16xf32>
    %cst_29 = arith.constant dense<0xFF800000> : vector<16xf32>
    %58 = vector.multi_reduction <maximumf>, %57, %cst_29 [1] : vector<16x16xf32> to vector<16xf32>
    %59 = vector.shape_cast %58 : vector<16xf32> to vector<16x1xf32>
    %60 = vector.broadcast %59 : vector<16x1xf32> to vector<16x16xf32>
    %61 = arith.subf %57, %60 : vector<16x16xf32>
    %62 = math.exp %61 : vector<16x16xf32>
    %cst_30 = arith.constant dense<0.000000e+00> : vector<16xf32>
    %63 = vector.multi_reduction <add>, %62, %cst_30 [1] : vector<16x16xf32> to vector<16xf32>
    %64 = vector.shape_cast %63 : vector<16xf32> to vector<16x1xf32>
    %65 = tpu.reciprocal %64 {approx = true} : vector<16x1xf32> -> vector<16x1xf32>
    %66 = vector.broadcast %65 : vector<16x1xf32> to vector<16x16xf32>
    %67 = arith.mulf %62, %66 : vector<16x16xf32>
    %68 = arith.truncf %67 : vector<16x16xf32> to vector<16x16xbf16>
    %cst_31 = arith.constant dense<0.000000e+00> : vector<16x32xf32>
    %69 = tpu.matmul %68, %55, %cst_31 {dimension_numbers = #tpu.dot_dimension_numbers<[1], [0], [0], [1], [0, 0, 1, 1], [], []>} : vector<16x16xbf16>, vector<16x32xbf16>, vector<16x32xf32> -> vector<16x32xf32>
    %70 = vector.extract_strided_slice %18 {offsets = [0, 96], sizes = [16, 32], strides = [1, 1]} : vector<16x128xbf16> to vector<16x32xbf16>
    %c0_32 = arith.constant 0 : index
    %c96 = arith.constant 96 : index
    %71 = vector.load %arg25[%c0_32, %c96] : memref<16x128xbf16, #tpu.memory_space<vmem>>, vector<16x32xbf16>
    %c0_33 = arith.constant 0 : index
    %c96_34 = arith.constant 96 : index
    %72 = vector.load %arg26[%c0_33, %c96_34] : memref<16x128xbf16, #tpu.memory_space<vmem>>, vector<16x32xbf16>
    "tpu.trace_start"() <{level = 10 : i32, message = "qe,ke->qk"}> : () -> ()
    %cst_35 = arith.constant dense<0.000000e+00> : vector<16x16xf32>
    %73 = tpu.matmul %70, %71, %cst_35 {dimension_numbers = #tpu.dot_dimension_numbers<[1], [1], [0], [0], [0, 0, 1, 0], [], []>} : vector<16x32xbf16>, vector<16x32xbf16>, vector<16x16xf32> -> vector<16x16xf32>
    "tpu.trace_stop"() : () -> ()
    %74 = arith.addf %73, %11 : vector<16x16xf32>
    %cst_36 = arith.constant dense<0xFF800000> : vector<16xf32>
    %75 = vector.multi_reduction <maximumf>, %74, %cst_36 [1] : vector<16x16xf32> to vector<16xf32>
    %76 = vector.shape_cast %75 : vector<16xf32> to vector<16x1xf32>
    %77 = vector.broadcast %76 : vector<16x1xf32> to vector<16x16xf32>
    %78 = arith.subf %74, %77 : vector<16x16xf32>
    %79 = math.exp %78 : vector<16x16xf32>
    %cst_37 = arith.constant dense<0.000000e+00> : vector<16xf32>
    %80 = vector.multi_reduction <add>, %79, %cst_37 [1] : vector<16x16xf32> to vector<16xf32>
    %81 = vector.shape_cast %80 : vector<16xf32> to vector<16x1xf32>
    %82 = tpu.reciprocal %81 {approx = true} : vector<16x1xf32> -> vector<16x1xf32>
    %83 = vector.broadcast %82 : vector<16x1xf32> to vector<16x16xf32>
    %84 = arith.mulf %79, %83 : vector<16x16xf32>
    %85 = arith.truncf %84 : vector<16x16xf32> to vector<16x16xbf16>
    %cst_38 = arith.constant dense<0.000000e+00> : vector<16x32xf32>
    %86 = tpu.matmul %85, %72, %cst_38 {dimension_numbers = #tpu.dot_dimension_numbers<[1], [0], [0], [1], [0, 0, 1, 1], [], []>} : vector<16x16xbf16>, vector<16x32xbf16>, vector<16x32xf32> -> vector<16x32xf32>
    %87 = tpu.concatenate %35, %52, %69, %86 in 1 : vector<16x32xf32>, vector<16x32xf32>, vector<16x32xf32>, vector<16x32xf32> -> vector<16x128xf32>
    %88 = arith.truncf %87 : vector<16x128xf32> to vector<16x128xbf16>
    %c0_39 = arith.constant 0 : index
    %c0_40 = arith.constant 0 : index
    %89 = vector.load %arg9[%c0_39, %c0_40] : memref<128x128xbf16, #tpu.memory_space<vmem>>, vector<128x128xbf16>
    %cst_41 = arith.constant dense<0.000000e+00> : vector<16x128xf32>
    %90 = tpu.matmul %88, %89, %cst_41 {dimension_numbers = #tpu.dot_dimension_numbers<[1], [0], [0], [1], [0, 0, 1, 1], [], []>} : vector<16x128xbf16>, vector<128x128xbf16>, vector<16x128xf32> -> vector<16x128xf32>
    %91 = arith.addf %90, %8 : vector<16x128xf32>
    %c0_42 = arith.constant 0 : index
    %c0_43 = arith.constant 0 : index
    %92 = vector.load %arg10[%c0_42, %c0_43] : memref<1x128xf32, #tpu.memory_space<vmem>>, vector<1x128xf32>
    %c0_44 = arith.constant 0 : index
    %c0_45 = arith.constant 0 : index
    %93 = vector.load %arg11[%c0_44, %c0_45] : memref<1x128xf32, #tpu.memory_space<vmem>>, vector<1x128xf32>
    %cst_46 = arith.constant dense<0.000000e+00> : vector<16xf32>
    %94 = vector.multi_reduction <add>, %91, %cst_46 [1] : vector<16x128xf32> to vector<16xf32>
    %95 = vector.shape_cast %94 : vector<16xf32> to vector<16x1xf32>
    %cst_47 = arith.constant 1.280000e+02 : f32
    %96 = vector.broadcast %cst_47 : f32 to vector<16x1xf32>
    %97 = arith.divf %95, %96 : vector<16x1xf32>
    %98 = vector.broadcast %97 : vector<16x1xf32> to vector<16x128xf32>
    %99 = arith.subf %91, %98 : vector<16x128xf32>
    %100 = arith.mulf %99, %99 : vector<16x128xf32>
    %cst_48 = arith.constant dense<0.000000e+00> : vector<16xf32>
    %101 = vector.multi_reduction <add>, %100, %cst_48 [1] : vector<16x128xf32> to vector<16xf32>
    %102 = vector.shape_cast %101 : vector<16xf32> to vector<16x1xf32>
    %cst_49 = arith.constant 1.280000e+02 : f32
    %103 = vector.broadcast %cst_49 : f32 to vector<16x1xf32>
    %104 = arith.divf %102, %103 : vector<16x1xf32>
    %cst_50 = arith.constant 9.99999997E-7 : f32
    %105 = vector.broadcast %cst_50 : f32 to vector<16x1xf32>
    %106 = arith.addf %104, %105 : vector<16x1xf32>
    %107 = math.rsqrt %106 : vector<16x1xf32>
    %108 = vector.broadcast %107 : vector<16x1xf32> to vector<16x128xf32>
    %109 = arith.mulf %99, %108 : vector<16x128xf32>
    %110 = vector.broadcast %92 : vector<1x128xf32> to vector<16x128xf32>
    %111 = arith.mulf %109, %110 : vector<16x128xf32>
    %112 = vector.broadcast %93 : vector<1x128xf32> to vector<16x128xf32>
    %113 = arith.addf %111, %112 : vector<16x128xf32>
    %114 = arith.truncf %113 : vector<16x128xf32> to vector<16x128xbf16>
    %c0_51 = arith.constant 0 : index
    %c0_52 = arith.constant 0 : index
    %115 = vector.load %arg12[%c0_51, %c0_52] : memref<128x128xbf16, #tpu.memory_space<vmem>>, vector<128x128xbf16>
    %cst_53 = arith.constant dense<0.000000e+00> : vector<16x128xf32>
    %116 = tpu.matmul %114, %115, %cst_53 {dimension_numbers = #tpu.dot_dimension_numbers<[1], [0], [0], [1], [0, 0, 1, 1], [], []>} : vector<16x128xbf16>, vector<128x128xbf16>, vector<16x128xf32> -> vector<16x128xf32>
    %117 = arith.truncf %116 : vector<16x128xf32> to vector<16x128xbf16>
    %118 = vector.extract_strided_slice %117 {offsets = [0, 0], sizes = [16, 32], strides = [1, 1]} : vector<16x128xbf16> to vector<16x32xbf16>
    %c0_54 = arith.constant 0 : index
    %c0_55 = arith.constant 0 : index
    %119 = vector.load %arg27[%c0_54, %c0_55] : memref<16x128xbf16, #tpu.memory_space<vmem>>, vector<16x32xbf16>
    %c0_56 = arith.constant 0 : index
    %c0_57 = arith.constant 0 : index
    %120 = vector.load %arg28[%c0_56, %c0_57] : memref<16x128xbf16, #tpu.memory_space<vmem>>, vector<16x32xbf16>
    "tpu.trace_start"() <{level = 10 : i32, message = "qe,ke->qk"}> : () -> ()
    %cst_58 = arith.constant dense<0.000000e+00> : vector<16x16xf32>
    %121 = tpu.matmul %118, %119, %cst_58 {dimension_numbers = #tpu.dot_dimension_numbers<[1], [1], [0], [0], [0, 0, 1, 0], [], []>} : vector<16x32xbf16>, vector<16x32xbf16>, vector<16x16xf32> -> vector<16x16xf32>
    "tpu.trace_stop"() : () -> ()
    %122 = vector.broadcast %14 : vector<1x16xf32> to vector<16x16xf32>
    %123 = arith.addf %121, %122 : vector<16x16xf32>
    %cst_59 = arith.constant dense<0xFF800000> : vector<16xf32>
    %124 = vector.multi_reduction <maximumf>, %123, %cst_59 [1] : vector<16x16xf32> to vector<16xf32>
    %125 = vector.shape_cast %124 : vector<16xf32> to vector<16x1xf32>
    %126 = vector.broadcast %125 : vector<16x1xf32> to vector<16x16xf32>
    %127 = arith.subf %123, %126 : vector<16x16xf32>
    %128 = math.exp %127 : vector<16x16xf32>
    %cst_60 = arith.constant dense<0.000000e+00> : vector<16xf32>
    %129 = vector.multi_reduction <add>, %128, %cst_60 [1] : vector<16x16xf32> to vector<16xf32>
    %130 = vector.shape_cast %129 : vector<16xf32> to vector<16x1xf32>
    %131 = tpu.reciprocal %130 {approx = true} : vector<16x1xf32> -> vector<16x1xf32>
    %132 = vector.broadcast %131 : vector<16x1xf32> to vector<16x16xf32>
    %133 = arith.mulf %128, %132 : vector<16x16xf32>
    %134 = arith.truncf %133 : vector<16x16xf32> to vector<16x16xbf16>
    %cst_61 = arith.constant dense<0.000000e+00> : vector<16x32xf32>
    %135 = tpu.matmul %134, %120, %cst_61 {dimension_numbers = #tpu.dot_dimension_numbers<[1], [0], [0], [1], [0, 0, 1, 1], [], []>} : vector<16x16xbf16>, vector<16x32xbf16>, vector<16x32xf32> -> vector<16x32xf32>
    %136 = vector.extract_strided_slice %117 {offsets = [0, 32], sizes = [16, 32], strides = [1, 1]} : vector<16x128xbf16> to vector<16x32xbf16>
    %c0_62 = arith.constant 0 : index
    %c32_63 = arith.constant 32 : index
    %137 = vector.load %arg27[%c0_62, %c32_63] : memref<16x128xbf16, #tpu.memory_space<vmem>>, vector<16x32xbf16>
    %c0_64 = arith.constant 0 : index
    %c32_65 = arith.constant 32 : index
    %138 = vector.load %arg28[%c0_64, %c32_65] : memref<16x128xbf16, #tpu.memory_space<vmem>>, vector<16x32xbf16>
    "tpu.trace_start"() <{level = 10 : i32, message = "qe,ke->qk"}> : () -> ()
    %cst_66 = arith.constant dense<0.000000e+00> : vector<16x16xf32>
    %139 = tpu.matmul %136, %137, %cst_66 {dimension_numbers = #tpu.dot_dimension_numbers<[1], [1], [0], [0], [0, 0, 1, 0], [], []>} : vector<16x32xbf16>, vector<16x32xbf16>, vector<16x16xf32> -> vector<16x16xf32>
    "tpu.trace_stop"() : () -> ()
    %140 = vector.broadcast %14 : vector<1x16xf32> to vector<16x16xf32>
    %141 = arith.addf %139, %140 : vector<16x16xf32>
    %cst_67 = arith.constant dense<0xFF800000> : vector<16xf32>
    %142 = vector.multi_reduction <maximumf>, %141, %cst_67 [1] : vector<16x16xf32> to vector<16xf32>
    %143 = vector.shape_cast %142 : vector<16xf32> to vector<16x1xf32>
    %144 = vector.broadcast %143 : vector<16x1xf32> to vector<16x16xf32>
    %145 = arith.subf %141, %144 : vector<16x16xf32>
    %146 = math.exp %145 : vector<16x16xf32>
    %cst_68 = arith.constant dense<0.000000e+00> : vector<16xf32>
    %147 = vector.multi_reduction <add>, %146, %cst_68 [1] : vector<16x16xf32> to vector<16xf32>
    %148 = vector.shape_cast %147 : vector<16xf32> to vector<16x1xf32>
    %149 = tpu.reciprocal %148 {approx = true} : vector<16x1xf32> -> vector<16x1xf32>
    %150 = vector.broadcast %149 : vector<16x1xf32> to vector<16x16xf32>
    %151 = arith.mulf %146, %150 : vector<16x16xf32>
    %152 = arith.truncf %151 : vector<16x16xf32> to vector<16x16xbf16>
    %cst_69 = arith.constant dense<0.000000e+00> : vector<16x32xf32>
    %153 = tpu.matmul %152, %138, %cst_69 {dimension_numbers = #tpu.dot_dimension_numbers<[1], [0], [0], [1], [0, 0, 1, 1], [], []>} : vector<16x16xbf16>, vector<16x32xbf16>, vector<16x32xf32> -> vector<16x32xf32>
    %154 = vector.extract_strided_slice %117 {offsets = [0, 64], sizes = [16, 32], strides = [1, 1]} : vector<16x128xbf16> to vector<16x32xbf16>
    %c0_70 = arith.constant 0 : index
    %c64_71 = arith.constant 64 : index
    %155 = vector.load %arg27[%c0_70, %c64_71] : memref<16x128xbf16, #tpu.memory_space<vmem>>, vector<16x32xbf16>
    %c0_72 = arith.constant 0 : index
    %c64_73 = arith.constant 64 : index
    %156 = vector.load %arg28[%c0_72, %c64_73] : memref<16x128xbf16, #tpu.memory_space<vmem>>, vector<16x32xbf16>
    "tpu.trace_start"() <{level = 10 : i32, message = "qe,ke->qk"}> : () -> ()
    %cst_74 = arith.constant dense<0.000000e+00> : vector<16x16xf32>
    %157 = tpu.matmul %154, %155, %cst_74 {dimension_numbers = #tpu.dot_dimension_numbers<[1], [1], [0], [0], [0, 0, 1, 0], [], []>} : vector<16x32xbf16>, vector<16x32xbf16>, vector<16x16xf32> -> vector<16x16xf32>
    "tpu.trace_stop"() : () -> ()
    %158 = vector.broadcast %14 : vector<1x16xf32> to vector<16x16xf32>
    %159 = arith.addf %157, %158 : vector<16x16xf32>
    %cst_75 = arith.constant dense<0xFF800000> : vector<16xf32>
    %160 = vector.multi_reduction <maximumf>, %159, %cst_75 [1] : vector<16x16xf32> to vector<16xf32>
    %161 = vector.shape_cast %160 : vector<16xf32> to vector<16x1xf32>
    %162 = vector.broadcast %161 : vector<16x1xf32> to vector<16x16xf32>
    %163 = arith.subf %159, %162 : vector<16x16xf32>
    %164 = math.exp %163 : vector<16x16xf32>
    %cst_76 = arith.constant dense<0.000000e+00> : vector<16xf32>
    %165 = vector.multi_reduction <add>, %164, %cst_76 [1] : vector<16x16xf32> to vector<16xf32>
    %166 = vector.shape_cast %165 : vector<16xf32> to vector<16x1xf32>
    %167 = tpu.reciprocal %166 {approx = true} : vector<16x1xf32> -> vector<16x1xf32>
    %168 = vector.broadcast %167 : vector<16x1xf32> to vector<16x16xf32>
    %169 = arith.mulf %164, %168 : vector<16x16xf32>
    %170 = arith.truncf %169 : vector<16x16xf32> to vector<16x16xbf16>
    %cst_77 = arith.constant dense<0.000000e+00> : vector<16x32xf32>
    %171 = tpu.matmul %170, %156, %cst_77 {dimension_numbers = #tpu.dot_dimension_numbers<[1], [0], [0], [1], [0, 0, 1, 1], [], []>} : vector<16x16xbf16>, vector<16x32xbf16>, vector<16x32xf32> -> vector<16x32xf32>
    %172 = vector.extract_strided_slice %117 {offsets = [0, 96], sizes = [16, 32], strides = [1, 1]} : vector<16x128xbf16> to vector<16x32xbf16>
    %c0_78 = arith.constant 0 : index
    %c96_79 = arith.constant 96 : index
    %173 = vector.load %arg27[%c0_78, %c96_79] : memref<16x128xbf16, #tpu.memory_space<vmem>>, vector<16x32xbf16>
    %c0_80 = arith.constant 0 : index
    %c96_81 = arith.constant 96 : index
    %174 = vector.load %arg28[%c0_80, %c96_81] : memref<16x128xbf16, #tpu.memory_space<vmem>>, vector<16x32xbf16>
    "tpu.trace_start"() <{level = 10 : i32, message = "qe,ke->qk"}> : () -> ()
    %cst_82 = arith.constant dense<0.000000e+00> : vector<16x16xf32>
    %175 = tpu.matmul %172, %173, %cst_82 {dimension_numbers = #tpu.dot_dimension_numbers<[1], [1], [0], [0], [0, 0, 1, 0], [], []>} : vector<16x32xbf16>, vector<16x32xbf16>, vector<16x16xf32> -> vector<16x16xf32>
    "tpu.trace_stop"() : () -> ()
    %176 = vector.broadcast %14 : vector<1x16xf32> to vector<16x16xf32>
    %177 = arith.addf %175, %176 : vector<16x16xf32>
    %cst_83 = arith.constant dense<0xFF800000> : vector<16xf32>
    %178 = vector.multi_reduction <maximumf>, %177, %cst_83 [1] : vector<16x16xf32> to vector<16xf32>
    %179 = vector.shape_cast %178 : vector<16xf32> to vector<16x1xf32>
    %180 = vector.broadcast %179 : vector<16x1xf32> to vector<16x16xf32>
    %181 = arith.subf %177, %180 : vector<16x16xf32>
    %182 = math.exp %181 : vector<16x16xf32>
    %cst_84 = arith.constant dense<0.000000e+00> : vector<16xf32>
    %183 = vector.multi_reduction <add>, %182, %cst_84 [1] : vector<16x16xf32> to vector<16xf32>
    %184 = vector.shape_cast %183 : vector<16xf32> to vector<16x1xf32>
    %185 = tpu.reciprocal %184 {approx = true} : vector<16x1xf32> -> vector<16x1xf32>
    %186 = vector.broadcast %185 : vector<16x1xf32> to vector<16x16xf32>
    %187 = arith.mulf %182, %186 : vector<16x16xf32>
    %188 = arith.truncf %187 : vector<16x16xf32> to vector<16x16xbf16>
    %cst_85 = arith.constant dense<0.000000e+00> : vector<16x32xf32>
    %189 = tpu.matmul %188, %174, %cst_85 {dimension_numbers = #tpu.dot_dimension_numbers<[1], [0], [0], [1], [0, 0, 1, 1], [], []>} : vector<16x16xbf16>, vector<16x32xbf16>, vector<16x32xf32> -> vector<16x32xf32>
    %190 = tpu.concatenate %135, %153, %171, %189 in 1 : vector<16x32xf32>, vector<16x32xf32>, vector<16x32xf32>, vector<16x32xf32> -> vector<16x128xf32>
    %191 = arith.truncf %190 : vector<16x128xf32> to vector<16x128xbf16>
    %c0_86 = arith.constant 0 : index
    %c0_87 = arith.constant 0 : index
    %192 = vector.load %arg15[%c0_86, %c0_87] : memref<128x128xbf16, #tpu.memory_space<vmem>>, vector<128x128xbf16>
    %cst_88 = arith.constant dense<0.000000e+00> : vector<16x128xf32>
    %193 = tpu.matmul %191, %192, %cst_88 {dimension_numbers = #tpu.dot_dimension_numbers<[1], [0], [0], [1], [0, 0, 1, 1], [], []>} : vector<16x128xbf16>, vector<128x128xbf16>, vector<16x128xf32> -> vector<16x128xf32>
    %194 = arith.addf %193, %113 : vector<16x128xf32>
    %c0_89 = arith.constant 0 : index
    %c0_90 = arith.constant 0 : index
    %195 = vector.load %arg16[%c0_89, %c0_90] : memref<1x128xf32, #tpu.memory_space<vmem>>, vector<1x128xf32>
    %c0_91 = arith.constant 0 : index
    %c0_92 = arith.constant 0 : index
    %196 = vector.load %arg17[%c0_91, %c0_92] : memref<1x128xf32, #tpu.memory_space<vmem>>, vector<1x128xf32>
    %cst_93 = arith.constant dense<0.000000e+00> : vector<16xf32>
    %197 = vector.multi_reduction <add>, %194, %cst_93 [1] : vector<16x128xf32> to vector<16xf32>
    %198 = vector.shape_cast %197 : vector<16xf32> to vector<16x1xf32>
    %cst_94 = arith.constant 1.280000e+02 : f32
    %199 = vector.broadcast %cst_94 : f32 to vector<16x1xf32>
    %200 = arith.divf %198, %199 : vector<16x1xf32>
    %201 = vector.broadcast %200 : vector<16x1xf32> to vector<16x128xf32>
    %202 = arith.subf %194, %201 : vector<16x128xf32>
    %203 = arith.mulf %202, %202 : vector<16x128xf32>
    %cst_95 = arith.constant dense<0.000000e+00> : vector<16xf32>
    %204 = vector.multi_reduction <add>, %203, %cst_95 [1] : vector<16x128xf32> to vector<16xf32>
    %205 = vector.shape_cast %204 : vector<16xf32> to vector<16x1xf32>
    %cst_96 = arith.constant 1.280000e+02 : f32
    %206 = vector.broadcast %cst_96 : f32 to vector<16x1xf32>
    %207 = arith.divf %205, %206 : vector<16x1xf32>
    %cst_97 = arith.constant 9.99999997E-7 : f32
    %208 = vector.broadcast %cst_97 : f32 to vector<16x1xf32>
    %209 = arith.addf %207, %208 : vector<16x1xf32>
    %210 = math.rsqrt %209 : vector<16x1xf32>
    %211 = vector.broadcast %210 : vector<16x1xf32> to vector<16x128xf32>
    %212 = arith.mulf %202, %211 : vector<16x128xf32>
    %213 = vector.broadcast %195 : vector<1x128xf32> to vector<16x128xf32>
    %214 = arith.mulf %212, %213 : vector<16x128xf32>
    %215 = vector.broadcast %196 : vector<1x128xf32> to vector<16x128xf32>
    %216 = arith.addf %214, %215 : vector<16x128xf32>
    %217 = arith.truncf %216 : vector<16x128xf32> to vector<16x128xbf16>
    %c0_98 = arith.constant 0 : index
    %c0_99 = arith.constant 0 : index
    %218 = vector.load %arg18[%c0_98, %c0_99] : memref<128x256xbf16, #tpu.memory_space<vmem>>, vector<128x256xbf16>
    %cst_100 = arith.constant dense<0.000000e+00> : vector<16x256xf32>
    %219 = tpu.matmul %217, %218, %cst_100 {dimension_numbers = #tpu.dot_dimension_numbers<[1], [0], [0], [1], [0, 0, 1, 1], [], []>} : vector<16x128xbf16>, vector<128x256xbf16>, vector<16x256xf32> -> vector<16x256xf32>
    %c0_101 = arith.constant 0 : index
    %c0_102 = arith.constant 0 : index
    %220 = vector.load %arg19[%c0_101, %c0_102] : memref<1x256xf32, #tpu.memory_space<vmem>>, vector<1x256xf32>
    %221 = vector.broadcast %220 : vector<1x256xf32> to vector<16x256xf32>
    %222 = arith.addf %219, %221 : vector<16x256xf32>
    %cst_103 = arith.constant 0.000000e+00 : f32
    %223 = vector.broadcast %cst_103 : f32 to vector<16x256xf32>
    %224 = arith.maximumf %222, %223 : vector<16x256xf32>
    %225 = arith.truncf %224 : vector<16x256xf32> to vector<16x256xbf16>
    %c0_104 = arith.constant 0 : index
    %c0_105 = arith.constant 0 : index
    %226 = vector.load %arg20[%c0_104, %c0_105] : memref<256x128xbf16, #tpu.memory_space<vmem>>, vector<256x128xbf16>
    %cst_106 = arith.constant dense<0.000000e+00> : vector<16x128xf32>
    %227 = tpu.matmul %225, %226, %cst_106 {dimension_numbers = #tpu.dot_dimension_numbers<[1], [0], [0], [1], [0, 0, 1, 1], [], []>} : vector<16x256xbf16>, vector<256x128xbf16>, vector<16x128xf32> -> vector<16x128xf32>
    %c0_107 = arith.constant 0 : index
    %c0_108 = arith.constant 0 : index
    %228 = vector.load %arg21[%c0_107, %c0_108] : memref<1x128xf32, #tpu.memory_space<vmem>>, vector<1x128xf32>
    %229 = vector.broadcast %228 : vector<1x128xf32> to vector<16x128xf32>
    %230 = arith.addf %227, %229 : vector<16x128xf32>
    %231 = arith.addf %230, %216 : vector<16x128xf32>
    %c0_109 = arith.constant 0 : index
    %c0_110 = arith.constant 0 : index
    %232 = vector.load %arg22[%c0_109, %c0_110] : memref<1x128xf32, #tpu.memory_space<vmem>>, vector<1x128xf32>
    %c0_111 = arith.constant 0 : index
    %c0_112 = arith.constant 0 : index
    %233 = vector.load %arg23[%c0_111, %c0_112] : memref<1x128xf32, #tpu.memory_space<vmem>>, vector<1x128xf32>
    %cst_113 = arith.constant dense<0.000000e+00> : vector<16xf32>
    %234 = vector.multi_reduction <add>, %231, %cst_113 [1] : vector<16x128xf32> to vector<16xf32>
    %235 = vector.shape_cast %234 : vector<16xf32> to vector<16x1xf32>
    %cst_114 = arith.constant 1.280000e+02 : f32
    %236 = vector.broadcast %cst_114 : f32 to vector<16x1xf32>
    %237 = arith.divf %235, %236 : vector<16x1xf32>
    %238 = vector.broadcast %237 : vector<16x1xf32> to vector<16x128xf32>
    %239 = arith.subf %231, %238 : vector<16x128xf32>
    %240 = arith.mulf %239, %239 : vector<16x128xf32>
    %cst_115 = arith.constant dense<0.000000e+00> : vector<16xf32>
    %241 = vector.multi_reduction <add>, %240, %cst_115 [1] : vector<16x128xf32> to vector<16xf32>
    %242 = vector.shape_cast %241 : vector<16xf32> to vector<16x1xf32>
    %cst_116 = arith.constant 1.280000e+02 : f32
    %243 = vector.broadcast %cst_116 : f32 to vector<16x1xf32>
    %244 = arith.divf %242, %243 : vector<16x1xf32>
    %cst_117 = arith.constant 9.99999997E-7 : f32
    %245 = vector.broadcast %cst_117 : f32 to vector<16x1xf32>
    %246 = arith.addf %244, %245 : vector<16x1xf32>
    %247 = math.rsqrt %246 : vector<16x1xf32>
    %248 = vector.broadcast %247 : vector<16x1xf32> to vector<16x128xf32>
    %249 = arith.mulf %239, %248 : vector<16x128xf32>
    %250 = vector.broadcast %232 : vector<1x128xf32> to vector<16x128xf32>
    %251 = arith.mulf %249, %250 : vector<16x128xf32>
    %252 = vector.broadcast %233 : vector<1x128xf32> to vector<16x128xf32>
    %253 = arith.addf %251, %252 : vector<16x128xf32>
    %254 = arith.truncf %253 : vector<16x128xf32> to vector<16x128xbf16>
    %c0_118 = arith.constant 0 : index
    %c0_119 = arith.constant 0 : index
    %c0_120 = arith.constant 0 : index
    %255 = vector.load %arg24[%c0_118, %c0_119, %c0_120] : memref<1x16x128xbf16, #tpu.memory_space<vmem>>, vector<1x16x128xbf16>
    %256 = vector.shape_cast %255 : vector<1x16x128xbf16> to vector<16x128xbf16>
    %257 = vector.shape_cast %254 : vector<16x128xbf16> to vector<1x16x128xbf16>
    tpu.vector_store %arg24[%c0_118, %c0_119, %c0_120], %257 {strides = array<i32>} : memref<1x16x128xbf16, #tpu.memory_space<vmem>>, vector<1x16x128xbf16>,
    return
  }
  func.func @transform_0(%arg0: i32, %arg1: i32) -> (i32, i32, i32) {
    %c0_i32 = arith.constant 0 : i32
    %c0_i32_0 = arith.constant 0 : i32
    %c0_i32_1 = arith.constant 0 : i32
    return %arg0, %c0_i32, %c0_i32_0 : i32, i32, i32
  }
  func.func @transform_1(%arg0: i32, %arg1: i32) -> (i32, i32, i32) {
    %c0_i32 = arith.constant 0 : i32
    %c0_i32_0 = arith.constant 0 : i32
    %c0_i32_1 = arith.constant 0 : i32
    return %arg0, %c0_i32, %c0_i32_0 : i32, i32, i32
  }
  func.func @transform_2(%arg0: i32, %arg1: i32) -> (i32, i32, i32) {
    %c0_i32 = arith.constant 0 : i32
    %c0_i32_0 = arith.constant 0 : i32
    return %arg0, %arg1, %c0_i32 : i32, i32, i32
  }
  func.func @transform_3(%arg0: i32, %arg1: i32) -> (i32, i32, i32) {
    %c0_i32 = arith.constant 0 : i32
    %c0_i32_0 = arith.constant 0 : i32
    %c0_i32_1 = arith.constant 0 : i32
    return %arg0, %c0_i32, %c0_i32_0 : i32, i32, i32
  }
  func.func @transform_4(%arg0: i32, %arg1: i32) -> (i32, i32) {
    %c0_i32 = arith.constant 0 : i32
    %c0_i32_0 = arith.constant 0 : i32
    %c0_i32_1 = arith.constant 0 : i32
    return %c0_i32, %c0_i32_0 : i32, i32
  }
  func.func @transform_5(%arg0: i32, %arg1: i32) -> (i32, i32) {
    %c0_i32 = arith.constant 0 : i32
    %c0_i32_0 = arith.constant 0 : i32
    %c0_i32_1 = arith.constant 0 : i32
    return %c0_i32, %c0_i32_0 : i32, i32
  }
  func.func @transform_6(%arg0: i32, %arg1: i32) -> (i32, i32) {
    %c0_i32 = arith.constant 0 : i32
    %c0_i32_0 = arith.constant 0 : i32
    %c0_i32_1 = arith.constant 0 : i32
    return %c0_i32, %c0_i32_0 : i32, i32
  }
  func.func @transform_7(%arg0: i32, %arg1: i32) -> (i32, i32) {
    %c0_i32 = arith.constant 0 : i32
    %c0_i32_0 = arith.constant 0 : i32
    %c0_i32_1 = arith.constant 0 : i32
    return %c0_i32, %c0_i32_0 : i32, i32
  }
  func.func @transform_8(%arg0: i32, %arg1: i32) -> (i32, i32) {
    %c0_i32 = arith.constant 0 : i32
    %c0_i32_0 = arith.constant 0 : i32
    %c0_i32_1 = arith.constant 0 : i32
    return %c0_i32, %c0_i32_0 : i32, i32
  }
  func.func @transform_9(%arg0: i32, %arg1: i32) -> (i32, i32) {
    %c0_i32 = arith.constant 0 : i32
    %c0_i32_0 = arith.constant 0 : i32
    %c0_i32_1 = arith.constant 0 : i32
    return %c0_i32, %c0_i32_0 : i32, i32
  }
  func.func @transform_10(%arg0: i32, %arg1: i32) -> (i32, i32) {
    %c0_i32 = arith.constant 0 : i32
    %c0_i32_0 = arith.constant 0 : i32
    %c0_i32_1 = arith.constant 0 : i32
    return %c0_i32, %c0_i32_0 : i32, i32
  }
  func.func @transform_11(%arg0: i32, %arg1: i32) -> (i32, i32) {
    %c0_i32 = arith.constant 0 : i32
    %c0_i32_0 = arith.constant 0 : i32
    %c0_i32_1 = arith.constant 0 : i32
    return %c0_i32, %c0_i32_0 : i32, i32
  }
  func.func @transform_12(%arg0: i32, %arg1: i32) -> (i32, i32) {
    %c0_i32 = arith.constant 0 : i32
    %c0_i32_0 = arith.constant 0 : i32
    %c0_i32_1 = arith.constant 0 : i32
    return %c0_i32, %c0_i32_0 : i32, i32
  }
  func.func @transform_13(%arg0: i32, %arg1: i32) -> (i32, i32) {
    %c0_i32 = arith.constant 0 : i32
    %c0_i32_0 = arith.constant 0 : i32
    %c0_i32_1 = arith.constant 0 : i32
    return %c0_i32, %c0_i32_0 : i32, i32
  }
  func.func @transform_14(%arg0: i32, %arg1: i32) -> (i32, i32) {
    %c0_i32 = arith.constant 0 : i32
    %c0_i32_0 = arith.constant 0 : i32
    %c0_i32_1 = arith.constant 0 : i32
    return %c0_i32, %c0_i32_0 : i32, i32
  }
  func.func @transform_15(%arg0: i32, %arg1: i32) -> (i32, i32) {
    %c0_i32 = arith.constant 0 : i32
    %c0_i32_0 = arith.constant 0 : i32
    %c0_i32_1 = arith.constant 0 : i32
    return %c0_i32, %c0_i32_0 : i32, i32
  }
  func.func @transform_16(%arg0: i32, %arg1: i32) -> (i32, i32) {
    %c0_i32 = arith.constant 0 : i32
    %c0_i32_0 = arith.constant 0 : i32
    %c0_i32_1 = arith.constant 0 : i32
    return %c0_i32, %c0_i32_0 : i32, i32
  }
  func.func @transform_17(%arg0: i32, %arg1: i32) -> (i32, i32) {
    %c0_i32 = arith.constant 0 : i32
    %c0_i32_0 = arith.constant 0 : i32
    %c0_i32_1 = arith.constant 0 : i32
    return %c0_i32, %c0_i32_0 : i32, i32
  }
  func.func @transform_18(%arg0: i32, %arg1: i32) -> (i32, i32) {
    %c0_i32 = arith.constant 0 : i32
    %c0_i32_0 = arith.constant 0 : i32
    %c0_i32_1 = arith.constant 0 : i32
    return %c0_i32, %c0_i32_0 : i32, i32
  }
  func.func @transform_19(%arg0: i32, %arg1: i32) -> (i32, i32) {
    %c0_i32 = arith.constant 0 : i32
    %c0_i32_0 = arith.constant 0 : i32
    %c0_i32_1 = arith.constant 0 : i32
    return %c0_i32, %c0_i32_0 : i32, i32
  }
  func.func @transform_20(%arg0: i32, %arg1: i32) -> (i32, i32) {
    %c0_i32 = arith.constant 0 : i32
    %c0_i32_0 = arith.constant 0 : i32
    %c0_i32_1 = arith.constant 0 : i32
    return %c0_i32, %c0_i32_0 : i32, i32
  }
  func.func @transform_21(%arg0: i32, %arg1: i32) -> (i32, i32) {
    %c0_i32 = arith.constant 0 : i32
    %c0_i32_0 = arith.constant 0 : i32
    %c0_i32_1 = arith.constant 0 : i32
    return %c0_i32, %c0_i32_0 : i32, i32
  }
  func.func @transform_22(%arg0: i32, %arg1: i32) -> (i32, i32, i32) {
    %c0_i32 = arith.constant 0 : i32
    %c0_i32_0 = arith.constant 0 : i32
    return %arg0, %arg1, %c0_i32 : i32, i32, i32
  }
}

module attributes {stable_mosaic.version = 11 : i64} {
  func.func @_decoder_layer_kernel(%arg0: i32, %arg1: i32, %arg2: memref<1x16x128xbf16, #tpu.memory_space<vmem>>, %arg3: memref<1x16x128xbf16, #tpu.memory_space<vmem>>, %arg4: memref<1x16x16xbf16, #tpu.memory_space<vmem>>, %arg5: memref<1x1x16xbf16, #tpu.memory_space<vmem>>, %arg6: memref<128x128xbf16, #tpu.memory_space<vmem>>, %arg7: memref<128x128xbf16, #tpu.memory_space<vmem>>, %arg8: memref<128x128xbf16, #tpu.memory_space<vmem>>, %arg9: memref<128x128xbf16, #tpu.memory_space<vmem>>, %arg10: memref<1x128xf32, #tpu.memory_space<vmem>>, %arg11: memref<1x128xf32, #tpu.memory_space<vmem>>, %arg12: memref<128x128xbf16, #tpu.memory_space<vmem>>, %arg13: memref<128x128xbf16, #tpu.memory_space<vmem>>, %arg14: memref<128x128xbf16, #tpu.memory_space<vmem>>, %arg15: memref<128x128xbf16, #tpu.memory_space<vmem>>, %arg16: memref<1x128xf32, #tpu.memory_space<vmem>>, %arg17: memref<1x128xf32, #tpu.memory_space<vmem>>, %arg18: memref<128x256xbf16, #tpu.memory_space<vmem>>, %arg19: memref<1x256xf32, #tpu.memory_space<vmem>>, %arg20: memref<256x128xbf16, #tpu.memory_space<vmem>>, %arg21: memref<1x128xf32, #tpu.memory_space<vmem>>, %arg22: memref<1x128xf32, #tpu.memory_space<vmem>>, %arg23: memref<1x128xf32, #tpu.memory_space<vmem>>, %arg24: memref<1x16x128xbf16, #tpu.memory_space<vmem>>, %arg25: memref<16x128xbf16, #tpu.memory_space<vmem>>, %arg26: memref<16x128xbf16, #tpu.memory_space<vmem>>, %arg27: memref<16x128xbf16, #tpu.memory_space<vmem>>, %arg28: memref<16x128xbf16, #tpu.memory_space<vmem>>) attributes {dimension_semantics = [#tpu.dimension_semantics<parallel>, #tpu.dimension_semantics<arbitrary>], iteration_bounds = array<i64: 2, 1>, scalar_prefetch = 0 : i64, scratch_operands = 4 : i64, tpu.core_type = #tpu.core_type<tc>, window_params = [{transform_indices = @transform_0, window_bounds = array<i64: 1, 16, 128>}, {transform_indices = @transform_1, window_bounds = array<i64: 1, 16, 128>}, {transform_indices = @transform_2, window_bounds = array<i64: 1, 16, 16>}, {transform_indices = @transform_3, window_bounds = array<i64: 1, 1, 16>}, {pipeline_mode = #tpu.pipeline_mode<synchronous>, transform_indices = @transform_4, window_bounds = array<i64: 128, 128>}, {pipeline_mode = #tpu.pipeline_mode<synchronous>, transform_indices = @transform_5, window_bounds = array<i64: 128, 128>}, {pipeline_mode = #tpu.pipeline_mode<synchronous>, transform_indices = @transform_6, window_bounds = array<i64: 128, 128>}, {pipeline_mode = #tpu.pipeline_mode<synchronous>, transform_indices = @transform_7, window_bounds = array<i64: 128, 128>}, {pipeline_mode = #tpu.pipeline_mode<synchronous>, transform_indices = @transform_8, window_bounds = array<i64: 1, 128>}, {pipeline_mode = #tpu.pipeline_mode<synchronous>, transform_indices = @transform_9, window_bounds = array<i64: 1, 128>}, {pipeline_mode = #tpu.pipeline_mode<synchronous>, transform_indices = @transform_10, window_bounds = array<i64: 128, 128>}, {pipeline_mode = #tpu.pipeline_mode<synchronous>, transform_indices = @transform_11, window_bounds = array<i64: 128, 128>}, {pipeline_mode = #tpu.pipeline_mode<synchronous>, transform_indices = @transform_12, window_bounds = array<i64: 128, 128>}, {pipeline_mode = #tpu.pipeline_mode<synchronous>, transform_indices = @transform_13, window_bounds = array<i64: 128, 128>}, {pipeline_mode = #tpu.pipeline_mode<synchronous>, transform_indices = @transform_14, window_bounds = array<i64: 1, 128>}, {pipeline_mode = #tpu.pipeline_mode<synchronous>, transform_indices = @transform_15, window_bounds = array<i64: 1, 128>}, {pipeline_mode = #tpu.pipeline_mode<synchronous>, transform_indices = @transform_16, window_bounds = array<i64: 128, 256>}, {pipeline_mode = #tpu.pipeline_mode<synchronous>, transform_indices = @transform_17, window_bounds = array<i64: 1, 256>}, {pipeline_mode = #tpu.pipeline_mode<synchronous>, transform_indices = @transform_18, window_bounds = array<i64: 256, 128>}, {pipeline_mode = #tpu.pipeline_mode<synchronous>, transform_indices = @transform_19, window_bounds = array<i64: 1, 128>}, {pipeline_mode = #tpu.pipeline_mode<synchronous>, transform_indices = @transform_20, window_bounds = array<i64: 1, 128>}, {pipeline_mode = #tpu.pipeline_mode<synchronous>, transform_indices = @transform_21, window_bounds = array<i64: 1, 128>}, {transform_indices = @transform_22, window_bounds = array<i64: 1, 16, 128>}]} {
    %c0_i32 = arith.constant 0 : i32
    %0 = arith.cmpi eq, %arg1, %c0_i32 : i32
    %1 = arith.extui %0 : i1 to i32
    %c0_i32_0 = arith.constant 0 : i32
    %2 = arith.cmpi ne, %1, %c0_i32_0 : i32
    scf.if %2 {
      %c0_121 = arith.constant 0 : index
      %c0_122 = arith.constant 0 : index
      %c0_123 = arith.constant 0 : index
      %258 = vector.load %arg2[%c0_121, %c0_122, %c0_123] : memref<1x16x128xbf16, #tpu.memory_space<vmem>>, vector<1x16x128xbf16>
      %259 = vector.shape_cast %258 : vector<1x16x128xbf16> to vector<16x128xbf16>
      %c0_124 = arith.constant 0 : index
      %c0_125 = arith.constant 0 : index
      %260 = vector.load %arg7[%c0_124, %c0_125] : memref<128x128xbf16, #tpu.memory_space<vmem>>, vector<128x128xbf16>
      %cst_126 = arith.constant dense<0.000000e+00> : vector<16x128xf32>
      %261 = tpu.matmul %259, %260, %cst_126 {dimension_numbers = #tpu.dot_dimension_numbers<[1], [0], [0], [1], [0, 0, 1, 1], [], []>} : vector<16x128xbf16>, vector<128x128xbf16>, vector<16x128xf32> -> vector<16x128xf32>
      %262 = arith.truncf %261 : vector<16x128xf32> to vector<16x128xbf16>
      %c0_127 = arith.constant 0 : index
      %c0_128 = arith.constant 0 : index
      %263 = vector.load %arg25[%c0_127, %c0_128] : memref<16x128xbf16, #tpu.memory_space<vmem>>, vector<16x128xbf16>
      tpu.vector_store %arg25[%c0_127, %c0_128], %262 {strides = array<i32>} : memref<16x128xbf16, #tpu.memory_space<vmem>>, vector<16x128xbf16>,
      %c0_129 = arith.constant 0 : index
      %c0_130 = arith.constant 0 : index
      %264 = vector.load %arg8[%c0_129, %c0_130] : memref<128x128xbf16, #tpu.memory_space<vmem>>, vector<128x128xbf16>
      %cst_131 = arith.constant dense<0.000000e+00> : vector<16x128xf32>
      %265 = tpu.matmul %259, %264, %cst_131 {dimension_numbers = #tpu.dot_dimension_numbers<[1], [0], [0], [1], [0, 0, 1, 1], [], []>} : vector<16x128xbf16>, vector<128x128xbf16>, vector<16x128xf32> -> vector<16x128xf32>
      %266 = arith.truncf %265 : vector<16x128xf32> to vector<16x128xbf16>
      %c0_132 = arith.constant 0 : index
      %c0_133 = arith.constant 0 : index
      %267 = vector.load %arg26[%c0_132, %c0_133] : memref<16x128xbf16, #tpu.memory_space<vmem>>, vector<16x128xbf16>
      tpu.vector_store %arg26[%c0_132, %c0_133], %266 {strides = array<i32>} : memref<16x128xbf16, #tpu.memory_space<vmem>>, vector<16x128xbf16>,
      %c0_134 = arith.constant 0 : index
      %c0_135 = arith.constant 0 : index
      %c0_136 = arith.constant 0 : index
      %268 = vector.load %arg3[%c0_134, %c0_135, %c0_136] : memref<1x16x128xbf16, #tpu.memory_space<vmem>>, vector<1x16x128xbf16>
      %269 = vector.shape_cast %268 : vector<1x16x128xbf16> to vector<16x128xbf16>
      %c0_137 = arith.constant 0 : index
      %c0_138 = arith.constant 0 : index
      %270 = vector.load %arg13[%c0_137, %c0_138] : memref<128x128xbf16, #tpu.memory_space<vmem>>, vector<128x128xbf16>
      %cst_139 = arith.constant dense<0.000000e+00> : vector<16x128xf32>
      %271 = tpu.matmul %269, %270, %cst_139 {dimension_numbers = #tpu.dot_dimension_numbers<[1], [0], [0], [1], [0, 0, 1, 1], [], []>} : vector<16x128xbf16>, vector<128x128xbf16>, vector<16x128xf32> -> vector<16x128xf32>
      %272 = arith.truncf %271 : vector<16x128xf32> to vector<16x128xbf16>
      %c0_140 = arith.constant 0 : index
      %c0_141 = arith.constant 0 : index
      %273 = vector.load %arg27[%c0_140, %c0_141] : memref<16x128xbf16, #tpu.memory_space<vmem>>, vector<16x128xbf16>
      tpu.vector_store %arg27[%c0_140, %c0_141], %272 {strides = array<i32>} : memref<16x128xbf16, #tpu.memory_space<vmem>>, vector<16x128xbf16>,
      %c0_142 = arith.constant 0 : index
      %c0_143 = arith.constant 0 : index
      %274 = vector.load %arg14[%c0_142, %c0_143] : memref<128x128xbf16, #tpu.memory_space<vmem>>, vector<128x128xbf16>
      %cst_144 = arith.constant dense<0.000000e+00> : vector<16x128xf32>
      %275 = tpu.matmul %269, %274, %cst_144 {dimension_numbers = #tpu.dot_dimension_numbers<[1], [0], [0], [1], [0, 0, 1, 1], [], []>} : vector<16x128xbf16>, vector<128x128xbf16>, vector<16x128xf32> -> vector<16x128xf32>
      %276 = arith.truncf %275 : vector<16x128xf32> to vector<16x128xbf16>
      %c0_145 = arith.constant 0 : index
      %c0_146 = arith.constant 0 : index
      %277 = vector.load %arg28[%c0_145, %c0_146] : memref<16x128xbf16, #tpu.memory_space<vmem>>, vector<16x128xbf16>
      tpu.vector_store %arg28[%c0_145, %c0_146], %276 {strides = array<i32>} : memref<16x128xbf16, #tpu.memory_space<vmem>>, vector<16x128xbf16>,
    } else {
    }
    %c16_i32 = arith.constant 16 : i32
    %3 = arith.muli %arg1, %c16_i32 : i32
    %4 = tpu.assume_multiple %3, 16 : i32
    %c0 = arith.constant 0 : index
    %5 = arith.index_cast %4 : i32 to index
    %c0_1 = arith.constant 0 : index
    %6 = vector.load %arg2[%c0, %5, %c0_1] : memref<1x16x128xbf16, #tpu.memory_space<vmem>>, vector<1x16x128xbf16>
    %7 = vector.shape_cast %6 : vector<1x16x128xbf16> to vector<16x128xbf16>
    %8 = arith.extf %7 : vector<16x128xbf16> to vector<16x128xf32>
    %c0_2 = arith.constant 0 : index
    %c0_3 = arith.constant 0 : index
    %c0_4 = arith.constant 0 : index
    %9 = vector.load %arg4[%c0_2, %c0_3, %c0_4] : memref<1x16x16xbf16, #tpu.memory_space<vmem>>, vector<1x16x16xbf16>
    %10 = vector.shape_cast %9 : vector<1x16x16xbf16> to vector<16x16xbf16>
    %11 = arith.extf %10 : vector<16x16xbf16> to vector<16x16xf32>
    %c0_5 = arith.constant 0 : index
    %c0_6 = arith.constant 0 : index
    %c0_7 = arith.constant 0 : index
    %12 = vector.load %arg5[%c0_5, %c0_6, %c0_7] : memref<1x1x16xbf16, #tpu.memory_space<vmem>>, vector<1x1x16xbf16>
    %13 = vector.shape_cast %12 : vector<1x1x16xbf16> to vector<1x16xbf16>
    %14 = arith.extf %13 : vector<1x16xbf16> to vector<1x16xf32>
    %15 = arith.truncf %8 : vector<16x128xf32> to vector<16x128xbf16>
    %c0_8 = arith.constant 0 : index
    %c0_9 = arith.constant 0 : index
    %16 = vector.load %arg6[%c0_8, %c0_9] : memref<128x128xbf16, #tpu.memory_space<vmem>>, vector<128x128xbf16>
    %cst = arith.constant dense<0.000000e+00> : vector<16x128xf32>
    %17 = tpu.matmul %15, %16, %cst {dimension_numbers = #tpu.dot_dimension_numbers<[1], [0], [0], [1], [0, 0, 1, 1], [], []>} : vector<16x128xbf16>, vector<128x128xbf16>, vector<16x128xf32> -> vector<16x128xf32>
    %18 = arith.truncf %17 : vector<16x128xf32> to vector<16x128xbf16>
    %19 = vector.extract_strided_slice %18 {offsets = [0, 0], sizes = [16, 32], strides = [1, 1]} : vector<16x128xbf16> to vector<16x32xbf16>
    %c0_10 = arith.constant 0 : index
    %c0_11 = arith.constant 0 : index
    %20 = vector.load %arg25[%c0_10, %c0_11] : memref<16x128xbf16, #tpu.memory_space<vmem>>, vector<16x32xbf16>
    %c0_12 = arith.constant 0 : index
    %c0_13 = arith.constant 0 : index
    %21 = vector.load %arg26[%c0_12, %c0_13] : memref<16x128xbf16, #tpu.memory_space<vmem>>, vector<16x32xbf16>
    "tpu.trace_start"() <{level = 10 : i32, message = "qe,ke->qk"}> : () -> ()
    %cst_14 = arith.constant dense<0.000000e+00> : vector<16x16xf32>
    %22 = tpu.matmul %19, %20, %cst_14 {dimension_numbers = #tpu.dot_dimension_numbers<[1], [1], [0], [0], [0, 0, 1, 0], [], []>} : vector<16x32xbf16>, vector<16x32xbf16>, vector<16x16xf32> -> vector<16x16xf32>
    "tpu.trace_stop"() : () -> ()
    %23 = arith.addf %22, %11 : vector<16x16xf32>
    %cst_15 = arith.constant dense<0xFF800000> : vector<16xf32>
    %24 = vector.multi_reduction <maximumf>, %23, %cst_15 [1] : vector<16x16xf32> to vector<16xf32>
    %25 = vector.shape_cast %24 : vector<16xf32> to vector<16x1xf32>
    %26 = vector.broadcast %25 : vector<16x1xf32> to vector<16x16xf32>
    %27 = arith.subf %23, %26 : vector<16x16xf32>
    %28 = math.exp %27 : vector<16x16xf32>
    %cst_16 = arith.constant dense<0.000000e+00> : vector<16xf32>
    %29 = vector.multi_reduction <add>, %28, %cst_16 [1] : vector<16x16xf32> to vector<16xf32>
    %30 = vector.shape_cast %29 : vector<16xf32> to vector<16x1xf32>
    %31 = tpu.reciprocal %30 {approx = true} : vector<16x1xf32> -> vector<16x1xf32>
    %32 = vector.broadcast %31 : vector<16x1xf32> to vector<16x16xf32>
    %33 = arith.mulf %28, %32 : vector<16x16xf32>
    %34 = arith.truncf %33 : vector<16x16xf32> to vector<16x16xbf16>
    %cst_17 = arith.constant dense<0.000000e+00> : vector<16x32xf32>
    %35 = tpu.matmul %34, %21, %cst_17 {dimension_numbers = #tpu.dot_dimension_numbers<[1], [0], [0], [1], [0, 0, 1, 1], [], []>} : vector<16x16xbf16>, vector<16x32xbf16>, vector<16x32xf32> -> vector<16x32xf32>
    %36 = vector.extract_strided_slice %18 {offsets = [0, 32], sizes = [16, 32], strides = [1, 1]} : vector<16x128xbf16> to vector<16x32xbf16>
    %c0_18 = arith.constant 0 : index
    %c32 = arith.constant 32 : index
    %37 = vector.load %arg25[%c0_18, %c32] : memref<16x128xbf16, #tpu.memory_space<vmem>>, vector<16x32xbf16>
    %c0_19 = arith.constant 0 : index
    %c32_20 = arith.constant 32 : index
    %38 = vector.load %arg26[%c0_19, %c32_20] : memref<16x128xbf16, #tpu.memory_space<vmem>>, vector<16x32xbf16>
    "tpu.trace_start"() <{level = 10 : i32, message = "qe,ke->qk"}> : () -> ()
    %cst_21 = arith.constant dense<0.000000e+00> : vector<16x16xf32>
    %39 = tpu.matmul %36, %37, %cst_21 {dimension_numbers = #tpu.dot_dimension_numbers<[1], [1], [0], [0], [0, 0, 1, 0], [], []>} : vector<16x32xbf16>, vector<16x32xbf16>, vector<16x16xf32> -> vector<16x16xf32>
    "tpu.trace_stop"() : () -> ()
    %40 = arith.addf %39, %11 : vector<16x16xf32>
    %cst_22 = arith.constant dense<0xFF800000> : vector<16xf32>
    %41 = vector.multi_reduction <maximumf>, %40, %cst_22 [1] : vector<16x16xf32> to vector<16xf32>
    %42 = vector.shape_cast %41 : vector<16xf32> to vector<16x1xf32>
    %43 = vector.broadcast %42 : vector<16x1xf32> to vector<16x16xf32>
    %44 = arith.subf %40, %43 : vector<16x16xf32>
    %45 = math.exp %44 : vector<16x16xf32>
    %cst_23 = arith.constant dense<0.000000e+00> : vector<16xf32>
    %46 = vector.multi_reduction <add>, %45, %cst_23 [1] : vector<16x16xf32> to vector<16xf32>
    %47 = vector.shape_cast %46 : vector<16xf32> to vector<16x1xf32>
    %48 = tpu.reciprocal %47 {approx = true} : vector<16x1xf32> -> vector<16x1xf32>
    %49 = vector.broadcast %48 : vector<16x1xf32> to vector<16x16xf32>
    %50 = arith.mulf %45, %49 : vector<16x16xf32>
    %51 = arith.truncf %50 : vector<16x16xf32> to vector<16x16xbf16>
    %cst_24 = arith.constant dense<0.000000e+00> : vector<16x32xf32>
    %52 = tpu.matmul %51, %38, %cst_24 {dimension_numbers = #tpu.dot_dimension_numbers<[1], [0], [0], [1], [0, 0, 1, 1], [], []>} : vector<16x16xbf16>, vector<16x32xbf16>, vector<16x32xf32> -> vector<16x32xf32>
    %53 = vector.extract_strided_slice %18 {offsets = [0, 64], sizes = [16, 32], strides = [1, 1]} : vector<16x128xbf16> to vector<16x32xbf16>
    %c0_25 = arith.constant 0 : index
    %c64 = arith.constant 64 : index
    %54 = vector.load %arg25[%c0_25, %c64] : memref<16x128xbf16, #tpu.memory_space<vmem>>, vector<16x32xbf16>
    %c0_26 = arith.constant 0 : index
    %c64_27 = arith.constant 64 : index
    %55 = vector.load %arg26[%c0_26, %c64_27] : memref<16x128xbf16, #tpu.memory_space<vmem>>, vector<16x32xbf16>
    "tpu.trace_start"() <{level = 10 : i32, message = "qe,ke->qk"}> : () -> ()
    %cst_28 = arith.constant dense<0.000000e+00> : vector<16x16xf32>
    %56 = tpu.matmul %53, %54, %cst_28 {dimension_numbers = #tpu.dot_dimension_numbers<[1], [1], [0], [0], [0, 0, 1, 0], [], []>} : vector<16x32xbf16>, vector<16x32xbf16>, vector<16x16xf32> -> vector<16x16xf32>
    "tpu.trace_stop"() : () -> ()
    %57 = arith.addf %56, %11 : vector<16x16xf32>
    %cst_29 = arith.constant dense<0xFF800000> : vector<16xf32>
    %58 = vector.multi_reduction <maximumf>, %57, %cst_29 [1] : vector<16x16xf32> to vector<16xf32>
    %59 = vector.shape_cast %58 : vector<16xf32> to vector<16x1xf32>
    %60 = vector.broadcast %59 : vector<16x1xf32> to vector<16x16xf32>
    %61 = arith.subf %57, %60 : vector<16x16xf32>
    %62 = math.exp %61 : vector<16x16xf32>
    %cst_30 = arith.constant dense<0.000000e+00> : vector<16xf32>
    %63 = vector.multi_reduction <add>, %62, %cst_30 [1] : vector<16x16xf32> to vector<16xf32>
    %64 = vector.shape_cast %63 : vector<16xf32> to vector<16x1xf32>
    %65 = tpu.reciprocal %64 {approx = true} : vector<16x1xf32> -> vector<16x1xf32>
    %66 = vector.broadcast %65 : vector<16x1xf32> to vector<16x16xf32>
    %67 = arith.mulf %62, %66 : vector<16x16xf32>
    %68 = arith.truncf %67 : vector<16x16xf32> to vector<16x16xbf16>
    %cst_31 = arith.constant dense<0.000000e+00> : vector<16x32xf32>
    %69 = tpu.matmul %68, %55, %cst_31 {dimension_numbers = #tpu.dot_dimension_numbers<[1], [0], [0], [1], [0, 0, 1, 1], [], []>} : vector<16x16xbf16>, vector<16x32xbf16>, vector<16x32xf32> -> vector<16x32xf32>
    %70 = vector.extract_strided_slice %18 {offsets = [0, 96], sizes = [16, 32], strides = [1, 1]} : vector<16x128xbf16> to vector<16x32xbf16>
    %c0_32 = arith.constant 0 : index
    %c96 = arith.constant 96 : index
    %71 = vector.load %arg25[%c0_32, %c96] : memref<16x128xbf16, #tpu.memory_space<vmem>>, vector<16x32xbf16>
    %c0_33 = arith.constant 0 : index
    %c96_34 = arith.constant 96 : index
    %72 = vector.load %arg26[%c0_33, %c96_34] : memref<16x128xbf16, #tpu.memory_space<vmem>>, vector<16x32xbf16>
    "tpu.trace_start"() <{level = 10 : i32, message = "qe,ke->qk"}> : () -> ()
    %cst_35 = arith.constant dense<0.000000e+00> : vector<16x16xf32>
    %73 = tpu.matmul %70, %71, %cst_35 {dimension_numbers = #tpu.dot_dimension_numbers<[1], [1], [0], [0], [0, 0, 1, 0], [], []>} : vector<16x32xbf16>, vector<16x32xbf16>, vector<16x16xf32> -> vector<16x16xf32>
    "tpu.trace_stop"() : () -> ()
    %74 = arith.addf %73, %11 : vector<16x16xf32>
    %cst_36 = arith.constant dense<0xFF800000> : vector<16xf32>
    %75 = vector.multi_reduction <maximumf>, %74, %cst_36 [1] : vector<16x16xf32> to vector<16xf32>
    %76 = vector.shape_cast %75 : vector<16xf32> to vector<16x1xf32>
    %77 = vector.broadcast %76 : vector<16x1xf32> to vector<16x16xf32>
    %78 = arith.subf %74, %77 : vector<16x16xf32>
    %79 = math.exp %78 : vector<16x16xf32>
    %cst_37 = arith.constant dense<0.000000e+00> : vector<16xf32>
    %80 = vector.multi_reduction <add>, %79, %cst_37 [1] : vector<16x16xf32> to vector<16xf32>
    %81 = vector.shape_cast %80 : vector<16xf32> to vector<16x1xf32>
    %82 = tpu.reciprocal %81 {approx = true} : vector<16x1xf32> -> vector<16x1xf32>
    %83 = vector.broadcast %82 : vector<16x1xf32> to vector<16x16xf32>
    %84 = arith.mulf %79, %83 : vector<16x16xf32>
    %85 = arith.truncf %84 : vector<16x16xf32> to vector<16x16xbf16>
    %cst_38 = arith.constant dense<0.000000e+00> : vector<16x32xf32>
    %86 = tpu.matmul %85, %72, %cst_38 {dimension_numbers = #tpu.dot_dimension_numbers<[1], [0], [0], [1], [0, 0, 1, 1], [], []>} : vector<16x16xbf16>, vector<16x32xbf16>, vector<16x32xf32> -> vector<16x32xf32>
    %87 = tpu.concatenate %35, %52, %69, %86 in 1 : vector<16x32xf32>, vector<16x32xf32>, vector<16x32xf32>, vector<16x32xf32> -> vector<16x128xf32>
    %88 = arith.truncf %87 : vector<16x128xf32> to vector<16x128xbf16>
    %c0_39 = arith.constant 0 : index
    %c0_40 = arith.constant 0 : index
    %89 = vector.load %arg9[%c0_39, %c0_40] : memref<128x128xbf16, #tpu.memory_space<vmem>>, vector<128x128xbf16>
    %cst_41 = arith.constant dense<0.000000e+00> : vector<16x128xf32>
    %90 = tpu.matmul %88, %89, %cst_41 {dimension_numbers = #tpu.dot_dimension_numbers<[1], [0], [0], [1], [0, 0, 1, 1], [], []>} : vector<16x128xbf16>, vector<128x128xbf16>, vector<16x128xf32> -> vector<16x128xf32>
    %91 = arith.addf %90, %8 : vector<16x128xf32>
    %c0_42 = arith.constant 0 : index
    %c0_43 = arith.constant 0 : index
    %92 = vector.load %arg10[%c0_42, %c0_43] : memref<1x128xf32, #tpu.memory_space<vmem>>, vector<1x128xf32>
    %c0_44 = arith.constant 0 : index
    %c0_45 = arith.constant 0 : index
    %93 = vector.load %arg11[%c0_44, %c0_45] : memref<1x128xf32, #tpu.memory_space<vmem>>, vector<1x128xf32>
    %cst_46 = arith.constant dense<0.000000e+00> : vector<16xf32>
    %94 = vector.multi_reduction <add>, %91, %cst_46 [1] : vector<16x128xf32> to vector<16xf32>
    %95 = vector.shape_cast %94 : vector<16xf32> to vector<16x1xf32>
    %cst_47 = arith.constant 1.280000e+02 : f32
    %96 = vector.broadcast %cst_47 : f32 to vector<16x1xf32>
    %97 = arith.divf %95, %96 : vector<16x1xf32>
    %98 = vector.broadcast %97 : vector<16x1xf32> to vector<16x128xf32>
    %99 = arith.subf %91, %98 : vector<16x128xf32>
    %100 = arith.mulf %99, %99 : vector<16x128xf32>
    %cst_48 = arith.constant dense<0.000000e+00> : vector<16xf32>
    %101 = vector.multi_reduction <add>, %100, %cst_48 [1] : vector<16x128xf32> to vector<16xf32>
    %102 = vector.shape_cast %101 : vector<16xf32> to vector<16x1xf32>
    %cst_49 = arith.constant 1.280000e+02 : f32
    %103 = vector.broadcast %cst_49 : f32 to vector<16x1xf32>
    %104 = arith.divf %102, %103 : vector<16x1xf32>
    %cst_50 = arith.constant 9.99999997E-7 : f32
    %105 = vector.broadcast %cst_50 : f32 to vector<16x1xf32>
    %106 = arith.addf %104, %105 : vector<16x1xf32>
    %107 = math.rsqrt %106 : vector<16x1xf32>
    %108 = vector.broadcast %107 : vector<16x1xf32> to vector<16x128xf32>
    %109 = arith.mulf %99, %108 : vector<16x128xf32>
    %110 = vector.broadcast %92 : vector<1x128xf32> to vector<16x128xf32>
    %111 = arith.mulf %109, %110 : vector<16x128xf32>
    %112 = vector.broadcast %93 : vector<1x128xf32> to vector<16x128xf32>
    %113 = arith.addf %111, %112 : vector<16x128xf32>
    %114 = arith.truncf %113 : vector<16x128xf32> to vector<16x128xbf16>
    %c0_51 = arith.constant 0 : index
    %c0_52 = arith.constant 0 : index
    %115 = vector.load %arg12[%c0_51, %c0_52] : memref<128x128xbf16, #tpu.memory_space<vmem>>, vector<128x128xbf16>
    %cst_53 = arith.constant dense<0.000000e+00> : vector<16x128xf32>
    %116 = tpu.matmul %114, %115, %cst_53 {dimension_numbers = #tpu.dot_dimension_numbers<[1], [0], [0], [1], [0, 0, 1, 1], [], []>} : vector<16x128xbf16>, vector<128x128xbf16>, vector<16x128xf32> -> vector<16x128xf32>
    %117 = arith.truncf %116 : vector<16x128xf32> to vector<16x128xbf16>
    %118 = vector.extract_strided_slice %117 {offsets = [0, 0], sizes = [16, 32], strides = [1, 1]} : vector<16x128xbf16> to vector<16x32xbf16>
    %c0_54 = arith.constant 0 : index
    %c0_55 = arith.constant 0 : index
    %119 = vector.load %arg27[%c0_54, %c0_55] : memref<16x128xbf16, #tpu.memory_space<vmem>>, vector<16x32xbf16>
    %c0_56 = arith.constant 0 : index
    %c0_57 = arith.constant 0 : index
    %120 = vector.load %arg28[%c0_56, %c0_57] : memref<16x128xbf16, #tpu.memory_space<vmem>>, vector<16x32xbf16>
    "tpu.trace_start"() <{level = 10 : i32, message = "qe,ke->qk"}> : () -> ()
    %cst_58 = arith.constant dense<0.000000e+00> : vector<16x16xf32>
    %121 = tpu.matmul %118, %119, %cst_58 {dimension_numbers = #tpu.dot_dimension_numbers<[1], [1], [0], [0], [0, 0, 1, 0], [], []>} : vector<16x32xbf16>, vector<16x32xbf16>, vector<16x16xf32> -> vector<16x16xf32>
    "tpu.trace_stop"() : () -> ()
    %122 = vector.broadcast %14 : vector<1x16xf32> to vector<16x16xf32>
    %123 = arith.addf %121, %122 : vector<16x16xf32>
    %cst_59 = arith.constant dense<0xFF800000> : vector<16xf32>
    %124 = vector.multi_reduction <maximumf>, %123, %cst_59 [1] : vector<16x16xf32> to vector<16xf32>
    %125 = vector.shape_cast %124 : vector<16xf32> to vector<16x1xf32>
    %126 = vector.broadcast %125 : vector<16x1xf32> to vector<16x16xf32>
    %127 = arith.subf %123, %126 : vector<16x16xf32>
    %128 = math.exp %127 : vector<16x16xf32>
    %cst_60 = arith.constant dense<0.000000e+00> : vector<16xf32>
    %129 = vector.multi_reduction <add>, %128, %cst_60 [1] : vector<16x16xf32> to vector<16xf32>
    %130 = vector.shape_cast %129 : vector<16xf32> to vector<16x1xf32>
    %131 = tpu.reciprocal %130 {approx = true} : vector<16x1xf32> -> vector<16x1xf32>
    %132 = vector.broadcast %131 : vector<16x1xf32> to vector<16x16xf32>
    %133 = arith.mulf %128, %132 : vector<16x16xf32>
    %134 = arith.truncf %133 : vector<16x16xf32> to vector<16x16xbf16>
    %cst_61 = arith.constant dense<0.000000e+00> : vector<16x32xf32>
    %135 = tpu.matmul %134, %120, %cst_61 {dimension_numbers = #tpu.dot_dimension_numbers<[1], [0], [0], [1], [0, 0, 1, 1], [], []>} : vector<16x16xbf16>, vector<16x32xbf16>, vector<16x32xf32> -> vector<16x32xf32>
    %136 = vector.extract_strided_slice %117 {offsets = [0, 32], sizes = [16, 32], strides = [1, 1]} : vector<16x128xbf16> to vector<16x32xbf16>
    %c0_62 = arith.constant 0 : index
    %c32_63 = arith.constant 32 : index
    %137 = vector.load %arg27[%c0_62, %c32_63] : memref<16x128xbf16, #tpu.memory_space<vmem>>, vector<16x32xbf16>
    %c0_64 = arith.constant 0 : index
    %c32_65 = arith.constant 32 : index
    %138 = vector.load %arg28[%c0_64, %c32_65] : memref<16x128xbf16, #tpu.memory_space<vmem>>, vector<16x32xbf16>
    "tpu.trace_start"() <{level = 10 : i32, message = "qe,ke->qk"}> : () -> ()
    %cst_66 = arith.constant dense<0.000000e+00> : vector<16x16xf32>
    %139 = tpu.matmul %136, %137, %cst_66 {dimension_numbers = #tpu.dot_dimension_numbers<[1], [1], [0], [0], [0, 0, 1, 0], [], []>} : vector<16x32xbf16>, vector<16x32xbf16>, vector<16x16xf32> -> vector<16x16xf32>
    "tpu.trace_stop"() : () -> ()
    %140 = vector.broadcast %14 : vector<1x16xf32> to vector<16x16xf32>
    %141 = arith.addf %139, %140 : vector<16x16xf32>
    %cst_67 = arith.constant dense<0xFF800000> : vector<16xf32>
    %142 = vector.multi_reduction <maximumf>, %141, %cst_67 [1] : vector<16x16xf32> to vector<16xf32>
    %143 = vector.shape_cast %142 : vector<16xf32> to vector<16x1xf32>
    %144 = vector.broadcast %143 : vector<16x1xf32> to vector<16x16xf32>
    %145 = arith.subf %141, %144 : vector<16x16xf32>
    %146 = math.exp %145 : vector<16x16xf32>
    %cst_68 = arith.constant dense<0.000000e+00> : vector<16xf32>
    %147 = vector.multi_reduction <add>, %146, %cst_68 [1] : vector<16x16xf32> to vector<16xf32>
    %148 = vector.shape_cast %147 : vector<16xf32> to vector<16x1xf32>
    %149 = tpu.reciprocal %148 {approx = true} : vector<16x1xf32> -> vector<16x1xf32>
    %150 = vector.broadcast %149 : vector<16x1xf32> to vector<16x16xf32>
    %151 = arith.mulf %146, %150 : vector<16x16xf32>
    %152 = arith.truncf %151 : vector<16x16xf32> to vector<16x16xbf16>
    %cst_69 = arith.constant dense<0.000000e+00> : vector<16x32xf32>
    %153 = tpu.matmul %152, %138, %cst_69 {dimension_numbers = #tpu.dot_dimension_numbers<[1], [0], [0], [1], [0, 0, 1, 1], [], []>} : vector<16x16xbf16>, vector<16x32xbf16>, vector<16x32xf32> -> vector<16x32xf32>
    %154 = vector.extract_strided_slice %117 {offsets = [0, 64], sizes = [16, 32], strides = [1, 1]} : vector<16x128xbf16> to vector<16x32xbf16>
    %c0_70 = arith.constant 0 : index
    %c64_71 = arith.constant 64 : index
    %155 = vector.load %arg27[%c0_70, %c64_71] : memref<16x128xbf16, #tpu.memory_space<vmem>>, vector<16x32xbf16>
    %c0_72 = arith.constant 0 : index
    %c64_73 = arith.constant 64 : index
    %156 = vector.load %arg28[%c0_72, %c64_73] : memref<16x128xbf16, #tpu.memory_space<vmem>>, vector<16x32xbf16>
    "tpu.trace_start"() <{level = 10 : i32, message = "qe,ke->qk"}> : () -> ()
    %cst_74 = arith.constant dense<0.000000e+00> : vector<16x16xf32>
    %157 = tpu.matmul %154, %155, %cst_74 {dimension_numbers = #tpu.dot_dimension_numbers<[1], [1], [0], [0], [0, 0, 1, 0], [], []>} : vector<16x32xbf16>, vector<16x32xbf16>, vector<16x16xf32> -> vector<16x16xf32>
    "tpu.trace_stop"() : () -> ()
    %158 = vector.broadcast %14 : vector<1x16xf32> to vector<16x16xf32>
    %159 = arith.addf %157, %158 : vector<16x16xf32>
    %cst_75 = arith.constant dense<0xFF800000> : vector<16xf32>
    %160 = vector.multi_reduction <maximumf>, %159, %cst_75 [1] : vector<16x16xf32> to vector<16xf32>
    %161 = vector.shape_cast %160 : vector<16xf32> to vector<16x1xf32>
    %162 = vector.broadcast %161 : vector<16x1xf32> to vector<16x16xf32>
    %163 = arith.subf %159, %162 : vector<16x16xf32>
    %164 = math.exp %163 : vector<16x16xf32>
    %cst_76 = arith.constant dense<0.000000e+00> : vector<16xf32>
    %165 = vector.multi_reduction <add>, %164, %cst_76 [1] : vector<16x16xf32> to vector<16xf32>
    %166 = vector.shape_cast %165 : vector<16xf32> to vector<16x1xf32>
    %167 = tpu.reciprocal %166 {approx = true} : vector<16x1xf32> -> vector<16x1xf32>
    %168 = vector.broadcast %167 : vector<16x1xf32> to vector<16x16xf32>
    %169 = arith.mulf %164, %168 : vector<16x16xf32>
    %170 = arith.truncf %169 : vector<16x16xf32> to vector<16x16xbf16>
    %cst_77 = arith.constant dense<0.000000e+00> : vector<16x32xf32>
    %171 = tpu.matmul %170, %156, %cst_77 {dimension_numbers = #tpu.dot_dimension_numbers<[1], [0], [0], [1], [0, 0, 1, 1], [], []>} : vector<16x16xbf16>, vector<16x32xbf16>, vector<16x32xf32> -> vector<16x32xf32>
    %172 = vector.extract_strided_slice %117 {offsets = [0, 96], sizes = [16, 32], strides = [1, 1]} : vector<16x128xbf16> to vector<16x32xbf16>
    %c0_78 = arith.constant 0 : index
    %c96_79 = arith.constant 96 : index
    %173 = vector.load %arg27[%c0_78, %c96_79] : memref<16x128xbf16, #tpu.memory_space<vmem>>, vector<16x32xbf16>
    %c0_80 = arith.constant 0 : index
    %c96_81 = arith.constant 96 : index
    %174 = vector.load %arg28[%c0_80, %c96_81] : memref<16x128xbf16, #tpu.memory_space<vmem>>, vector<16x32xbf16>
    "tpu.trace_start"() <{level = 10 : i32, message = "qe,ke->qk"}> : () -> ()
    %cst_82 = arith.constant dense<0.000000e+00> : vector<16x16xf32>
    %175 = tpu.matmul %172, %173, %cst_82 {dimension_numbers = #tpu.dot_dimension_numbers<[1], [1], [0], [0], [0, 0, 1, 0], [], []>} : vector<16x32xbf16>, vector<16x32xbf16>, vector<16x16xf32> -> vector<16x16xf32>
    "tpu.trace_stop"() : () -> ()
    %176 = vector.broadcast %14 : vector<1x16xf32> to vector<16x16xf32>
    %177 = arith.addf %175, %176 : vector<16x16xf32>
    %cst_83 = arith.constant dense<0xFF800000> : vector<16xf32>
    %178 = vector.multi_reduction <maximumf>, %177, %cst_83 [1] : vector<16x16xf32> to vector<16xf32>
    %179 = vector.shape_cast %178 : vector<16xf32> to vector<16x1xf32>
    %180 = vector.broadcast %179 : vector<16x1xf32> to vector<16x16xf32>
    %181 = arith.subf %177, %180 : vector<16x16xf32>
    %182 = math.exp %181 : vector<16x16xf32>
    %cst_84 = arith.constant dense<0.000000e+00> : vector<16xf32>
    %183 = vector.multi_reduction <add>, %182, %cst_84 [1] : vector<16x16xf32> to vector<16xf32>
    %184 = vector.shape_cast %183 : vector<16xf32> to vector<16x1xf32>
    %185 = tpu.reciprocal %184 {approx = true} : vector<16x1xf32> -> vector<16x1xf32>
    %186 = vector.broadcast %185 : vector<16x1xf32> to vector<16x16xf32>
    %187 = arith.mulf %182, %186 : vector<16x16xf32>
    %188 = arith.truncf %187 : vector<16x16xf32> to vector<16x16xbf16>
    %cst_85 = arith.constant dense<0.000000e+00> : vector<16x32xf32>
    %189 = tpu.matmul %188, %174, %cst_85 {dimension_numbers = #tpu.dot_dimension_numbers<[1], [0], [0], [1], [0, 0, 1, 1], [], []>} : vector<16x16xbf16>, vector<16x32xbf16>, vector<16x32xf32> -> vector<16x32xf32>
    %190 = tpu.concatenate %135, %153, %171, %189 in 1 : vector<16x32xf32>, vector<16x32xf32>, vector<16x32xf32>, vector<16x32xf32> -> vector<16x128xf32>
    %191 = arith.truncf %190 : vector<16x128xf32> to vector<16x128xbf16>
    %c0_86 = arith.constant 0 : index
    %c0_87 = arith.constant 0 : index
    %192 = vector.load %arg15[%c0_86, %c0_87] : memref<128x128xbf16, #tpu.memory_space<vmem>>, vector<128x128xbf16>
    %cst_88 = arith.constant dense<0.000000e+00> : vector<16x128xf32>
    %193 = tpu.matmul %191, %192, %cst_88 {dimension_numbers = #tpu.dot_dimension_numbers<[1], [0], [0], [1], [0, 0, 1, 1], [], []>} : vector<16x128xbf16>, vector<128x128xbf16>, vector<16x128xf32> -> vector<16x128xf32>
    %194 = arith.addf %193, %113 : vector<16x128xf32>
    %c0_89 = arith.constant 0 : index
    %c0_90 = arith.constant 0 : index
    %195 = vector.load %arg16[%c0_89, %c0_90] : memref<1x128xf32, #tpu.memory_space<vmem>>, vector<1x128xf32>
    %c0_91 = arith.constant 0 : index
    %c0_92 = arith.constant 0 : index
    %196 = vector.load %arg17[%c0_91, %c0_92] : memref<1x128xf32, #tpu.memory_space<vmem>>, vector<1x128xf32>
    %cst_93 = arith.constant dense<0.000000e+00> : vector<16xf32>
    %197 = vector.multi_reduction <add>, %194, %cst_93 [1] : vector<16x128xf32> to vector<16xf32>
    %198 = vector.shape_cast %197 : vector<16xf32> to vector<16x1xf32>
    %cst_94 = arith.constant 1.280000e+02 : f32
    %199 = vector.broadcast %cst_94 : f32 to vector<16x1xf32>
    %200 = arith.divf %198, %199 : vector<16x1xf32>
    %201 = vector.broadcast %200 : vector<16x1xf32> to vector<16x128xf32>
    %202 = arith.subf %194, %201 : vector<16x128xf32>
    %203 = arith.mulf %202, %202 : vector<16x128xf32>
    %cst_95 = arith.constant dense<0.000000e+00> : vector<16xf32>
    %204 = vector.multi_reduction <add>, %203, %cst_95 [1] : vector<16x128xf32> to vector<16xf32>
    %205 = vector.shape_cast %204 : vector<16xf32> to vector<16x1xf32>
    %cst_96 = arith.constant 1.280000e+02 : f32
    %206 = vector.broadcast %cst_96 : f32 to vector<16x1xf32>
    %207 = arith.divf %205, %206 : vector<16x1xf32>
    %cst_97 = arith.constant 9.99999997E-7 : f32
    %208 = vector.broadcast %cst_97 : f32 to vector<16x1xf32>
    %209 = arith.addf %207, %208 : vector<16x1xf32>
    %210 = math.rsqrt %209 : vector<16x1xf32>
    %211 = vector.broadcast %210 : vector<16x1xf32> to vector<16x128xf32>
    %212 = arith.mulf %202, %211 : vector<16x128xf32>
    %213 = vector.broadcast %195 : vector<1x128xf32> to vector<16x128xf32>
    %214 = arith.mulf %212, %213 : vector<16x128xf32>
    %215 = vector.broadcast %196 : vector<1x128xf32> to vector<16x128xf32>
    %216 = arith.addf %214, %215 : vector<16x128xf32>
    %217 = arith.truncf %216 : vector<16x128xf32> to vector<16x128xbf16>
    %c0_98 = arith.constant 0 : index
    %c0_99 = arith.constant 0 : index
    %218 = vector.load %arg18[%c0_98, %c0_99] : memref<128x256xbf16, #tpu.memory_space<vmem>>, vector<128x256xbf16>
    %cst_100 = arith.constant dense<0.000000e+00> : vector<16x256xf32>
    %219 = tpu.matmul %217, %218, %cst_100 {dimension_numbers = #tpu.dot_dimension_numbers<[1], [0], [0], [1], [0, 0, 1, 1], [], []>} : vector<16x128xbf16>, vector<128x256xbf16>, vector<16x256xf32> -> vector<16x256xf32>
    %c0_101 = arith.constant 0 : index
    %c0_102 = arith.constant 0 : index
    %220 = vector.load %arg19[%c0_101, %c0_102] : memref<1x256xf32, #tpu.memory_space<vmem>>, vector<1x256xf32>
    %221 = vector.broadcast %220 : vector<1x256xf32> to vector<16x256xf32>
    %222 = arith.addf %219, %221 : vector<16x256xf32>
    %cst_103 = arith.constant 0.000000e+00 : f32
    %223 = vector.broadcast %cst_103 : f32 to vector<16x256xf32>
    %224 = arith.maximumf %222, %223 : vector<16x256xf32>
    %225 = arith.truncf %224 : vector<16x256xf32> to vector<16x256xbf16>
    %c0_104 = arith.constant 0 : index
    %c0_105 = arith.constant 0 : index
    %226 = vector.load %arg20[%c0_104, %c0_105] : memref<256x128xbf16, #tpu.memory_space<vmem>>, vector<256x128xbf16>
    %cst_106 = arith.constant dense<0.000000e+00> : vector<16x128xf32>
    %227 = tpu.matmul %225, %226, %cst_106 {dimension_numbers = #tpu.dot_dimension_numbers<[1], [0], [0], [1], [0, 0, 1, 1], [], []>} : vector<16x256xbf16>, vector<256x128xbf16>, vector<16x128xf32> -> vector<16x128xf32>
    %c0_107 = arith.constant 0 : index
    %c0_108 = arith.constant 0 : index
    %228 = vector.load %arg21[%c0_107, %c0_108] : memref<1x128xf32, #tpu.memory_space<vmem>>, vector<1x128xf32>
    %229 = vector.broadcast %228 : vector<1x128xf32> to vector<16x128xf32>
    %230 = arith.addf %227, %229 : vector<16x128xf32>
    %231 = arith.addf %230, %216 : vector<16x128xf32>
    %c0_109 = arith.constant 0 : index
    %c0_110 = arith.constant 0 : index
    %232 = vector.load %arg22[%c0_109, %c0_110] : memref<1x128xf32, #tpu.memory_space<vmem>>, vector<1x128xf32>
    %c0_111 = arith.constant 0 : index
    %c0_112 = arith.constant 0 : index
    %233 = vector.load %arg23[%c0_111, %c0_112] : memref<1x128xf32, #tpu.memory_space<vmem>>, vector<1x128xf32>
    %cst_113 = arith.constant dense<0.000000e+00> : vector<16xf32>
    %234 = vector.multi_reduction <add>, %231, %cst_113 [1] : vector<16x128xf32> to vector<16xf32>
    %235 = vector.shape_cast %234 : vector<16xf32> to vector<16x1xf32>
    %cst_114 = arith.constant 1.280000e+02 : f32
    %236 = vector.broadcast %cst_114 : f32 to vector<16x1xf32>
    %237 = arith.divf %235, %236 : vector<16x1xf32>
    %238 = vector.broadcast %237 : vector<16x1xf32> to vector<16x128xf32>
    %239 = arith.subf %231, %238 : vector<16x128xf32>
    %240 = arith.mulf %239, %239 : vector<16x128xf32>
    %cst_115 = arith.constant dense<0.000000e+00> : vector<16xf32>
    %241 = vector.multi_reduction <add>, %240, %cst_115 [1] : vector<16x128xf32> to vector<16xf32>
    %242 = vector.shape_cast %241 : vector<16xf32> to vector<16x1xf32>
    %cst_116 = arith.constant 1.280000e+02 : f32
    %243 = vector.broadcast %cst_116 : f32 to vector<16x1xf32>
    %244 = arith.divf %242, %243 : vector<16x1xf32>
    %cst_117 = arith.constant 9.99999997E-7 : f32
    %245 = vector.broadcast %cst_117 : f32 to vector<16x1xf32>
    %246 = arith.addf %244, %245 : vector<16x1xf32>
    %247 = math.rsqrt %246 : vector<16x1xf32>
    %248 = vector.broadcast %247 : vector<16x1xf32> to vector<16x128xf32>
    %249 = arith.mulf %239, %248 : vector<16x128xf32>
    %250 = vector.broadcast %232 : vector<1x128xf32> to vector<16x128xf32>
    %251 = arith.mulf %249, %250 : vector<16x128xf32>
    %252 = vector.broadcast %233 : vector<1x128xf32> to vector<16x128xf32>
    %253 = arith.addf %251, %252 : vector<16x128xf32>
    %254 = arith.truncf %253 : vector<16x128xf32> to vector<16x128xbf16>
    %c0_118 = arith.constant 0 : index
    %c0_119 = arith.constant 0 : index
    %c0_120 = arith.constant 0 : index
    %255 = vector.load %arg24[%c0_118, %c0_119, %c0_120] : memref<1x16x128xbf16, #tpu.memory_space<vmem>>, vector<1x16x128xbf16>
    %256 = vector.shape_cast %255 : vector<1x16x128xbf16> to vector<16x128xbf16>
    %257 = vector.shape_cast %254 : vector<16x128xbf16> to vector<1x16x128xbf16>
    tpu.vector_store %arg24[%c0_118, %c0_119, %c0_120], %257 {strides = array<i32>} : memref<1x16x128xbf16, #tpu.memory_space<vmem>>, vector<1x16x128xbf16>,
    return
  }
  func.func @transform_0(%arg0: i32, %arg1: i32) -> (i32, i32, i32) {
    %c0_i32 = arith.constant 0 : i32
    %c0_i32_0 = arith.constant 0 : i32
    %c0_i32_1 = arith.constant 0 : i32
    return %arg0, %c0_i32, %c0_i32_0 : i32, i32, i32
  }
  func.func @transform_1(%arg0: i32, %arg1: i32) -> (i32, i32, i32) {
    %c0_i32 = arith.constant 0 : i32
    %c0_i32_0 = arith.constant 0 : i32
    %c0_i32_1 = arith.constant 0 : i32
    return %arg0, %c0_i32, %c0_i32_0 : i32, i32, i32
  }
  func.func @transform_2(%arg0: i32, %arg1: i32) -> (i32, i32, i32) {
    %c0_i32 = arith.constant 0 : i32
    %c0_i32_0 = arith.constant 0 : i32
    return %arg0, %arg1, %c0_i32 : i32, i32, i32
  }
  func.func @transform_3(%arg0: i32, %arg1: i32) -> (i32, i32, i32) {
    %c0_i32 = arith.constant 0 : i32
    %c0_i32_0 = arith.constant 0 : i32
    %c0_i32_1 = arith.constant 0 : i32
    return %arg0, %c0_i32, %c0_i32_0 : i32, i32, i32
  }
  func.func @transform_4(%arg0: i32, %arg1: i32) -> (i32, i32) {
    %c0_i32 = arith.constant 0 : i32
    %c0_i32_0 = arith.constant 0 : i32
    %c0_i32_1 = arith.constant 0 : i32
    return %c0_i32, %c0_i32_0 : i32, i32
  }
  func.func @transform_5(%arg0: i32, %arg1: i32) -> (i32, i32) {
    %c0_i32 = arith.constant 0 : i32
    %c0_i32_0 = arith.constant 0 : i32
    %c0_i32_1 = arith.constant 0 : i32
    return %c0_i32, %c0_i32_0 : i32, i32
  }
  func.func @transform_6(%arg0: i32, %arg1: i32) -> (i32, i32) {
    %c0_i32 = arith.constant 0 : i32
    %c0_i32_0 = arith.constant 0 : i32
    %c0_i32_1 = arith.constant 0 : i32
    return %c0_i32, %c0_i32_0 : i32, i32
  }
  func.func @transform_7(%arg0: i32, %arg1: i32) -> (i32, i32) {
    %c0_i32 = arith.constant 0 : i32
    %c0_i32_0 = arith.constant 0 : i32
    %c0_i32_1 = arith.constant 0 : i32
    return %c0_i32, %c0_i32_0 : i32, i32
  }
  func.func @transform_8(%arg0: i32, %arg1: i32) -> (i32, i32) {
    %c0_i32 = arith.constant 0 : i32
    %c0_i32_0 = arith.constant 0 : i32
    %c0_i32_1 = arith.constant 0 : i32
    return %c0_i32, %c0_i32_0 : i32, i32
  }
  func.func @transform_9(%arg0: i32, %arg1: i32) -> (i32, i32) {
    %c0_i32 = arith.constant 0 : i32
    %c0_i32_0 = arith.constant 0 : i32
    %c0_i32_1 = arith.constant 0 : i32
    return %c0_i32, %c0_i32_0 : i32, i32
  }
  func.func @transform_10(%arg0: i32, %arg1: i32) -> (i32, i32) {
    %c0_i32 = arith.constant 0 : i32
    %c0_i32_0 = arith.constant 0 : i32
    %c0_i32_1 = arith.constant 0 : i32
    return %c0_i32, %c0_i32_0 : i32, i32
  }
  func.func @transform_11(%arg0: i32, %arg1: i32) -> (i32, i32) {
    %c0_i32 = arith.constant 0 : i32
    %c0_i32_0 = arith.constant 0 : i32
    %c0_i32_1 = arith.constant 0 : i32
    return %c0_i32, %c0_i32_0 : i32, i32
  }
  func.func @transform_12(%arg0: i32, %arg1: i32) -> (i32, i32) {
    %c0_i32 = arith.constant 0 : i32
    %c0_i32_0 = arith.constant 0 : i32
    %c0_i32_1 = arith.constant 0 : i32
    return %c0_i32, %c0_i32_0 : i32, i32
  }
  func.func @transform_13(%arg0: i32, %arg1: i32) -> (i32, i32) {
    %c0_i32 = arith.constant 0 : i32
    %c0_i32_0 = arith.constant 0 : i32
    %c0_i32_1 = arith.constant 0 : i32
    return %c0_i32, %c0_i32_0 : i32, i32
  }
  func.func @transform_14(%arg0: i32, %arg1: i32) -> (i32, i32) {
    %c0_i32 = arith.constant 0 : i32
    %c0_i32_0 = arith.constant 0 : i32
    %c0_i32_1 = arith.constant 0 : i32
    return %c0_i32, %c0_i32_0 : i32, i32
  }
  func.func @transform_15(%arg0: i32, %arg1: i32) -> (i32, i32) {
    %c0_i32 = arith.constant 0 : i32
    %c0_i32_0 = arith.constant 0 : i32
    %c0_i32_1 = arith.constant 0 : i32
    return %c0_i32, %c0_i32_0 : i32, i32
  }
  func.func @transform_16(%arg0: i32, %arg1: i32) -> (i32, i32) {
    %c0_i32 = arith.constant 0 : i32
    %c0_i32_0 = arith.constant 0 : i32
    %c0_i32_1 = arith.constant 0 : i32
    return %c0_i32, %c0_i32_0 : i32, i32
  }
  func.func @transform_17(%arg0: i32, %arg1: i32) -> (i32, i32) {
    %c0_i32 = arith.constant 0 : i32
    %c0_i32_0 = arith.constant 0 : i32
    %c0_i32_1 = arith.constant 0 : i32
    return %c0_i32, %c0_i32_0 : i32, i32
  }
  func.func @transform_18(%arg0: i32, %arg1: i32) -> (i32, i32) {
    %c0_i32 = arith.constant 0 : i32
    %c0_i32_0 = arith.constant 0 : i32
    %c0_i32_1 = arith.constant 0 : i32
    return %c0_i32, %c0_i32_0 : i32, i32
  }
  func.func @transform_19(%arg0: i32, %arg1: i32) -> (i32, i32) {
    %c0_i32 = arith.constant 0 : i32
    %c0_i32_0 = arith.constant 0 : i32
    %c0_i32_1 = arith.constant 0 : i32
    return %c0_i32, %c0_i32_0 : i32, i32
  }
  func.func @transform_20(%arg0: i32, %arg1: i32) -> (i32, i32) {
    %c0_i32 = arith.constant 0 : i32
    %c0_i32_0 = arith.constant 0 : i32
    %c0_i32_1 = arith.constant 0 : i32
    return %c0_i32, %c0_i32_0 : i32, i32
  }
  func.func @transform_21(%arg0: i32, %arg1: i32) -> (i32, i32) {
    %c0_i32 = arith.constant 0 : i32
    %c0_i32_0 = arith.constant 0 : i32
    %c0_i32_1 = arith.constant 0 : i32
    return %c0_i32, %c0_i32_0 : i32, i32
  }
  func.func @transform_22(%arg0: i32, %arg1: i32) -> (i32, i32, i32) {
    %c0_i32 = arith.constant 0 : i32
    %c0_i32_0 = arith.constant 0 : i32
    return %arg0, %arg1, %c0_i32 : i32, i32, i32
  }
}

</mosaic_0001>

<llo_original>
// kernel: decoder_forward.2
$region0: #{decoder_forward.2}
  #allocation0 [shape = 'u32[]', space=smem, size = 0x4, offset = 0x4, fixed_abs, tag = 'smem constant byte address 0x4 - core index']
  #allocation1 [shape = 'u32[144,128]{1,0:T(1,128)}', space=vmem, size = 0x12000, scoped, tag = 'internal scratch']
  #allocation2 [shape = 'bf16[16,128]{1,0:T(16,128)(2,1)}', space=vmem, size = 0x1000, scoped, tag = 'scratch operand']
  #allocation3 [shape = 'bf16[16,128]{1,0:T(16,128)(2,1)}', space=vmem, size = 0x1000, scoped, tag = 'scratch operand']
  #allocation4 [shape = 'bf16[16,128]{1,0:T(16,128)(2,1)}', space=vmem, size = 0x1000, scoped, tag = 'scratch operand']
  #allocation5 [shape = 'bf16[16,128]{1,0:T(16,128)(2,1)}', space=vmem, size = 0x1000, scoped, tag = 'scratch operand']
  %s0 = inlined_call_operand.vmem [shape: bf16[2,16,128], index: 0, kind: input, shape index: {}]
  %s1 = inlined_call_operand.vmem [shape: bf16[2,16,128], index: 1, kind: input, shape index: {}]
  %s2 = inlined_call_operand.vmem [shape: bf16[2,16,16], index: 2, kind: input, shape index: {}]
  %s3 = inlined_call_operand.vmem [shape: bf16[2,1,16], index: 3, kind: input, shape index: {}]
  %s4 = inlined_call_operand.vmem [shape: bf16[128,128], index: 4, kind: input, shape index: {}]
  %s5 = inlined_call_operand.hbm [shape: bf16[128,128], index: 5, kind: input, shape index: {}]
  %s6 = inlined_call_operand.hbm [shape: bf16[128,128], index: 6, kind: input, shape index: {}]
  %s7 = inlined_call_operand.hbm [shape: bf16[128,128], index: 7, kind: input, shape index: {}]
  %s8 = inlined_call_operand.vmem [shape: f32[1,128], index: 8, kind: input, shape index: {}]
  %s9 = inlined_call_operand.hbm [shape: f32[1,128], index: 9, kind: input, shape index: {}]
  %s10 = inlined_call_operand.hbm [shape: bf16[128,128], index: 10, kind: input, shape index: {}]
  %s11 = inlined_call_operand.hbm [shape: bf16[128,128], index: 11, kind: input, shape index: {}]
  %s12 = inlined_call_operand.hbm [shape: bf16[128,128], index: 12, kind: input, shape index: {}]
  %s13 = inlined_call_operand.hbm [shape: bf16[128,128], index: 13, kind: input, shape index: {}]
  %s14 = inlined_call_operand.hbm [shape: f32[1,128], index: 14, kind: input, shape index: {}]
  %s15 = inlined_call_operand.hbm [shape: f32[1,128], index: 15, kind: input, shape index: {}]
  %s16 = inlined_call_operand.vmem [shape: bf16[128,256], index: 16, kind: input, shape index: {}]
  %s17 = inlined_call_operand.hbm [shape: f32[1,256], index: 17, kind: input, shape index: {}]
  %s18 = inlined_call_operand.hbm [shape: bf16[256,128], index: 18, kind: input, shape index: {}]
  %s19 = inlined_call_operand.hbm [shape: f32[1,128], index: 19, kind: input, shape index: {}]
  %s20 = inlined_call_operand.hbm [shape: f32[1,128], index: 20, kind: input, shape index: {}]
  %s21 = inlined_call_operand.hbm [shape: f32[1,128], index: 21, kind: input, shape index: {}]
  %s22 = inlined_call_operand.vmem [shape: bf16[2,16,128], index: 22, kind: output, shape index: {}]
  %s23 = sld [smem:[#allocation0]]
  $region185: #{decoder_forward.2} parent=0
    _
  %s25 = ssub.s32 1, %s23
  %s26 = scalar_select 0, %s25, %s23
  $region1: #{decoder_forward.2} parent=0
    #allocation6 [shape = 'u8[32768]{0}', space=vmem, size = 0x8000, scoped, tag = 'input window, operand 5, single buffered']
    #allocation7 [shape = 's32[2]{0}', space=sflag, size = 0x8, scoped, tag = 'scoped memory for decoder_forward.2']
    #allocation8 [shape = 'u8[32768]{0}', space=vmem, size = 0x8000, scoped, tag = 'input window, operand 6, single buffered']
    #allocation9 [shape = 's32[1]{0}', space=sflag, size = 0x4, scoped, tag = 'scoped memory for decoder_forward.2']
    #allocation10 [shape = 'u8[32768]{0}', space=vmem, size = 0x8000, scoped, tag = 'input window, operand 7, single buffered']
    #allocation11 [shape = 'u8[512]{0}', space=vmem, size = 0x400, scoped, tag = 'input window, operand 9, single buffered']
    #allocation12 [shape = 's32[1]{0}', space=sflag, size = 0x4, scoped, tag = 'scoped memory for decoder_forward.2']
    #allocation13 [shape = 'u8[32768]{0}', space=vmem, size = 0x8000, scoped, tag = 'input window, operand 10, single buffered']
    #allocation14 [shape = 'u8[32768]{0}', space=vmem, size = 0x8000, scoped, tag = 'input window, operand 11, single buffered']
    #allocation15 [shape = 's32[1]{0}', space=sflag, size = 0x4, scoped, tag = 'scoped memory for decoder_forward.2']
    #allocation16 [shape = 'u8[32768]{0}', space=vmem, size = 0x8000, scoped, tag = 'input window, operand 12, single buffered']
    #allocation17 [shape = 'u8[32768]{0}', space=vmem, size = 0x8000, scoped, tag = 'input window, operand 13, single buffered']
    #allocation18 [shape = 's32[1]{0}', space=sflag, size = 0x4, scoped, tag = 'scoped memory for decoder_forward.2']
    #allocation19 [shape = 'u8[512]{0}', space=vmem, size = 0x400, scoped, tag = 'input window, operand 14, single buffered']
    #allocation20 [shape = 'u8[512]{0}', space=vmem, size = 0x400, scoped, tag = 'input window, operand 15, single buffered']
    #allocation21 [shape = 's32[1]{0}', space=sflag, size = 0x4, scoped, tag = 'scoped memory for decoder_forward.2']
    #allocation22 [shape = 'u8[1024]{0}', space=vmem, size = 0x400, scoped, tag = 'input window, operand 17, single buffered']
    #allocation23 [shape = 'u8[65536]{0}', space=vmem, size = 0x10000, scoped, tag = 'input window, operand 18, single buffered']
    #allocation24 [shape = 's32[1]{0}', space=sflag, size = 0x4, scoped, tag = 'scoped memory for decoder_forward.2']
    #allocation25 [shape = 'u8[512]{0}', space=vmem, size = 0x400, scoped, tag = 'input window, operand 19, single buffered']
    #allocation26 [shape = 'u8[512]{0}', space=vmem, size = 0x400, scoped, tag = 'input window, operand 20, single buffered']
    #allocation27 [shape = 's32[1]{0}', space=sflag, size = 0x4, scoped, tag = 'scoped memory for decoder_forward.2']
    #allocation28 [shape = 'u8[512]{0}', space=vmem, size = 0x400, scoped, tag = 'input window, operand 21, single buffered']
    %27 = vsyncpa [#allocation7], 0
    %28 = vsyncpa [#allocation9], 0
    %29 = vsyncpa [#allocation12], 0
    %30 = vsyncpa [#allocation15], 0
    %31 = vsyncpa [#allocation18], 0
    %32 = vsyncpa [#allocation21], 0
    %33 = vsyncpa [#allocation24], 0
    %34 = vsyncpa [#allocation27], 0
    loop: start=0, step=1, limit=4
    $region2: #{decoder_forward.2} parent=1 // loop_pre_header
      _
    $region3: #{decoder_forward.2} parent=1 // loop_header
      %s36 = sphi 0, %s40
      %p37 = scmp.ge.s32.totalorder %s36, 4
      %s43 = sphi 0, %s55
      %s44 = sphi 0, %s51
      %s45 = sphi 0, %s43
      %s46 = sphi 0, %s44
      %s47 = sphi 0, %s45
      %s48 = sphi 0, %s46
      %s58 = sphi 0, %s60
      %s61 = sphi 0, %s58
      %s62 = sphi 0, %s61
      %s78 = sphi 0, %s62
      %s84 = sphi 0, %s86
      %s87 = sphi 0, %s84
      %s88 = sphi 0, %s87
      %s104 = sphi 0, %s88
      %s112 = sphi 0, %s114
      %s115 = sphi 0, %s112
      %s116 = sphi 0, %s115
      %s132 = sphi 0, %s116
      %s138 = sphi 0, %s140
      %s141 = sphi 0, %s138
      %s142 = sphi 0, %s141
      %s158 = sphi 0, %s142
      %s162 = sphi 0, %s162
      %s164 = sphi 0, %s162
      %s165 = sphi 0, %s164
      %s179 = sphi 0, %s165
      %s183 = sphi 0, %s183
      %s185 = sphi 0, %s183
      %s186 = sphi 0, %s185
      %s200 = sphi 0, %s186
      %s204 = sphi 0, %s204
      %s206 = sphi 0, %s204
      %s207 = sphi 0, %s206
      %s221 = sphi 0, %s207
      %s225 = sphi 0, %s225
      %s227 = sphi 0, %s225
      %s228 = sphi 0, %s227
      %s242 = sphi 0, %s228
      %s246 = sphi 0, %s246
      %s248 = sphi 0, %s246
      %s249 = sphi 0, %s248
      %s263 = sphi 0, %s249
      %s267 = sphi 0, %s267
      %s269 = sphi 0, %s267
      %s270 = sphi 0, %s269
      %s284 = sphi 0, %s270
      %s288 = sphi 0, %s288
      %s290 = sphi 0, %s288
      %s291 = sphi 0, %s290
      %s305 = sphi 0, %s291
      %s309 = sphi 0, %s309
      %s311 = sphi 0, %s309
      %s312 = sphi 0, %s311
      %s326 = sphi 0, %s312
      %s330 = sphi 0, %s330
      %s332 = sphi 0, %s330
      %s333 = sphi 0, %s332
      %s347 = sphi 0, %s333
      %s351 = sphi 0, %s351
      %s353 = sphi 0, %s351
      %s354 = sphi 0, %s353
      %s368 = sphi 0, %s354
      %s372 = sphi 0, %s372
      %s374 = sphi 0, %s372
      %s375 = sphi 0, %s374
      %s389 = sphi 0, %s375
      %s393 = sphi 0, %s393
      %s395 = sphi 0, %s393
      %s396 = sphi 0, %s395
      %s410 = sphi 0, %s396
      %s414 = sphi 0, %s414
      %s416 = sphi 0, %s414
      %s417 = sphi 0, %s416
      %s431 = sphi 0, %s417
      %s435 = sphi 0, %s435
      %s437 = sphi 0, %s435
      %s438 = sphi 0, %s437
      %s452 = sphi 0, %s438
      %s456 = sphi 0, %s456
      %s458 = sphi 0, %s456
      %s459 = sphi 0, %s458
      %s473 = sphi 0, %s459
      %s477 = sphi 0, %s477
      %s479 = sphi 0, %s477
      %s480 = sphi 0, %s479
      %s494 = sphi 0, %s480
      %s498 = sphi 0, %s498
      %s500 = sphi 0, %s498
      %s501 = sphi 0, %s500
      %s515 = sphi 0, %s501
      %s519 = sphi 0, %s519
      %s521 = sphi 0, %s519
      %s522 = sphi 0, %s521
      %s536 = sphi 0, %s522
      %s544 = sphi 0, %s546
      %s547 = sphi 0, %s544
      %s548 = sphi 0, %s547
      %s564 = sphi 0, %s548
    $region4: #{decoder_forward.2} parent=1 // loop_header_branch
      %39 = sbr.rel (%p37) target = $region8
    $region5: #{decoder_forward.2} parent=1 // loop_body
      %s41 = ssub.s32 %s36, 1
      %s42 = ssub.s32 %s36, 2
      %s49 = sadd.s32 1, %s44
      %p50 = scmp.ge.s32.totalorder %s49, 1
      %s51 = scalar_select %p50, 0, %s49
      %s52 = sadd.s32 1, %s43
      %s53 = scalar_select %p50, %s52, %s43
      %p54 = scmp.ge.s32.totalorder %s53, 2
      %s55 = scalar_select %p54, 0, %s53
      %s56 = ssub.s32 %s43, %s55
      %p57 = scmp.eq.s32.totalorder %s56, 0
      %s59 = sadd.s32 %s58, 1
      %s60 = scalar_select %p57, %s58, %s59
      %p63 = pneg %p57
      %p64 = scmp.eq.s32.totalorder %s36, 1
      %p65 = por %p63, %p64
      %p66 = scmp.ne.s32.totalorder %s58, %s61
      %p67 = scmp.eq.s32.totalorder %s36, 0
      %p68 = por %p66, %p67
      %p69 = scmp.ne.s32.totalorder %s58, %s61
      %p70 = scmp.eq.s32.totalorder %s41, 1
      %p71 = por %p69, %p70
      %p72 = scmp.ne.s32.totalorder %s61, %s62
      %p73 = scmp.eq.s32.totalorder %s41, 0
      %p74 = por %p72, %p73
      %p75 = scmp.ne.s32.totalorder %s61, %s62
      %p76 = scmp.eq.s32.totalorder %s42, 1
      %p77 = por %p75, %p76
      %p79 = scmp.ne.s32.totalorder %s62, %s78
      %p80 = scmp.eq.s32.totalorder %s42, 0
      %p81 = por %p79, %p80
      %s82 = ssub.s32 %s43, %s55
      %p83 = scmp.eq.s32.totalorder %s82, 0
      %s85 = sadd.s32 %s84, 1
      %s86 = scalar_select %p83, %s84, %s85
      %p89 = pneg %p83
      %p90 = scmp.eq.s32.totalorder %s36, 1
      %p91 = por %p89, %p90
      %p92 = scmp.ne.s32.totalorder %s84, %s87
      %p93 = scmp.eq.s32.totalorder %s36, 0
      %p94 = por %p92, %p93
      %p95 = scmp.ne.s32.totalorder %s84, %s87
      %p96 = scmp.eq.s32.totalorder %s41, 1
      %p97 = por %p95, %p96
      %p98 = scmp.ne.s32.totalorder %s87, %s88
      %p99 = scmp.eq.s32.totalorder %s41, 0
      %p100 = por %p98, %p99
      %p101 = scmp.ne.s32.totalorder %s87, %s88
      %p102 = scmp.eq.s32.totalorder %s42, 1
      %p103 = por %p101, %p102
      %p105 = scmp.ne.s32.totalorder %s88, %s104
      %p106 = scmp.eq.s32.totalorder %s42, 0
      %p107 = por %p105, %p106
      %s108 = ssub.s32 %s43, %s55
      %s109 = ssub.s32 %s44, %s51
      %s110 = sor.u32 %s108, %s109
      %p111 = scmp.eq.s32.totalorder %s110, 0
      %s113 = sadd.s32 %s112, 1
      %s114 = scalar_select %p111, %s112, %s113
      %p117 = pneg %p111
      %p118 = scmp.eq.s32.totalorder %s36, 1
      %p119 = por %p117, %p118
      %p120 = scmp.ne.s32.totalorder %s112, %s115
      %p121 = scmp.eq.s32.totalorder %s36, 0
      %p122 = por %p120, %p121
      %p123 = scmp.ne.s32.totalorder %s112, %s115
      %p124 = scmp.eq.s32.totalorder %s41, 1
      %p125 = por %p123, %p124
      %p126 = scmp.ne.s32.totalorder %s115, %s116
      %p127 = scmp.eq.s32.totalorder %s41, 0
      %p128 = por %p126, %p127
      %p129 = scmp.ne.s32.totalorder %s115, %s116
      %p130 = scmp.eq.s32.totalorder %s42, 1
      %p131 = por %p129, %p130
      %p133 = scmp.ne.s32.totalorder %s116, %s132
      %p134 = scmp.eq.s32.totalorder %s42, 0
      %p135 = por %p133, %p134
      %s136 = ssub.s32 %s43, %s55
      %p137 = scmp.eq.s32.totalorder %s136, 0
      %s139 = sadd.s32 %s138, 1
      %s140 = scalar_select %p137, %s138, %s139
      %p143 = pneg %p137
      %p144 = scmp.eq.s32.totalorder %s36, 1
      %p145 = por %p143, %p144
      %p146 = scmp.ne.s32.totalorder %s138, %s141
      %p147 = scmp.eq.s32.totalorder %s36, 0
      %p148 = por %p146, %p147
      %p149 = scmp.ne.s32.totalorder %s138, %s141
      %p150 = scmp.eq.s32.totalorder %s41, 1
      %p151 = por %p149, %p150
      %p152 = scmp.ne.s32.totalorder %s141, %s142
      %p153 = scmp.eq.s32.totalorder %s41, 0
      %p154 = por %p152, %p153
      %p155 = scmp.ne.s32.totalorder %s141, %s142
      %p156 = scmp.eq.s32.totalorder %s42, 1
      %p157 = por %p155, %p156
      %p159 = scmp.ne.s32.totalorder %s142, %s158
      %p160 = scmp.eq.s32.totalorder %s42, 0
      %p161 = por %p159, %p160
      %s163 = sadd.s32 %s162, 1
      %p166 = scmp.eq.s32.totalorder %s36, 1
      %p167 = scmp.ne.s32.totalorder %s162, %s164
      %p168 = scmp.eq.s32.totalorder %s36, 0
      %p169 = por %p167, %p168
      %p170 = scmp.ne.s32.totalorder %s162, %s164
      %p171 = scmp.eq.s32.totalorder %s41, 1
      %p172 = por %p170, %p171
      %p173 = scmp.ne.s32.totalorder %s164, %s165
      %p174 = scmp.eq.s32.totalorder %s41, 0
      %p175 = por %p173, %p174
      %p176 = scmp.ne.s32.totalorder %s164, %s165
      %p177 = scmp.eq.s32.totalorder %s42, 1
      %p178 = por %p176, %p177
      %p180 = scmp.ne.s32.totalorder %s165, %s179
      %p181 = scmp.eq.s32.totalorder %s42, 0
      %p182 = por %p180, %p181
      %s184 = sadd.s32 %s183, 1
      %p187 = scmp.eq.s32.totalorder %s36, 1
      %p188 = scmp.ne.s32.totalorder %s183, %s185
      %p189 = scmp.eq.s32.totalorder %s36, 0
      %p190 = por %p188, %p189
      %p191 = scmp.ne.s32.totalorder %s183, %s185
      %p192 = scmp.eq.s32.totalorder %s41, 1
      %p193 = por %p191, %p192
      %p194 = scmp.ne.s32.totalorder %s185, %s186
      %p195 = scmp.eq.s32.totalorder %s41, 0
      %p196 = por %p194, %p195
      %p197 = scmp.ne.s32.totalorder %s185, %s186
      %p198 = scmp.eq.s32.totalorder %s42, 1
      %p199 = por %p197, %p198
      %p201 = scmp.ne.s32.totalorder %s186, %s200
      %p202 = scmp.eq.s32.totalorder %s42, 0
      %p203 = por %p201, %p202
      %s205 = sadd.s32 %s204, 1
      %p208 = scmp.eq.s32.totalorder %s36, 1
      %p209 = scmp.ne.s32.totalorder %s204, %s206
      %p210 = scmp.eq.s32.totalorder %s36, 0
      %p211 = por %p209, %p210
      %p212 = scmp.ne.s32.totalorder %s204, %s206
      %p213 = scmp.eq.s32.totalorder %s41, 1
      %p214 = por %p212, %p213
      %p215 = scmp.ne.s32.totalorder %s206, %s207
      %p216 = scmp.eq.s32.totalorder %s41, 0
      %p217 = por %p215, %p216
      %p218 = scmp.ne.s32.totalorder %s206, %s207
      %p219 = scmp.eq.s32.totalorder %s42, 1
      %p220 = por %p218, %p219
      %p222 = scmp.ne.s32.totalorder %s207, %s221
      %p223 = scmp.eq.s32.totalorder %s42, 0
      %p224 = por %p222, %p223
      %s226 = sadd.s32 %s225, 1
      %p229 = scmp.eq.s32.totalorder %s36, 1
      %p230 = scmp.ne.s32.totalorder %s225, %s227
      %p231 = scmp.eq.s32.totalorder %s36, 0
      %p232 = por %p230, %p231
      %p233 = scmp.ne.s32.totalorder %s225, %s227
      %p234 = scmp.eq.s32.totalorder %s41, 1
      %p235 = por %p233, %p234
      %p236 = scmp.ne.s32.totalorder %s227, %s228
      %p237 = scmp.eq.s32.totalorder %s41, 0
      %p238 = por %p236, %p237
      %p239 = scmp.ne.s32.totalorder %s227, %s228
      %p240 = scmp.eq.s32.totalorder %s42, 1
      %p241 = por %p239, %p240
      %p243 = scmp.ne.s32.totalorder %s228, %s242
      %p244 = scmp.eq.s32.totalorder %s42, 0
      %p245 = por %p243, %p244
      %s247 = sadd.s32 %s246, 1
      %p250 = scmp.eq.s32.totalorder %s36, 1
      %p251 = scmp.ne.s32.totalorder %s246, %s248
      %p252 = scmp.eq.s32.totalorder %s36, 0
      %p253 = por %p251, %p252
      %p254 = scmp.ne.s32.totalorder %s246, %s248
      %p255 = scmp.eq.s32.totalorder %s41, 1
      %p256 = por %p254, %p255
      %p257 = scmp.ne.s32.totalorder %s248, %s249
      %p258 = scmp.eq.s32.totalorder %s41, 0
      %p259 = por %p257, %p258
      %p260 = scmp.ne.s32.totalorder %s248, %s249
      %p261 = scmp.eq.s32.totalorder %s42, 1
      %p262 = por %p260, %p261
      %p264 = scmp.ne.s32.totalorder %s249, %s263
      %p265 = scmp.eq.s32.totalorder %s42, 0
      %p266 = por %p264, %p265
      %s268 = sadd.s32 %s267, 1
      %p271 = scmp.eq.s32.totalorder %s36, 1
      %p272 = scmp.ne.s32.totalorder %s267, %s269
      %p273 = scmp.eq.s32.totalorder %s36, 0
      %p274 = por %p272, %p273
      %p275 = scmp.ne.s32.totalorder %s267, %s269
      %p276 = scmp.eq.s32.totalorder %s41, 1
      %p277 = por %p275, %p276
      %p278 = scmp.ne.s32.totalorder %s269, %s270
      %p279 = scmp.eq.s32.totalorder %s41, 0
      %p280 = por %p278, %p279
      %p281 = scmp.ne.s32.totalorder %s269, %s270
      %p282 = scmp.eq.s32.totalorder %s42, 1
      %p283 = por %p281, %p282
      %p285 = scmp.ne.s32.totalorder %s270, %s284
      %p286 = scmp.eq.s32.totalorder %s42, 0
      %p287 = por %p285, %p286
      %s289 = sadd.s32 %s288, 1
      %p292 = scmp.eq.s32.totalorder %s36, 1
      %p293 = scmp.ne.s32.totalorder %s288, %s290
      %p294 = scmp.eq.s32.totalorder %s36, 0
      %p295 = por %p293, %p294
      %p296 = scmp.ne.s32.totalorder %s288, %s290
      %p297 = scmp.eq.s32.totalorder %s41, 1
      %p298 = por %p296, %p297
      %p299 = scmp.ne.s32.totalorder %s290, %s291
      %p300 = scmp.eq.s32.totalorder %s41, 0
      %p301 = por %p299, %p300
      %p302 = scmp.ne.s32.totalorder %s290, %s291
      %p303 = scmp.eq.s32.totalorder %s42, 1
      %p304 = por %p302, %p303
      %p306 = scmp.ne.s32.totalorder %s291, %s305
      %p307 = scmp.eq.s32.totalorder %s42, 0
      %p308 = por %p306, %p307
      %s310 = sadd.s32 %s309, 1
      %p313 = scmp.eq.s32.totalorder %s36, 1
      %p314 = scmp.ne.s32.totalorder %s309, %s311
      %p315 = scmp.eq.s32.totalorder %s36, 0
      %p316 = por %p314, %p315
      %p317 = scmp.ne.s32.totalorder %s309, %s311
      %p318 = scmp.eq.s32.totalorder %s41, 1
      %p319 = por %p317, %p318
      %p320 = scmp.ne.s32.totalorder %s311, %s312
      %p321 = scmp.eq.s32.totalorder %s41, 0
      %p322 = por %p320, %p321
      %p323 = scmp.ne.s32.totalorder %s311, %s312
      %p324 = scmp.eq.s32.totalorder %s42, 1
      %p325 = por %p323, %p324
      %p327 = scmp.ne.s32.totalorder %s312, %s326
      %p328 = scmp.eq.s32.totalorder %s42, 0
      %p329 = por %p327, %p328
      %s331 = sadd.s32 %s330, 1
      %p334 = scmp.eq.s32.totalorder %s36, 1
      %p335 = scmp.ne.s32.totalorder %s330, %s332
      %p336 = scmp.eq.s32.totalorder %s36, 0
      %p337 = por %p335, %p336
      %p338 = scmp.ne.s32.totalorder %s330, %s332
      %p339 = scmp.eq.s32.totalorder %s41, 1
      %p340 = por %p338, %p339
      %p341 = scmp.ne.s32.totalorder %s332, %s333
      %p342 = scmp.eq.s32.totalorder %s41, 0
      %p343 = por %p341, %p342
      %p344 = scmp.ne.s32.totalorder %s332, %s333
      %p345 = scmp.eq.s32.totalorder %s42, 1
      %p346 = por %p344, %p345
      %p348 = scmp.ne.s32.totalorder %s333, %s347
      %p349 = scmp.eq.s32.totalorder %s42, 0
      %p350 = por %p348, %p349
      %s352 = sadd.s32 %s351, 1
      %p355 = scmp.eq.s32.totalorder %s36, 1
      %p356 = scmp.ne.s32.totalorder %s351, %s353
      %p357 = scmp.eq.s32.totalorder %s36, 0
      %p358 = por %p356, %p357
      %p359 = scmp.ne.s32.totalorder %s351, %s353
      %p360 = scmp.eq.s32.totalorder %s41, 1
      %p361 = por %p359, %p360
      %p362 = scmp.ne.s32.totalorder %s353, %s354
      %p363 = scmp.eq.s32.totalorder %s41, 0
      %p364 = por %p362, %p363
      %p365 = scmp.ne.s32.totalorder %s353, %s354
      %p366 = scmp.eq.s32.totalorder %s42, 1
      %p367 = por %p365, %p366
      %p369 = scmp.ne.s32.totalorder %s354, %s368
      %p370 = scmp.eq.s32.totalorder %s42, 0
      %p371 = por %p369, %p370
      %s373 = sadd.s32 %s372, 1
      %p376 = scmp.eq.s32.totalorder %s36, 1
      %p377 = scmp.ne.s32.totalorder %s372, %s374
      %p378 = scmp.eq.s32.totalorder %s36, 0
      %p379 = por %p377, %p378
      %p380 = scmp.ne.s32.totalorder %s372, %s374
      %p381 = scmp.eq.s32.totalorder %s41, 1
      %p382 = por %p380, %p381
      %p383 = scmp.ne.s32.totalorder %s374, %s375
      %p384 = scmp.eq.s32.totalorder %s41, 0
      %p385 = por %p383, %p384
      %p386 = scmp.ne.s32.totalorder %s374, %s375
      %p387 = scmp.eq.s32.totalorder %s42, 1
      %p388 = por %p386, %p387
      %p390 = scmp.ne.s32.totalorder %s375, %s389
      %p391 = scmp.eq.s32.totalorder %s42, 0
      %p392 = por %p390, %p391
      %s394 = sadd.s32 %s393, 1
      %p397 = scmp.eq.s32.totalorder %s36, 1
      %p398 = scmp.ne.s32.totalorder %s393, %s395
      %p399 = scmp.eq.s32.totalorder %s36, 0
      %p400 = por %p398, %p399
      %p401 = scmp.ne.s32.totalorder %s393, %s395
      %p402 = scmp.eq.s32.totalorder %s41, 1
      %p403 = por %p401, %p402
      %p404 = scmp.ne.s32.totalorder %s395, %s396
      %p405 = scmp.eq.s32.totalorder %s41, 0
      %p406 = por %p404, %p405
      %p407 = scmp.ne.s32.totalorder %s395, %s396
      %p408 = scmp.eq.s32.totalorder %s42, 1
      %p409 = por %p407, %p408
      %p411 = scmp.ne.s32.totalorder %s396, %s410
      %p412 = scmp.eq.s32.totalorder %s42, 0
      %p413 = por %p411, %p412
      %s415 = sadd.s32 %s414, 1
      %p418 = scmp.eq.s32.totalorder %s36, 1
      %p419 = scmp.ne.s32.totalorder %s414, %s416
      %p420 = scmp.eq.s32.totalorder %s36, 0
      %p421 = por %p419, %p420
      %p422 = scmp.ne.s32.totalorder %s414, %s416
      %p423 = scmp.eq.s32.totalorder %s41, 1
      %p424 = por %p422, %p423
      %p425 = scmp.ne.s32.totalorder %s416, %s417
      %p426 = scmp.eq.s32.totalorder %s41, 0
      %p427 = por %p425, %p426
      %p428 = scmp.ne.s32.totalorder %s416, %s417
      %p429 = scmp.eq.s32.totalorder %s42, 1
      %p430 = por %p428, %p429
      %p432 = scmp.ne.s32.totalorder %s417, %s431
      %p433 = scmp.eq.s32.totalorder %s42, 0
      %p434 = por %p432, %p433
      %s436 = sadd.s32 %s435, 1
      %p439 = scmp.eq.s32.totalorder %s36, 1
      %p440 = scmp.ne.s32.totalorder %s435, %s437
      %p441 = scmp.eq.s32.totalorder %s36, 0
      %p442 = por %p440, %p441
      %p443 = scmp.ne.s32.totalorder %s435, %s437
      %p444 = scmp.eq.s32.totalorder %s41, 1
      %p445 = por %p443, %p444
      %p446 = scmp.ne.s32.totalorder %s437, %s438
      %p447 = scmp.eq.s32.totalorder %s41, 0
      %p448 = por %p446, %p447
      %p449 = scmp.ne.s32.totalorder %s437, %s438
      %p450 = scmp.eq.s32.totalorder %s42, 1
      %p451 = por %p449, %p450
      %p453 = scmp.ne.s32.totalorder %s438, %s452
      %p454 = scmp.eq.s32.totalorder %s42, 0
      %p455 = por %p453, %p454
      %s457 = sadd.s32 %s456, 1
      %p460 = scmp.eq.s32.totalorder %s36, 1
      %p461 = scmp.ne.s32.totalorder %s456, %s458
      %p462 = scmp.eq.s32.totalorder %s36, 0
      %p463 = por %p461, %p462
      %p464 = scmp.ne.s32.totalorder %s456, %s458
      %p465 = scmp.eq.s32.totalorder %s41, 1
      %p466 = por %p464, %p465
      %p467 = scmp.ne.s32.totalorder %s458, %s459
      %p468 = scmp.eq.s32.totalorder %s41, 0
      %p469 = por %p467, %p468
      %p470 = scmp.ne.s32.totalorder %s458, %s459
      %p471 = scmp.eq.s32.totalorder %s42, 1
      %p472 = por %p470, %p471
      %p474 = scmp.ne.s32.totalorder %s459, %s473
      %p475 = scmp.eq.s32.totalorder %s42, 0
      %p476 = por %p474, %p475
      %s478 = sadd.s32 %s477, 1
      %p481 = scmp.eq.s32.totalorder %s36, 1
      %p482 = scmp.ne.s32.totalorder %s477, %s479
      %p483 = scmp.eq.s32.totalorder %s36, 0
      %p484 = por %p482, %p483
      %p485 = scmp.ne.s32.totalorder %s477, %s479
      %p486 = scmp.eq.s32.totalorder %s41, 1
      %p487 = por %p485, %p486
      %p488 = scmp.ne.s32.totalorder %s479, %s480
      %p489 = scmp.eq.s32.totalorder %s41, 0
      %p490 = por %p488, %p489
      %p491 = scmp.ne.s32.totalorder %s479, %s480
      %p492 = scmp.eq.s32.totalorder %s42, 1
      %p493 = por %p491, %p492
      %p495 = scmp.ne.s32.totalorder %s480, %s494
      %p496 = scmp.eq.s32.totalorder %s42, 0
      %p497 = por %p495, %p496
      %s499 = sadd.s32 %s498, 1
      %p502 = scmp.eq.s32.totalorder %s36, 1
      %p503 = scmp.ne.s32.totalorder %s498, %s500
      %p504 = scmp.eq.s32.totalorder %s36, 0
      %p505 = por %p503, %p504
      %p506 = scmp.ne.s32.totalorder %s498, %s500
      %p507 = scmp.eq.s32.totalorder %s41, 1
      %p508 = por %p506, %p507
      %p509 = scmp.ne.s32.totalorder %s500, %s501
      %p510 = scmp.eq.s32.totalorder %s41, 0
      %p511 = por %p509, %p510
      %p512 = scmp.ne.s32.totalorder %s500, %s501
      %p513 = scmp.eq.s32.totalorder %s42, 1
      %p514 = por %p512, %p513
      %p516 = scmp.ne.s32.totalorder %s501, %s515
      %p517 = scmp.eq.s32.totalorder %s42, 0
      %p518 = por %p516, %p517
      %s520 = sadd.s32 %s519, 1
      %p523 = scmp.eq.s32.totalorder %s36, 1
      %p524 = scmp.ne.s32.totalorder %s519, %s521
      %p525 = scmp.eq.s32.totalorder %s36, 0
      %p526 = por %p524, %p525
      %p527 = scmp.ne.s32.totalorder %s519, %s521
      %p528 = scmp.eq.s32.totalorder %s41, 1
      %p529 = por %p527, %p528
      %p530 = scmp.ne.s32.totalorder %s521, %s522
      %p531 = scmp.eq.s32.totalorder %s41, 0
      %p532 = por %p530, %p531
      %p533 = scmp.ne.s32.totalorder %s521, %s522
      %p534 = scmp.eq.s32.totalorder %s42, 1
      %p535 = por %p533, %p534
      %p537 = scmp.ne.s32.totalorder %s522, %s536
      %p538 = scmp.eq.s32.totalorder %s42, 0
      %p539 = por %p537, %p538
      %s540 = ssub.s32 %s43, %s55
      %s541 = ssub.s32 %s44, %s51
      %s542 = sor.u32 %s540, %s541
      %p543 = scmp.eq.s32.totalorder %s542, 0
      %s545 = sadd.s32 %s544, 1
      %s546 = scalar_select %p543, %s544, %s545
      %p549 = pneg %p543
      %p550 = scmp.eq.s32.totalorder %s36, 1
      %p551 = por %p549, %p550
      %p552 = scmp.ne.s32.totalorder %s544, %s547
      %p553 = scmp.eq.s32.totalorder %s36, 0
      %p554 = por %p552, %p553
      %p555 = scmp.ne.s32.totalorder %s544, %s547
      %p556 = scmp.eq.s32.totalorder %s41, 1
      %p557 = por %p555, %p556
      %p558 = scmp.ne.s32.totalorder %s547, %s548
      %p559 = scmp.eq.s32.totalorder %s41, 0
      %p560 = por %p558, %p559
      %p561 = scmp.ne.s32.totalorder %s547, %s548
      %p562 = scmp.eq.s32.totalorder %s42, 1
      %p563 = por %p561, %p562
      %p565 = scmp.ne.s32.totalorder %s548, %s564
      %p566 = scmp.eq.s32.totalorder %s42, 0
      %p567 = por %p565, %p566
      %p568 = scmp.le.s32.totalorder 1, %s36
      %p569 = scmp.lt.s32.totalorder %s36, 3
      %p570 = pnand %p568, %p569
      %p571 = pneg %p570
      // Predicated region
      $region9: #{decoder_forward.2} parent=5 // pred_check
        _
      $region10: #{decoder_forward.2} parent=5 // pred_check_branch
        %573 = sbr.rel (%p570) target = $region12
      $region11: #{decoder_forward.2} parent=5 // pred_region
        %s574 = ssub.s32 %s36, 1
        // Predicated region
        $region13: #{decoder_forward.2} parent=11 // pred_check
          %p575 = pneg %p175
        $region14: #{decoder_forward.2} parent=11 // pred_check_branch
          %577 = sbr.rel (%p575) target = $region16
        $region15: #{decoder_forward.2} parent=11 // pred_region
          _
        $region16: #{decoder_forward.2} parent=11 // pred_fallthru
          _
        // Predicated region
        $region17: #{decoder_forward.2} parent=11 // pred_check
          %p578 = pneg %p196
        $region18: #{decoder_forward.2} parent=11 // pred_check_branch
          %580 = sbr.rel (%p578) target = $region20
        $region19: #{decoder_forward.2} parent=11 // pred_region
          %s582 = ssub.s32 1024, 1024
          %583 = vsyncadd [#allocation7], %s582
          %s584 = sshll.u32 [#allocation6], 4
          %s585 = int_to_ptr.vmem [resolvable:$true] %s584
          %590 = dma.hbm_to_vmem [thread:$0]  %s5, 1024, %s585, [#allocation7], 64, 64, 4
        $region20: #{decoder_forward.2} parent=11 // pred_fallthru
          _
        // Predicated region
        $region21: #{decoder_forward.2} parent=11 // pred_check
          %p591 = pneg %p217
        $region22: #{decoder_forward.2} parent=11 // pred_check_branch
          %593 = sbr.rel (%p591) target = $region24
        $region23: #{decoder_forward.2} parent=11 // pred_region
          %s595 = ssub.s32 1024, 1024
          %596 = vsyncadd [#allocation9], %s595
          %s597 = sshll.u32 [#allocation8], 4
          %s598 = int_to_ptr.vmem [resolvable:$true] %s597
          %603 = dma.hbm_to_vmem [thread:$0]  %s6, 1024, %s598, [#allocation9], 64, 64, 4
        $region24: #{decoder_forward.2} parent=11 // pred_fallthru
          _
        // Predicated region
        $region25: #{decoder_forward.2} parent=11 // pred_check
          %p604 = pneg %p238
        $region26: #{decoder_forward.2} parent=11 // pred_check_branch
          %606 = sbr.rel (%p604) target = $region28
        $region27: #{decoder_forward.2} parent=11 // pred_region
          %s608 = ssub.s32 1024, 1024
          %609 = vsyncadd [#allocation9], %s608
          %s610 = sshll.u32 [#allocation10], 4
          %s611 = int_to_ptr.vmem [resolvable:$true] %s610
          %616 = dma.hbm_to_vmem [thread:$0]  %s7, 1024, %s611, [#allocation9], 64, 64, 4
        $region28: #{decoder_forward.2} parent=11 // pred_fallthru
          _
        // Predicated region
        $region29: #{decoder_forward.2} parent=11 // pred_check
          %p617 = pneg %p259
        $region30: #{decoder_forward.2} parent=11 // pred_check_branch
          %619 = sbr.rel (%p617) target = $region32
        $region31: #{decoder_forward.2} parent=11 // pred_region
          _
        $region32: #{decoder_forward.2} parent=11 // pred_fallthru
          _
        // Predicated region
        $region33: #{decoder_forward.2} parent=11 // pred_check
          %p620 = pneg %p280
        $region34: #{decoder_forward.2} parent=11 // pred_check_branch
          %622 = sbr.rel (%p620) target = $region36
        $region35: #{decoder_forward.2} parent=11 // pred_region
          %s624 = ssub.s32 16, 16
          %625 = vsyncadd [#allocation12], %s624
          %s627 = sshll.u32 [#allocation11], 4
          %s628 = int_to_ptr.vmem [resolvable:$true] %s627
          %630 = dma.hbm_to_vmem [thread:$0]  %s9, 16, %s628, [#allocation12]
        $region36: #{decoder_forward.2} parent=11 // pred_fallthru
          _
        // Predicated region
        $region37: #{decoder_forward.2} parent=11 // pred_check
          %p631 = pneg %p301
        $region38: #{decoder_forward.2} parent=11 // pred_check_branch
          %633 = sbr.rel (%p631) target = $region40
        $region39: #{decoder_forward.2} parent=11 // pred_region
          %s635 = ssub.s32 1024, 1024
          %636 = vsyncadd [#allocation12], %s635
          %s637 = sshll.u32 [#allocation13], 4
          %s638 = int_to_ptr.vmem [resolvable:$true] %s637
          %643 = dma.hbm_to_vmem [thread:$0]  %s10, 1024, %s638, [#allocation12], 64, 64, 4
        $region40: #{decoder_forward.2} parent=11 // pred_fallthru
          _
        // Predicated region
        $region41: #{decoder_forward.2} parent=11 // pred_check
          %p644 = pneg %p322
        $region42: #{decoder_forward.2} parent=11 // pred_check_branch
          %646 = sbr.rel (%p644) target = $region44
        $region43: #{decoder_forward.2} parent=11 // pred_region
          %s648 = ssub.s32 1024, 1024
          %649 = vsyncadd [#allocation15], %s648
          %s650 = sshll.u32 [#allocation14], 4
          %s651 = int_to_ptr.vmem [resolvable:$true] %s650
          %656 = dma.hbm_to_vmem [thread:$0]  %s11, 1024, %s651, [#allocation15], 64, 64, 4
        $region44: #{decoder_forward.2} parent=11 // pred_fallthru
          _
        // Predicated region
        $region45: #{decoder_forward.2} parent=11 // pred_check
          %p657 = pneg %p343
        $region46: #{decoder_forward.2} parent=11 // pred_check_branch
          %659 = sbr.rel (%p657) target = $region48
        $region47: #{decoder_forward.2} parent=11 // pred_region
          %s661 = ssub.s32 1024, 1024
          %662 = vsyncadd [#allocation15], %s661
          %s663 = sshll.u32 [#allocation16], 4
          %s664 = int_to_ptr.vmem [resolvable:$true] %s663
          %669 = dma.hbm_to_vmem [thread:$0]  %s12, 1024, %s664, [#allocation15], 64, 64, 4
        $region48: #{decoder_forward.2} parent=11 // pred_fallthru
          _
        // Predicated region
        $region49: #{decoder_forward.2} parent=11 // pred_check
          %p670 = pneg %p364
        $region50: #{decoder_forward.2} parent=11 // pred_check_branch
          %672 = sbr.rel (%p670) target = $region52
        $region51: #{decoder_forward.2} parent=11 // pred_region
          %s674 = ssub.s32 1024, 1024
          %675 = vsyncadd [#allocation18], %s674
          %s676 = sshll.u32 [#allocation17], 4
          %s677 = int_to_ptr.vmem [resolvable:$true] %s676
          %682 = dma.hbm_to_vmem [thread:$0]  %s13, 1024, %s677, [#allocation18], 64, 64, 4
        $region52: #{decoder_forward.2} parent=11 // pred_fallthru
          _
        // Predicated region
        $region53: #{decoder_forward.2} parent=11 // pred_check
          %p683 = pneg %p385
        $region54: #{decoder_forward.2} parent=11 // pred_check_branch
          %685 = sbr.rel (%p683) target = $region56
        $region55: #{decoder_forward.2} parent=11 // pred_region
          %s687 = ssub.s32 16, 16
          %688 = vsyncadd [#allocation18], %s687
          %s690 = sshll.u32 [#allocation19], 4
          %s691 = int_to_ptr.vmem [resolvable:$true] %s690
          %693 = dma.hbm_to_vmem [thread:$0]  %s14, 16, %s691, [#allocation18]
        $region56: #{decoder_forward.2} parent=11 // pred_fallthru
          _
        // Predicated region
        $region57: #{decoder_forward.2} parent=11 // pred_check
          %p694 = pneg %p406
        $region58: #{decoder_forward.2} parent=11 // pred_check_branch
          %696 = sbr.rel (%p694) target = $region60
        $region59: #{decoder_forward.2} parent=11 // pred_region
          %s698 = ssub.s32 16, 16
          %699 = vsyncadd [#allocation21], %s698
          %s701 = sshll.u32 [#allocation20], 4
          %s702 = int_to_ptr.vmem [resolvable:$true] %s701
          %704 = dma.hbm_to_vmem [thread:$0]  %s15, 16, %s702, [#allocation21]
        $region60: #{decoder_forward.2} parent=11 // pred_fallthru
          _
        // Predicated region
        $region61: #{decoder_forward.2} parent=11 // pred_check
          %p705 = pneg %p427
        $region62: #{decoder_forward.2} parent=11 // pred_check_branch
          %707 = sbr.rel (%p705) target = $region64
        $region63: #{decoder_forward.2} parent=11 // pred_region
          _
        $region64: #{decoder_forward.2} parent=11 // pred_fallthru
          _
        // Predicated region
        $region65: #{decoder_forward.2} parent=11 // pred_check
          %p708 = pneg %p448
        $region66: #{decoder_forward.2} parent=11 // pred_check_branch
          %710 = sbr.rel (%p708) target = $region68
        $region67: #{decoder_forward.2} parent=11 // pred_region
          %s712 = ssub.s32 32, 32
          %713 = vsyncadd [#allocation21], %s712
          %s715 = sshll.u32 [#allocation22], 4
          %s716 = int_to_ptr.vmem [resolvable:$true] %s715
          %718 = dma.hbm_to_vmem [thread:$0]  %s17, 32, %s716, [#allocation21]
        $region68: #{decoder_forward.2} parent=11 // pred_fallthru
          _
        // Predicated region
        $region69: #{decoder_forward.2} parent=11 // pred_check
          %p719 = pneg %p469
        $region70: #{decoder_forward.2} parent=11 // pred_check_branch
          %721 = sbr.rel (%p719) target = $region72
        $region71: #{decoder_forward.2} parent=11 // pred_region
          %s723 = ssub.s32 2048, 2048
          %724 = vsyncadd [#allocation24], %s723
          %s725 = sshll.u32 [#allocation23], 4
          %s726 = int_to_ptr.vmem [resolvable:$true] %s725
          %731 = dma.hbm_to_vmem [thread:$0]  %s18, 2048, %s726, [#allocation24], 64, 64, 4
        $region72: #{decoder_forward.2} parent=11 // pred_fallthru
          _
        // Predicated region
        $region73: #{decoder_forward.2} parent=11 // pred_check
          %p732 = pneg %p490
        $region74: #{decoder_forward.2} parent=11 // pred_check_branch
          %734 = sbr.rel (%p732) target = $region76
        $region75: #{decoder_forward.2} parent=11 // pred_region
          %s736 = ssub.s32 16, 16
          %737 = vsyncadd [#allocation24], %s736
          %s739 = sshll.u32 [#allocation25], 4
          %s740 = int_to_ptr.vmem [resolvable:$true] %s739
          %742 = dma.hbm_to_vmem [thread:$0]  %s19, 16, %s740, [#allocation24]
        $region76: #{decoder_forward.2} parent=11 // pred_fallthru
          _
        // Predicated region
        $region77: #{decoder_forward.2} parent=11 // pred_check
          %p743 = pneg %p511
        $region78: #{decoder_forward.2} parent=11 // pred_check_branch
          %745 = sbr.rel (%p743) target = $region80
        $region79: #{decoder_forward.2} parent=11 // pred_region
          %s747 = ssub.s32 16, 16
          %748 = vsyncadd [#allocation27], %s747
          %s750 = sshll.u32 [#allocation26], 4
          %s751 = int_to_ptr.vmem [resolvable:$true] %s750
          %753 = dma.hbm_to_vmem [thread:$0]  %s20, 16, %s751, [#allocation27]
        $region80: #{decoder_forward.2} parent=11 // pred_fallthru
          _
        // Predicated region
        $region81: #{decoder_forward.2} parent=11 // pred_check
          %p754 = pneg %p532
        $region82: #{decoder_forward.2} parent=11 // pred_check_branch
          %756 = sbr.rel (%p754) target = $region84
        $region83: #{decoder_forward.2} parent=11 // pred_region
          %s758 = ssub.s32 16, 16
          %759 = vsyncadd [#allocation27], %s758
          %s761 = sshll.u32 [#allocation28], 4
          %s762 = int_to_ptr.vmem [resolvable:$true] %s761
          %764 = dma.hbm_to_vmem [thread:$0]  %s21, 16, %s762, [#allocation27]
        $region84: #{decoder_forward.2} parent=11 // pred_fallthru
          _
      $region12: #{decoder_forward.2} parent=5 // pred_fallthru
        _
      %p765 = scmp.lt.s32.totalorder %s36, 2
      // Predicated region
      $region85: #{decoder_forward.2} parent=5 // pred_check
        %p766 = pneg %p765
      $region86: #{decoder_forward.2} parent=5 // pred_check_branch
        %768 = sbr.rel (%p766) target = $region88
      $region87: #{decoder_forward.2} parent=5 // pred_region
        // Predicated region
        $region89: #{decoder_forward.2} parent=87 // pred_check
          %p769 = pneg %p68
        $region90: #{decoder_forward.2} parent=87 // pred_check_branch
          %771 = sbr.rel (%p769) target = $region92
        $region91: #{decoder_forward.2} parent=87 // pred_region
          %p772 = scmp.lt.s32.totalorder %s43, 1
          %s773 = scalar_select %p772, %s43, 1
          %s774 = smul.addr %s773, 2
          %s775 = smul.addr %s774, 4
          %s776 = scalar_lea.vmem %s0, %s775
        $region92: #{decoder_forward.2} parent=87 // pred_fallthru
          _
        // Predicated region
        $region93: #{decoder_forward.2} parent=87 // pred_check
          %p777 = pneg %p94
        $region94: #{decoder_forward.2} parent=87 // pred_check_branch
          %779 = sbr.rel (%p777) target = $region96
        $region95: #{decoder_forward.2} parent=87 // pred_region
          %p780 = scmp.lt.s32.totalorder %s43, 1
          %s781 = scalar_select %p780, %s43, 1
          %s782 = smul.addr %s781, 2
          %s783 = smul.addr %s782, 4
          %s784 = scalar_lea.vmem %s1, %s783
        $region96: #{decoder_forward.2} parent=87 // pred_fallthru
          _
        // Predicated region
        $region97: #{decoder_forward.2} parent=87 // pred_check
          %p785 = pneg %p122
        $region98: #{decoder_forward.2} parent=87 // pred_check_branch
          %787 = sbr.rel (%p785) target = $region100
        $region99: #{decoder_forward.2} parent=87 // pred_region
          %s788 = smul.u32 2, %s44
          %p789 = scmp.lt.s32.totalorder %s43, 1
          %s790 = scalar_select %p789, %s43, 1
          %p791 = scmp.lt.s32.totalorder %s788, 1
          %s792 = scalar_select %p791, %s788, 1
          %s793 = smul.addr %s790, 2
          %s794 = sadd.s32 %s792, %s793
          %s795 = smul.addr %s794, 4
          %s796 = scalar_lea.vmem %s2, %s795
          %s797 = smul.u32 2, %s44
        $region100: #{decoder_forward.2} parent=87 // pred_fallthru
          _
        // Predicated region
        $region101: #{decoder_forward.2} parent=87 // pred_check
          %p798 = pneg %p148
        $region102: #{decoder_forward.2} parent=87 // pred_check_branch
          %800 = sbr.rel (%p798) target = $region104
        $region103: #{decoder_forward.2} parent=87 // pred_region
          %p801 = scmp.lt.s32.totalorder %s43, 1
          %s802 = scalar_select %p801, %s43, 1
          %s803 = scalar_lea.vmem %s3, %s802
        $region104: #{decoder_forward.2} parent=87 // pred_fallthru
          _
      $region88: #{decoder_forward.2} parent=5 // pred_fallthru
        _
      %p804 = scmp.le.s32.totalorder 1, %s36
      %p805 = scmp.lt.s32.totalorder %s36, 3
      %p806 = pnand %p804, %p805
      %p807 = pneg %p806
      // Predicated region
      $region105: #{decoder_forward.2} parent=5 // pred_check
        _
      $region106: #{decoder_forward.2} parent=5 // pred_check_branch
        %809 = sbr.rel (%p806) target = $region108
      $region107: #{decoder_forward.2} parent=5 // pred_region
        %s810 = ssub.s32 %s36, 1
        // Predicated region
        $region109: #{decoder_forward.2} parent=107 // pred_check
          %p811 = pneg %p196
        $region110: #{decoder_forward.2} parent=107 // pred_check_branch
          %813 = sbr.rel (%p811) target = $region112
        $region111: #{decoder_forward.2} parent=107 // pred_region
          %814 = dma.done [#allocation7], 1024
        $region112: #{decoder_forward.2} parent=107 // pred_fallthru
          _
        // Predicated region
        $region113: #{decoder_forward.2} parent=107 // pred_check
          %p815 = pneg %p217
        $region114: #{decoder_forward.2} parent=107 // pred_check_branch
          %817 = sbr.rel (%p815) target = $region116
        $region115: #{decoder_forward.2} parent=107 // pred_region
          %818 = dma.done [#allocation9], 1024
        $region116: #{decoder_forward.2} parent=107 // pred_fallthru
          _
        // Predicated region
        $region117: #{decoder_forward.2} parent=107 // pred_check
          %p819 = pneg %p238
        $region118: #{decoder_forward.2} parent=107 // pred_check_branch
          %821 = sbr.rel (%p819) target = $region120
        $region119: #{decoder_forward.2} parent=107 // pred_region
          %822 = dma.done [#allocation9], 1024
        $region120: #{decoder_forward.2} parent=107 // pred_fallthru
          _
        // Predicated region
        $region121: #{decoder_forward.2} parent=107 // pred_check
          %p823 = pneg %p280
        $region122: #{decoder_forward.2} parent=107 // pred_check_branch
          %825 = sbr.rel (%p823) target = $region124
        $region123: #{decoder_forward.2} parent=107 // pred_region
          %826 = dma.done [#allocation12], 16
        $region124: #{decoder_forward.2} parent=107 // pred_fallthru
          _
        // Predicated region
        $region125: #{decoder_forward.2} parent=107 // pred_check
          %p827 = pneg %p301
        $region126: #{decoder_forward.2} parent=107 // pred_check_branch
          %829 = sbr.rel (%p827) target = $region128
        $region127: #{decoder_forward.2} parent=107 // pred_region
          %830 = dma.done [#allocation12], 1024
        $region128: #{decoder_forward.2} parent=107 // pred_fallthru
          _
        // Predicated region
        $region129: #{decoder_forward.2} parent=107 // pred_check
          %p831 = pneg %p322
        $region130: #{decoder_forward.2} parent=107 // pred_check_branch
          %833 = sbr.rel (%p831) target = $region132
        $region131: #{decoder_forward.2} parent=107 // pred_region
          %834 = dma.done [#allocation15], 1024
        $region132: #{decoder_forward.2} parent=107 // pred_fallthru
          _
        // Predicated region
        $region133: #{decoder_forward.2} parent=107 // pred_check
          %p835 = pneg %p343
        $region134: #{decoder_forward.2} parent=107 // pred_check_branch
          %837 = sbr.rel (%p835) target = $region136
        $region135: #{decoder_forward.2} parent=107 // pred_region
          %838 = dma.done [#allocation15], 1024
        $region136: #{decoder_forward.2} parent=107 // pred_fallthru
          _
        // Predicated region
        $region137: #{decoder_forward.2} parent=107 // pred_check
          %p839 = pneg %p364
        $region138: #{decoder_forward.2} parent=107 // pred_check_branch
          %841 = sbr.rel (%p839) target = $region140
        $region139: #{decoder_forward.2} parent=107 // pred_region
          %842 = dma.done [#allocation18], 1024
        $region140: #{decoder_forward.2} parent=107 // pred_fallthru
          _
        // Predicated region
        $region141: #{decoder_forward.2} parent=107 // pred_check
          %p843 = pneg %p385
        $region142: #{decoder_forward.2} parent=107 // pred_check_branch
          %845 = sbr.rel (%p843) target = $region144
        $region143: #{decoder_forward.2} parent=107 // pred_region
          %846 = dma.done [#allocation18], 16
        $region144: #{decoder_forward.2} parent=107 // pred_fallthru
          _
        // Predicated region
        $region145: #{decoder_forward.2} parent=107 // pred_check
          %p847 = pneg %p406
        $region146: #{decoder_forward.2} parent=107 // pred_check_branch
          %849 = sbr.rel (%p847) target = $region148
        $region147: #{decoder_forward.2} parent=107 // pred_region
          %850 = dma.done [#allocation21], 16
        $region148: #{decoder_forward.2} parent=107 // pred_fallthru
          _
        // Predicated region
        $region149: #{decoder_forward.2} parent=107 // pred_check
          %p851 = pneg %p448
        $region150: #{decoder_forward.2} parent=107 // pred_check_branch
          %853 = sbr.rel (%p851) target = $region152
        $region151: #{decoder_forward.2} parent=107 // pred_region
          %854 = dma.done [#allocation21], 32
        $region152: #{decoder_forward.2} parent=107 // pred_fallthru
          _
        // Predicated region
        $region153: #{decoder_forward.2} parent=107 // pred_check
          %p855 = pneg %p469
        $region154: #{decoder_forward.2} parent=107 // pred_check_branch
          %857 = sbr.rel (%p855) target = $region156
        $region155: #{decoder_forward.2} parent=107 // pred_region
          %858 = dma.done [#allocation24], 2048
        $region156: #{decoder_forward.2} parent=107 // pred_fallthru
          _
        // Predicated region
        $region157: #{decoder_forward.2} parent=107 // pred_check
          %p859 = pneg %p490
        $region158: #{decoder_forward.2} parent=107 // pred_check_branch
          %861 = sbr.rel (%p859) target = $region160
        $region159: #{decoder_forward.2} parent=107 // pred_region
          %862 = dma.done [#allocation24], 16
        $region160: #{decoder_forward.2} parent=107 // pred_fallthru
          _
        // Predicated region
        $region161: #{decoder_forward.2} parent=107 // pred_check
          %p863 = pneg %p511
        $region162: #{decoder_forward.2} parent=107 // pred_check_branch
          %865 = sbr.rel (%p863) target = $region164
        $region163: #{decoder_forward.2} parent=107 // pred_region
          %866 = dma.done [#allocation27], 16
        $region164: #{decoder_forward.2} parent=107 // pred_fallthru
          _
        // Predicated region
        $region165: #{decoder_forward.2} parent=107 // pred_check
          %p867 = pneg %p532
        $region166: #{decoder_forward.2} parent=107 // pred_check_branch
          %869 = sbr.rel (%p867) target = $region168
        $region167: #{decoder_forward.2} parent=107 // pred_region
          %870 = dma.done [#allocation27], 16
        $region168: #{decoder_forward.2} parent=107 // pred_fallthru
          _
        %p871 = scmp.lt.s32.totalorder %s45, 1
        %s872 = scalar_select %p871, %s45, 1
        %s873 = smul.addr %s872, 2
        %s874 = smul.addr %s873, 4
        %s875 = scalar_lea.vmem %s0, %s874
        %p876 = pneg %p74
        %p877 = pneg %p71
        %p878 = scmp.lt.s32.totalorder %s45, 1
        %s879 = scalar_select %p878, %s45, 1
        %s880 = smul.addr %s879, 2
        %s881 = smul.addr %s880, 4
        %s882 = scalar_lea.vmem %s1, %s881
        %p883 = pneg %p100
        %p884 = pneg %p97
        %s885 = smul.u32 2, %s46
        %p886 = scmp.lt.s32.totalorder %s45, 1
        %s887 = scalar_select %p886, %s45, 1
        %p888 = scmp.lt.s32.totalorder %s885, 1
        %s889 = scalar_select %p888, %s885, 1
        %s890 = smul.addr %s887, 2
        %s891 = sadd.s32 %s889, %s890
        %s892 = smul.addr %s891, 4
        %s893 = scalar_lea.vmem %s2, %s892
        %p894 = pneg %p128
        %p895 = pneg %p125
        %p896 = scmp.lt.s32.totalorder %s45, 1
        %s897 = scalar_select %p896, %s45, 1
        %s898 = scalar_lea.vmem %s3, %s897
        %p899 = pneg %p154
        %p900 = pneg %p151
        %p901 = pneg %p175
        %p902 = pneg %p172
        %p903 = pneg %p196
        %p904 = pneg %p193
        %p905 = pneg %p217
        %p906 = pneg %p214
        %p907 = pneg %p238
        %p908 = pneg %p235
        %p909 = pneg %p259
        %p910 = pneg %p256
        %p911 = pneg %p280
        %p912 = pneg %p277
        %p913 = pneg %p301
        %p914 = pneg %p298
        %p915 = pneg %p322
        %p916 = pneg %p319
        %p917 = pneg %p343
        %p918 = pneg %p340
        %p919 = pneg %p364
        %p920 = pneg %p361
        %p921 = pneg %p385
        %p922 = pneg %p382
        %p923 = pneg %p406
        %p924 = pneg %p403
        %p925 = pneg %p427
        %p926 = pneg %p424
        %p927 = pneg %p448
        %p928 = pneg %p445
        %p929 = pneg %p469
        %p930 = pneg %p466
        %p931 = pneg %p490
        %p932 = pneg %p487
        %p933 = pneg %p511
        %p934 = pneg %p508
        %p935 = pneg %p532
        %p936 = pneg %p529
        %p937 = pneg %p560
        %p938 = pneg %p557
        %s939 = smul.u32 2, %s46
        %p940 = scmp.lt.s32.totalorder %s45, 1
        %s941 = scalar_select %p940, %s45, 1
        %p942 = scmp.lt.s32.totalorder %s939, 1
        %s943 = scalar_select %p942, %s939, 1
        %s944 = smul.addr %s941, 2
        %s945 = sadd.s32 %s943, %s944
        %s946 = smul.addr %s945, 4
        %s947 = scalar_lea.vmem %s22, %s946
        %p948 = scmp.lt.s32.totalorder %s45, 1
        %s949 = scalar_select %p948, %s45, 1
        %s950 = smul.addr %s949, 2
        %s951 = smul.addr %s950, 4
        %s952 = scalar_lea.vmem %s0, %s951
        %p953 = scmp.lt.s32.totalorder %s45, 1
        %s954 = scalar_select %p953, %s45, 1
        %s955 = smul.addr %s954, 2
        %s956 = smul.addr %s955, 4
        %s957 = scalar_lea.vmem %s1, %s956
        %s958 = smul.u32 2, %s46
        %p959 = scmp.lt.s32.totalorder %s45, 1
        %s960 = scalar_select %p959, %s45, 1
        %p961 = scmp.lt.s32.totalorder %s958, 1
        %s962 = scalar_select %p961, %s958, 1
        %s963 = smul.addr %s960, 2
        %s964 = sadd.s32 %s962, %s963
        %s965 = smul.addr %s964, 4
        %s966 = scalar_lea.vmem %s2, %s965
        %s967 = smul.u32 2, %s46
        %p968 = scmp.lt.s32.totalorder %s45, 1
        %s969 = scalar_select %p968, %s45, 1
        %s970 = scalar_lea.vmem %s3, %s969
        %s971 = smul.u32 2, %s46
        %p972 = scmp.lt.s32.totalorder %s45, 1
        %s973 = scalar_select %p972, %s45, 1
        %p974 = scmp.lt.s32.totalorder %s971, 1
        %s975 = scalar_select %p974, %s971, 1
        %s976 = smul.addr %s973, 2
        %s977 = sadd.s32 %s975, %s976
        %s978 = smul.addr %s977, 4
        %s979 = scalar_lea.vmem %s22, %s978
        %s980 = smul.u32 2, %s46
        %p982 = scmp.eq.s32.totalorder %s46, 0
        // Predicated region
        $region169: #{decoder_forward.2} parent=107 // pred_check
          %p983 = pneg %p982
        $region170: #{decoder_forward.2} parent=107 // pred_check_branch
          %985 = sbr.rel (%p983) target = $region172
        $region171: #{decoder_forward.2} parent=107 // pred_region
          %v986 = vld [vmem:[%s952] sm:$0xf]
          %v987 = vld [vmem:[%s952 + $0x4] sm:$0xf]
          %v988 = vld [vmem:[#allocation6] sm:$0xf]
          %v989 = vld [vmem:[#allocation6 + $0x4] sm:$0xf]
          %v990 = vld [vmem:[#allocation6 + $0x8] sm:$0xf]
          %v991 = vld [vmem:[#allocation6 + $0xc] sm:$0xf]
          %v992 = vld [vmem:[#allocation6 + $0x10] sm:$0xf]
          %v993 = vld [vmem:[#allocation6 + $0x14] sm:$0xf]
          %v994 = vld [vmem:[#allocation6 + $0x18] sm:$0xf]
          %v995 = vld [vmem:[#allocation6 + $0x1c] sm:$0xf]
          %v996 = vld [vmem:[#allocation6 + $0x20] sm:$0xf]
          %v997 = vld [vmem:[#allocation6 + $0x24] sm:$0xf]
          %v998 = vld [vmem:[#allocation6 + $0x28] sm:$0xf]
          %v999 = vld [vmem:[#allocation6 + $0x2c] sm:$0xf]
          %v1000 = vld [vmem:[#allocation6 + $0x30] sm:$0xf]
          %v1001 = vld [vmem:[#allocation6 + $0x34] sm:$0xf]
          %v1002 = vld [vmem:[#allocation6 + $0x38] sm:$0xf]
          %v1003 = vld [vmem:[#allocation6 + $0x3c] sm:$0xf]
          %v1006 = vunpack.c.l.b16 %v986
          %v1007 = vunpack.c.l.b16 %v987
          %v1008 = vpack.c.b16 %v1007, %v1006
          %v1026 = vunpack.c.l.b16 %v988
          %v1027 = vunpack.c.l.b16 %v989
          %v1028 = vunpack.c.l.b16 %v990
          %v1029 = vunpack.c.l.b16 %v991
          %v1030 = vunpack.c.l.b16 %v992
          %v1031 = vunpack.c.l.b16 %v993
          %v1032 = vunpack.c.l.b16 %v994
          %v1033 = vunpack.c.l.b16 %v995
          %v1034 = vunpack.c.l.b16 %v996
          %v1035 = vunpack.c.l.b16 %v997
          %v1036 = vunpack.c.l.b16 %v998
          %v1037 = vunpack.c.l.b16 %v999
          %v1038 = vunpack.c.l.b16 %v1000
          %v1039 = vunpack.c.l.b16 %v1001
          %v1040 = vunpack.c.l.b16 %v1002
          %v1041 = vunpack.c.l.b16 %v1003
          %v1042 = vpack.c.b16 %v1027, %v1026
          %v1043 = vpack.c.b16 %v1029, %v1028
          %v1044 = vpack.c.b16 %v1031, %v1030
          %v1045 = vpack.c.b16 %v1033, %v1032
          %v1046 = vpack.c.b16 %v1035, %v1034
          %v1047 = vpack.c.b16 %v1037, %v1036
          %v1048 = vpack.c.b16 %v1039, %v1038
          %v1049 = vpack.c.b16 %v1041, %v1040
          %1058 = vmatprep.subr.bf16.mxu0 0
          %1059 = vmatpush1.bf16.msra.mxu0 %v1042
          %1060 = vmatprep.subr.bf16.mxu0 0
          %1061 = vmatpush1.bf16.msra.mxu0 %v1043
          %1062 = vmatprep.subr.bf16.mxu0 0
          %1063 = vmatpush1.bf16.msra.mxu0 %v1044
          %1064 = vmatprep.subr.bf16.mxu0 0
          %1065 = vmatpush1.bf16.msra.mxu0 %v1045
          %1066 = vmatprep.subr.bf16.mxu0 0
          %1067 = vmatpush1.bf16.msra.mxu0 %v1046
          %1068 = vmatprep.subr.bf16.mxu0 0
          %1069 = vmatpush1.bf16.msra.mxu0 %v1047
          %1070 = vmatprep.subr.bf16.mxu0 0
          %1071 = vmatpush1.bf16.msra.mxu0 %v1048
          %1072 = vmatprep.subr.bf16.mxu0 0
          %1073 = vmatpush1.bf16.msra.mxu0 %v1049
          %1074 = vmatprep.subr.bf16.mxu0 0
          %1075 = vmatpush1.bf16.msra.mxu0 0
          %1076 = vmatprep.subr.bf16.mxu0 0
          %1077 = vmatpush1.bf16.msra.mxu0 0
          %1078 = vmatprep.subr.bf16.mxu0 0
          %1079 = vmatpush1.bf16.msra.mxu0 0
          %1080 = vmatprep.subr.bf16.mxu0 0
          %1081 = vmatpush1.bf16.msra.mxu0 0
          %1082 = vmatprep.subr.bf16.mxu0 0
          %1083 = vmatpush1.bf16.msra.mxu0 0
          %1084 = vmatprep.subr.bf16.mxu0 0
          %1085 = vmatpush1.bf16.msra.mxu0 0
          %1086 = vmatprep.subr.bf16.mxu0 0
          %1087 = vmatpush1.bf16.msra.mxu0 0
          %1088 = vmatprep.subr.bf16.mxu0 0
          %1089 = vmatpush1.bf16.msra.mxu0 0
          %1090 = vmatprep.mubr.bf16.mxu0 0
          %1091 = vmatmul.mubr.bf16.gmra.mrb[0].mxu0 %v1008
          %v1092 = vpop.f32.mrb[0].mxu0
          %v1093 = vadd.f32 0.0, %v1092
          %v1094 = vpop.f32.mrb[0].mxu0
          %v1095 = vpop.f32.mrb[0].mxu0
          %v1096 = vadd.f32 0.0, %v1095
          %v1097 = vpop.f32.mrb[0].mxu0
          %1098 = vdwg.mxu0
          %v1099 = vpack.c.bf16 %v1096, %v1093
          %1100 = vst [vmem:[#allocation2] sm:$0xff] %v1099
          %v1101 = vld [vmem:[#allocation8] sm:$0xf]
          %v1102 = vld [vmem:[#allocation8 + $0x4] sm:$0xf]
          %v1103 = vld [vmem:[#allocation8 + $0x8] sm:$0xf]
          %v1104 = vld [vmem:[#allocation8 + $0xc] sm:$0xf]
          %v1105 = vld [vmem:[#allocation8 + $0x10] sm:$0xf]
          %v1106 = vld [vmem:[#allocation8 + $0x14] sm:$0xf]
          %v1107 = vld [vmem:[#allocation8 + $0x18] sm:$0xf]
          %v1108 = vld [vmem:[#allocation8 + $0x1c] sm:$0xf]
          %v1109 = vld [vmem:[#allocation8 + $0x20] sm:$0xf]
          %v1110 = vld [vmem:[#allocation8 + $0x24] sm:$0xf]
          %v1111 = vld [vmem:[#allocation8 + $0x28] sm:$0xf]
          %v1112 = vld [vmem:[#allocation8 + $0x2c] sm:$0xf]
          %v1113 = vld [vmem:[#allocation8 + $0x30] sm:$0xf]
          %v1114 = vld [vmem:[#allocation8 + $0x34] sm:$0xf]
          %v1115 = vld [vmem:[#allocation8 + $0x38] sm:$0xf]
          %v1116 = vld [vmem:[#allocation8 + $0x3c] sm:$0xf]
          %v1133 = vunpack.c.l.b16 %v1101
          %v1134 = vunpack.c.l.b16 %v1102
          %v1135 = vunpack.c.l.b16 %v1103
          %v1136 = vunpack.c.l.b16 %v1104
          %v1137 = vunpack.c.l.b16 %v1105
          %v1138 = vunpack.c.l.b16 %v1106
          %v1139 = vunpack.c.l.b16 %v1107
          %v1140 = vunpack.c.l.b16 %v1108
          %v1141 = vunpack.c.l.b16 %v1109
          %v1142 = vunpack.c.l.b16 %v1110
          %v1143 = vunpack.c.l.b16 %v1111
          %v1144 = vunpack.c.l.b16 %v1112
          %v1145 = vunpack.c.l.b16 %v1113
          %v1146 = vunpack.c.l.b16 %v1114
          %v1147 = vunpack.c.l.b16 %v1115
          %v1148 = vunpack.c.l.b16 %v1116
          %v1149 = vpack.c.b16 %v1134, %v1133
          %v1150 = vpack.c.b16 %v1136, %v1135
          %v1151 = vpack.c.b16 %v1138, %v1137
          %v1152 = vpack.c.b16 %v1140, %v1139
          %v1153 = vpack.c.b16 %v1142, %v1141
          %v1154 = vpack.c.b16 %v1144, %v1143
          %v1155 = vpack.c.b16 %v1146, %v1145
          %v1156 = vpack.c.b16 %v1148, %v1147
          %1165 = vmatprep.subr.bf16.mxu0 0
          %1166 = vmatpush1.bf16.msra.mxu0 %v1149
          %1167 = vmatprep.subr.bf16.mxu0 0
          %1168 = vmatpush1.bf16.msra.mxu0 %v1150
          %1169 = vmatprep.subr.bf16.mxu0 0
          %1170 = vmatpush1.bf16.msra.mxu0 %v1151
          %1171 = vmatprep.subr.bf16.mxu0 0
          %1172 = vmatpush1.bf16.msra.mxu0 %v1152
          %1173 = vmatprep.subr.bf16.mxu0 0
          %1174 = vmatpush1.bf16.msra.mxu0 %v1153
          %1175 = vmatprep.subr.bf16.mxu0 0
          %1176 = vmatpush1.bf16.msra.mxu0 %v1154
          %1177 = vmatprep.subr.bf16.mxu0 0
          %1178 = vmatpush1.bf16.msra.mxu0 %v1155
          %1179 = vmatprep.subr.bf16.mxu0 0
          %1180 = vmatpush1.bf16.msra.mxu0 %v1156
          %1181 = vmatprep.subr.bf16.mxu0 0
          %1182 = vmatpush1.bf16.msra.mxu0 0
          %1183 = vmatprep.subr.bf16.mxu0 0
          %1184 = vmatpush1.bf16.msra.mxu0 0
          %1185 = vmatprep.subr.bf16.mxu0 0
          %1186 = vmatpush1.bf16.msra.mxu0 0
          %1187 = vmatprep.subr.bf16.mxu0 0
          %1188 = vmatpush1.bf16.msra.mxu0 0
          %1189 = vmatprep.subr.bf16.mxu0 0
          %1190 = vmatpush1.bf16.msra.mxu0 0
          %1191 = vmatprep.subr.bf16.mxu0 0
          %1192 = vmatpush1.bf16.msra.mxu0 0
          %1193 = vmatprep.subr.bf16.mxu0 0
          %1194 = vmatpush1.bf16.msra.mxu0 0
          %1195 = vmatprep.subr.bf16.mxu0 0
          %1196 = vmatpush1.bf16.msra.mxu0 0
          %1197 = vmatprep.mubr.bf16.mxu0 0
          %1198 = vmatmul.mubr.bf16.gmra.mrb[0].mxu0 %v1008
          %v1199 = vpop.f32.mrb[0].mxu0
          %v1200 = vadd.f32 0.0, %v1199
          %v1201 = vpop.f32.mrb[0].mxu0
          %v1202 = vpop.f32.mrb[0].mxu0
          %v1203 = vadd.f32 0.0, %v1202
          %v1204 = vpop.f32.mrb[0].mxu0
          %1205 = vdwg.mxu0
          %v1206 = vpack.c.bf16 %v1203, %v1200
          %1207 = vst [vmem:[#allocation3] sm:$0xff] %v1206
          %v1208 = vld [vmem:[%s957] sm:$0xf]
          %v1209 = vld [vmem:[%s957 + $0x4] sm:$0xf]
          %v1210 = vld [vmem:[#allocation14] sm:$0xf]
          %v1211 = vld [vmem:[#allocation14 + $0x4] sm:$0xf]
          %v1212 = vld [vmem:[#allocation14 + $0x8] sm:$0xf]
          %v1213 = vld [vmem:[#allocation14 + $0xc] sm:$0xf]
          %v1214 = vld [vmem:[#allocation14 + $0x10] sm:$0xf]
          %v1215 = vld [vmem:[#allocation14 + $0x14] sm:$0xf]
          %v1216 = vld [vmem:[#allocation14 + $0x18] sm:$0xf]
          %v1217 = vld [vmem:[#allocation14 + $0x1c] sm:$0xf]
          %v1218 = vld [vmem:[#allocation14 + $0x20] sm:$0xf]
          %v1219 = vld [vmem:[#allocation14 + $0x24] sm:$0xf]
          %v1220 = vld [vmem:[#allocation14 + $0x28] sm:$0xf]
          %v1221 = vld [vmem:[#allocation14 + $0x2c] sm:$0xf]
          %v1222 = vld [vmem:[#allocation14 + $0x30] sm:$0xf]
          %v1223 = vld [vmem:[#allocation14 + $0x34] sm:$0xf]
          %v1224 = vld [vmem:[#allocation14 + $0x38] sm:$0xf]
          %v1225 = vld [vmem:[#allocation14 + $0x3c] sm:$0xf]
          %v1228 = vunpack.c.l.b16 %v1208
          %v1229 = vunpack.c.l.b16 %v1209
          %v1230 = vpack.c.b16 %v1229, %v1228
          %v1248 = vunpack.c.l.b16 %v1210
          %v1249 = vunpack.c.l.b16 %v1211
          %v1250 = vunpack.c.l.b16 %v1212
          %v1251 = vunpack.c.l.b16 %v1213
          %v1252 = vunpack.c.l.b16 %v1214
          %v1253 = vunpack.c.l.b16 %v1215
          %v1254 = vunpack.c.l.b16 %v1216
          %v1255 = vunpack.c.l.b16 %v1217
          %v1256 = vunpack.c.l.b16 %v1218
          %v1257 = vunpack.c.l.b16 %v1219
          %v1258 = vunpack.c.l.b16 %v1220
          %v1259 = vunpack.c.l.b16 %v1221
          %v1260 = vunpack.c.l.b16 %v1222
          %v1261 = vunpack.c.l.b16 %v1223
          %v1262 = vunpack.c.l.b16 %v1224
          %v1263 = vunpack.c.l.b16 %v1225
          %v1264 = vpack.c.b16 %v1249, %v1248
          %v1265 = vpack.c.b16 %v1251, %v1250
          %v1266 = vpack.c.b16 %v1253, %v1252
          %v1267 = vpack.c.b16 %v1255, %v1254
          %v1268 = vpack.c.b16 %v1257, %v1256
          %v1269 = vpack.c.b16 %v1259, %v1258
          %v1270 = vpack.c.b16 %v1261, %v1260
          %v1271 = vpack.c.b16 %v1263, %v1262
          %1280 = vmatprep.subr.bf16.mxu0 0
          %1281 = vmatpush1.bf16.msra.mxu0 %v1264
          %1282 = vmatprep.subr.bf16.mxu0 0
          %1283 = vmatpush1.bf16.msra.mxu0 %v1265
          %1284 = vmatprep.subr.bf16.mxu0 0
          %1285 = vmatpush1.bf16.msra.mxu0 %v1266
          %1286 = vmatprep.subr.bf16.mxu0 0
          %1287 = vmatpush1.bf16.msra.mxu0 %v1267
          %1288 = vmatprep.subr.bf16.mxu0 0
          %1289 = vmatpush1.bf16.msra.mxu0 %v1268
          %1290 = vmatprep.subr.bf16.mxu0 0
          %1291 = vmatpush1.bf16.msra.mxu0 %v1269
          %1292 = vmatprep.subr.bf16.mxu0 0
          %1293 = vmatpush1.bf16.msra.mxu0 %v1270
          %1294 = vmatprep.subr.bf16.mxu0 0
          %1295 = vmatpush1.bf16.msra.mxu0 %v1271
          %1296 = vmatprep.subr.bf16.mxu0 0
          %1297 = vmatpush1.bf16.msra.mxu0 0
          %1298 = vmatprep.subr.bf16.mxu0 0
          %1299 = vmatpush1.bf16.msra.mxu0 0
          %1300 = vmatprep.subr.bf16.mxu0 0
          %1301 = vmatpush1.bf16.msra.mxu0 0
          %1302 = vmatprep.subr.bf16.mxu0 0
          %1303 = vmatpush1.bf16.msra.mxu0 0
          %1304 = vmatprep.subr.bf16.mxu0 0
          %1305 = vmatpush1.bf16.msra.mxu0 0
          %1306 = vmatprep.subr.bf16.mxu0 0
          %1307 = vmatpush1.bf16.msra.mxu0 0
          %1308 = vmatprep.subr.bf16.mxu0 0
          %1309 = vmatpush1.bf16.msra.mxu0 0
          %1310 = vmatprep.subr.bf16.mxu0 0
          %1311 = vmatpush1.bf16.msra.mxu0 0
          %1312 = vmatprep.mubr.bf16.mxu0 0
          %1313 = vmatmul.mubr.bf16.gmra.mrb[0].mxu0 %v1230
          %v1314 = vpop.f32.mrb[0].mxu0
          %v1315 = vadd.f32 0.0, %v1314
          %v1316 = vpop.f32.mrb[0].mxu0
          %v1317 = vpop.f32.mrb[0].mxu0
          %v1318 = vadd.f32 0.0, %v1317
          %v1319 = vpop.f32.mrb[0].mxu0
          %1320 = vdwg.mxu0
          %v1321 = vpack.c.bf16 %v1318, %v1315
          %1322 = vst [vmem:[#allocation4] sm:$0xff] %v1321
          %v1323 = vld [vmem:[#allocation16] sm:$0xf]
          %v1324 = vld [vmem:[#allocation16 + $0x4] sm:$0xf]
          %v1325 = vld [vmem:[#allocation16 + $0x8] sm:$0xf]
          %v1326 = vld [vmem:[#allocation16 + $0xc] sm:$0xf]
          %v1327 = vld [vmem:[#allocation16 + $0x10] sm:$0xf]
          %v1328 = vld [vmem:[#allocation16 + $0x14] sm:$0xf]
          %v1329 = vld [vmem:[#allocation16 + $0x18] sm:$0xf]
          %v1330 = vld [vmem:[#allocation16 + $0x1c] sm:$0xf]
          %v1331 = vld [vmem:[#allocation16 + $0x20] sm:$0xf]
          %v1332 = vld [vmem:[#allocation16 + $0x24] sm:$0xf]
          %v1333 = vld [vmem:[#allocation16 + $0x28] sm:$0xf]
          %v1334 = vld [vmem:[#allocation16 + $0x2c] sm:$0xf]
          %v1335 = vld [vmem:[#allocation16 + $0x30] sm:$0xf]
          %v1336 = vld [vmem:[#allocation16 + $0x34] sm:$0xf]
          %v1337 = vld [vmem:[#allocation16 + $0x38] sm:$0xf]
          %v1338 = vld [vmem:[#allocation16 + $0x3c] sm:$0xf]
          %v1355 = vunpack.c.l.b16 %v1323
          %v1356 = vunpack.c.l.b16 %v1324
          %v1357 = vunpack.c.l.b16 %v1325
          %v1358 = vunpack.c.l.b16 %v1326
          %v1359 = vunpack.c.l.b16 %v1327
          %v1360 = vunpack.c.l.b16 %v1328
          %v1361 = vunpack.c.l.b16 %v1329
          %v1362 = vunpack.c.l.b16 %v1330
          %v1363 = vunpack.c.l.b16 %v1331
          %v1364 = vunpack.c.l.b16 %v1332
          %v1365 = vunpack.c.l.b16 %v1333
          %v1366 = vunpack.c.l.b16 %v1334
          %v1367 = vunpack.c.l.b16 %v1335
          %v1368 = vunpack.c.l.b16 %v1336
          %v1369 = vunpack.c.l.b16 %v1337
          %v1370 = vunpack.c.l.b16 %v1338
          %v1371 = vpack.c.b16 %v1356, %v1355
          %v1372 = vpack.c.b16 %v1358, %v1357
          %v1373 = vpack.c.b16 %v1360, %v1359
          %v1374 = vpack.c.b16 %v1362, %v1361
          %v1375 = vpack.c.b16 %v1364, %v1363
          %v1376 = vpack.c.b16 %v1366, %v1365
          %v1377 = vpack.c.b16 %v1368, %v1367
          %v1378 = vpack.c.b16 %v1370, %v1369
          %1387 = vmatprep.subr.bf16.mxu0 0
          %1388 = vmatpush1.bf16.msra.mxu0 %v1371
          %1389 = vmatprep.subr.bf16.mxu0 0
          %1390 = vmatpush1.bf16.msra.mxu0 %v1372
          %1391 = vmatprep.subr.bf16.mxu0 0
          %1392 = vmatpush1.bf16.msra.mxu0 %v1373
          %1393 = vmatprep.subr.bf16.mxu0 0
          %1394 = vmatpush1.bf16.msra.mxu0 %v1374
          %1395 = vmatprep.subr.bf16.mxu0 0
          %1396 = vmatpush1.bf16.msra.mxu0 %v1375
          %1397 = vmatprep.subr.bf16.mxu0 0
          %1398 = vmatpush1.bf16.msra.mxu0 %v1376
          %1399 = vmatprep.subr.bf16.mxu0 0
          %1400 = vmatpush1.bf16.msra.mxu0 %v1377
          %1401 = vmatprep.subr.bf16.mxu0 0
          %1402 = vmatpush1.bf16.msra.mxu0 %v1378
          %1403 = vmatprep.subr.bf16.mxu0 0
          %1404 = vmatpush1.bf16.msra.mxu0 0
          %1405 = vmatprep.subr.bf16.mxu0 0
          %1406 = vmatpush1.bf16.msra.mxu0 0
          %1407 = vmatprep.subr.bf16.mxu0 0
          %1408 = vmatpush1.bf16.msra.mxu0 0
          %1409 = vmatprep.subr.bf16.mxu0 0
          %1410 = vmatpush1.bf16.msra.mxu0 0
          %1411 = vmatprep.subr.bf16.mxu0 0
          %1412 = vmatpush1.bf16.msra.mxu0 0
          %1413 = vmatprep.subr.bf16.mxu0 0
          %1414 = vmatpush1.bf16.msra.mxu0 0
          %1415 = vmatprep.subr.bf16.mxu0 0
          %1416 = vmatpush1.bf16.msra.mxu0 0
          %1417 = vmatprep.subr.bf16.mxu0 0
          %1418 = vmatpush1.bf16.msra.mxu0 0
          %1419 = vmatprep.mubr.bf16.mxu0 0
          %1420 = vmatmul.mubr.bf16.gmra.mrb[0].mxu0 %v1230
          %v1421 = vpop.f32.mrb[0].mxu0
          %v1422 = vadd.f32 0.0, %v1421
          %v1423 = vpop.f32.mrb[0].mxu0
          %v1424 = vpop.f32.mrb[0].mxu0
          %v1425 = vadd.f32 0.0, %v1424
          %v1426 = vpop.f32.mrb[0].mxu0
          %1427 = vdwg.mxu0
          %v1428 = vpack.c.bf16 %v1425, %v1422
          %1429 = vst [vmem:[#allocation5] sm:$0xff] %v1428
        $region172: #{decoder_forward.2} parent=107 // pred_fallthru
          _
        %s1430 = smul.u32 %s46, 16
        %s1431 = sshra.s32 %s1430, 3
        %s1432 = sand.u32 %s1430, 7
        %s1433 = smul.addr %s1431, 4
        %s1434 = scalar_lea.vmem %s952, %s1433
        %v1435 = vld [vmem:[%s1434] sm:$0xf]
        %v1436 = vld [vmem:[%s1434 + $0x4] sm:$0xf]
        %v1437 = vunpack.c.l.bf16 %v1435
        %v1438 = vunpack.c.l.bf16 %v1436
        %v1439 = vld [vmem:[%s966] sm:$0xf]
        %v1440 = vld [vmem:[%s966 + $0x4] sm:$0xf]
        %v1441 = vunpack.c.l.bf16 %v1439
        %v1442 = vunpack.c.l.bf16 %v1440
        %v1443 = vld [vmem:[%s970] sm:$0x1]
        %v1444 = vunpack.c.l.bf16 %v1443
        %v1445 = vld [vmem:[%s4] sm:$0xf]
        %v1446 = vld [vmem:[%s4 + $0x4] sm:$0xf]
        %v1447 = vld [vmem:[%s4 + $0x8] sm:$0xf]
        %v1448 = vld [vmem:[%s4 + $0xc] sm:$0xf]
        %v1449 = vld [vmem:[%s4 + $0x10] sm:$0xf]
        %v1450 = vld [vmem:[%s4 + $0x14] sm:$0xf]
        %v1451 = vld [vmem:[%s4 + $0x18] sm:$0xf]
        %v1452 = vld [vmem:[%s4 + $0x1c] sm:$0xf]
        %v1453 = vld [vmem:[%s4 + $0x20] sm:$0xf]
        %v1454 = vld [vmem:[%s4 + $0x24] sm:$0xf]
        %v1455 = vld [vmem:[%s4 + $0x28] sm:$0xf]
        %v1456 = vld [vmem:[%s4 + $0x2c] sm:$0xf]
        %v1457 = vld [vmem:[%s4 + $0x30] sm:$0xf]
        %v1458 = vld [vmem:[%s4 + $0x34] sm:$0xf]
        %v1459 = vld [vmem:[%s4 + $0x38] sm:$0xf]
        %v1460 = vld [vmem:[%s4 + $0x3c] sm:$0xf]
        %v1463 = vunpack.c.l.b16 %v1435
        %v1464 = vunpack.c.l.b16 %v1436
        %v1465 = vpack.c.b16 %v1464, %v1463
        %v1483 = vunpack.c.l.b16 %v1445
        %v1484 = vunpack.c.l.b16 %v1446
        %v1485 = vunpack.c.l.b16 %v1447
        %v1486 = vunpack.c.l.b16 %v1448
        %v1487 = vunpack.c.l.b16 %v1449
        %v1488 = vunpack.c.l.b16 %v1450
        %v1489 = vunpack.c.l.b16 %v1451
        %v1490 = vunpack.c.l.b16 %v1452
        %v1491 = vunpack.c.l.b16 %v1453
        %v1492 = vunpack.c.l.b16 %v1454
        %v1493 = vunpack.c.l.b16 %v1455
        %v1494 = vunpack.c.l.b16 %v1456
        %v1495 = vunpack.c.l.b16 %v1457
        %v1496 = vunpack.c.l.b16 %v1458
        %v1497 = vunpack.c.l.b16 %v1459
        %v1498 = vunpack.c.l.b16 %v1460
        %v1499 = vpack.c.b16 %v1484, %v1483
        %v1500 = vpack.c.b16 %v1486, %v1485
        %v1501 = vpack.c.b16 %v1488, %v1487
        %v1502 = vpack.c.b16 %v1490, %v1489
        %v1503 = vpack.c.b16 %v1492, %v1491
        %v1504 = vpack.c.b16 %v1494, %v1493
        %v1505 = vpack.c.b16 %v1496, %v1495
        %v1506 = vpack.c.b16 %v1498, %v1497
        %1515 = vmatprep.subr.bf16.mxu0 0
        %1516 = vmatpush1.bf16.msra.mxu0 %v1499
        %1517 = vmatprep.subr.bf16.mxu0 0
        %1518 = vmatpush1.bf16.msra.mxu0 %v1500
        %1519 = vmatprep.subr.bf16.mxu0 0
        %1520 = vmatpush1.bf16.msra.mxu0 %v1501
        %1521 = vmatprep.subr.bf16.mxu0 0
        %1522 = vmatpush1.bf16.msra.mxu0 %v1502
        %1523 = vmatprep.subr.bf16.mxu0 0
        %1524 = vmatpush1.bf16.msra.mxu0 %v1503
        %1525 = vmatprep.subr.bf16.mxu0 0
        %1526 = vmatpush1.bf16.msra.mxu0 %v1504
        %1527 = vmatprep.subr.bf16.mxu0 0
        %1528 = vmatpush1.bf16.msra.mxu0 %v1505
        %1529 = vmatprep.subr.bf16.mxu0 0
        %1530 = vmatpush1.bf16.msra.mxu0 %v1506
        %1531 = vmatprep.subr.bf16.mxu0 0
        %1532 = vmatpush1.bf16.msra.mxu0 0
        %1533 = vmatprep.subr.bf16.mxu0 0
        %1534 = vmatpush1.bf16.msra.mxu0 0
        %1535 = vmatprep.subr.bf16.mxu0 0
        %1536 = vmatpush1.bf16.msra.mxu0 0
        %1537 = vmatprep.subr.bf16.mxu0 0
        %1538 = vmatpush1.bf16.msra.mxu0 0
        %1539 = vmatprep.subr.bf16.mxu0 0
        %1540 = vmatpush1.bf16.msra.mxu0 0
        %1541 = vmatprep.subr.bf16.mxu0 0
        %1542 = vmatpush1.bf16.msra.mxu0 0
        %1543 = vmatprep.subr.bf16.mxu0 0
        %1544 = vmatpush1.bf16.msra.mxu0 0
        %1545 = vmatprep.subr.bf16.mxu0 0
        %1546 = vmatpush1.bf16.msra.mxu0 0
        %1547 = vmatprep.mubr.bf16.mxu0 0
        %1548 = vmatmul.mubr.bf16.gmra.mrb[0].mxu0 %v1465
        %v1549 = vpop.f32.mrb[0].mxu0
        %v1550 = vadd.f32 0.0, %v1549
        %v1551 = vpop.f32.mrb[0].mxu0
        %v1552 = vpop.f32.mrb[0].mxu0
        %v1553 = vadd.f32 0.0, %v1552
        %v1554 = vpop.f32.mrb[0].mxu0
        %1555 = vdwg.mxu0
        %v1556 = vpack.c.bf16 %v1553, %v1550
        %v1557 = vld [vmem:[#allocation2] sm:$0xff]
        %v1558 = vld [vmem:[#allocation3] sm:$0xff]
        %vm1559 = vcmask 261120
        %v1561 = vsel %vm1559, %v1556, 0
        %v1564 = vsel %vm1559, %v1557, 0
        %1566 = vmatprep.subr.bf16.mxu0 0
        %1567 = vmatpush1.bf16.xpose.msra.mxu0 %v1564
        %1568 = vmatprep.subr.bf16.mxu0 0
        %1569 = vmatpush1.bf16.xpose.msra.mxu0 0
        %1570 = vmatprep.subr.bf16.mxu0 0
        %1571 = vmatpush1.bf16.xpose.msra.mxu0 0
        %1572 = vmatprep.subr.bf16.mxu0 0
        %1573 = vmatpush1.bf16.xpose.msra.mxu0 0
        %1574 = vmatprep.subr.bf16.mxu0 0
        %1575 = vmatpush1.bf16.xpose.msra.mxu0 0
        %1576 = vmatprep.subr.bf16.mxu0 0
        %1577 = vmatpush1.bf16.xpose.msra.mxu0 0
        %1578 = vmatprep.subr.bf16.mxu0 0
        %1579 = vmatpush1.bf16.xpose.msra.mxu0 0
        %1580 = vmatprep.subr.bf16.mxu0 0
        %1581 = vmatpush1.bf16.xpose.msra.mxu0 0
        %1582 = vmatprep.subr.bf16.mxu0 0
        %1583 = vmatpush1.bf16.xpose.msra.mxu0 0
        %1584 = vmatprep.subr.bf16.mxu0 0
        %1585 = vmatpush1.bf16.xpose.msra.mxu0 0
        %1586 = vmatprep.subr.bf16.mxu0 0
        %1587 = vmatpush1.bf16.xpose.msra.mxu0 0
        %1588 = vmatprep.subr.bf16.mxu0 0
        %1589 = vmatpush1.bf16.xpose.msra.mxu0 0
        %1590 = vmatprep.subr.bf16.mxu0 0
        %1591 = vmatpush1.bf16.xpose.msra.mxu0 0
        %1592 = vmatprep.subr.bf16.mxu0 0
        %1593 = vmatpush1.bf16.xpose.msra.mxu0 0
        %1594 = vmatprep.subr.bf16.mxu0 0
        %1595 = vmatpush1.bf16.xpose.msra.mxu0 0
        %1596 = vmatprep.subr.bf16.mxu0 0
        %1597 = vmatpush1.bf16.xpose.msra.mxu0 0
        %1598 = vmatprep.mubr.bf16.mxu0 0
        %1599 = vmatmul.mubr.bf16.gmra.mrb[0].mxu0 %v1561
        %v1600 = vpop.f32.mrb[0].mxu0
        %v1601 = vadd.f32 %v1441, %v1600
        %v1602 = vpop.f32.mrb[0].mxu0
        %v1603 = vpop.f32.mrb[0].mxu0
        %v1604 = vadd.f32 %v1442, %v1603
        %v1605 = vpop.f32.mrb[0].mxu0
        %1606 = vdwg.mxu0
        %vm1607 = vcmask 130048
        %v1608 = vsel %vm1607, %v1601, -inf
        %1609 = vmax.xlane.f32.xlu0 %v1608
        %v1610 = vpop.xlane.xlu0 %1609
        %v1611 = vsel %vm1607, %v1604, -inf
        %1612 = vmax.xlane.f32.xlu0 %v1611
        %v1613 = vpop.xlane.xlu0 %1612
        %v1614 = vsub.f32 %v1601, %v1610
        %v1615 = vsub.f32 %v1604, %v1613
        %v1616 = vmul.f32 %v1614, 1.442695
        %v1617 = vpow.pop %v1616
        %v1618 = vmul.f32 %v1615, 1.442695
        %v1619 = vpow.pop %v1618
        %v1620 = vsel %vm1607, %v1617, 0.0
        %1621 = vadd.xlane.f32.xlu0 %v1620
        %v1622 = vpop.xlane.xlu0 %1621
        %v1623 = vsel %vm1607, %v1619, 0.0
        %1624 = vadd.xlane.f32.xlu0 %v1623
        %v1625 = vpop.xlane.xlu0 %1624
        %v1626 = vrcp.pop %v1622
        %v1627 = vrcp.pop %v1625
        %v1628 = vmul.f32 %v1617, %v1626
        %v1629 = vmul.f32 %v1619, %v1627
        %v1630 = vpack.c.bf16 %v1629, %v1628
        %v1632 = vsel %vm1607, %v1630, 0
        %1634 = vmatprep.subr.bf16.mxu0 0
        %1635 = vmatpush1.bf16.msra.mxu0 %v1558
        %1636 = vmatprep.subr.bf16.mxu0 0
        %1637 = vmatpush1.bf16.msra.mxu0 0
        %1638 = vmatprep.subr.bf16.mxu0 0
        %1639 = vmatpush1.bf16.msra.mxu0 0
        %1640 = vmatprep.subr.bf16.mxu0 0
        %1641 = vmatpush1.bf16.msra.mxu0 0
        %1642 = vmatprep.subr.bf16.mxu0 0
        %1643 = vmatpush1.bf16.msra.mxu0 0
        %1644 = vmatprep.subr.bf16.mxu0 0
        %1645 = vmatpush1.bf16.msra.mxu0 0
        %1646 = vmatprep.subr.bf16.mxu0 0
        %1647 = vmatpush1.bf16.msra.mxu0 0
        %1648 = vmatprep.subr.bf16.mxu0 0
        %1649 = vmatpush1.bf16.msra.mxu0 0
        %1650 = vmatprep.subr.bf16.mxu0 0
        %1651 = vmatpush1.bf16.msra.mxu0 0
        %1652 = vmatprep.subr.bf16.mxu0 0
        %1653 = vmatpush1.bf16.msra.mxu0 0
        %1654 = vmatprep.subr.bf16.mxu0 0
        %1655 = vmatpush1.bf16.msra.mxu0 0
        %1656 = vmatprep.subr.bf16.mxu0 0
        %1657 = vmatpush1.bf16.msra.mxu0 0
        %1658 = vmatprep.subr.bf16.mxu0 0
        %1659 = vmatpush1.bf16.msra.mxu0 0
        %1660 = vmatprep.subr.bf16.mxu0 0
        %1661 = vmatpush1.bf16.msra.mxu0 0
        %1662 = vmatprep.subr.bf16.mxu0 0
        %1663 = vmatpush1.bf16.msra.mxu0 0
        %1664 = vmatprep.subr.bf16.mxu0 0
        %1665 = vmatpush1.bf16.msra.mxu0 0
        %1666 = vmatprep.mubr.bf16.mxu0 0
        %1667 = vmatmul.mubr.bf16.gmra.mrb[0].mxu0 %v1632
        %v1668 = vpop.f32.mrb[0].mxu0
        %v1669 = vadd.f32 0.0, %v1668
        %v1670 = vpop.f32.mrb[0].mxu0
        %v1671 = vpop.f32.mrb[0].mxu0
        %v1672 = vadd.f32 0.0, %v1671
        %v1673 = vpop.f32.mrb[0].mxu0
        %1674 = vdwg.mxu0
        %v1675 = vld [vmem:[#allocation2] sm:$0xff]
        %v1676 = vld [vmem:[#allocation3] sm:$0xff]
        %1678 = vrot.lane.b32.xlu0 %v1556, 96
        %v1679 = vpop.permute.xlu0 %1678
        %1681 = vrot.lane.b32.xlu0 %v1675, 96
        %v1682 = vpop.permute.xlu0 %1681
        %v1684 = vsel %vm1559, %v1679, 0
        %v1687 = vsel %vm1559, %v1682, 0
        %1689 = vmatprep.subr.bf16.mxu0 0
        %1690 = vmatpush1.bf16.xpose.msra.mxu0 %v1687
        %1691 = vmatprep.subr.bf16.mxu0 0
        %1692 = vmatpush1.bf16.xpose.msra.mxu0 0
        %1693 = vmatprep.subr.bf16.mxu0 0
        %1694 = vmatpush1.bf16.xpose.msra.mxu0 0
        %1695 = vmatprep.subr.bf16.mxu0 0
        %1696 = vmatpush1.bf16.xpose.msra.mxu0 0
        %1697 = vmatprep.subr.bf16.mxu0 0
        %1698 = vmatpush1.bf16.xpose.msra.mxu0 0
        %1699 = vmatprep.subr.bf16.mxu0 0
        %1700 = vmatpush1.bf16.xpose.msra.mxu0 0
        %1701 = vmatprep.subr.bf16.mxu0 0
        %1702 = vmatpush1.bf16.xpose.msra.mxu0 0
        %1703 = vmatprep.subr.bf16.mxu0 0
        %1704 = vmatpush1.bf16.xpose.msra.mxu0 0
        %1705 = vmatprep.subr.bf16.mxu0 0
        %1706 = vmatpush1.bf16.xpose.msra.mxu0 0
        %1707 = vmatprep.subr.bf16.mxu0 0
        %1708 = vmatpush1.bf16.xpose.msra.mxu0 0
        %1709 = vmatprep.subr.bf16.mxu0 0
        %1710 = vmatpush1.bf16.xpose.msra.mxu0 0
        %1711 = vmatprep.subr.bf16.mxu0 0
        %1712 = vmatpush1.bf16.xpose.msra.mxu0 0
        %1713 = vmatprep.subr.bf16.mxu0 0
        %1714 = vmatpush1.bf16.xpose.msra.mxu0 0
        %1715 = vmatprep.subr.bf16.mxu0 0
        %1716 = vmatpush1.bf16.xpose.msra.mxu0 0
        %1717 = vmatprep.subr.bf16.mxu0 0
        %1718 = vmatpush1.bf16.xpose.msra.mxu0 0
        %1719 = vmatprep.subr.bf16.mxu0 0
        %1720 = vmatpush1.bf16.xpose.msra.mxu0 0
        %1721 = vmatprep.mubr.bf16.mxu0 0
        %1722 = vmatmul.mubr.bf16.gmra.mrb[0].mxu0 %v1684
        %v1723 = vpop.f32.mrb[0].mxu0
        %v1724 = vadd.f32 %v1441, %v1723
        %v1725 = vpop.f32.mrb[0].mxu0
        %v1726 = vpop.f32.mrb[0].mxu0
        %v1727 = vadd.f32 %v1442, %v1726
        %v1728 = vpop.f32.mrb[0].mxu0
        %1729 = vdwg.mxu0
        %v1730 = vsel %vm1607, %v1724, -inf
        %1731 = vmax.xlane.f32.xlu0 %v1730
        %v1732 = vpop.xlane.xlu0 %1731
        %v1733 = vsel %vm1607, %v1727, -inf
        %1734 = vmax.xlane.f32.xlu0 %v1733
        %v1735 = vpop.xlane.xlu0 %1734
        %v1736 = vsub.f32 %v1724, %v1732
        %v1737 = vsub.f32 %v1727, %v1735
        %v1738 = vmul.f32 %v1736, 1.442695
        %v1739 = vpow.pop %v1738
        %v1740 = vmul.f32 %v1737, 1.442695
        %v1741 = vpow.pop %v1740
        %v1742 = vsel %vm1607, %v1739, 0.0
        %1743 = vadd.xlane.f32.xlu0 %v1742
        %v1744 = vpop.xlane.xlu0 %1743
        %v1745 = vsel %vm1607, %v1741, 0.0
        %1746 = vadd.xlane.f32.xlu0 %v1745
        %v1747 = vpop.xlane.xlu0 %1746
        %v1748 = vrcp.pop %v1744
        %v1749 = vrcp.pop %v1747
        %v1750 = vmul.f32 %v1739, %v1748
        %v1751 = vmul.f32 %v1741, %v1749
        %v1752 = vpack.c.bf16 %v1751, %v1750
        %1754 = vrot.lane.b32.xlu0 %v1676, 96
        %v1755 = vpop.permute.xlu0 %1754
        %v1758 = vsel %vm1607, %v1752, 0
        %1760 = vmatprep.subr.bf16.mxu0 0
        %1761 = vmatpush1.bf16.msra.mxu0 %v1755
        %1762 = vmatprep.subr.bf16.mxu0 0
        %1763 = vmatpush1.bf16.msra.mxu0 0
        %1764 = vmatprep.subr.bf16.mxu0 0
        %1765 = vmatpush1.bf16.msra.mxu0 0
        %1766 = vmatprep.subr.bf16.mxu0 0
        %1767 = vmatpush1.bf16.msra.mxu0 0
        %1768 = vmatprep.subr.bf16.mxu0 0
        %1769 = vmatpush1.bf16.msra.mxu0 0
        %1770 = vmatprep.subr.bf16.mxu0 0
        %1771 = vmatpush1.bf16.msra.mxu0 0
        %1772 = vmatprep.subr.bf16.mxu0 0
        %1773 = vmatpush1.bf16.msra.mxu0 0
        %1774 = vmatprep.subr.bf16.mxu0 0
        %1775 = vmatpush1.bf16.msra.mxu0 0
        %1776 = vmatprep.subr.bf16.mxu0 0
        %1777 = vmatpush1.bf16.msra.mxu0 0
        %1778 = vmatprep.subr.bf16.mxu0 0
        %1779 = vmatpush1.bf16.msra.mxu0 0
        %1780 = vmatprep.subr.bf16.mxu0 0
        %1781 = vmatpush1.bf16.msra.mxu0 0
        %1782 = vmatprep.subr.bf16.mxu0 0
        %1783 = vmatpush1.bf16.msra.mxu0 0
        %1784 = vmatprep.subr.bf16.mxu0 0
        %1785 = vmatpush1.bf16.msra.mxu0 0
        %1786 = vmatprep.subr.bf16.mxu0 0
        %1787 = vmatpush1.bf16.msra.mxu0 0
        %1788 = vmatprep.subr.bf16.mxu0 0
        %1789 = vmatpush1.bf16.msra.mxu0 0
        %1790 = vmatprep.subr.bf16.mxu0 0
        %1791 = vmatpush1.bf16.msra.mxu0 0
        %1792 = vmatprep.mubr.bf16.mxu0 0
        %1793 = vmatmul.mubr.bf16.gmra.mrb[0].mxu0 %v1758
        %v1794 = vpop.f32.mrb[0].mxu0
        %v1795 = vadd.f32 0.0, %v1794
        %v1796 = vpop.f32.mrb[0].mxu0
        %v1797 = vpop.f32.mrb[0].mxu0
        %v1798 = vadd.f32 0.0, %v1797
        %v1799 = vpop.f32.mrb[0].mxu0
        %1800 = vdwg.mxu0
        %v1801 = vld [vmem:[#allocation2] sm:$0xff]
        %v1802 = vld [vmem:[#allocation3] sm:$0xff]
        %1803 = vrot.lane.b32.xlu0 %v1556, 64
        %v1804 = vpop.permute.xlu0 %1803
        %1806 = vrot.lane.b32.xlu0 %v1801, 64
        %v1807 = vpop.permute.xlu0 %1806
        %v1809 = vsel %vm1559, %v1804, 0
        %v1812 = vsel %vm1559, %v1807, 0
        %1814 = vmatprep.subr.bf16.mxu0 0
        %1815 = vmatpush1.bf16.xpose.msra.mxu0 %v1812
        %1816 = vmatprep.subr.bf16.mxu0 0
        %1817 = vmatpush1.bf16.xpose.msra.mxu0 0
        %1818 = vmatprep.subr.bf16.mxu0 0
        %1819 = vmatpush1.bf16.xpose.msra.mxu0 0
        %1820 = vmatprep.subr.bf16.mxu0 0
        %1821 = vmatpush1.bf16.xpose.msra.mxu0 0
        %1822 = vmatprep.subr.bf16.mxu0 0
        %1823 = vmatpush1.bf16.xpose.msra.mxu0 0
        %1824 = vmatprep.subr.bf16.mxu0 0
        %1825 = vmatpush1.bf16.xpose.msra.mxu0 0
        %1826 = vmatprep.subr.bf16.mxu0 0
        %1827 = vmatpush1.bf16.xpose.msra.mxu0 0
        %1828 = vmatprep.subr.bf16.mxu0 0
        %1829 = vmatpush1.bf16.xpose.msra.mxu0 0
        %1830 = vmatprep.subr.bf16.mxu0 0
        %1831 = vmatpush1.bf16.xpose.msra.mxu0 0
        %1832 = vmatprep.subr.bf16.mxu0 0
        %1833 = vmatpush1.bf16.xpose.msra.mxu0 0
        %1834 = vmatprep.subr.bf16.mxu0 0
        %1835 = vmatpush1.bf16.xpose.msra.mxu0 0
        %1836 = vmatprep.subr.bf16.mxu0 0
        %1837 = vmatpush1.bf16.xpose.msra.mxu0 0
        %1838 = vmatprep.subr.bf16.mxu0 0
        %1839 = vmatpush1.bf16.xpose.msra.mxu0 0
        %1840 = vmatprep.subr.bf16.mxu0 0
        %1841 = vmatpush1.bf16.xpose.msra.mxu0 0
        %1842 = vmatprep.subr.bf16.mxu0 0
        %1843 = vmatpush1.bf16.xpose.msra.mxu0 0
        %1844 = vmatprep.subr.bf16.mxu0 0
        %1845 = vmatpush1.bf16.xpose.msra.mxu0 0
        %1846 = vmatprep.mubr.bf16.mxu0 0
        %1847 = vmatmul.mubr.bf16.gmra.mrb[0].mxu0 %v1809
        %v1848 = vpop.f32.mrb[0].mxu0
        %v1849 = vadd.f32 %v1441, %v1848
        %v1850 = vpop.f32.mrb[0].mxu0
        %v1851 = vpop.f32.mrb[0].mxu0
        %v1852 = vadd.f32 %v1442, %v1851
        %v1853 = vpop.f32.mrb[0].mxu0
        %1854 = vdwg.mxu0
        %v1855 = vsel %vm1607, %v1849, -inf
        %1856 = vmax.xlane.f32.xlu0 %v1855
        %v1857 = vpop.xlane.xlu0 %1856
        %v1858 = vsel %vm1607, %v1852, -inf
        %1859 = vmax.xlane.f32.xlu0 %v1858
        %v1860 = vpop.xlane.xlu0 %1859
        %v1861 = vsub.f32 %v1849, %v1857
        %v1862 = vsub.f32 %v1852, %v1860
        %v1863 = vmul.f32 %v1861, 1.442695
        %v1864 = vpow.pop %v1863
        %v1865 = vmul.f32 %v1862, 1.442695
        %v1866 = vpow.pop %v1865
        %v1867 = vsel %vm1607, %v1864, 0.0
        %1868 = vadd.xlane.f32.xlu0 %v1867
        %v1869 = vpop.xlane.xlu0 %1868
        %v1870 = vsel %vm1607, %v1866, 0.0
        %1871 = vadd.xlane.f32.xlu0 %v1870
        %v1872 = vpop.xlane.xlu0 %1871
        %v1873 = vrcp.pop %v1869
        %v1874 = vrcp.pop %v1872
        %v1875 = vmul.f32 %v1864, %v1873
        %v1876 = vmul.f32 %v1866, %v1874
        %v1877 = vpack.c.bf16 %v1876, %v1875
        %1879 = vrot.lane.b32.xlu0 %v1802, 64
        %v1880 = vpop.permute.xlu0 %1879
        %v1883 = vsel %vm1607, %v1877, 0
        %1885 = vmatprep.subr.bf16.mxu0 0
        %1886 = vmatpush1.bf16.msra.mxu0 %v1880
        %1887 = vmatprep.subr.bf16.mxu0 0
        %1888 = vmatpush1.bf16.msra.mxu0 0
        %1889 = vmatprep.subr.bf16.mxu0 0
        %1890 = vmatpush1.bf16.msra.mxu0 0
        %1891 = vmatprep.subr.bf16.mxu0 0
        %1892 = vmatpush1.bf16.msra.mxu0 0
        %1893 = vmatprep.subr.bf16.mxu0 0
        %1894 = vmatpush1.bf16.msra.mxu0 0
        %1895 = vmatprep.subr.bf16.mxu0 0
        %1896 = vmatpush1.bf16.msra.mxu0 0
        %1897 = vmatprep.subr.bf16.mxu0 0
        %1898 = vmatpush1.bf16.msra.mxu0 0
        %1899 = vmatprep.subr.bf16.mxu0 0
        %1900 = vmatpush1.bf16.msra.mxu0 0
        %1901 = vmatprep.subr.bf16.mxu0 0
        %1902 = vmatpush1.bf16.msra.mxu0 0
        %1903 = vmatprep.subr.bf16.mxu0 0
        %1904 = vmatpush1.bf16.msra.mxu0 0
        %1905 = vmatprep.subr.bf16.mxu0 0
        %1906 = vmatpush1.bf16.msra.mxu0 0
        %1907 = vmatprep.subr.bf16.mxu0 0
        %1908 = vmatpush1.bf16.msra.mxu0 0
        %1909 = vmatprep.subr.bf16.mxu0 0
        %1910 = vmatpush1.bf16.msra.mxu0 0
        %1911 = vmatprep.subr.bf16.mxu0 0
        %1912 = vmatpush1.bf16.msra.mxu0 0
        %1913 = vmatprep.subr.bf16.mxu0 0
        %1914 = vmatpush1.bf16.msra.mxu0 0
        %1915 = vmatprep.subr.bf16.mxu0 0
        %1916 = vmatpush1.bf16.msra.mxu0 0
        %1917 = vmatprep.mubr.bf16.mxu0 0
        %1918 = vmatmul.mubr.bf16.gmra.mrb[0].mxu0 %v1883
        %v1919 = vpop.f32.mrb[0].mxu0
        %v1920 = vadd.f32 0.0, %v1919
        %v1921 = vpop.f32.mrb[0].mxu0
        %v1922 = vpop.f32.mrb[0].mxu0
        %v1923 = vadd.f32 0.0, %v1922
        %v1924 = vpop.f32.mrb[0].mxu0
        %1925 = vdwg.mxu0
        %v1926 = vld [vmem:[#allocation2] sm:$0xff]
        %v1927 = vld [vmem:[#allocation3] sm:$0xff]
        %1928 = vrot.lane.b32.xlu0 %v1556, 32
        %v1929 = vpop.permute.xlu0 %1928
        %1931 = vrot.lane.b32.xlu0 %v1926, 32
        %v1932 = vpop.permute.xlu0 %1931
        %v1934 = vsel %vm1559, %v1929, 0
        %v1937 = vsel %vm1559, %v1932, 0
        %1939 = vmatprep.subr.bf16.mxu0 0
        %1940 = vmatpush1.bf16.xpose.msra.mxu0 %v1937
        %1941 = vmatprep.subr.bf16.mxu0 0
        %1942 = vmatpush1.bf16.xpose.msra.mxu0 0
        %1943 = vmatprep.subr.bf16.mxu0 0
        %1944 = vmatpush1.bf16.xpose.msra.mxu0 0
        %1945 = vmatprep.subr.bf16.mxu0 0
        %1946 = vmatpush1.bf16.xpose.msra.mxu0 0
        %1947 = vmatprep.subr.bf16.mxu0 0
        %1948 = vmatpush1.bf16.xpose.msra.mxu0 0
        %1949 = vmatprep.subr.bf16.mxu0 0
        %1950 = vmatpush1.bf16.xpose.msra.mxu0 0
        %1951 = vmatprep.subr.bf16.mxu0 0
        %1952 = vmatpush1.bf16.xpose.msra.mxu0 0
        %1953 = vmatprep.subr.bf16.mxu0 0
        %1954 = vmatpush1.bf16.xpose.msra.mxu0 0
        %1955 = vmatprep.subr.bf16.mxu0 0
        %1956 = vmatpush1.bf16.xpose.msra.mxu0 0
        %1957 = vmatprep.subr.bf16.mxu0 0
        %1958 = vmatpush1.bf16.xpose.msra.mxu0 0
        %1959 = vmatprep.subr.bf16.mxu0 0
        %1960 = vmatpush1.bf16.xpose.msra.mxu0 0
        %1961 = vmatprep.subr.bf16.mxu0 0
        %1962 = vmatpush1.bf16.xpose.msra.mxu0 0
        %1963 = vmatprep.subr.bf16.mxu0 0
        %1964 = vmatpush1.bf16.xpose.msra.mxu0 0
        %1965 = vmatprep.subr.bf16.mxu0 0
        %1966 = vmatpush1.bf16.xpose.msra.mxu0 0
        %1967 = vmatprep.subr.bf16.mxu0 0
        %1968 = vmatpush1.bf16.xpose.msra.mxu0 0
        %1969 = vmatprep.subr.bf16.mxu0 0
        %1970 = vmatpush1.bf16.xpose.msra.mxu0 0
        %1971 = vmatprep.mubr.bf16.mxu0 0
        %1972 = vmatmul.mubr.bf16.gmra.mrb[0].mxu0 %v1934
        %v1973 = vpop.f32.mrb[0].mxu0
        %v1974 = vadd.f32 %v1441, %v1973
        %v1975 = vpop.f32.mrb[0].mxu0
        %v1976 = vpop.f32.mrb[0].mxu0
        %v1977 = vadd.f32 %v1442, %v1976
        %v1978 = vpop.f32.mrb[0].mxu0
        %1979 = vdwg.mxu0
        %v1980 = vsel %vm1607, %v1974, -inf
        %1981 = vmax.xlane.f32.xlu0 %v1980
        %v1982 = vpop.xlane.xlu0 %1981
        %v1983 = vsel %vm1607, %v1977, -inf
        %1984 = vmax.xlane.f32.xlu0 %v1983
        %v1985 = vpop.xlane.xlu0 %1984
        %v1986 = vsub.f32 %v1974, %v1982
        %v1987 = vsub.f32 %v1977, %v1985
        %v1988 = vmul.f32 %v1986, 1.442695
        %v1989 = vpow.pop %v1988
        %v1990 = vmul.f32 %v1987, 1.442695
        %v1991 = vpow.pop %v1990
        %v1992 = vsel %vm1607, %v1989, 0.0
        %1993 = vadd.xlane.f32.xlu0 %v1992
        %v1994 = vpop.xlane.xlu0 %1993
        %v1995 = vsel %vm1607, %v1991, 0.0
        %1996 = vadd.xlane.f32.xlu0 %v1995
        %v1997 = vpop.xlane.xlu0 %1996
        %v1998 = vrcp.pop %v1994
        %v1999 = vrcp.pop %v1997
        %v2000 = vmul.f32 %v1989, %v1998
        %v2001 = vmul.f32 %v1991, %v1999
        %v2002 = vpack.c.bf16 %v2001, %v2000
        %2004 = vrot.lane.b32.xlu0 %v1927, 32
        %v2005 = vpop.permute.xlu0 %2004
        %v2008 = vsel %vm1607, %v2002, 0
        %2010 = vmatprep.subr.bf16.mxu0 0
        %2011 = vmatpush1.bf16.msra.mxu0 %v2005
        %2012 = vmatprep.subr.bf16.mxu0 0
        %2013 = vmatpush1.bf16.msra.mxu0 0
        %2014 = vmatprep.subr.bf16.mxu0 0
        %2015 = vmatpush1.bf16.msra.mxu0 0
        %2016 = vmatprep.subr.bf16.mxu0 0
        %2017 = vmatpush1.bf16.msra.mxu0 0
        %2018 = vmatprep.subr.bf16.mxu0 0
        %2019 = vmatpush1.bf16.msra.mxu0 0
        %2020 = vmatprep.subr.bf16.mxu0 0
        %2021 = vmatpush1.bf16.msra.mxu0 0
        %2022 = vmatprep.subr.bf16.mxu0 0
        %2023 = vmatpush1.bf16.msra.mxu0 0
        %2024 = vmatprep.subr.bf16.mxu0 0
        %2025 = vmatpush1.bf16.msra.mxu0 0
        %2026 = vmatprep.subr.bf16.mxu0 0
        %2027 = vmatpush1.bf16.msra.mxu0 0
        %2028 = vmatprep.subr.bf16.mxu0 0
        %2029 = vmatpush1.bf16.msra.mxu0 0
        %2030 = vmatprep.subr.bf16.mxu0 0
        %2031 = vmatpush1.bf16.msra.mxu0 0
        %2032 = vmatprep.subr.bf16.mxu0 0
        %2033 = vmatpush1.bf16.msra.mxu0 0
        %2034 = vmatprep.subr.bf16.mxu0 0
        %2035 = vmatpush1.bf16.msra.mxu0 0
        %2036 = vmatprep.subr.bf16.mxu0 0
        %2037 = vmatpush1.bf16.msra.mxu0 0
        %2038 = vmatprep.subr.bf16.mxu0 0
        %2039 = vmatpush1.bf16.msra.mxu0 0
        %2040 = vmatprep.subr.bf16.mxu0 0
        %2041 = vmatpush1.bf16.msra.mxu0 0
        %2042 = vmatprep.mubr.bf16.mxu0 0
        %2043 = vmatmul.mubr.bf16.gmra.mrb[0].mxu0 %v2008
        %v2044 = vpop.f32.mrb[0].mxu0
        %v2045 = vadd.f32 0.0, %v2044
        %v2046 = vpop.f32.mrb[0].mxu0
        %v2047 = vpop.f32.mrb[0].mxu0
        %v2048 = vadd.f32 0.0, %v2047
        %v2049 = vpop.f32.mrb[0].mxu0
        %2050 = vdwg.mxu0
        %2053 = vrot.lane.b32.xlu0 %v1795, 32
        %v2054 = vpop.permute.xlu0 %2053
        %2055 = vrot.lane.b32.xlu0 %v1798, 32
        %v2056 = vpop.permute.xlu0 %2055
        %2061 = vrot.lane.b32.xlu0 %v1920, 64
        %v2062 = vpop.permute.xlu0 %2061
        %2063 = vrot.lane.b32.xlu0 %v1923, 64
        %v2064 = vpop.permute.xlu0 %2063
        %2069 = vrot.lane.b32.xlu0 %v2045, 96
        %v2070 = vpop.permute.xlu0 %2069
        %2071 = vrot.lane.b32.xlu0 %v2048, 96
        %v2072 = vpop.permute.xlu0 %2071
        %v2075 = vsel %vm1559, %v1669, %v2054
        %v2076 = vsel %vm1559, %v1672, %v2056
        %vm2077 = vcmask 523264
        %v2078 = vsel %vm2077, %v2075, %v2062
        %v2079 = vsel %vm2077, %v2076, %v2064
        %vm2080 = vcmask 785408
        %v2081 = vsel %vm2080, %v2078, %v2070
        %v2082 = vsel %vm2080, %v2079, %v2072
        %v2083 = vpack.c.bf16 %v2082, %v2081
        %v2084 = vld [vmem:[#allocation10] sm:$0xf]
        %v2085 = vld [vmem:[#allocation10 + $0x4] sm:$0xf]
        %v2086 = vld [vmem:[#allocation10 + $0x8] sm:$0xf]
        %v2087 = vld [vmem:[#allocation10 + $0xc] sm:$0xf]
        %v2088 = vld [vmem:[#allocation10 + $0x10] sm:$0xf]
        %v2089 = vld [vmem:[#allocation10 + $0x14] sm:$0xf]
        %v2090 = vld [vmem:[#allocation10 + $0x18] sm:$0xf]
        %v2091 = vld [vmem:[#allocation10 + $0x1c] sm:$0xf]
        %v2092 = vld [vmem:[#allocation10 + $0x20] sm:$0xf]
        %v2093 = vld [vmem:[#allocation10 + $0x24] sm:$0xf]
        %v2094 = vld [vmem:[#allocation10 + $0x28] sm:$0xf]
        %v2095 = vld [vmem:[#allocation10 + $0x2c] sm:$0xf]
        %v2096 = vld [vmem:[#allocation10 + $0x30] sm:$0xf]
        %v2097 = vld [vmem:[#allocation10 + $0x34] sm:$0xf]
        %v2098 = vld [vmem:[#allocation10 + $0x38] sm:$0xf]
        %v2099 = vld [vmem:[#allocation10 + $0x3c] sm:$0xf]
        %v2116 = vunpack.c.l.b16 %v2084
        %v2117 = vunpack.c.l.b16 %v2085
        %v2118 = vunpack.c.l.b16 %v2086
        %v2119 = vunpack.c.l.b16 %v2087
        %v2120 = vunpack.c.l.b16 %v2088
        %v2121 = vunpack.c.l.b16 %v2089
        %v2122 = vunpack.c.l.b16 %v2090
        %v2123 = vunpack.c.l.b16 %v2091
        %v2124 = vunpack.c.l.b16 %v2092
        %v2125 = vunpack.c.l.b16 %v2093
        %v2126 = vunpack.c.l.b16 %v2094
        %v2127 = vunpack.c.l.b16 %v2095
        %v2128 = vunpack.c.l.b16 %v2096
        %v2129 = vunpack.c.l.b16 %v2097
        %v2130 = vunpack.c.l.b16 %v2098
        %v2131 = vunpack.c.l.b16 %v2099
        %v2132 = vpack.c.b16 %v2117, %v2116
        %v2133 = vpack.c.b16 %v2119, %v2118
        %v2134 = vpack.c.b16 %v2121, %v2120
        %v2135 = vpack.c.b16 %v2123, %v2122
        %v2136 = vpack.c.b16 %v2125, %v2124
        %v2137 = vpack.c.b16 %v2127, %v2126
        %v2138 = vpack.c.b16 %v2129, %v2128
        %v2139 = vpack.c.b16 %v2131, %v2130
        %2148 = vmatprep.subr.bf16.mxu0 0
        %2149 = vmatpush1.bf16.msra.mxu0 %v2132
        %2150 = vmatprep.subr.bf16.mxu0 0
        %2151 = vmatpush1.bf16.msra.mxu0 %v2133
        %2152 = vmatprep.subr.bf16.mxu0 0
        %2153 = vmatpush1.bf16.msra.mxu0 %v2134
        %2154 = vmatprep.subr.bf16.mxu0 0
        %2155 = vmatpush1.bf16.msra.mxu0 %v2135
        %2156 = vmatprep.subr.bf16.mxu0 0
        %2157 = vmatpush1.bf16.msra.mxu0 %v2136
        %2158 = vmatprep.subr.bf16.mxu0 0
        %2159 = vmatpush1.bf16.msra.mxu0 %v2137
        %2160 = vmatprep.subr.bf16.mxu0 0
        %2161 = vmatpush1.bf16.msra.mxu0 %v2138
        %2162 = vmatprep.subr.bf16.mxu0 0
        %2163 = vmatpush1.bf16.msra.mxu0 %v2139
        %2164 = vmatprep.subr.bf16.mxu0 0
        %2165 = vmatpush1.bf16.msra.mxu0 0
        %2166 = vmatprep.subr.bf16.mxu0 0
        %2167 = vmatpush1.bf16.msra.mxu0 0
        %2168 = vmatprep.subr.bf16.mxu0 0
        %2169 = vmatpush1.bf16.msra.mxu0 0
        %2170 = vmatprep.subr.bf16.mxu0 0
        %2171 = vmatpush1.bf16.msra.mxu0 0
        %2172 = vmatprep.subr.bf16.mxu0 0
        %2173 = vmatpush1.bf16.msra.mxu0 0
        %2174 = vmatprep.subr.bf16.mxu0 0
        %2175 = vmatpush1.bf16.msra.mxu0 0
        %2176 = vmatprep.subr.bf16.mxu0 0
        %2177 = vmatpush1.bf16.msra.mxu0 0
        %2178 = vmatprep.subr.bf16.mxu0 0
        %2179 = vmatpush1.bf16.msra.mxu0 0
        %2180 = vmatprep.mubr.bf16.mxu0 0
        %2181 = vmatmul.mubr.bf16.gmra.mrb[0].mxu0 %v2083
        %v2182 = vpop.f32.mrb[0].mxu0
        %v2183 = vadd.f32 %v1437, %v2182
        %v2184 = vpop.f32.mrb[0].mxu0
        %v2185 = vpop.f32.mrb[0].mxu0
        %v2186 = vadd.f32 %v1438, %v2185
        %v2187 = vpop.f32.mrb[0].mxu0
        %2188 = vdwg.mxu0
        %v2189 = vld [vmem:[%s8] sm:$0x1]
        %v2190 = vld [vmem:[#allocation11] sm:$0x1]
        %2191 = vadd.xlane.f32.xlu0 %v2183
        %v2192 = vpop.xlane.xlu0 %2191
        %2193 = vadd.xlane.f32.xlu0 %v2186
        %v2194 = vpop.xlane.xlu0 %2193
        %v2195 = vrcp.pop 128.0
        %v2196 = vmul.f32 %v2192, %v2195
        %v2197 = vmul.f32 %v2194, %v2195
        %v2198 = vsub.f32 %v2183, %v2196
        %v2199 = vsub.f32 %v2186, %v2197
        %v2200 = vmul.f32 %v2198, %v2198
        %v2201 = vmul.f32 %v2199, %v2199
        %2202 = vadd.xlane.f32.xlu0 %v2200
        %v2203 = vpop.xlane.xlu0 %2202
        %2204 = vadd.xlane.f32.xlu0 %v2201
        %v2205 = vpop.xlane.xlu0 %2204
        %v2206 = vmul.f32 %v2203, %v2195
        %v2207 = vmul.f32 %v2205, %v2195
        %v2208 = vadd.f32 %v2206, 1e-06
        %v2209 = vadd.f32 %v2207, 1e-06
        %v2210 = vrsqrt.pop %v2208
        %v2211 = vrsqrt.pop %v2209
        %v2212 = vmul.f32 %v2198, %v2210
        %v2213 = vmul.f32 %v2199, %v2211
        %v2215 = vlaneseq
        %v2216 = vshrl.u32 %v2215, 7
        %v2217 = vsub.s32 0, %v2216
        %v2218 = vrot.slane %v2189, %v2217
        %v2220 = vmul.f32 %v2212, %v2218
        %v2221 = vmul.f32 %v2213, %v2218
        %v2223 = vlaneseq
        %v2224 = vshrl.u32 %v2223, 7
        %v2225 = vsub.s32 0, %v2224
        %v2226 = vrot.slane %v2190, %v2225
        %v2228 = vadd.f32 %v2220, %v2226
        %v2229 = vadd.f32 %v2221, %v2226
        %v2230 = vpack.c.bf16 %v2229, %v2228
        %v2231 = vld [vmem:[#allocation13] sm:$0xf]
        %v2232 = vld [vmem:[#allocation13 + $0x4] sm:$0xf]
        %v2233 = vld [vmem:[#allocation13 + $0x8] sm:$0xf]
        %v2234 = vld [vmem:[#allocation13 + $0xc] sm:$0xf]
        %v2235 = vld [vmem:[#allocation13 + $0x10] sm:$0xf]
        %v2236 = vld [vmem:[#allocation13 + $0x14] sm:$0xf]
        %v2237 = vld [vmem:[#allocation13 + $0x18] sm:$0xf]
        %v2238 = vld [vmem:[#allocation13 + $0x1c] sm:$0xf]
        %v2239 = vld [vmem:[#allocation13 + $0x20] sm:$0xf]
        %v2240 = vld [vmem:[#allocation13 + $0x24] sm:$0xf]
        %v2241 = vld [vmem:[#allocation13 + $0x28] sm:$0xf]
        %v2242 = vld [vmem:[#allocation13 + $0x2c] sm:$0xf]
        %v2243 = vld [vmem:[#allocation13 + $0x30] sm:$0xf]
        %v2244 = vld [vmem:[#allocation13 + $0x34] sm:$0xf]
        %v2245 = vld [vmem:[#allocation13 + $0x38] sm:$0xf]
        %v2246 = vld [vmem:[#allocation13 + $0x3c] sm:$0xf]
        %v2263 = vunpack.c.l.b16 %v2231
        %v2264 = vunpack.c.l.b16 %v2232
        %v2265 = vunpack.c.l.b16 %v2233
        %v2266 = vunpack.c.l.b16 %v2234
        %v2267 = vunpack.c.l.b16 %v2235
        %v2268 = vunpack.c.l.b16 %v2236
        %v2269 = vunpack.c.l.b16 %v2237
        %v2270 = vunpack.c.l.b16 %v2238
        %v2271 = vunpack.c.l.b16 %v2239
        %v2272 = vunpack.c.l.b16 %v2240
        %v2273 = vunpack.c.l.b16 %v2241
        %v2274 = vunpack.c.l.b16 %v2242
        %v2275 = vunpack.c.l.b16 %v2243
        %v2276 = vunpack.c.l.b16 %v2244
        %v2277 = vunpack.c.l.b16 %v2245
        %v2278 = vunpack.c.l.b16 %v2246
        %v2279 = vpack.c.b16 %v2264, %v2263
        %v2280 = vpack.c.b16 %v2266, %v2265
        %v2281 = vpack.c.b16 %v2268, %v2267
        %v2282 = vpack.c.b16 %v2270, %v2269
        %v2283 = vpack.c.b16 %v2272, %v2271
        %v2284 = vpack.c.b16 %v2274, %v2273
        %v2285 = vpack.c.b16 %v2276, %v2275
        %v2286 = vpack.c.b16 %v2278, %v2277
        %2295 = vmatprep.subr.bf16.mxu0 0
        %2296 = vmatpush1.bf16.msra.mxu0 %v2279
        %2297 = vmatprep.subr.bf16.mxu0 0
        %2298 = vmatpush1.bf16.msra.mxu0 %v2280
        %2299 = vmatprep.subr.bf16.mxu0 0
        %2300 = vmatpush1.bf16.msra.mxu0 %v2281
        %2301 = vmatprep.subr.bf16.mxu0 0
        %2302 = vmatpush1.bf16.msra.mxu0 %v2282
        %2303 = vmatprep.subr.bf16.mxu0 0
        %2304 = vmatpush1.bf16.msra.mxu0 %v2283
        %2305 = vmatprep.subr.bf16.mxu0 0
        %2306 = vmatpush1.bf16.msra.mxu0 %v2284
        %2307 = vmatprep.subr.bf16.mxu0 0
        %2308 = vmatpush1.bf16.msra.mxu0 %v2285
        %2309 = vmatprep.subr.bf16.mxu0 0
        %2310 = vmatpush1.bf16.msra.mxu0 %v2286
        %2311 = vmatprep.subr.bf16.mxu0 0
        %2312 = vmatpush1.bf16.msra.mxu0 0
        %2313 = vmatprep.subr.bf16.mxu0 0
        %2314 = vmatpush1.bf16.msra.mxu0 0
        %2315 = vmatprep.subr.bf16.mxu0 0
        %2316 = vmatpush1.bf16.msra.mxu0 0
        %2317 = vmatprep.subr.bf16.mxu0 0
        %2318 = vmatpush1.bf16.msra.mxu0 0
        %2319 = vmatprep.subr.bf16.mxu0 0
        %2320 = vmatpush1.bf16.msra.mxu0 0
        %2321 = vmatprep.subr.bf16.mxu0 0
        %2322 = vmatpush1.bf16.msra.mxu0 0
        %2323 = vmatprep.subr.bf16.mxu0 0
        %2324 = vmatpush1.bf16.msra.mxu0 0
        %2325 = vmatprep.subr.bf16.mxu0 0
        %2326 = vmatpush1.bf16.msra.mxu0 0
        %2327 = vmatprep.mubr.bf16.mxu0 0
        %2328 = vmatmul.mubr.bf16.gmra.mrb[0].mxu0 %v2230
        %v2329 = vpop.f32.mrb[0].mxu0
        %v2330 = vadd.f32 0.0, %v2329
        %v2331 = vpop.f32.mrb[0].mxu0
        %v2332 = vpop.f32.mrb[0].mxu0
        %v2333 = vadd.f32 0.0, %v2332
        %v2334 = vpop.f32.mrb[0].mxu0
        %2335 = vdwg.mxu0
        %v2336 = vpack.c.bf16 %v2333, %v2330
        %v2337 = vld [vmem:[#allocation4] sm:$0xff]
        %v2338 = vld [vmem:[#allocation5] sm:$0xff]
        %v2339 = vlaneseq
        %v2340 = vshrl.u32 %v2339, 7
        %v2341 = vsub.s32 0, %v2340
        %v2342 = vrot.slane %v1444, %v2341
        %v2344 = vsel %vm1559, %v2336, 0
        %v2347 = vsel %vm1559, %v2337, 0
        %2349 = vmatprep.subr.bf16.mxu0 0
        %2350 = vmatpush1.bf16.xpose.msra.mxu0 %v2347
        %2351 = vmatprep.subr.bf16.mxu0 0
        %2352 = vmatpush1.bf16.xpose.msra.mxu0 0
        %2353 = vmatprep.subr.bf16.mxu0 0
        %2354 = vmatpush1.bf16.xpose.msra.mxu0 0
        %2355 = vmatprep.subr.bf16.mxu0 0
        %2356 = vmatpush1.bf16.xpose.msra.mxu0 0
        %2357 = vmatprep.subr.bf16.mxu0 0
        %2358 = vmatpush1.bf16.xpose.msra.mxu0 0
        %2359 = vmatprep.subr.bf16.mxu0 0
        %2360 = vmatpush1.bf16.xpose.msra.mxu0 0
        %2361 = vmatprep.subr.bf16.mxu0 0
        %2362 = vmatpush1.bf16.xpose.msra.mxu0 0
        %2363 = vmatprep.subr.bf16.mxu0 0
        %2364 = vmatpush1.bf16.xpose.msra.mxu0 0
        %2365 = vmatprep.subr.bf16.mxu0 0
        %2366 = vmatpush1.bf16.xpose.msra.mxu0 0
        %2367 = vmatprep.subr.bf16.mxu0 0
        %2368 = vmatpush1.bf16.xpose.msra.mxu0 0
        %2369 = vmatprep.subr.bf16.mxu0 0
        %2370 = vmatpush1.bf16.xpose.msra.mxu0 0
        %2371 = vmatprep.subr.bf16.mxu0 0
        %2372 = vmatpush1.bf16.xpose.msra.mxu0 0
        %2373 = vmatprep.subr.bf16.mxu0 0
        %2374 = vmatpush1.bf16.xpose.msra.mxu0 0
        %2375 = vmatprep.subr.bf16.mxu0 0
        %2376 = vmatpush1.bf16.xpose.msra.mxu0 0
        %2377 = vmatprep.subr.bf16.mxu0 0
        %2378 = vmatpush1.bf16.xpose.msra.mxu0 0
        %2379 = vmatprep.subr.bf16.mxu0 0
        %2380 = vmatpush1.bf16.xpose.msra.mxu0 0
        %2381 = vmatprep.mubr.bf16.mxu0 0
        %2382 = vmatmul.mubr.bf16.gmra.mrb[0].mxu0 %v2344
        %v2383 = vpop.f32.mrb[0].mxu0
        %v2384 = vadd.f32 %v2342, %v2383
        %v2385 = vpop.f32.mrb[0].mxu0
        %v2386 = vpop.f32.mrb[0].mxu0
        %v2387 = vadd.f32 %v2342, %v2386
        %v2388 = vpop.f32.mrb[0].mxu0
        %2389 = vdwg.mxu0
        %v2390 = vsel %vm1607, %v2384, -inf
        %2391 = vmax.xlane.f32.xlu0 %v2390
        %v2392 = vpop.xlane.xlu0 %2391
        %v2393 = vsel %vm1607, %v2387, -inf
        %2394 = vmax.xlane.f32.xlu0 %v2393
        %v2395 = vpop.xlane.xlu0 %2394
        %v2396 = vsub.f32 %v2384, %v2392
        %v2397 = vsub.f32 %v2387, %v2395
        %v2398 = vmul.f32 %v2396, 1.442695
        %v2399 = vpow.pop %v2398
        %v2400 = vmul.f32 %v2397, 1.442695
        %v2401 = vpow.pop %v2400
        %v2402 = vsel %vm1607, %v2399, 0.0
        %2403 = vadd.xlane.f32.xlu0 %v2402
        %v2404 = vpop.xlane.xlu0 %2403
        %v2405 = vsel %vm1607, %v2401, 0.0
        %2406 = vadd.xlane.f32.xlu0 %v2405
        %v2407 = vpop.xlane.xlu0 %2406
        %v2408 = vrcp.pop %v2404
        %v2409 = vrcp.pop %v2407
        %v2410 = vmul.f32 %v2399, %v2408
        %v2411 = vmul.f32 %v2401, %v2409
        %v2412 = vpack.c.bf16 %v2411, %v2410
        %v2414 = vsel %vm1607, %v2412, 0
        %2416 = vmatprep.subr.bf16.mxu0 0
        %2417 = vmatpush1.bf16.msra.mxu0 %v2338
        %2418 = vmatprep.subr.bf16.mxu0 0
        %2419 = vmatpush1.bf16.msra.mxu0 0
        %2420 = vmatprep.subr.bf16.mxu0 0
        %2421 = vmatpush1.bf16.msra.mxu0 0
        %2422 = vmatprep.subr.bf16.mxu0 0
        %2423 = vmatpush1.bf16.msra.mxu0 0
        %2424 = vmatprep.subr.bf16.mxu0 0
        %2425 = vmatpush1.bf16.msra.mxu0 0
        %2426 = vmatprep.subr.bf16.mxu0 0
        %2427 = vmatpush1.bf16.msra.mxu0 0
        %2428 = vmatprep.subr.bf16.mxu0 0
        %2429 = vmatpush1.bf16.msra.mxu0 0
        %2430 = vmatprep.subr.bf16.mxu0 0
        %2431 = vmatpush1.bf16.msra.mxu0 0
        %2432 = vmatprep.subr.bf16.mxu0 0
        %2433 = vmatpush1.bf16.msra.mxu0 0
        %2434 = vmatprep.subr.bf16.mxu0 0
        %2435 = vmatpush1.bf16.msra.mxu0 0
        %2436 = vmatprep.subr.bf16.mxu0 0
        %2437 = vmatpush1.bf16.msra.mxu0 0
        %2438 = vmatprep.subr.bf16.mxu0 0
        %2439 = vmatpush1.bf16.msra.mxu0 0
        %2440 = vmatprep.subr.bf16.mxu0 0
        %2441 = vmatpush1.bf16.msra.mxu0 0
        %2442 = vmatprep.subr.bf16.mxu0 0
        %2443 = vmatpush1.bf16.msra.mxu0 0
        %2444 = vmatprep.subr.bf16.mxu0 0
        %2445 = vmatpush1.bf16.msra.mxu0 0
        %2446 = vmatprep.subr.bf16.mxu0 0
        %2447 = vmatpush1.bf16.msra.mxu0 0
        %2448 = vmatprep.mubr.bf16.mxu0 0
        %2449 = vmatmul.mubr.bf16.gmra.mrb[0].mxu0 %v2414
        %v2450 = vpop.f32.mrb[0].mxu0
        %v2451 = vadd.f32 0.0, %v2450
        %v2452 = vpop.f32.mrb[0].mxu0
        %v2453 = vpop.f32.mrb[0].mxu0
        %v2454 = vadd.f32 0.0, %v2453
        %v2455 = vpop.f32.mrb[0].mxu0
        %2456 = vdwg.mxu0
        %v2457 = vld [vmem:[#allocation4] sm:$0xff]
        %v2458 = vld [vmem:[#allocation5] sm:$0xff]
        %2460 = vrot.lane.b32.xlu0 %v2336, 96
        %v2461 = vpop.permute.xlu0 %2460
        %2463 = vrot.lane.b32.xlu0 %v2457, 96
        %v2464 = vpop.permute.xlu0 %2463
        %v2466 = vsel %vm1559, %v2461, 0
        %v2469 = vsel %vm1559, %v2464, 0
        %2471 = vmatprep.subr.bf16.mxu0 0
        %2472 = vmatpush1.bf16.xpose.msra.mxu0 %v2469
        %2473 = vmatprep.subr.bf16.mxu0 0
        %2474 = vmatpush1.bf16.xpose.msra.mxu0 0
        %2475 = vmatprep.subr.bf16.mxu0 0
        %2476 = vmatpush1.bf16.xpose.msra.mxu0 0
        %2477 = vmatprep.subr.bf16.mxu0 0
        %2478 = vmatpush1.bf16.xpose.msra.mxu0 0
        %2479 = vmatprep.subr.bf16.mxu0 0
        %2480 = vmatpush1.bf16.xpose.msra.mxu0 0
        %2481 = vmatprep.subr.bf16.mxu0 0
        %2482 = vmatpush1.bf16.xpose.msra.mxu0 0
        %2483 = vmatprep.subr.bf16.mxu0 0
        %2484 = vmatpush1.bf16.xpose.msra.mxu0 0
        %2485 = vmatprep.subr.bf16.mxu0 0
        %2486 = vmatpush1.bf16.xpose.msra.mxu0 0
        %2487 = vmatprep.subr.bf16.mxu0 0
        %2488 = vmatpush1.bf16.xpose.msra.mxu0 0
        %2489 = vmatprep.subr.bf16.mxu0 0
        %2490 = vmatpush1.bf16.xpose.msra.mxu0 0
        %2491 = vmatprep.subr.bf16.mxu0 0
        %2492 = vmatpush1.bf16.xpose.msra.mxu0 0
        %2493 = vmatprep.subr.bf16.mxu0 0
        %2494 = vmatpush1.bf16.xpose.msra.mxu0 0
        %2495 = vmatprep.subr.bf16.mxu0 0
        %2496 = vmatpush1.bf16.xpose.msra.mxu0 0
        %2497 = vmatprep.subr.bf16.mxu0 0
        %2498 = vmatpush1.bf16.xpose.msra.mxu0 0
        %2499 = vmatprep.subr.bf16.mxu0 0
        %2500 = vmatpush1.bf16.xpose.msra.mxu0 0
        %2501 = vmatprep.subr.bf16.mxu0 0
        %2502 = vmatpush1.bf16.xpose.msra.mxu0 0
        %2503 = vmatprep.mubr.bf16.mxu0 0
        %2504 = vmatmul.mubr.bf16.gmra.mrb[0].mxu0 %v2466
        %v2505 = vpop.f32.mrb[0].mxu0
        %v2506 = vadd.f32 %v2342, %v2505
        %v2507 = vpop.f32.mrb[0].mxu0
        %v2508 = vpop.f32.mrb[0].mxu0
        %v2509 = vadd.f32 %v2342, %v2508
        %v2510 = vpop.f32.mrb[0].mxu0
        %2511 = vdwg.mxu0
        %v2512 = vsel %vm1607, %v2506, -inf
        %2513 = vmax.xlane.f32.xlu0 %v2512
        %v2514 = vpop.xlane.xlu0 %2513
        %v2515 = vsel %vm1607, %v2509, -inf
        %2516 = vmax.xlane.f32.xlu0 %v2515
        %v2517 = vpop.xlane.xlu0 %2516
        %v2518 = vsub.f32 %v2506, %v2514
        %v2519 = vsub.f32 %v2509, %v2517
        %v2520 = vmul.f32 %v2518, 1.442695
        %v2521 = vpow.pop %v2520
        %v2522 = vmul.f32 %v2519, 1.442695
        %v2523 = vpow.pop %v2522
        %v2524 = vsel %vm1607, %v2521, 0.0
        %2525 = vadd.xlane.f32.xlu0 %v2524
        %v2526 = vpop.xlane.xlu0 %2525
        %v2527 = vsel %vm1607, %v2523, 0.0
        %2528 = vadd.xlane.f32.xlu0 %v2527
        %v2529 = vpop.xlane.xlu0 %2528
        %v2530 = vrcp.pop %v2526
        %v2531 = vrcp.pop %v2529
        %v2532 = vmul.f32 %v2521, %v2530
        %v2533 = vmul.f32 %v2523, %v2531
        %v2534 = vpack.c.bf16 %v2533, %v2532
        %2536 = vrot.lane.b32.xlu0 %v2458, 96
        %v2537 = vpop.permute.xlu0 %2536
        %v2540 = vsel %vm1607, %v2534, 0
        %2542 = vmatprep.subr.bf16.mxu0 0
        %2543 = vmatpush1.bf16.msra.mxu0 %v2537
        %2544 = vmatprep.subr.bf16.mxu0 0
        %2545 = vmatpush1.bf16.msra.mxu0 0
        %2546 = vmatprep.subr.bf16.mxu0 0
        %2547 = vmatpush1.bf16.msra.mxu0 0
        %2548 = vmatprep.subr.bf16.mxu0 0
        %2549 = vmatpush1.bf16.msra.mxu0 0
        %2550 = vmatprep.subr.bf16.mxu0 0
        %2551 = vmatpush1.bf16.msra.mxu0 0
        %2552 = vmatprep.subr.bf16.mxu0 0
        %2553 = vmatpush1.bf16.msra.mxu0 0
        %2554 = vmatprep.subr.bf16.mxu0 0
        %2555 = vmatpush1.bf16.msra.mxu0 0
        %2556 = vmatprep.subr.bf16.mxu0 0
        %2557 = vmatpush1.bf16.msra.mxu0 0
        %2558 = vmatprep.subr.bf16.mxu0 0
        %2559 = vmatpush1.bf16.msra.mxu0 0
        %2560 = vmatprep.subr.bf16.mxu0 0
        %2561 = vmatpush1.bf16.msra.mxu0 0
        %2562 = vmatprep.subr.bf16.mxu0 0
        %2563 = vmatpush1.bf16.msra.mxu0 0
        %2564 = vmatprep.subr.bf16.mxu0 0
        %2565 = vmatpush1.bf16.msra.mxu0 0
        %2566 = vmatprep.subr.bf16.mxu0 0
        %2567 = vmatpush1.bf16.msra.mxu0 0
        %2568 = vmatprep.subr.bf16.mxu0 0
        %2569 = vmatpush1.bf16.msra.mxu0 0
        %2570 = vmatprep.subr.bf16.mxu0 0
        %2571 = vmatpush1.bf16.msra.mxu0 0
        %2572 = vmatprep.subr.bf16.mxu0 0
        %2573 = vmatpush1.bf16.msra.mxu0 0
        %2574 = vmatprep.mubr.bf16.mxu0 0
        %2575 = vmatmul.mubr.bf16.gmra.mrb[0].mxu0 %v2540
        %v2576 = vpop.f32.mrb[0].mxu0
        %v2577 = vadd.f32 0.0, %v2576
        %v2578 = vpop.f32.mrb[0].mxu0
        %v2579 = vpop.f32.mrb[0].mxu0
        %v2580 = vadd.f32 0.0, %v2579
        %v2581 = vpop.f32.mrb[0].mxu0
        %2582 = vdwg.mxu0
        %v2583 = vld [vmem:[#allocation4] sm:$0xff]
        %v2584 = vld [vmem:[#allocation5] sm:$0xff]
        %2585 = vrot.lane.b32.xlu0 %v2336, 64
        %v2586 = vpop.permute.xlu0 %2585
        %2588 = vrot.lane.b32.xlu0 %v2583, 64
        %v2589 = vpop.permute.xlu0 %2588
        %v2591 = vsel %vm1559, %v2586, 0
        %v2594 = vsel %vm1559, %v2589, 0
        %2596 = vmatprep.subr.bf16.mxu0 0
        %2597 = vmatpush1.bf16.xpose.msra.mxu0 %v2594
        %2598 = vmatprep.subr.bf16.mxu0 0
        %2599 = vmatpush1.bf16.xpose.msra.mxu0 0
        %2600 = vmatprep.subr.bf16.mxu0 0
        %2601 = vmatpush1.bf16.xpose.msra.mxu0 0
        %2602 = vmatprep.subr.bf16.mxu0 0
        %2603 = vmatpush1.bf16.xpose.msra.mxu0 0
        %2604 = vmatprep.subr.bf16.mxu0 0
        %2605 = vmatpush1.bf16.xpose.msra.mxu0 0
        %2606 = vmatprep.subr.bf16.mxu0 0
        %2607 = vmatpush1.bf16.xpose.msra.mxu0 0
        %2608 = vmatprep.subr.bf16.mxu0 0
        %2609 = vmatpush1.bf16.xpose.msra.mxu0 0
        %2610 = vmatprep.subr.bf16.mxu0 0
        %2611 = vmatpush1.bf16.xpose.msra.mxu0 0
        %2612 = vmatprep.subr.bf16.mxu0 0
        %2613 = vmatpush1.bf16.xpose.msra.mxu0 0
        %2614 = vmatprep.subr.bf16.mxu0 0
        %2615 = vmatpush1.bf16.xpose.msra.mxu0 0
        %2616 = vmatprep.subr.bf16.mxu0 0
        %2617 = vmatpush1.bf16.xpose.msra.mxu0 0
        %2618 = vmatprep.subr.bf16.mxu0 0
        %2619 = vmatpush1.bf16.xpose.msra.mxu0 0
        %2620 = vmatprep.subr.bf16.mxu0 0
        %2621 = vmatpush1.bf16.xpose.msra.mxu0 0
        %2622 = vmatprep.subr.bf16.mxu0 0
        %2623 = vmatpush1.bf16.xpose.msra.mxu0 0
        %2624 = vmatprep.subr.bf16.mxu0 0
        %2625 = vmatpush1.bf16.xpose.msra.mxu0 0
        %2626 = vmatprep.subr.bf16.mxu0 0
        %2627 = vmatpush1.bf16.xpose.msra.mxu0 0
        %2628 = vmatprep.mubr.bf16.mxu0 0
        %2629 = vmatmul.mubr.bf16.gmra.mrb[0].mxu0 %v2591
        %v2630 = vpop.f32.mrb[0].mxu0
        %v2631 = vadd.f32 %v2342, %v2630
        %v2632 = vpop.f32.mrb[0].mxu0
        %v2633 = vpop.f32.mrb[0].mxu0
        %v2634 = vadd.f32 %v2342, %v2633
        %v2635 = vpop.f32.mrb[0].mxu0
        %2636 = vdwg.mxu0
        %v2637 = vsel %vm1607, %v2631, -inf
        %2638 = vmax.xlane.f32.xlu0 %v2637
        %v2639 = vpop.xlane.xlu0 %2638
        %v2640 = vsel %vm1607, %v2634, -inf
        %2641 = vmax.xlane.f32.xlu0 %v2640
        %v2642 = vpop.xlane.xlu0 %2641
        %v2643 = vsub.f32 %v2631, %v2639
        %v2644 = vsub.f32 %v2634, %v2642
        %v2645 = vmul.f32 %v2643, 1.442695
        %v2646 = vpow.pop %v2645
        %v2647 = vmul.f32 %v2644, 1.442695
        %v2648 = vpow.pop %v2647
        %v2649 = vsel %vm1607, %v2646, 0.0
        %2650 = vadd.xlane.f32.xlu0 %v2649
        %v2651 = vpop.xlane.xlu0 %2650
        %v2652 = vsel %vm1607, %v2648, 0.0
        %2653 = vadd.xlane.f32.xlu0 %v2652
        %v2654 = vpop.xlane.xlu0 %2653
        %v2655 = vrcp.pop %v2651
        %v2656 = vrcp.pop %v2654
        %v2657 = vmul.f32 %v2646, %v2655
        %v2658 = vmul.f32 %v2648, %v2656
        %v2659 = vpack.c.bf16 %v2658, %v2657
        %2661 = vrot.lane.b32.xlu0 %v2584, 64
        %v2662 = vpop.permute.xlu0 %2661
        %v2665 = vsel %vm1607, %v2659, 0
        %2667 = vmatprep.subr.bf16.mxu0 0
        %2668 = vmatpush1.bf16.msra.mxu0 %v2662
        %2669 = vmatprep.subr.bf16.mxu0 0
        %2670 = vmatpush1.bf16.msra.mxu0 0
        %2671 = vmatprep.subr.bf16.mxu0 0
        %2672 = vmatpush1.bf16.msra.mxu0 0
        %2673 = vmatprep.subr.bf16.mxu0 0
        %2674 = vmatpush1.bf16.msra.mxu0 0
        %2675 = vmatprep.subr.bf16.mxu0 0
        %2676 = vmatpush1.bf16.msra.mxu0 0
        %2677 = vmatprep.subr.bf16.mxu0 0
        %2678 = vmatpush1.bf16.msra.mxu0 0
        %2679 = vmatprep.subr.bf16.mxu0 0
        %2680 = vmatpush1.bf16.msra.mxu0 0
        %2681 = vmatprep.subr.bf16.mxu0 0
        %2682 = vmatpush1.bf16.msra.mxu0 0
        %2683 = vmatprep.subr.bf16.mxu0 0
        %2684 = vmatpush1.bf16.msra.mxu0 0
        %2685 = vmatprep.subr.bf16.mxu0 0
        %2686 = vmatpush1.bf16.msra.mxu0 0
        %2687 = vmatprep.subr.bf16.mxu0 0
        %2688 = vmatpush1.bf16.msra.mxu0 0
        %2689 = vmatprep.subr.bf16.mxu0 0
        %2690 = vmatpush1.bf16.msra.mxu0 0
        %2691 = vmatprep.subr.bf16.mxu0 0
        %2692 = vmatpush1.bf16.msra.mxu0 0
        %2693 = vmatprep.subr.bf16.mxu0 0
        %2694 = vmatpush1.bf16.msra.mxu0 0
        %2695 = vmatprep.subr.bf16.mxu0 0
        %2696 = vmatpush1.bf16.msra.mxu0 0
        %2697 = vmatprep.subr.bf16.mxu0 0
        %2698 = vmatpush1.bf16.msra.mxu0 0
        %2699 = vmatprep.mubr.bf16.mxu0 0
        %2700 = vmatmul.mubr.bf16.gmra.mrb[0].mxu0 %v2665
        %v2701 = vpop.f32.mrb[0].mxu0
        %v2702 = vadd.f32 0.0, %v2701
        %v2703 = vpop.f32.mrb[0].mxu0
        %v2704 = vpop.f32.mrb[0].mxu0
        %v2705 = vadd.f32 0.0, %v2704
        %v2706 = vpop.f32.mrb[0].mxu0
        %2707 = vdwg.mxu0
        %v2708 = vld [vmem:[#allocation4] sm:$0xff]
        %v2709 = vld [vmem:[#allocation5] sm:$0xff]
        %2710 = vrot.lane.b32.xlu0 %v2336, 32
        %v2711 = vpop.permute.xlu0 %2710
        %2713 = vrot.lane.b32.xlu0 %v2708, 32
        %v2714 = vpop.permute.xlu0 %2713
        %v2716 = vsel %vm1559, %v2711, 0
        %v2719 = vsel %vm1559, %v2714, 0
        %2721 = vmatprep.subr.bf16.mxu0 0
        %2722 = vmatpush1.bf16.xpose.msra.mxu0 %v2719
        %2723 = vmatprep.subr.bf16.mxu0 0
        %2724 = vmatpush1.bf16.xpose.msra.mxu0 0
        %2725 = vmatprep.subr.bf16.mxu0 0
        %2726 = vmatpush1.bf16.xpose.msra.mxu0 0
        %2727 = vmatprep.subr.bf16.mxu0 0
        %2728 = vmatpush1.bf16.xpose.msra.mxu0 0
        %2729 = vmatprep.subr.bf16.mxu0 0
        %2730 = vmatpush1.bf16.xpose.msra.mxu0 0
        %2731 = vmatprep.subr.bf16.mxu0 0
        %2732 = vmatpush1.bf16.xpose.msra.mxu0 0
        %2733 = vmatprep.subr.bf16.mxu0 0
        %2734 = vmatpush1.bf16.xpose.msra.mxu0 0
        %2735 = vmatprep.subr.bf16.mxu0 0
        %2736 = vmatpush1.bf16.xpose.msra.mxu0 0
        %2737 = vmatprep.subr.bf16.mxu0 0
        %2738 = vmatpush1.bf16.xpose.msra.mxu0 0
        %2739 = vmatprep.subr.bf16.mxu0 0
        %2740 = vmatpush1.bf16.xpose.msra.mxu0 0
        %2741 = vmatprep.subr.bf16.mxu0 0
        %2742 = vmatpush1.bf16.xpose.msra.mxu0 0
        %2743 = vmatprep.subr.bf16.mxu0 0
        %2744 = vmatpush1.bf16.xpose.msra.mxu0 0
        %2745 = vmatprep.subr.bf16.mxu0 0
        %2746 = vmatpush1.bf16.xpose.msra.mxu0 0
        %2747 = vmatprep.subr.bf16.mxu0 0
        %2748 = vmatpush1.bf16.xpose.msra.mxu0 0
        %2749 = vmatprep.subr.bf16.mxu0 0
        %2750 = vmatpush1.bf16.xpose.msra.mxu0 0
        %2751 = vmatprep.subr.bf16.mxu0 0
        %2752 = vmatpush1.bf16.xpose.msra.mxu0 0
        %2753 = vmatprep.mubr.bf16.mxu0 0
        %2754 = vmatmul.mubr.bf16.gmra.mrb[0].mxu0 %v2716
        %v2755 = vpop.f32.mrb[0].mxu0
        %v2756 = vadd.f32 %v2342, %v2755
        %v2757 = vpop.f32.mrb[0].mxu0
        %v2758 = vpop.f32.mrb[0].mxu0
        %v2759 = vadd.f32 %v2342, %v2758
        %v2760 = vpop.f32.mrb[0].mxu0
        %2761 = vdwg.mxu0
        %v2762 = vsel %vm1607, %v2756, -inf
        %2763 = vmax.xlane.f32.xlu0 %v2762
        %v2764 = vpop.xlane.xlu0 %2763
        %v2765 = vsel %vm1607, %v2759, -inf
        %2766 = vmax.xlane.f32.xlu0 %v2765
        %v2767 = vpop.xlane.xlu0 %2766
        %v2768 = vsub.f32 %v2756, %v2764
        %v2769 = vsub.f32 %v2759, %v2767
        %v2770 = vmul.f32 %v2768, 1.442695
        %v2771 = vpow.pop %v2770
        %v2772 = vmul.f32 %v2769, 1.442695
        %v2773 = vpow.pop %v2772
        %v2774 = vsel %vm1607, %v2771, 0.0
        %2775 = vadd.xlane.f32.xlu0 %v2774
        %v2776 = vpop.xlane.xlu0 %2775
        %v2777 = vsel %vm1607, %v2773, 0.0
        %2778 = vadd.xlane.f32.xlu0 %v2777
        %v2779 = vpop.xlane.xlu0 %2778
        %v2780 = vrcp.pop %v2776
        %v2781 = vrcp.pop %v2779
        %v2782 = vmul.f32 %v2771, %v2780
        %v2783 = vmul.f32 %v2773, %v2781
        %v2784 = vpack.c.bf16 %v2783, %v2782
        %2786 = vrot.lane.b32.xlu0 %v2709, 32
        %v2787 = vpop.permute.xlu0 %2786
        %v2790 = vsel %vm1607, %v2784, 0
        %2792 = vmatprep.subr.bf16.mxu0 0
        %2793 = vmatpush1.bf16.msra.mxu0 %v2787
        %2794 = vmatprep.subr.bf16.mxu0 0
        %2795 = vmatpush1.bf16.msra.mxu0 0
        %2796 = vmatprep.subr.bf16.mxu0 0
        %2797 = vmatpush1.bf16.msra.mxu0 0
        %2798 = vmatprep.subr.bf16.mxu0 0
        %2799 = vmatpush1.bf16.msra.mxu0 0
        %2800 = vmatprep.subr.bf16.mxu0 0
        %2801 = vmatpush1.bf16.msra.mxu0 0
        %2802 = vmatprep.subr.bf16.mxu0 0
        %2803 = vmatpush1.bf16.msra.mxu0 0
        %2804 = vmatprep.subr.bf16.mxu0 0
        %2805 = vmatpush1.bf16.msra.mxu0 0
        %2806 = vmatprep.subr.bf16.mxu0 0
        %2807 = vmatpush1.bf16.msra.mxu0 0
        %2808 = vmatprep.subr.bf16.mxu0 0
        %2809 = vmatpush1.bf16.msra.mxu0 0
        %2810 = vmatprep.subr.bf16.mxu0 0
        %2811 = vmatpush1.bf16.msra.mxu0 0
        %2812 = vmatprep.subr.bf16.mxu0 0
        %2813 = vmatpush1.bf16.msra.mxu0 0
        %2814 = vmatprep.subr.bf16.mxu0 0
        %2815 = vmatpush1.bf16.msra.mxu0 0
        %2816 = vmatprep.subr.bf16.mxu0 0
        %2817 = vmatpush1.bf16.msra.mxu0 0
        %2818 = vmatprep.subr.bf16.mxu0 0
        %2819 = vmatpush1.bf16.msra.mxu0 0
        %2820 = vmatprep.subr.bf16.mxu0 0
        %2821 = vmatpush1.bf16.msra.mxu0 0
        %2822 = vmatprep.subr.bf16.mxu0 0
        %2823 = vmatpush1.bf16.msra.mxu0 0
        %2824 = vmatprep.mubr.bf16.mxu0 0
        %2825 = vmatmul.mubr.bf16.gmra.mrb[0].mxu0 %v2790
        %v2826 = vpop.f32.mrb[0].mxu0
        %v2827 = vadd.f32 0.0, %v2826
        %v2828 = vpop.f32.mrb[0].mxu0
        %v2829 = vpop.f32.mrb[0].mxu0
        %v2830 = vadd.f32 0.0, %v2829
        %v2831 = vpop.f32.mrb[0].mxu0
        %2832 = vdwg.mxu0
        %2835 = vrot.lane.b32.xlu0 %v2577, 32
        %v2836 = vpop.permute.xlu0 %2835
        %2837 = vrot.lane.b32.xlu0 %v2580, 32
        %v2838 = vpop.permute.xlu0 %2837
        %2843 = vrot.lane.b32.xlu0 %v2702, 64
        %v2844 = vpop.permute.xlu0 %2843
        %2845 = vrot.lane.b32.xlu0 %v2705, 64
        %v2846 = vpop.permute.xlu0 %2845
        %2851 = vrot.lane.b32.xlu0 %v2827, 96
        %v2852 = vpop.permute.xlu0 %2851
        %2853 = vrot.lane.b32.xlu0 %v2830, 96
        %v2854 = vpop.permute.xlu0 %2853
        %v2857 = vsel %vm1559, %v2451, %v2836
        %v2858 = vsel %vm1559, %v2454, %v2838
        %v2859 = vsel %vm2077, %v2857, %v2844
        %v2860 = vsel %vm2077, %v2858, %v2846
        %v2861 = vsel %vm2080, %v2859, %v2852
        %v2862 = vsel %vm2080, %v2860, %v2854
        %v2863 = vpack.c.bf16 %v2862, %v2861
        %v2864 = vld [vmem:[#allocation17] sm:$0xf]
        %v2865 = vld [vmem:[#allocation17 + $0x4] sm:$0xf]
        %v2866 = vld [vmem:[#allocation17 + $0x8] sm:$0xf]
        %v2867 = vld [vmem:[#allocation17 + $0xc] sm:$0xf]
        %v2868 = vld [vmem:[#allocation17 + $0x10] sm:$0xf]
        %v2869 = vld [vmem:[#allocation17 + $0x14] sm:$0xf]
        %v2870 = vld [vmem:[#allocation17 + $0x18] sm:$0xf]
        %v2871 = vld [vmem:[#allocation17 + $0x1c] sm:$0xf]
        %v2872 = vld [vmem:[#allocation17 + $0x20] sm:$0xf]
        %v2873 = vld [vmem:[#allocation17 + $0x24] sm:$0xf]
        %v2874 = vld [vmem:[#allocation17 + $0x28] sm:$0xf]
        %v2875 = vld [vmem:[#allocation17 + $0x2c] sm:$0xf]
        %v2876 = vld [vmem:[#allocation17 + $0x30] sm:$0xf]
        %v2877 = vld [vmem:[#allocation17 + $0x34] sm:$0xf]
        %v2878 = vld [vmem:[#allocation17 + $0x38] sm:$0xf]
        %v2879 = vld [vmem:[#allocation17 + $0x3c] sm:$0xf]
        %v2896 = vunpack.c.l.b16 %v2864
        %v2897 = vunpack.c.l.b16 %v2865
        %v2898 = vunpack.c.l.b16 %v2866
        %v2899 = vunpack.c.l.b16 %v2867
        %v2900 = vunpack.c.l.b16 %v2868
        %v2901 = vunpack.c.l.b16 %v2869
        %v2902 = vunpack.c.l.b16 %v2870
        %v2903 = vunpack.c.l.b16 %v2871
        %v2904 = vunpack.c.l.b16 %v2872
        %v2905 = vunpack.c.l.b16 %v2873
        %v2906 = vunpack.c.l.b16 %v2874
        %v2907 = vunpack.c.l.b16 %v2875
        %v2908 = vunpack.c.l.b16 %v2876
        %v2909 = vunpack.c.l.b16 %v2877
        %v2910 = vunpack.c.l.b16 %v2878
        %v2911 = vunpack.c.l.b16 %v2879
        %v2912 = vpack.c.b16 %v2897, %v2896
        %v2913 = vpack.c.b16 %v2899, %v2898
        %v2914 = vpack.c.b16 %v2901, %v2900
        %v2915 = vpack.c.b16 %v2903, %v2902
        %v2916 = vpack.c.b16 %v2905, %v2904
        %v2917 = vpack.c.b16 %v2907, %v2906
        %v2918 = vpack.c.b16 %v2909, %v2908
        %v2919 = vpack.c.b16 %v2911, %v2910
        %2928 = vmatprep.subr.bf16.mxu0 0
        %2929 = vmatpush1.bf16.msra.mxu0 %v2912
        %2930 = vmatprep.subr.bf16.mxu0 0
        %2931 = vmatpush1.bf16.msra.mxu0 %v2913
        %2932 = vmatprep.subr.bf16.mxu0 0
        %2933 = vmatpush1.bf16.msra.mxu0 %v2914
        %2934 = vmatprep.subr.bf16.mxu0 0
        %2935 = vmatpush1.bf16.msra.mxu0 %v2915
        %2936 = vmatprep.subr.bf16.mxu0 0
        %2937 = vmatpush1.bf16.msra.mxu0 %v2916
        %2938 = vmatprep.subr.bf16.mxu0 0
        %2939 = vmatpush1.bf16.msra.mxu0 %v2917
        %2940 = vmatprep.subr.bf16.mxu0 0
        %2941 = vmatpush1.bf16.msra.mxu0 %v2918
        %2942 = vmatprep.subr.bf16.mxu0 0
        %2943 = vmatpush1.bf16.msra.mxu0 %v2919
        %2944 = vmatprep.subr.bf16.mxu0 0
        %2945 = vmatpush1.bf16.msra.mxu0 0
        %2946 = vmatprep.subr.bf16.mxu0 0
        %2947 = vmatpush1.bf16.msra.mxu0 0
        %2948 = vmatprep.subr.bf16.mxu0 0
        %2949 = vmatpush1.bf16.msra.mxu0 0
        %2950 = vmatprep.subr.bf16.mxu0 0
        %2951 = vmatpush1.bf16.msra.mxu0 0
        %2952 = vmatprep.subr.bf16.mxu0 0
        %2953 = vmatpush1.bf16.msra.mxu0 0
        %2954 = vmatprep.subr.bf16.mxu0 0
        %2955 = vmatpush1.bf16.msra.mxu0 0
        %2956 = vmatprep.subr.bf16.mxu0 0
        %2957 = vmatpush1.bf16.msra.mxu0 0
        %2958 = vmatprep.subr.bf16.mxu0 0
        %2959 = vmatpush1.bf16.msra.mxu0 0
        %2960 = vmatprep.mubr.bf16.mxu0 0
        %2961 = vmatmul.mubr.bf16.gmra.mrb[0].mxu0 %v2863
        %v2962 = vpop.f32.mrb[0].mxu0
        %v2963 = vadd.f32 %v2228, %v2962
        %v2964 = vpop.f32.mrb[0].mxu0
        %v2965 = vpop.f32.mrb[0].mxu0
        %v2966 = vadd.f32 %v2229, %v2965
        %v2967 = vpop.f32.mrb[0].mxu0
        %2968 = vdwg.mxu0
        %v2969 = vld [vmem:[#allocation19] sm:$0x1]
        %v2970 = vld [vmem:[#allocation20] sm:$0x1]
        %2971 = vadd.xlane.f32.xlu0 %v2963
        %v2972 = vpop.xlane.xlu0 %2971
        %2973 = vadd.xlane.f32.xlu0 %v2966
        %v2974 = vpop.xlane.xlu0 %2973
        %v2975 = vmul.f32 %v2972, %v2195
        %v2976 = vmul.f32 %v2974, %v2195
        %v2977 = vsub.f32 %v2963, %v2975
        %v2978 = vsub.f32 %v2966, %v2976
        %v2979 = vmul.f32 %v2977, %v2977
        %v2980 = vmul.f32 %v2978, %v2978
        %2981 = vadd.xlane.f32.xlu0 %v2979
        %v2982 = vpop.xlane.xlu0 %2981
        %2983 = vadd.xlane.f32.xlu0 %v2980
        %v2984 = vpop.xlane.xlu0 %2983
        %v2985 = vmul.f32 %v2982, %v2195
        %v2986 = vmul.f32 %v2984, %v2195
        %v2987 = vadd.f32 %v2985, 1e-06
        %v2988 = vadd.f32 %v2986, 1e-06
        %v2989 = vrsqrt.pop %v2987
        %v2990 = vrsqrt.pop %v2988
        %v2991 = vmul.f32 %v2977, %v2989
        %v2992 = vmul.f32 %v2978, %v2990
        %v2994 = vlaneseq
        %v2995 = vshrl.u32 %v2994, 7
        %v2996 = vsub.s32 0, %v2995
        %v2997 = vrot.slane %v2969, %v2996
        %v2999 = vmul.f32 %v2991, %v2997
        %v3000 = vmul.f32 %v2992, %v2997
        %v3002 = vlaneseq
        %v3003 = vshrl.u32 %v3002, 7
        %v3004 = vsub.s32 0, %v3003
        %v3005 = vrot.slane %v2970, %v3004
        %v3007 = vadd.f32 %v2999, %v3005
        %v3008 = vadd.f32 %v3000, %v3005
        %v3009 = vpack.c.bf16 %v3008, %v3007
        %v3010 = vld [vmem:[%s16] sm:$0xff]
        %v3011 = vld [vmem:[%s16 + $0x8] sm:$0xff]
        %v3012 = vld [vmem:[%s16 + $0x10] sm:$0xff]
        %v3013 = vld [vmem:[%s16 + $0x18] sm:$0xff]
        %v3014 = vld [vmem:[%s16 + $0x20] sm:$0xff]
        %v3015 = vld [vmem:[%s16 + $0x28] sm:$0xff]
        %v3016 = vld [vmem:[%s16 + $0x30] sm:$0xff]
        %v3017 = vld [vmem:[%s16 + $0x38] sm:$0xff]
        %v3018 = vld [vmem:[%s16 + $0x40] sm:$0xff]
        %v3019 = vld [vmem:[%s16 + $0x48] sm:$0xff]
        %v3020 = vld [vmem:[%s16 + $0x50] sm:$0xff]
        %v3021 = vld [vmem:[%s16 + $0x58] sm:$0xff]
        %v3022 = vld [vmem:[%s16 + $0x60] sm:$0xff]
        %v3023 = vld [vmem:[%s16 + $0x68] sm:$0xff]
        %v3024 = vld [vmem:[%s16 + $0x70] sm:$0xff]
        %v3025 = vld [vmem:[%s16 + $0x78] sm:$0xff]
        %v3026 = vld [vmem:[#allocation22] sm:$0x3]
        %v3028 = vlaneseq
        %v3029 = vshrl.u32 %v3028, 7
        %v3030 = vsub.s32 0, %v3029
        %v3031 = vrot.slane %v3026, %v3030
        %v3032 = vlaneseq
        %v3033 = vshrl.u32 %v3032, 7
        %v3034 = vsub.s32 1, %v3033
        %v3035 = vrot.slane %v3026, %v3034
        %v3054 = vunpack.c.l.b16 %v3010
        %v3055 = vunpack.c.h.b16 %v3010
        %v3056 = vunpack.c.l.b16 %v3011
        %v3057 = vunpack.c.h.b16 %v3011
        %v3058 = vunpack.c.l.b16 %v3012
        %v3059 = vunpack.c.h.b16 %v3012
        %v3060 = vunpack.c.l.b16 %v3013
        %v3061 = vunpack.c.h.b16 %v3013
        %v3062 = vunpack.c.l.b16 %v3014
        %v3063 = vunpack.c.h.b16 %v3014
        %v3064 = vunpack.c.l.b16 %v3015
        %v3065 = vunpack.c.h.b16 %v3015
        %v3066 = vunpack.c.l.b16 %v3016
        %v3067 = vunpack.c.h.b16 %v3016
        %v3068 = vunpack.c.l.b16 %v3017
        %v3069 = vunpack.c.h.b16 %v3017
        %v3070 = vunpack.c.l.b16 %v3018
        %v3071 = vunpack.c.h.b16 %v3018
        %v3072 = vunpack.c.l.b16 %v3019
        %v3073 = vunpack.c.h.b16 %v3019
        %v3074 = vunpack.c.l.b16 %v3020
        %v3075 = vunpack.c.h.b16 %v3020
        %v3076 = vunpack.c.l.b16 %v3021
        %v3077 = vunpack.c.h.b16 %v3021
        %v3078 = vunpack.c.l.b16 %v3022
        %v3079 = vunpack.c.h.b16 %v3022
        %v3080 = vunpack.c.l.b16 %v3023
        %v3081 = vunpack.c.h.b16 %v3023
        %v3082 = vunpack.c.l.b16 %v3024
        %v3083 = vunpack.c.h.b16 %v3024
        %v3084 = vunpack.c.l.b16 %v3025
        %v3085 = vunpack.c.h.b16 %v3025
        %v3086 = vpack.c.b16 %v3056, %v3054
        %v3087 = vpack.c.b16 %v3057, %v3055
        %v3088 = vpack.c.b16 %v3060, %v3058
        %v3089 = vpack.c.b16 %v3061, %v3059
        %v3090 = vpack.c.b16 %v3064, %v3062
        %v3091 = vpack.c.b16 %v3065, %v3063
        %v3092 = vpack.c.b16 %v3068, %v3066
        %v3093 = vpack.c.b16 %v3069, %v3067
        %v3094 = vpack.c.b16 %v3072, %v3070
        %v3095 = vpack.c.b16 %v3073, %v3071
        %v3096 = vpack.c.b16 %v3076, %v3074
        %v3097 = vpack.c.b16 %v3077, %v3075
        %v3098 = vpack.c.b16 %v3080, %v3078
        %v3099 = vpack.c.b16 %v3081, %v3079
        %v3100 = vpack.c.b16 %v3084, %v3082
        %v3101 = vpack.c.b16 %v3085, %v3083
        %3118 = vmatprep.subr.bf16.mxu0 %v3087
        %3119 = vmatpush1.bf16.msra.mxu0 %v3086
        %3120 = vmatprep.subr.bf16.mxu0 %v3089
        %3121 = vmatpush1.bf16.msra.mxu0 %v3088
        %3122 = vmatprep.subr.bf16.mxu0 %v3091
        %3123 = vmatpush1.bf16.msra.mxu0 %v3090
        %3124 = vmatprep.subr.bf16.mxu0 %v3093
        %3125 = vmatpush1.bf16.msra.mxu0 %v3092
        %3126 = vmatprep.subr.bf16.mxu0 %v3095
        %3127 = vmatpush1.bf16.msra.mxu0 %v3094
        %3128 = vmatprep.subr.bf16.mxu0 %v3097
        %3129 = vmatpush1.bf16.msra.mxu0 %v3096
        %3130 = vmatprep.subr.bf16.mxu0 %v3099
        %3131 = vmatpush1.bf16.msra.mxu0 %v3098
        %3132 = vmatprep.subr.bf16.mxu0 %v3101
        %3133 = vmatpush1.bf16.msra.mxu0 %v3100
        %3134 = vmatprep.subr.bf16.mxu0 0
        %3135 = vmatpush1.bf16.msra.mxu0 0
        %3136 = vmatprep.subr.bf16.mxu0 0
        %3137 = vmatpush1.bf16.msra.mxu0 0
        %3138 = vmatprep.subr.bf16.mxu0 0
        %3139 = vmatpush1.bf16.msra.mxu0 0
        %3140 = vmatprep.subr.bf16.mxu0 0
        %3141 = vmatpush1.bf16.msra.mxu0 0
        %3142 = vmatprep.subr.bf16.mxu0 0
        %3143 = vmatpush1.bf16.msra.mxu0 0
        %3144 = vmatprep.subr.bf16.mxu0 0
        %3145 = vmatpush1.bf16.msra.mxu0 0
        %3146 = vmatprep.subr.bf16.mxu0 0
        %3147 = vmatpush1.bf16.msra.mxu0 0
        %3148 = vmatprep.subr.bf16.mxu0 0
        %3149 = vmatpush1.bf16.msra.mxu0 0
        %3150 = vmatprep.mubr.bf16.mxu0 0
        %3151 = vmatmul.mubr.bf16.gmra.mrb[0].mxu0 %v3009
        %v3152 = vpop.f32.mrb[0].mxu0
        %v3153 = vadd.f32 %v3031, %v3152
        %v3154 = vpop.f32.mrb[0].mxu0
        %v3155 = vadd.f32 %v3035, %v3154
        %v3156 = vpop.f32.mrb[0].mxu0
        %v3157 = vadd.f32 %v3031, %v3156
        %v3158 = vpop.f32.mrb[0].mxu0
        %v3159 = vadd.f32 %v3035, %v3158
        %3160 = vdwg.mxu0
        %v3161 = vmax.f32 %v3153, 0.0
        %v3162 = vmax.f32 %v3155, 0.0
        %v3163 = vmax.f32 %v3157, 0.0
        %v3164 = vmax.f32 %v3159, 0.0
        %v3165 = vpack.c.bf16 %v3163, %v3161
        %v3166 = vpack.c.bf16 %v3164, %v3162
        %v3167 = vld [vmem:[#allocation23] sm:$0xf]
        %v3168 = vld [vmem:[#allocation23 + $0x4] sm:$0xf]
        %v3169 = vld [vmem:[#allocation23 + $0x8] sm:$0xf]
        %v3170 = vld [vmem:[#allocation23 + $0xc] sm:$0xf]
        %v3171 = vld [vmem:[#allocation23 + $0x10] sm:$0xf]
        %v3172 = vld [vmem:[#allocation23 + $0x14] sm:$0xf]
        %v3173 = vld [vmem:[#allocation23 + $0x18] sm:$0xf]
        %v3174 = vld [vmem:[#allocation23 + $0x1c] sm:$0xf]
        %v3175 = vld [vmem:[#allocation23 + $0x20] sm:$0xf]
        %v3176 = vld [vmem:[#allocation23 + $0x24] sm:$0xf]
        %v3177 = vld [vmem:[#allocation23 + $0x28] sm:$0xf]
        %v3178 = vld [vmem:[#allocation23 + $0x2c] sm:$0xf]
        %v3179 = vld [vmem:[#allocation23 + $0x30] sm:$0xf]
        %v3180 = vld [vmem:[#allocation23 + $0x34] sm:$0xf]
        %v3181 = vld [vmem:[#allocation23 + $0x38] sm:$0xf]
        %v3182 = vld [vmem:[#allocation23 + $0x3c] sm:$0xf]
        %v3183 = vld [vmem:[#allocation23 + $0x40] sm:$0xf]
        %v3184 = vld [vmem:[#allocation23 + $0x44] sm:$0xf]
        %v3185 = vld [vmem:[#allocation23 + $0x48] sm:$0xf]
        %v3186 = vld [vmem:[#allocation23 + $0x4c] sm:$0xf]
        %v3187 = vld [vmem:[#allocation23 + $0x50] sm:$0xf]
        %v3188 = vld [vmem:[#allocation23 + $0x54] sm:$0xf]
        %v3189 = vld [vmem:[#allocation23 + $0x58] sm:$0xf]
        %v3190 = vld [vmem:[#allocation23 + $0x5c] sm:$0xf]
        %v3191 = vld [vmem:[#allocation23 + $0x60] sm:$0xf]
        %v3192 = vld [vmem:[#allocation23 + $0x64] sm:$0xf]
        %v3193 = vld [vmem:[#allocation23 + $0x68] sm:$0xf]
        %v3194 = vld [vmem:[#allocation23 + $0x6c] sm:$0xf]
        %v3195 = vld [vmem:[#allocation23 + $0x70] sm:$0xf]
        %v3196 = vld [vmem:[#allocation23 + $0x74] sm:$0xf]
        %v3197 = vld [vmem:[#allocation23 + $0x78] sm:$0xf]
        %v3198 = vld [vmem:[#allocation23 + $0x7c] sm:$0xf]
        %v3199 = vld [vmem:[#allocation25] sm:$0x1]
        %v3201 = vlaneseq
        %v3202 = vshrl.u32 %v3201, 7
        %v3203 = vsub.s32 0, %v3202
        %v3204 = vrot.slane %v3199, %v3203
        %v3238 = vunpack.c.l.b16 %v3167
        %v3239 = vunpack.c.l.b16 %v3168
        %v3240 = vunpack.c.l.b16 %v3169
        %v3241 = vunpack.c.l.b16 %v3170
        %v3242 = vunpack.c.l.b16 %v3171
        %v3243 = vunpack.c.l.b16 %v3172
        %v3244 = vunpack.c.l.b16 %v3173
        %v3245 = vunpack.c.l.b16 %v3174
        %v3246 = vunpack.c.l.b16 %v3175
        %v3247 = vunpack.c.l.b16 %v3176
        %v3248 = vunpack.c.l.b16 %v3177
        %v3249 = vunpack.c.l.b16 %v3178
        %v3250 = vunpack.c.l.b16 %v3179
        %v3251 = vunpack.c.l.b16 %v3180
        %v3252 = vunpack.c.l.b16 %v3181
        %v3253 = vunpack.c.l.b16 %v3182
        %v3254 = vunpack.c.l.b16 %v3183
        %v3255 = vunpack.c.l.b16 %v3184
        %v3256 = vunpack.c.l.b16 %v3185
        %v3257 = vunpack.c.l.b16 %v3186
        %v3258 = vunpack.c.l.b16 %v3187
        %v3259 = vunpack.c.l.b16 %v3188
        %v3260 = vunpack.c.l.b16 %v3189
        %v3261 = vunpack.c.l.b16 %v3190
        %v3262 = vunpack.c.l.b16 %v3191
        %v3263 = vunpack.c.l.b16 %v3192
        %v3264 = vunpack.c.l.b16 %v3193
        %v3265 = vunpack.c.l.b16 %v3194
        %v3266 = vunpack.c.l.b16 %v3195
        %v3267 = vunpack.c.l.b16 %v3196
        %v3268 = vunpack.c.l.b16 %v3197
        %v3269 = vunpack.c.l.b16 %v3198
        %v3270 = vpack.c.b16 %v3239, %v3238
        %v3271 = vpack.c.b16 %v3241, %v3240
        %v3272 = vpack.c.b16 %v3243, %v3242
        %v3273 = vpack.c.b16 %v3245, %v3244
        %v3274 = vpack.c.b16 %v3247, %v3246
        %v3275 = vpack.c.b16 %v3249, %v3248
        %v3276 = vpack.c.b16 %v3251, %v3250
        %v3277 = vpack.c.b16 %v3253, %v3252
        %v3278 = vpack.c.b16 %v3255, %v3254
        %v3279 = vpack.c.b16 %v3257, %v3256
        %v3280 = vpack.c.b16 %v3259, %v3258
        %v3281 = vpack.c.b16 %v3261, %v3260
        %v3282 = vpack.c.b16 %v3263, %v3262
        %v3283 = vpack.c.b16 %v3265, %v3264
        %v3284 = vpack.c.b16 %v3267, %v3266
        %v3285 = vpack.c.b16 %v3269, %v3268
        %3302 = vmatprep.subr.bf16.mxu0 0
        %3303 = vmatpush1.bf16.msra.mxu0 %v3270
        %3304 = vmatprep.subr.bf16.mxu0 0
        %3305 = vmatpush1.bf16.msra.mxu0 %v3271
        %3306 = vmatprep.subr.bf16.mxu0 0
        %3307 = vmatpush1.bf16.msra.mxu0 %v3272
        %3308 = vmatprep.subr.bf16.mxu0 0
        %3309 = vmatpush1.bf16.msra.mxu0 %v3273
        %3310 = vmatprep.subr.bf16.mxu0 0
        %3311 = vmatpush1.bf16.msra.mxu0 %v3274
        %3312 = vmatprep.subr.bf16.mxu0 0
        %3313 = vmatpush1.bf16.msra.mxu0 %v3275
        %3314 = vmatprep.subr.bf16.mxu0 0
        %3315 = vmatpush1.bf16.msra.mxu0 %v3276
        %3316 = vmatprep.subr.bf16.mxu0 0
        %3317 = vmatpush1.bf16.msra.mxu0 %v3277
        %3318 = vmatprep.subr.bf16.mxu0 0
        %3319 = vmatpush1.bf16.msra.mxu0 %v3278
        %3320 = vmatprep.subr.bf16.mxu0 0
        %3321 = vmatpush1.bf16.msra.mxu0 %v3279
        %3322 = vmatprep.subr.bf16.mxu0 0
        %3323 = vmatpush1.bf16.msra.mxu0 %v3280
        %3324 = vmatprep.subr.bf16.mxu0 0
        %3325 = vmatpush1.bf16.msra.mxu0 %v3281
        %3326 = vmatprep.subr.bf16.mxu0 0
        %3327 = vmatpush1.bf16.msra.mxu0 %v3282
        %3328 = vmatprep.subr.bf16.mxu0 0
        %3329 = vmatpush1.bf16.msra.mxu0 %v3283
        %3330 = vmatprep.subr.bf16.mxu0 0
        %3331 = vmatpush1.bf16.msra.mxu0 %v3284
        %3332 = vmatprep.subr.bf16.mxu0 0
        %3333 = vmatpush1.bf16.msra.mxu0 %v3285
        %3334 = vmatprep.mubr.bf16.mxu0 %v3166
        %3335 = vmatmul.mubr.bf16.gmra.mrb[0].mxu0 %v3165
        %v3336 = vpop.f32.mrb[0].mxu0
        %v3337 = vadd.f32 %v3204, %v3336
        %v3338 = vpop.f32.mrb[0].mxu0
        %v3339 = vpop.f32.mrb[0].mxu0
        %v3340 = vadd.f32 %v3204, %v3339
        %v3341 = vpop.f32.mrb[0].mxu0
        %3342 = vdwg.mxu0
        %v3343 = vadd.f32 %v3337, %v3007
        %v3344 = vadd.f32 %v3340, %v3008
        %v3345 = vld [vmem:[#allocation26] sm:$0x1]
        %v3346 = vld [vmem:[#allocation28] sm:$0x1]
        %3347 = vadd.xlane.f32.xlu0 %v3343
        %v3348 = vpop.xlane.xlu0 %3347
        %3349 = vadd.xlane.f32.xlu0 %v3344
        %v3350 = vpop.xlane.xlu0 %3349
        %v3351 = vmul.f32 %v3348, %v2195
        %v3352 = vmul.f32 %v3350, %v2195
        %v3353 = vsub.f32 %v3343, %v3351
        %v3354 = vsub.f32 %v3344, %v3352
        %v3355 = vmul.f32 %v3353, %v3353
        %v3356 = vmul.f32 %v3354, %v3354
        %3357 = vadd.xlane.f32.xlu0 %v3355
        %v3358 = vpop.xlane.xlu0 %3357
        %3359 = vadd.xlane.f32.xlu0 %v3356
        %v3360 = vpop.xlane.xlu0 %3359
        %v3361 = vmul.f32 %v3358, %v2195
        %v3362 = vmul.f32 %v3360, %v2195
        %v3363 = vadd.f32 %v3361, 1e-06
        %v3364 = vadd.f32 %v3362, 1e-06
        %v3365 = vrsqrt.pop %v3363
        %v3366 = vrsqrt.pop %v3364
        %v3367 = vmul.f32 %v3353, %v3365
        %v3368 = vmul.f32 %v3354, %v3366
        %v3370 = vlaneseq
        %v3371 = vshrl.u32 %v3370, 7
        %v3372 = vsub.s32 0, %v3371
        %v3373 = vrot.slane %v3345, %v3372
        %v3375 = vmul.f32 %v3367, %v3373
        %v3376 = vmul.f32 %v3368, %v3373
        %v3378 = vlaneseq
        %v3379 = vshrl.u32 %v3378, 7
        %v3380 = vsub.s32 0, %v3379
        %v3381 = vrot.slane %v3346, %v3380
        %v3383 = vadd.f32 %v3375, %v3381
        %v3384 = vadd.f32 %v3376, %v3381
        %v3385 = vpack.c.bf16 %v3384, %v3383
        %v3387 = vunpack.c.l.b16 %v3385
        %v3388 = vunpack.c.h.b16 %v3385
        %v3389 = vpack.c.b16 %v3387, %v3387
        %v3390 = vpack.c.b16 %v3388, %v3388
        %3393 = vst [vmem:[%s979] sm:$0xf] %v3389
        %3394 = vst [vmem:[%s979 + $0x4] sm:$0xf] %v3390
        %s3395 = smul.u32 2, %s46
        %p3396 = scmp.lt.s32.totalorder %s45, 1
        %s3397 = scalar_select %p3396, %s45, 1
        %p3398 = scmp.lt.s32.totalorder %s3395, 1
        %s3399 = scalar_select %p3398, %s3395, 1
        %s3400 = smul.addr %s3397, 2
        %s3401 = sadd.s32 %s3399, %s3400
        %s3402 = smul.addr %s3401, 4
        %s3403 = scalar_lea.vmem %s22, %s3402
        // Predicated region
        $region173: #{decoder_forward.2} parent=107 // pred_check
          %p3404 = pneg %p557
        $region174: #{decoder_forward.2} parent=107 // pred_check_branch
          %3406 = sbr.rel (%p3404) target = $region176
        $region175: #{decoder_forward.2} parent=107 // pred_region
          %s3407 = smul.u32 2, %s46
        $region176: #{decoder_forward.2} parent=107 // pred_fallthru
          _
      $region108: #{decoder_forward.2} parent=5 // pred_fallthru
        _
      %p3408 = scmp.le.s32.totalorder 2, %s36
      // Predicated region
      $region177: #{decoder_forward.2} parent=5 // pred_check
        %p3409 = pneg %p3408
      $region178: #{decoder_forward.2} parent=5 // pred_check_branch
        %3411 = sbr.rel (%p3409) target = $region180
      $region179: #{decoder_forward.2} parent=5 // pred_region
        %s3412 = ssub.s32 %s36, 2
        // Predicated region
        $region181: #{decoder_forward.2} parent=179 // pred_check
          %p3413 = pneg %p563
        $region182: #{decoder_forward.2} parent=179 // pred_check_branch
          %3415 = sbr.rel (%p3413) target = $region184
        $region183: #{decoder_forward.2} parent=179 // pred_region
          %s3416 = smul.u32 2, %s48
          %p3417 = scmp.lt.s32.totalorder %s47, 1
          %s3418 = scalar_select %p3417, %s47, 1
          %p3419 = scmp.lt.s32.totalorder %s3416, 1
          %s3420 = scalar_select %p3419, %s3416, 1
          %s3421 = smul.addr %s3418, 2
          %s3422 = sadd.s32 %s3420, %s3421
          %s3423 = smul.addr %s3422, 4
          %s3424 = scalar_lea.vmem %s22, %s3423
        $region184: #{decoder_forward.2} parent=179 // pred_fallthru
          _
      $region180: #{decoder_forward.2} parent=5 // pred_fallthru
        _
    $region6: #{decoder_forward.2} parent=1 // loop_footer
      %s40 = sadd.s32 1, %s36
    $region7: #{decoder_forward.2} parent=1 // loop_footer_branch
      %35 = sbr.rel target = $region3
    $region8: #{decoder_forward.2} parent=1 // loop_exit
      _
    %3425 = vsyncpa [#allocation7], 1
    %s3426 = scalar_lea.sflag [#allocation7], 1
    %3427 = vsyncpa %s3426, 1
    %3428 = vsyncpa [#allocation9], 1
    %3429 = vsyncpa [#allocation12], 1
    %3430 = vsyncpa [#allocation15], 1
    %3431 = vsyncpa [#allocation18], 1
    %3432 = vsyncpa [#allocation21], 1
    %3433 = vsyncpa [#allocation24], 1
    %3434 = vsyncpa [#allocation27], 1

// kernel: decoder_forward.3
$region0: #{decoder_forward.3}
  #allocation0 [shape = 'u32[]', space=smem, size = 0x4, offset = 0x4, fixed_abs, tag = 'smem constant byte address 0x4 - core index']
  #allocation1 [shape = 'u32[144,128]{1,0:T(1,128)}', space=vmem, size = 0x12000, scoped, tag = 'internal scratch']
  #allocation2 [shape = 'bf16[16,128]{1,0:T(16,128)(2,1)}', space=vmem, size = 0x1000, scoped, tag = 'scratch operand']
  #allocation3 [shape = 'bf16[16,128]{1,0:T(16,128)(2,1)}', space=vmem, size = 0x1000, scoped, tag = 'scratch operand']
  #allocation4 [shape = 'bf16[16,128]{1,0:T(16,128)(2,1)}', space=vmem, size = 0x1000, scoped, tag = 'scratch operand']
  #allocation5 [shape = 'bf16[16,128]{1,0:T(16,128)(2,1)}', space=vmem, size = 0x1000, scoped, tag = 'scratch operand']
  %s0 = inlined_call_operand.vmem [shape: bf16[2,16,128], index: 0, kind: input, shape index: {}]
  %s1 = inlined_call_operand.vmem [shape: bf16[2,16,128], index: 1, kind: input, shape index: {}]
  %s2 = inlined_call_operand.vmem [shape: bf16[2,16,16], index: 2, kind: input, shape index: {}]
  %s3 = inlined_call_operand.vmem [shape: bf16[2,1,16], index: 3, kind: input, shape index: {}]
  %s4 = inlined_call_operand.vmem [shape: bf16[128,128], index: 4, kind: input, shape index: {}]
  %s5 = inlined_call_operand.vmem [shape: bf16[128,128], index: 5, kind: input, shape index: {}]
  %s6 = inlined_call_operand.vmem [shape: bf16[128,128], index: 6, kind: input, shape index: {}]
  %s7 = inlined_call_operand.vmem [shape: bf16[128,128], index: 7, kind: input, shape index: {}]
  %s8 = inlined_call_operand.vmem [shape: f32[1,128], index: 8, kind: input, shape index: {}]
  %s9 = inlined_call_operand.vmem [shape: f32[1,128], index: 9, kind: input, shape index: {}]
  %s10 = inlined_call_operand.vmem [shape: bf16[128,128], index: 10, kind: input, shape index: {}]
  %s11 = inlined_call_operand.vmem [shape: bf16[128,128], index: 11, kind: input, shape index: {}]
  %s12 = inlined_call_operand.vmem [shape: bf16[128,128], index: 12, kind: input, shape index: {}]
  %s13 = inlined_call_operand.vmem [shape: bf16[128,128], index: 13, kind: input, shape index: {}]
  %s14 = inlined_call_operand.vmem [shape: f32[1,128], index: 14, kind: input, shape index: {}]
  %s15 = inlined_call_operand.vmem [shape: f32[1,128], index: 15, kind: input, shape index: {}]
  %s16 = inlined_call_operand.vmem [shape: bf16[128,256], index: 16, kind: input, shape index: {}]
  %s17 = inlined_call_operand.vmem [shape: f32[1,256], index: 17, kind: input, shape index: {}]
  %s18 = inlined_call_operand.vmem [shape: bf16[256,128], index: 18, kind: input, shape index: {}]
  %s19 = inlined_call_operand.vmem [shape: f32[1,128], index: 19, kind: input, shape index: {}]
  %s20 = inlined_call_operand.vmem [shape: f32[1,128], index: 20, kind: input, shape index: {}]
  %s21 = inlined_call_operand.vmem [shape: f32[1,128], index: 21, kind: input, shape index: {}]
  %s22 = inlined_call_operand.vmem [shape: bf16[2,16,128], index: 22, kind: output, shape index: {}]
  %s23 = sld [smem:[#allocation0]]
  $region125: #{decoder_forward.3} parent=0
    _
  %s25 = ssub.s32 1, %s23
  %s26 = scalar_select 0, %s25, %s23
  loop: start=0, step=1, limit=4
  $region2: #{decoder_forward.3} parent=0 // loop_pre_header
    _
  $region3: #{decoder_forward.3} parent=0 // loop_header
    %s28 = sphi 0, %s32
    %p29 = scmp.ge.s32.totalorder %s28, 4
    %s35 = sphi 0, %s47
    %s36 = sphi 0, %s43
    %s37 = sphi 0, %s35
    %s38 = sphi 0, %s36
    %s39 = sphi 0, %s37
    %s40 = sphi 0, %s38
    %s50 = sphi 0, %s52
    %s53 = sphi 0, %s50
    %s54 = sphi 0, %s53
    %s70 = sphi 0, %s54
    %s76 = sphi 0, %s78
    %s79 = sphi 0, %s76
    %s80 = sphi 0, %s79
    %s96 = sphi 0, %s80
    %s104 = sphi 0, %s106
    %s107 = sphi 0, %s104
    %s108 = sphi 0, %s107
    %s124 = sphi 0, %s108
    %s130 = sphi 0, %s132
    %s133 = sphi 0, %s130
    %s134 = sphi 0, %s133
    %s150 = sphi 0, %s134
    %s154 = sphi 0, %s154
    %s156 = sphi 0, %s154
    %s157 = sphi 0, %s156
    %s171 = sphi 0, %s157
    %s175 = sphi 0, %s175
    %s177 = sphi 0, %s175
    %s178 = sphi 0, %s177
    %s192 = sphi 0, %s178
    %s196 = sphi 0, %s196
    %s198 = sphi 0, %s196
    %s199 = sphi 0, %s198
    %s213 = sphi 0, %s199
    %s217 = sphi 0, %s217
    %s219 = sphi 0, %s217
    %s220 = sphi 0, %s219
    %s234 = sphi 0, %s220
    %s238 = sphi 0, %s238
    %s240 = sphi 0, %s238
    %s241 = sphi 0, %s240
    %s255 = sphi 0, %s241
    %s259 = sphi 0, %s259
    %s261 = sphi 0, %s259
    %s262 = sphi 0, %s261
    %s276 = sphi 0, %s262
    %s280 = sphi 0, %s280
    %s282 = sphi 0, %s280
    %s283 = sphi 0, %s282
    %s297 = sphi 0, %s283
    %s301 = sphi 0, %s301
    %s303 = sphi 0, %s301
    %s304 = sphi 0, %s303
    %s318 = sphi 0, %s304
    %s322 = sphi 0, %s322
    %s324 = sphi 0, %s322
    %s325 = sphi 0, %s324
    %s339 = sphi 0, %s325
    %s343 = sphi 0, %s343
    %s345 = sphi 0, %s343
    %s346 = sphi 0, %s345
    %s360 = sphi 0, %s346
    %s364 = sphi 0, %s364
    %s366 = sphi 0, %s364
    %s367 = sphi 0, %s366
    %s381 = sphi 0, %s367
    %s385 = sphi 0, %s385
    %s387 = sphi 0, %s385
    %s388 = sphi 0, %s387
    %s402 = sphi 0, %s388
    %s406 = sphi 0, %s406
    %s408 = sphi 0, %s406
    %s409 = sphi 0, %s408
    %s423 = sphi 0, %s409
    %s427 = sphi 0, %s427
    %s429 = sphi 0, %s427
    %s430 = sphi 0, %s429
    %s444 = sphi 0, %s430
    %s448 = sphi 0, %s448
    %s450 = sphi 0, %s448
    %s451 = sphi 0, %s450
    %s465 = sphi 0, %s451
    %s469 = sphi 0, %s469
    %s471 = sphi 0, %s469
    %s472 = sphi 0, %s471
    %s486 = sphi 0, %s472
    %s490 = sphi 0, %s490
    %s492 = sphi 0, %s490
    %s493 = sphi 0, %s492
    %s507 = sphi 0, %s493
    %s511 = sphi 0, %s511
    %s513 = sphi 0, %s511
    %s514 = sphi 0, %s513
    %s528 = sphi 0, %s514
    %s536 = sphi 0, %s538
    %s539 = sphi 0, %s536
    %s540 = sphi 0, %s539
    %s556 = sphi 0, %s540
  $region4: #{decoder_forward.3} parent=0 // loop_header_branch
    %31 = sbr.rel (%p29) target = $region8
  $region5: #{decoder_forward.3} parent=0 // loop_body
    %s33 = ssub.s32 %s28, 1
    %s34 = ssub.s32 %s28, 2
    %s41 = sadd.s32 1, %s36
    %p42 = scmp.ge.s32.totalorder %s41, 1
    %s43 = scalar_select %p42, 0, %s41
    %s44 = sadd.s32 1, %s35
    %s45 = scalar_select %p42, %s44, %s35
    %p46 = scmp.ge.s32.totalorder %s45, 2
    %s47 = scalar_select %p46, 0, %s45
    %s48 = ssub.s32 %s35, %s47
    %p49 = scmp.eq.s32.totalorder %s48, 0
    %s51 = sadd.s32 %s50, 1
    %s52 = scalar_select %p49, %s50, %s51
    %p55 = pneg %p49
    %p56 = scmp.eq.s32.totalorder %s28, 1
    %p57 = por %p55, %p56
    %p58 = scmp.ne.s32.totalorder %s50, %s53
    %p59 = scmp.eq.s32.totalorder %s28, 0
    %p60 = por %p58, %p59
    %p61 = scmp.ne.s32.totalorder %s50, %s53
    %p62 = scmp.eq.s32.totalorder %s33, 1
    %p63 = por %p61, %p62
    %p64 = scmp.ne.s32.totalorder %s53, %s54
    %p65 = scmp.eq.s32.totalorder %s33, 0
    %p66 = por %p64, %p65
    %p67 = scmp.ne.s32.totalorder %s53, %s54
    %p68 = scmp.eq.s32.totalorder %s34, 1
    %p69 = por %p67, %p68
    %p71 = scmp.ne.s32.totalorder %s54, %s70
    %p72 = scmp.eq.s32.totalorder %s34, 0
    %p73 = por %p71, %p72
    %s74 = ssub.s32 %s35, %s47
    %p75 = scmp.eq.s32.totalorder %s74, 0
    %s77 = sadd.s32 %s76, 1
    %s78 = scalar_select %p75, %s76, %s77
    %p81 = pneg %p75
    %p82 = scmp.eq.s32.totalorder %s28, 1
    %p83 = por %p81, %p82
    %p84 = scmp.ne.s32.totalorder %s76, %s79
    %p85 = scmp.eq.s32.totalorder %s28, 0
    %p86 = por %p84, %p85
    %p87 = scmp.ne.s32.totalorder %s76, %s79
    %p88 = scmp.eq.s32.totalorder %s33, 1
    %p89 = por %p87, %p88
    %p90 = scmp.ne.s32.totalorder %s79, %s80
    %p91 = scmp.eq.s32.totalorder %s33, 0
    %p92 = por %p90, %p91
    %p93 = scmp.ne.s32.totalorder %s79, %s80
    %p94 = scmp.eq.s32.totalorder %s34, 1
    %p95 = por %p93, %p94
    %p97 = scmp.ne.s32.totalorder %s80, %s96
    %p98 = scmp.eq.s32.totalorder %s34, 0
    %p99 = por %p97, %p98
    %s100 = ssub.s32 %s35, %s47
    %s101 = ssub.s32 %s36, %s43
    %s102 = sor.u32 %s100, %s101
    %p103 = scmp.eq.s32.totalorder %s102, 0
    %s105 = sadd.s32 %s104, 1
    %s106 = scalar_select %p103, %s104, %s105
    %p109 = pneg %p103
    %p110 = scmp.eq.s32.totalorder %s28, 1
    %p111 = por %p109, %p110
    %p112 = scmp.ne.s32.totalorder %s104, %s107
    %p113 = scmp.eq.s32.totalorder %s28, 0
    %p114 = por %p112, %p113
    %p115 = scmp.ne.s32.totalorder %s104, %s107
    %p116 = scmp.eq.s32.totalorder %s33, 1
    %p117 = por %p115, %p116
    %p118 = scmp.ne.s32.totalorder %s107, %s108
    %p119 = scmp.eq.s32.totalorder %s33, 0
    %p120 = por %p118, %p119
    %p121 = scmp.ne.s32.totalorder %s107, %s108
    %p122 = scmp.eq.s32.totalorder %s34, 1
    %p123 = por %p121, %p122
    %p125 = scmp.ne.s32.totalorder %s108, %s124
    %p126 = scmp.eq.s32.totalorder %s34, 0
    %p127 = por %p125, %p126
    %s128 = ssub.s32 %s35, %s47
    %p129 = scmp.eq.s32.totalorder %s128, 0
    %s131 = sadd.s32 %s130, 1
    %s132 = scalar_select %p129, %s130, %s131
    %p135 = pneg %p129
    %p136 = scmp.eq.s32.totalorder %s28, 1
    %p137 = por %p135, %p136
    %p138 = scmp.ne.s32.totalorder %s130, %s133
    %p139 = scmp.eq.s32.totalorder %s28, 0
    %p140 = por %p138, %p139
    %p141 = scmp.ne.s32.totalorder %s130, %s133
    %p142 = scmp.eq.s32.totalorder %s33, 1
    %p143 = por %p141, %p142
    %p144 = scmp.ne.s32.totalorder %s133, %s134
    %p145 = scmp.eq.s32.totalorder %s33, 0
    %p146 = por %p144, %p145
    %p147 = scmp.ne.s32.totalorder %s133, %s134
    %p148 = scmp.eq.s32.totalorder %s34, 1
    %p149 = por %p147, %p148
    %p151 = scmp.ne.s32.totalorder %s134, %s150
    %p152 = scmp.eq.s32.totalorder %s34, 0
    %p153 = por %p151, %p152
    %s155 = sadd.s32 %s154, 1
    %p158 = scmp.eq.s32.totalorder %s28, 1
    %p159 = scmp.ne.s32.totalorder %s154, %s156
    %p160 = scmp.eq.s32.totalorder %s28, 0
    %p161 = por %p159, %p160
    %p162 = scmp.ne.s32.totalorder %s154, %s156
    %p163 = scmp.eq.s32.totalorder %s33, 1
    %p164 = por %p162, %p163
    %p165 = scmp.ne.s32.totalorder %s156, %s157
    %p166 = scmp.eq.s32.totalorder %s33, 0
    %p167 = por %p165, %p166
    %p168 = scmp.ne.s32.totalorder %s156, %s157
    %p169 = scmp.eq.s32.totalorder %s34, 1
    %p170 = por %p168, %p169
    %p172 = scmp.ne.s32.totalorder %s157, %s171
    %p173 = scmp.eq.s32.totalorder %s34, 0
    %p174 = por %p172, %p173
    %s176 = sadd.s32 %s175, 1
    %p179 = scmp.eq.s32.totalorder %s28, 1
    %p180 = scmp.ne.s32.totalorder %s175, %s177
    %p181 = scmp.eq.s32.totalorder %s28, 0
    %p182 = por %p180, %p181
    %p183 = scmp.ne.s32.totalorder %s175, %s177
    %p184 = scmp.eq.s32.totalorder %s33, 1
    %p185 = por %p183, %p184
    %p186 = scmp.ne.s32.totalorder %s177, %s178
    %p187 = scmp.eq.s32.totalorder %s33, 0
    %p188 = por %p186, %p187
    %p189 = scmp.ne.s32.totalorder %s177, %s178
    %p190 = scmp.eq.s32.totalorder %s34, 1
    %p191 = por %p189, %p190
    %p193 = scmp.ne.s32.totalorder %s178, %s192
    %p194 = scmp.eq.s32.totalorder %s34, 0
    %p195 = por %p193, %p194
    %s197 = sadd.s32 %s196, 1
    %p200 = scmp.eq.s32.totalorder %s28, 1
    %p201 = scmp.ne.s32.totalorder %s196, %s198
    %p202 = scmp.eq.s32.totalorder %s28, 0
    %p203 = por %p201, %p202
    %p204 = scmp.ne.s32.totalorder %s196, %s198
    %p205 = scmp.eq.s32.totalorder %s33, 1
    %p206 = por %p204, %p205
    %p207 = scmp.ne.s32.totalorder %s198, %s199
    %p208 = scmp.eq.s32.totalorder %s33, 0
    %p209 = por %p207, %p208
    %p210 = scmp.ne.s32.totalorder %s198, %s199
    %p211 = scmp.eq.s32.totalorder %s34, 1
    %p212 = por %p210, %p211
    %p214 = scmp.ne.s32.totalorder %s199, %s213
    %p215 = scmp.eq.s32.totalorder %s34, 0
    %p216 = por %p214, %p215
    %s218 = sadd.s32 %s217, 1
    %p221 = scmp.eq.s32.totalorder %s28, 1
    %p222 = scmp.ne.s32.totalorder %s217, %s219
    %p223 = scmp.eq.s32.totalorder %s28, 0
    %p224 = por %p222, %p223
    %p225 = scmp.ne.s32.totalorder %s217, %s219
    %p226 = scmp.eq.s32.totalorder %s33, 1
    %p227 = por %p225, %p226
    %p228 = scmp.ne.s32.totalorder %s219, %s220
    %p229 = scmp.eq.s32.totalorder %s33, 0
    %p230 = por %p228, %p229
    %p231 = scmp.ne.s32.totalorder %s219, %s220
    %p232 = scmp.eq.s32.totalorder %s34, 1
    %p233 = por %p231, %p232
    %p235 = scmp.ne.s32.totalorder %s220, %s234
    %p236 = scmp.eq.s32.totalorder %s34, 0
    %p237 = por %p235, %p236
    %s239 = sadd.s32 %s238, 1
    %p242 = scmp.eq.s32.totalorder %s28, 1
    %p243 = scmp.ne.s32.totalorder %s238, %s240
    %p244 = scmp.eq.s32.totalorder %s28, 0
    %p245 = por %p243, %p244
    %p246 = scmp.ne.s32.totalorder %s238, %s240
    %p247 = scmp.eq.s32.totalorder %s33, 1
    %p248 = por %p246, %p247
    %p249 = scmp.ne.s32.totalorder %s240, %s241
    %p250 = scmp.eq.s32.totalorder %s33, 0
    %p251 = por %p249, %p250
    %p252 = scmp.ne.s32.totalorder %s240, %s241
    %p253 = scmp.eq.s32.totalorder %s34, 1
    %p254 = por %p252, %p253
    %p256 = scmp.ne.s32.totalorder %s241, %s255
    %p257 = scmp.eq.s32.totalorder %s34, 0
    %p258 = por %p256, %p257
    %s260 = sadd.s32 %s259, 1
    %p263 = scmp.eq.s32.totalorder %s28, 1
    %p264 = scmp.ne.s32.totalorder %s259, %s261
    %p265 = scmp.eq.s32.totalorder %s28, 0
    %p266 = por %p264, %p265
    %p267 = scmp.ne.s32.totalorder %s259, %s261
    %p268 = scmp.eq.s32.totalorder %s33, 1
    %p269 = por %p267, %p268
    %p270 = scmp.ne.s32.totalorder %s261, %s262
    %p271 = scmp.eq.s32.totalorder %s33, 0
    %p272 = por %p270, %p271
    %p273 = scmp.ne.s32.totalorder %s261, %s262
    %p274 = scmp.eq.s32.totalorder %s34, 1
    %p275 = por %p273, %p274
    %p277 = scmp.ne.s32.totalorder %s262, %s276
    %p278 = scmp.eq.s32.totalorder %s34, 0
    %p279 = por %p277, %p278
    %s281 = sadd.s32 %s280, 1
    %p284 = scmp.eq.s32.totalorder %s28, 1
    %p285 = scmp.ne.s32.totalorder %s280, %s282
    %p286 = scmp.eq.s32.totalorder %s28, 0
    %p287 = por %p285, %p286
    %p288 = scmp.ne.s32.totalorder %s280, %s282
    %p289 = scmp.eq.s32.totalorder %s33, 1
    %p290 = por %p288, %p289
    %p291 = scmp.ne.s32.totalorder %s282, %s283
    %p292 = scmp.eq.s32.totalorder %s33, 0
    %p293 = por %p291, %p292
    %p294 = scmp.ne.s32.totalorder %s282, %s283
    %p295 = scmp.eq.s32.totalorder %s34, 1
    %p296 = por %p294, %p295
    %p298 = scmp.ne.s32.totalorder %s283, %s297
    %p299 = scmp.eq.s32.totalorder %s34, 0
    %p300 = por %p298, %p299
    %s302 = sadd.s32 %s301, 1
    %p305 = scmp.eq.s32.totalorder %s28, 1
    %p306 = scmp.ne.s32.totalorder %s301, %s303
    %p307 = scmp.eq.s32.totalorder %s28, 0
    %p308 = por %p306, %p307
    %p309 = scmp.ne.s32.totalorder %s301, %s303
    %p310 = scmp.eq.s32.totalorder %s33, 1
    %p311 = por %p309, %p310
    %p312 = scmp.ne.s32.totalorder %s303, %s304
    %p313 = scmp.eq.s32.totalorder %s33, 0
    %p314 = por %p312, %p313
    %p315 = scmp.ne.s32.totalorder %s303, %s304
    %p316 = scmp.eq.s32.totalorder %s34, 1
    %p317 = por %p315, %p316
    %p319 = scmp.ne.s32.totalorder %s304, %s318
    %p320 = scmp.eq.s32.totalorder %s34, 0
    %p321 = por %p319, %p320
    %s323 = sadd.s32 %s322, 1
    %p326 = scmp.eq.s32.totalorder %s28, 1
    %p327 = scmp.ne.s32.totalorder %s322, %s324
    %p328 = scmp.eq.s32.totalorder %s28, 0
    %p329 = por %p327, %p328
    %p330 = scmp.ne.s32.totalorder %s322, %s324
    %p331 = scmp.eq.s32.totalorder %s33, 1
    %p332 = por %p330, %p331
    %p333 = scmp.ne.s32.totalorder %s324, %s325
    %p334 = scmp.eq.s32.totalorder %s33, 0
    %p335 = por %p333, %p334
    %p336 = scmp.ne.s32.totalorder %s324, %s325
    %p337 = scmp.eq.s32.totalorder %s34, 1
    %p338 = por %p336, %p337
    %p340 = scmp.ne.s32.totalorder %s325, %s339
    %p341 = scmp.eq.s32.totalorder %s34, 0
    %p342 = por %p340, %p341
    %s344 = sadd.s32 %s343, 1
    %p347 = scmp.eq.s32.totalorder %s28, 1
    %p348 = scmp.ne.s32.totalorder %s343, %s345
    %p349 = scmp.eq.s32.totalorder %s28, 0
    %p350 = por %p348, %p349
    %p351 = scmp.ne.s32.totalorder %s343, %s345
    %p352 = scmp.eq.s32.totalorder %s33, 1
    %p353 = por %p351, %p352
    %p354 = scmp.ne.s32.totalorder %s345, %s346
    %p355 = scmp.eq.s32.totalorder %s33, 0
    %p356 = por %p354, %p355
    %p357 = scmp.ne.s32.totalorder %s345, %s346
    %p358 = scmp.eq.s32.totalorder %s34, 1
    %p359 = por %p357, %p358
    %p361 = scmp.ne.s32.totalorder %s346, %s360
    %p362 = scmp.eq.s32.totalorder %s34, 0
    %p363 = por %p361, %p362
    %s365 = sadd.s32 %s364, 1
    %p368 = scmp.eq.s32.totalorder %s28, 1
    %p369 = scmp.ne.s32.totalorder %s364, %s366
    %p370 = scmp.eq.s32.totalorder %s28, 0
    %p371 = por %p369, %p370
    %p372 = scmp.ne.s32.totalorder %s364, %s366
    %p373 = scmp.eq.s32.totalorder %s33, 1
    %p374 = por %p372, %p373
    %p375 = scmp.ne.s32.totalorder %s366, %s367
    %p376 = scmp.eq.s32.totalorder %s33, 0
    %p377 = por %p375, %p376
    %p378 = scmp.ne.s32.totalorder %s366, %s367
    %p379 = scmp.eq.s32.totalorder %s34, 1
    %p380 = por %p378, %p379
    %p382 = scmp.ne.s32.totalorder %s367, %s381
    %p383 = scmp.eq.s32.totalorder %s34, 0
    %p384 = por %p382, %p383
    %s386 = sadd.s32 %s385, 1
    %p389 = scmp.eq.s32.totalorder %s28, 1
    %p390 = scmp.ne.s32.totalorder %s385, %s387
    %p391 = scmp.eq.s32.totalorder %s28, 0
    %p392 = por %p390, %p391
    %p393 = scmp.ne.s32.totalorder %s385, %s387
    %p394 = scmp.eq.s32.totalorder %s33, 1
    %p395 = por %p393, %p394
    %p396 = scmp.ne.s32.totalorder %s387, %s388
    %p397 = scmp.eq.s32.totalorder %s33, 0
    %p398 = por %p396, %p397
    %p399 = scmp.ne.s32.totalorder %s387, %s388
    %p400 = scmp.eq.s32.totalorder %s34, 1
    %p401 = por %p399, %p400
    %p403 = scmp.ne.s32.totalorder %s388, %s402
    %p404 = scmp.eq.s32.totalorder %s34, 0
    %p405 = por %p403, %p404
    %s407 = sadd.s32 %s406, 1
    %p410 = scmp.eq.s32.totalorder %s28, 1
    %p411 = scmp.ne.s32.totalorder %s406, %s408
    %p412 = scmp.eq.s32.totalorder %s28, 0
    %p413 = por %p411, %p412
    %p414 = scmp.ne.s32.totalorder %s406, %s408
    %p415 = scmp.eq.s32.totalorder %s33, 1
    %p416 = por %p414, %p415
    %p417 = scmp.ne.s32.totalorder %s408, %s409
    %p418 = scmp.eq.s32.totalorder %s33, 0
    %p419 = por %p417, %p418
    %p420 = scmp.ne.s32.totalorder %s408, %s409
    %p421 = scmp.eq.s32.totalorder %s34, 1
    %p422 = por %p420, %p421
    %p424 = scmp.ne.s32.totalorder %s409, %s423
    %p425 = scmp.eq.s32.totalorder %s34, 0
    %p426 = por %p424, %p425
    %s428 = sadd.s32 %s427, 1
    %p431 = scmp.eq.s32.totalorder %s28, 1
    %p432 = scmp.ne.s32.totalorder %s427, %s429
    %p433 = scmp.eq.s32.totalorder %s28, 0
    %p434 = por %p432, %p433
    %p435 = scmp.ne.s32.totalorder %s427, %s429
    %p436 = scmp.eq.s32.totalorder %s33, 1
    %p437 = por %p435, %p436
    %p438 = scmp.ne.s32.totalorder %s429, %s430
    %p439 = scmp.eq.s32.totalorder %s33, 0
    %p440 = por %p438, %p439
    %p441 = scmp.ne.s32.totalorder %s429, %s430
    %p442 = scmp.eq.s32.totalorder %s34, 1
    %p443 = por %p441, %p442
    %p445 = scmp.ne.s32.totalorder %s430, %s444
    %p446 = scmp.eq.s32.totalorder %s34, 0
    %p447 = por %p445, %p446
    %s449 = sadd.s32 %s448, 1
    %p452 = scmp.eq.s32.totalorder %s28, 1
    %p453 = scmp.ne.s32.totalorder %s448, %s450
    %p454 = scmp.eq.s32.totalorder %s28, 0
    %p455 = por %p453, %p454
    %p456 = scmp.ne.s32.totalorder %s448, %s450
    %p457 = scmp.eq.s32.totalorder %s33, 1
    %p458 = por %p456, %p457
    %p459 = scmp.ne.s32.totalorder %s450, %s451
    %p460 = scmp.eq.s32.totalorder %s33, 0
    %p461 = por %p459, %p460
    %p462 = scmp.ne.s32.totalorder %s450, %s451
    %p463 = scmp.eq.s32.totalorder %s34, 1
    %p464 = por %p462, %p463
    %p466 = scmp.ne.s32.totalorder %s451, %s465
    %p467 = scmp.eq.s32.totalorder %s34, 0
    %p468 = por %p466, %p467
    %s470 = sadd.s32 %s469, 1
    %p473 = scmp.eq.s32.totalorder %s28, 1
    %p474 = scmp.ne.s32.totalorder %s469, %s471
    %p475 = scmp.eq.s32.totalorder %s28, 0
    %p476 = por %p474, %p475
    %p477 = scmp.ne.s32.totalorder %s469, %s471
    %p478 = scmp.eq.s32.totalorder %s33, 1
    %p479 = por %p477, %p478
    %p480 = scmp.ne.s32.totalorder %s471, %s472
    %p481 = scmp.eq.s32.totalorder %s33, 0
    %p482 = por %p480, %p481
    %p483 = scmp.ne.s32.totalorder %s471, %s472
    %p484 = scmp.eq.s32.totalorder %s34, 1
    %p485 = por %p483, %p484
    %p487 = scmp.ne.s32.totalorder %s472, %s486
    %p488 = scmp.eq.s32.totalorder %s34, 0
    %p489 = por %p487, %p488
    %s491 = sadd.s32 %s490, 1
    %p494 = scmp.eq.s32.totalorder %s28, 1
    %p495 = scmp.ne.s32.totalorder %s490, %s492
    %p496 = scmp.eq.s32.totalorder %s28, 0
    %p497 = por %p495, %p496
    %p498 = scmp.ne.s32.totalorder %s490, %s492
    %p499 = scmp.eq.s32.totalorder %s33, 1
    %p500 = por %p498, %p499
    %p501 = scmp.ne.s32.totalorder %s492, %s493
    %p502 = scmp.eq.s32.totalorder %s33, 0
    %p503 = por %p501, %p502
    %p504 = scmp.ne.s32.totalorder %s492, %s493
    %p505 = scmp.eq.s32.totalorder %s34, 1
    %p506 = por %p504, %p505
    %p508 = scmp.ne.s32.totalorder %s493, %s507
    %p509 = scmp.eq.s32.totalorder %s34, 0
    %p510 = por %p508, %p509
    %s512 = sadd.s32 %s511, 1
    %p515 = scmp.eq.s32.totalorder %s28, 1
    %p516 = scmp.ne.s32.totalorder %s511, %s513
    %p517 = scmp.eq.s32.totalorder %s28, 0
    %p518 = por %p516, %p517
    %p519 = scmp.ne.s32.totalorder %s511, %s513
    %p520 = scmp.eq.s32.totalorder %s33, 1
    %p521 = por %p519, %p520
    %p522 = scmp.ne.s32.totalorder %s513, %s514
    %p523 = scmp.eq.s32.totalorder %s33, 0
    %p524 = por %p522, %p523
    %p525 = scmp.ne.s32.totalorder %s513, %s514
    %p526 = scmp.eq.s32.totalorder %s34, 1
    %p527 = por %p525, %p526
    %p529 = scmp.ne.s32.totalorder %s514, %s528
    %p530 = scmp.eq.s32.totalorder %s34, 0
    %p531 = por %p529, %p530
    %s532 = ssub.s32 %s35, %s47
    %s533 = ssub.s32 %s36, %s43
    %s534 = sor.u32 %s532, %s533
    %p535 = scmp.eq.s32.totalorder %s534, 0
    %s537 = sadd.s32 %s536, 1
    %s538 = scalar_select %p535, %s536, %s537
    %p541 = pneg %p535
    %p542 = scmp.eq.s32.totalorder %s28, 1
    %p543 = por %p541, %p542
    %p544 = scmp.ne.s32.totalorder %s536, %s539
    %p545 = scmp.eq.s32.totalorder %s28, 0
    %p546 = por %p544, %p545
    %p547 = scmp.ne.s32.totalorder %s536, %s539
    %p548 = scmp.eq.s32.totalorder %s33, 1
    %p549 = por %p547, %p548
    %p550 = scmp.ne.s32.totalorder %s539, %s540
    %p551 = scmp.eq.s32.totalorder %s33, 0
    %p552 = por %p550, %p551
    %p553 = scmp.ne.s32.totalorder %s539, %s540
    %p554 = scmp.eq.s32.totalorder %s34, 1
    %p555 = por %p553, %p554
    %p557 = scmp.ne.s32.totalorder %s540, %s556
    %p558 = scmp.eq.s32.totalorder %s34, 0
    %p559 = por %p557, %p558
    %p560 = scmp.le.s32.totalorder 1, %s28
    %p561 = scmp.lt.s32.totalorder %s28, 3
    %p562 = pnand %p560, %p561
    %p563 = pneg %p562
    // Predicated region
    $region9: #{decoder_forward.3} parent=5 // pred_check
      _
    $region10: #{decoder_forward.3} parent=5 // pred_check_branch
      %565 = sbr.rel (%p562) target = $region12
    $region11: #{decoder_forward.3} parent=5 // pred_region
      %s566 = ssub.s32 %s28, 1
      // Predicated region
      $region13: #{decoder_forward.3} parent=11 // pred_check
        %p567 = pneg %p167
      $region14: #{decoder_forward.3} parent=11 // pred_check_branch
        %569 = sbr.rel (%p567) target = $region16
      $region15: #{decoder_forward.3} parent=11 // pred_region
        _
      $region16: #{decoder_forward.3} parent=11 // pred_fallthru
        _
      // Predicated region
      $region17: #{decoder_forward.3} parent=11 // pred_check
        %p570 = pneg %p188
      $region18: #{decoder_forward.3} parent=11 // pred_check_branch
        %572 = sbr.rel (%p570) target = $region20
      $region19: #{decoder_forward.3} parent=11 // pred_region
        _
      $region20: #{decoder_forward.3} parent=11 // pred_fallthru
        _
      // Predicated region
      $region21: #{decoder_forward.3} parent=11 // pred_check
        %p573 = pneg %p209
      $region22: #{decoder_forward.3} parent=11 // pred_check_branch
        %575 = sbr.rel (%p573) target = $region24
      $region23: #{decoder_forward.3} parent=11 // pred_region
        _
      $region24: #{decoder_forward.3} parent=11 // pred_fallthru
        _
      // Predicated region
      $region25: #{decoder_forward.3} parent=11 // pred_check
        %p576 = pneg %p230
      $region26: #{decoder_forward.3} parent=11 // pred_check_branch
        %578 = sbr.rel (%p576) target = $region28
      $region27: #{decoder_forward.3} parent=11 // pred_region
        _
      $region28: #{decoder_forward.3} parent=11 // pred_fallthru
        _
      // Predicated region
      $region29: #{decoder_forward.3} parent=11 // pred_check
        %p579 = pneg %p251
      $region30: #{decoder_forward.3} parent=11 // pred_check_branch
        %581 = sbr.rel (%p579) target = $region32
      $region31: #{decoder_forward.3} parent=11 // pred_region
        _
      $region32: #{decoder_forward.3} parent=11 // pred_fallthru
        _
      // Predicated region
      $region33: #{decoder_forward.3} parent=11 // pred_check
        %p582 = pneg %p272
      $region34: #{decoder_forward.3} parent=11 // pred_check_branch
        %584 = sbr.rel (%p582) target = $region36
      $region35: #{decoder_forward.3} parent=11 // pred_region
        _
      $region36: #{decoder_forward.3} parent=11 // pred_fallthru
        _
      // Predicated region
      $region37: #{decoder_forward.3} parent=11 // pred_check
        %p585 = pneg %p293
      $region38: #{decoder_forward.3} parent=11 // pred_check_branch
        %587 = sbr.rel (%p585) target = $region40
      $region39: #{decoder_forward.3} parent=11 // pred_region
        _
      $region40: #{decoder_forward.3} parent=11 // pred_fallthru
        _
      // Predicated region
      $region41: #{decoder_forward.3} parent=11 // pred_check
        %p588 = pneg %p314
      $region42: #{decoder_forward.3} parent=11 // pred_check_branch
        %590 = sbr.rel (%p588) target = $region44
      $region43: #{decoder_forward.3} parent=11 // pred_region
        _
      $region44: #{decoder_forward.3} parent=11 // pred_fallthru
        _
      // Predicated region
      $region45: #{decoder_forward.3} parent=11 // pred_check
        %p591 = pneg %p335
      $region46: #{decoder_forward.3} parent=11 // pred_check_branch
        %593 = sbr.rel (%p591) target = $region48
      $region47: #{decoder_forward.3} parent=11 // pred_region
        _
      $region48: #{decoder_forward.3} parent=11 // pred_fallthru
        _
      // Predicated region
      $region49: #{decoder_forward.3} parent=11 // pred_check
        %p594 = pneg %p356
      $region50: #{decoder_forward.3} parent=11 // pred_check_branch
        %596 = sbr.rel (%p594) target = $region52
      $region51: #{decoder_forward.3} parent=11 // pred_region
        _
      $region52: #{decoder_forward.3} parent=11 // pred_fallthru
        _
      // Predicated region
      $region53: #{decoder_forward.3} parent=11 // pred_check
        %p597 = pneg %p377
      $region54: #{decoder_forward.3} parent=11 // pred_check_branch
        %599 = sbr.rel (%p597) target = $region56
      $region55: #{decoder_forward.3} parent=11 // pred_region
        _
      $region56: #{decoder_forward.3} parent=11 // pred_fallthru
        _
      // Predicated region
      $region57: #{decoder_forward.3} parent=11 // pred_check
        %p600 = pneg %p398
      $region58: #{decoder_forward.3} parent=11 // pred_check_branch
        %602 = sbr.rel (%p600) target = $region60
      $region59: #{decoder_forward.3} parent=11 // pred_region
        _
      $region60: #{decoder_forward.3} parent=11 // pred_fallthru
        _
      // Predicated region
      $region61: #{decoder_forward.3} parent=11 // pred_check
        %p603 = pneg %p419
      $region62: #{decoder_forward.3} parent=11 // pred_check_branch
        %605 = sbr.rel (%p603) target = $region64
      $region63: #{decoder_forward.3} parent=11 // pred_region
        _
      $region64: #{decoder_forward.3} parent=11 // pred_fallthru
        _
      // Predicated region
      $region65: #{decoder_forward.3} parent=11 // pred_check
        %p606 = pneg %p440
      $region66: #{decoder_forward.3} parent=11 // pred_check_branch
        %608 = sbr.rel (%p606) target = $region68
      $region67: #{decoder_forward.3} parent=11 // pred_region
        _
      $region68: #{decoder_forward.3} parent=11 // pred_fallthru
        _
      // Predicated region
      $region69: #{decoder_forward.3} parent=11 // pred_check
        %p609 = pneg %p461
      $region70: #{decoder_forward.3} parent=11 // pred_check_branch
        %611 = sbr.rel (%p609) target = $region72
      $region71: #{decoder_forward.3} parent=11 // pred_region
        _
      $region72: #{decoder_forward.3} parent=11 // pred_fallthru
        _
      // Predicated region
      $region73: #{decoder_forward.3} parent=11 // pred_check
        %p612 = pneg %p482
      $region74: #{decoder_forward.3} parent=11 // pred_check_branch
        %614 = sbr.rel (%p612) target = $region76
      $region75: #{decoder_forward.3} parent=11 // pred_region
        _
      $region76: #{decoder_forward.3} parent=11 // pred_fallthru
        _
      // Predicated region
      $region77: #{decoder_forward.3} parent=11 // pred_check
        %p615 = pneg %p503
      $region78: #{decoder_forward.3} parent=11 // pred_check_branch
        %617 = sbr.rel (%p615) target = $region80
      $region79: #{decoder_forward.3} parent=11 // pred_region
        _
      $region80: #{decoder_forward.3} parent=11 // pred_fallthru
        _
      // Predicated region
      $region81: #{decoder_forward.3} parent=11 // pred_check
        %p618 = pneg %p524
      $region82: #{decoder_forward.3} parent=11 // pred_check_branch
        %620 = sbr.rel (%p618) target = $region84
      $region83: #{decoder_forward.3} parent=11 // pred_region
        _
      $region84: #{decoder_forward.3} parent=11 // pred_fallthru
        _
    $region12: #{decoder_forward.3} parent=5 // pred_fallthru
      _
    %p621 = scmp.lt.s32.totalorder %s28, 2
    // Predicated region
    $region85: #{decoder_forward.3} parent=5 // pred_check
      %p622 = pneg %p621
    $region86: #{decoder_forward.3} parent=5 // pred_check_branch
      %624 = sbr.rel (%p622) target = $region88
    $region87: #{decoder_forward.3} parent=5 // pred_region
      // Predicated region
      $region89: #{decoder_forward.3} parent=87 // pred_check
        %p625 = pneg %p60
      $region90: #{decoder_forward.3} parent=87 // pred_check_branch
        %627 = sbr.rel (%p625) target = $region92
      $region91: #{decoder_forward.3} parent=87 // pred_region
        %p628 = scmp.lt.s32.totalorder %s35, 1
        %s629 = scalar_select %p628, %s35, 1
        %s630 = smul.addr %s629, 2
        %s631 = smul.addr %s630, 4
        %s632 = scalar_lea.vmem %s0, %s631
      $region92: #{decoder_forward.3} parent=87 // pred_fallthru
        _
      // Predicated region
      $region93: #{decoder_forward.3} parent=87 // pred_check
        %p633 = pneg %p86
      $region94: #{decoder_forward.3} parent=87 // pred_check_branch
        %635 = sbr.rel (%p633) target = $region96
      $region95: #{decoder_forward.3} parent=87 // pred_region
        %p636 = scmp.lt.s32.totalorder %s35, 1
        %s637 = scalar_select %p636, %s35, 1
        %s638 = smul.addr %s637, 2
        %s639 = smul.addr %s638, 4
        %s640 = scalar_lea.vmem %s1, %s639
      $region96: #{decoder_forward.3} parent=87 // pred_fallthru
        _
      // Predicated region
      $region97: #{decoder_forward.3} parent=87 // pred_check
        %p641 = pneg %p114
      $region98: #{decoder_forward.3} parent=87 // pred_check_branch
        %643 = sbr.rel (%p641) target = $region100
      $region99: #{decoder_forward.3} parent=87 // pred_region
        %s644 = smul.u32 2, %s36
        %p645 = scmp.lt.s32.totalorder %s35, 1
        %s646 = scalar_select %p645, %s35, 1
        %p647 = scmp.lt.s32.totalorder %s644, 1
        %s648 = scalar_select %p647, %s644, 1
        %s649 = smul.addr %s646, 2
        %s650 = sadd.s32 %s648, %s649
        %s651 = smul.addr %s650, 4
        %s652 = scalar_lea.vmem %s2, %s651
        %s653 = smul.u32 2, %s36
      $region100: #{decoder_forward.3} parent=87 // pred_fallthru
        _
      // Predicated region
      $region101: #{decoder_forward.3} parent=87 // pred_check
        %p654 = pneg %p140
      $region102: #{decoder_forward.3} parent=87 // pred_check_branch
        %656 = sbr.rel (%p654) target = $region104
      $region103: #{decoder_forward.3} parent=87 // pred_region
        %p657 = scmp.lt.s32.totalorder %s35, 1
        %s658 = scalar_select %p657, %s35, 1
        %s659 = scalar_lea.vmem %s3, %s658
      $region104: #{decoder_forward.3} parent=87 // pred_fallthru
        _
    $region88: #{decoder_forward.3} parent=5 // pred_fallthru
      _
    %p660 = scmp.le.s32.totalorder 1, %s28
    %p661 = scmp.lt.s32.totalorder %s28, 3
    %p662 = pnand %p660, %p661
    %p663 = pneg %p662
    // Predicated region
    $region105: #{decoder_forward.3} parent=5 // pred_check
      _
    $region106: #{decoder_forward.3} parent=5 // pred_check_branch
      %665 = sbr.rel (%p662) target = $region108
    $region107: #{decoder_forward.3} parent=5 // pred_region
      %s666 = ssub.s32 %s28, 1
      %p667 = scmp.lt.s32.totalorder %s37, 1
      %s668 = scalar_select %p667, %s37, 1
      %s669 = smul.addr %s668, 2
      %s670 = smul.addr %s669, 4
      %s671 = scalar_lea.vmem %s0, %s670
      %p672 = pneg %p66
      %p673 = pneg %p63
      %p674 = scmp.lt.s32.totalorder %s37, 1
      %s675 = scalar_select %p674, %s37, 1
      %s676 = smul.addr %s675, 2
      %s677 = smul.addr %s676, 4
      %s678 = scalar_lea.vmem %s1, %s677
      %p679 = pneg %p92
      %p680 = pneg %p89
      %s681 = smul.u32 2, %s38
      %p682 = scmp.lt.s32.totalorder %s37, 1
      %s683 = scalar_select %p682, %s37, 1
      %p684 = scmp.lt.s32.totalorder %s681, 1
      %s685 = scalar_select %p684, %s681, 1
      %s686 = smul.addr %s683, 2
      %s687 = sadd.s32 %s685, %s686
      %s688 = smul.addr %s687, 4
      %s689 = scalar_lea.vmem %s2, %s688
      %p690 = pneg %p120
      %p691 = pneg %p117
      %p692 = scmp.lt.s32.totalorder %s37, 1
      %s693 = scalar_select %p692, %s37, 1
      %s694 = scalar_lea.vmem %s3, %s693
      %p695 = pneg %p146
      %p696 = pneg %p143
      %p697 = pneg %p167
      %p698 = pneg %p164
      %p699 = pneg %p188
      %p700 = pneg %p185
      %p701 = pneg %p209
      %p702 = pneg %p206
      %p703 = pneg %p230
      %p704 = pneg %p227
      %p705 = pneg %p251
      %p706 = pneg %p248
      %p707 = pneg %p272
      %p708 = pneg %p269
      %p709 = pneg %p293
      %p710 = pneg %p290
      %p711 = pneg %p314
      %p712 = pneg %p311
      %p713 = pneg %p335
      %p714 = pneg %p332
      %p715 = pneg %p356
      %p716 = pneg %p353
      %p717 = pneg %p377
      %p718 = pneg %p374
      %p719 = pneg %p398
      %p720 = pneg %p395
      %p721 = pneg %p419
      %p722 = pneg %p416
      %p723 = pneg %p440
      %p724 = pneg %p437
      %p725 = pneg %p461
      %p726 = pneg %p458
      %p727 = pneg %p482
      %p728 = pneg %p479
      %p729 = pneg %p503
      %p730 = pneg %p500
      %p731 = pneg %p524
      %p732 = pneg %p521
      %p733 = pneg %p552
      %p734 = pneg %p549
      %s735 = smul.u32 2, %s38
      %p736 = scmp.lt.s32.totalorder %s37, 1
      %s737 = scalar_select %p736, %s37, 1
      %p738 = scmp.lt.s32.totalorder %s735, 1
      %s739 = scalar_select %p738, %s735, 1
      %s740 = smul.addr %s737, 2
      %s741 = sadd.s32 %s739, %s740
      %s742 = smul.addr %s741, 4
      %s743 = scalar_lea.vmem %s22, %s742
      %p744 = scmp.lt.s32.totalorder %s37, 1
      %s745 = scalar_select %p744, %s37, 1
      %s746 = smul.addr %s745, 2
      %s747 = smul.addr %s746, 4
      %s748 = scalar_lea.vmem %s0, %s747
      %p749 = scmp.lt.s32.totalorder %s37, 1
      %s750 = scalar_select %p749, %s37, 1
      %s751 = smul.addr %s750, 2
      %s752 = smul.addr %s751, 4
      %s753 = scalar_lea.vmem %s1, %s752
      %s754 = smul.u32 2, %s38
      %p755 = scmp.lt.s32.totalorder %s37, 1
      %s756 = scalar_select %p755, %s37, 1
      %p757 = scmp.lt.s32.totalorder %s754, 1
      %s758 = scalar_select %p757, %s754, 1
      %s759 = smul.addr %s756, 2
      %s760 = sadd.s32 %s758, %s759
      %s761 = smul.addr %s760, 4
      %s762 = scalar_lea.vmem %s2, %s761
      %s763 = smul.u32 2, %s38
      %p764 = scmp.lt.s32.totalorder %s37, 1
      %s765 = scalar_select %p764, %s37, 1
      %s766 = scalar_lea.vmem %s3, %s765
      %s767 = smul.u32 2, %s38
      %p768 = scmp.lt.s32.totalorder %s37, 1
      %s769 = scalar_select %p768, %s37, 1
      %p770 = scmp.lt.s32.totalorder %s767, 1
      %s771 = scalar_select %p770, %s767, 1
      %s772 = smul.addr %s769, 2
      %s773 = sadd.s32 %s771, %s772
      %s774 = smul.addr %s773, 4
      %s775 = scalar_lea.vmem %s22, %s774
      %s776 = smul.u32 2, %s38
      %p778 = scmp.eq.s32.totalorder %s38, 0
      // Predicated region
      $region109: #{decoder_forward.3} parent=107 // pred_check
        %p779 = pneg %p778
      $region110: #{decoder_forward.3} parent=107 // pred_check_branch
        %781 = sbr.rel (%p779) target = $region112
      $region111: #{decoder_forward.3} parent=107 // pred_region
        %v782 = vld [vmem:[%s748] sm:$0xf]
        %v783 = vld [vmem:[%s748 + $0x4] sm:$0xf]
        %v784 = vld [vmem:[%s5] sm:$0xf]
        %v785 = vld [vmem:[%s5 + $0x4] sm:$0xf]
        %v786 = vld [vmem:[%s5 + $0x8] sm:$0xf]
        %v787 = vld [vmem:[%s5 + $0xc] sm:$0xf]
        %v788 = vld [vmem:[%s5 + $0x10] sm:$0xf]
        %v789 = vld [vmem:[%s5 + $0x14] sm:$0xf]
        %v790 = vld [vmem:[%s5 + $0x18] sm:$0xf]
        %v791 = vld [vmem:[%s5 + $0x1c] sm:$0xf]
        %v792 = vld [vmem:[%s5 + $0x20] sm:$0xf]
        %v793 = vld [vmem:[%s5 + $0x24] sm:$0xf]
        %v794 = vld [vmem:[%s5 + $0x28] sm:$0xf]
        %v795 = vld [vmem:[%s5 + $0x2c] sm:$0xf]
        %v796 = vld [vmem:[%s5 + $0x30] sm:$0xf]
        %v797 = vld [vmem:[%s5 + $0x34] sm:$0xf]
        %v798 = vld [vmem:[%s5 + $0x38] sm:$0xf]
        %v799 = vld [vmem:[%s5 + $0x3c] sm:$0xf]
        %v802 = vunpack.c.l.b16 %v782
        %v803 = vunpack.c.l.b16 %v783
        %v804 = vpack.c.b16 %v803, %v802
        %v822 = vunpack.c.l.b16 %v784
        %v823 = vunpack.c.l.b16 %v785
        %v824 = vunpack.c.l.b16 %v786
        %v825 = vunpack.c.l.b16 %v787
        %v826 = vunpack.c.l.b16 %v788
        %v827 = vunpack.c.l.b16 %v789
        %v828 = vunpack.c.l.b16 %v790
        %v829 = vunpack.c.l.b16 %v791
        %v830 = vunpack.c.l.b16 %v792
        %v831 = vunpack.c.l.b16 %v793
        %v832 = vunpack.c.l.b16 %v794
        %v833 = vunpack.c.l.b16 %v795
        %v834 = vunpack.c.l.b16 %v796
        %v835 = vunpack.c.l.b16 %v797
        %v836 = vunpack.c.l.b16 %v798
        %v837 = vunpack.c.l.b16 %v799
        %v838 = vpack.c.b16 %v823, %v822
        %v839 = vpack.c.b16 %v825, %v824
        %v840 = vpack.c.b16 %v827, %v826
        %v841 = vpack.c.b16 %v829, %v828
        %v842 = vpack.c.b16 %v831, %v830
        %v843 = vpack.c.b16 %v833, %v832
        %v844 = vpack.c.b16 %v835, %v834
        %v845 = vpack.c.b16 %v837, %v836
        %854 = vmatprep.subr.bf16.mxu0 0
        %855 = vmatpush1.bf16.msra.mxu0 %v838
        %856 = vmatprep.subr.bf16.mxu0 0
        %857 = vmatpush1.bf16.msra.mxu0 %v839
        %858 = vmatprep.subr.bf16.mxu0 0
        %859 = vmatpush1.bf16.msra.mxu0 %v840
        %860 = vmatprep.subr.bf16.mxu0 0
        %861 = vmatpush1.bf16.msra.mxu0 %v841
        %862 = vmatprep.subr.bf16.mxu0 0
        %863 = vmatpush1.bf16.msra.mxu0 %v842
        %864 = vmatprep.subr.bf16.mxu0 0
        %865 = vmatpush1.bf16.msra.mxu0 %v843
        %866 = vmatprep.subr.bf16.mxu0 0
        %867 = vmatpush1.bf16.msra.mxu0 %v844
        %868 = vmatprep.subr.bf16.mxu0 0
        %869 = vmatpush1.bf16.msra.mxu0 %v845
        %870 = vmatprep.subr.bf16.mxu0 0
        %871 = vmatpush1.bf16.msra.mxu0 0
        %872 = vmatprep.subr.bf16.mxu0 0
        %873 = vmatpush1.bf16.msra.mxu0 0
        %874 = vmatprep.subr.bf16.mxu0 0
        %875 = vmatpush1.bf16.msra.mxu0 0
        %876 = vmatprep.subr.bf16.mxu0 0
        %877 = vmatpush1.bf16.msra.mxu0 0
        %878 = vmatprep.subr.bf16.mxu0 0
        %879 = vmatpush1.bf16.msra.mxu0 0
        %880 = vmatprep.subr.bf16.mxu0 0
        %881 = vmatpush1.bf16.msra.mxu0 0
        %882 = vmatprep.subr.bf16.mxu0 0
        %883 = vmatpush1.bf16.msra.mxu0 0
        %884 = vmatprep.subr.bf16.mxu0 0
        %885 = vmatpush1.bf16.msra.mxu0 0
        %886 = vmatprep.mubr.bf16.mxu0 0
        %887 = vmatmul.mubr.bf16.gmra.mrb[0].mxu0 %v804
        %v888 = vpop.f32.mrb[0].mxu0
        %v889 = vadd.f32 0.0, %v888
        %v890 = vpop.f32.mrb[0].mxu0
        %v891 = vpop.f32.mrb[0].mxu0
        %v892 = vadd.f32 0.0, %v891
        %v893 = vpop.f32.mrb[0].mxu0
        %894 = vdwg.mxu0
        %v895 = vpack.c.bf16 %v892, %v889
        %896 = vst [vmem:[#allocation2] sm:$0xff] %v895
        %v897 = vld [vmem:[%s6] sm:$0xf]
        %v898 = vld [vmem:[%s6 + $0x4] sm:$0xf]
        %v899 = vld [vmem:[%s6 + $0x8] sm:$0xf]
        %v900 = vld [vmem:[%s6 + $0xc] sm:$0xf]
        %v901 = vld [vmem:[%s6 + $0x10] sm:$0xf]
        %v902 = vld [vmem:[%s6 + $0x14] sm:$0xf]
        %v903 = vld [vmem:[%s6 + $0x18] sm:$0xf]
        %v904 = vld [vmem:[%s6 + $0x1c] sm:$0xf]
        %v905 = vld [vmem:[%s6 + $0x20] sm:$0xf]
        %v906 = vld [vmem:[%s6 + $0x24] sm:$0xf]
        %v907 = vld [vmem:[%s6 + $0x28] sm:$0xf]
        %v908 = vld [vmem:[%s6 + $0x2c] sm:$0xf]
        %v909 = vld [vmem:[%s6 + $0x30] sm:$0xf]
        %v910 = vld [vmem:[%s6 + $0x34] sm:$0xf]
        %v911 = vld [vmem:[%s6 + $0x38] sm:$0xf]
        %v912 = vld [vmem:[%s6 + $0x3c] sm:$0xf]
        %v929 = vunpack.c.l.b16 %v897
        %v930 = vunpack.c.l.b16 %v898
        %v931 = vunpack.c.l.b16 %v899
        %v932 = vunpack.c.l.b16 %v900
        %v933 = vunpack.c.l.b16 %v901
        %v934 = vunpack.c.l.b16 %v902
        %v935 = vunpack.c.l.b16 %v903
        %v936 = vunpack.c.l.b16 %v904
        %v937 = vunpack.c.l.b16 %v905
        %v938 = vunpack.c.l.b16 %v906
        %v939 = vunpack.c.l.b16 %v907
        %v940 = vunpack.c.l.b16 %v908
        %v941 = vunpack.c.l.b16 %v909
        %v942 = vunpack.c.l.b16 %v910
        %v943 = vunpack.c.l.b16 %v911
        %v944 = vunpack.c.l.b16 %v912
        %v945 = vpack.c.b16 %v930, %v929
        %v946 = vpack.c.b16 %v932, %v931
        %v947 = vpack.c.b16 %v934, %v933
        %v948 = vpack.c.b16 %v936, %v935
        %v949 = vpack.c.b16 %v938, %v937
        %v950 = vpack.c.b16 %v940, %v939
        %v951 = vpack.c.b16 %v942, %v941
        %v952 = vpack.c.b16 %v944, %v943
        %961 = vmatprep.subr.bf16.mxu0 0
        %962 = vmatpush1.bf16.msra.mxu0 %v945
        %963 = vmatprep.subr.bf16.mxu0 0
        %964 = vmatpush1.bf16.msra.mxu0 %v946
        %965 = vmatprep.subr.bf16.mxu0 0
        %966 = vmatpush1.bf16.msra.mxu0 %v947
        %967 = vmatprep.subr.bf16.mxu0 0
        %968 = vmatpush1.bf16.msra.mxu0 %v948
        %969 = vmatprep.subr.bf16.mxu0 0
        %970 = vmatpush1.bf16.msra.mxu0 %v949
        %971 = vmatprep.subr.bf16.mxu0 0
        %972 = vmatpush1.bf16.msra.mxu0 %v950
        %973 = vmatprep.subr.bf16.mxu0 0
        %974 = vmatpush1.bf16.msra.mxu0 %v951
        %975 = vmatprep.subr.bf16.mxu0 0
        %976 = vmatpush1.bf16.msra.mxu0 %v952
        %977 = vmatprep.subr.bf16.mxu0 0
        %978 = vmatpush1.bf16.msra.mxu0 0
        %979 = vmatprep.subr.bf16.mxu0 0
        %980 = vmatpush1.bf16.msra.mxu0 0
        %981 = vmatprep.subr.bf16.mxu0 0
        %982 = vmatpush1.bf16.msra.mxu0 0
        %983 = vmatprep.subr.bf16.mxu0 0
        %984 = vmatpush1.bf16.msra.mxu0 0
        %985 = vmatprep.subr.bf16.mxu0 0
        %986 = vmatpush1.bf16.msra.mxu0 0
        %987 = vmatprep.subr.bf16.mxu0 0
        %988 = vmatpush1.bf16.msra.mxu0 0
        %989 = vmatprep.subr.bf16.mxu0 0
        %990 = vmatpush1.bf16.msra.mxu0 0
        %991 = vmatprep.subr.bf16.mxu0 0
        %992 = vmatpush1.bf16.msra.mxu0 0
        %993 = vmatprep.mubr.bf16.mxu0 0
        %994 = vmatmul.mubr.bf16.gmra.mrb[0].mxu0 %v804
        %v995 = vpop.f32.mrb[0].mxu0
        %v996 = vadd.f32 0.0, %v995
        %v997 = vpop.f32.mrb[0].mxu0
        %v998 = vpop.f32.mrb[0].mxu0
        %v999 = vadd.f32 0.0, %v998
        %v1000 = vpop.f32.mrb[0].mxu0
        %1001 = vdwg.mxu0
        %v1002 = vpack.c.bf16 %v999, %v996
        %1003 = vst [vmem:[#allocation3] sm:$0xff] %v1002
        %v1004 = vld [vmem:[%s753] sm:$0xf]
        %v1005 = vld [vmem:[%s753 + $0x4] sm:$0xf]
        %v1006 = vld [vmem:[%s11] sm:$0xf]
        %v1007 = vld [vmem:[%s11 + $0x4] sm:$0xf]
        %v1008 = vld [vmem:[%s11 + $0x8] sm:$0xf]
        %v1009 = vld [vmem:[%s11 + $0xc] sm:$0xf]
        %v1010 = vld [vmem:[%s11 + $0x10] sm:$0xf]
        %v1011 = vld [vmem:[%s11 + $0x14] sm:$0xf]
        %v1012 = vld [vmem:[%s11 + $0x18] sm:$0xf]
        %v1013 = vld [vmem:[%s11 + $0x1c] sm:$0xf]
        %v1014 = vld [vmem:[%s11 + $0x20] sm:$0xf]
        %v1015 = vld [vmem:[%s11 + $0x24] sm:$0xf]
        %v1016 = vld [vmem:[%s11 + $0x28] sm:$0xf]
        %v1017 = vld [vmem:[%s11 + $0x2c] sm:$0xf]
        %v1018 = vld [vmem:[%s11 + $0x30] sm:$0xf]
        %v1019 = vld [vmem:[%s11 + $0x34] sm:$0xf]
        %v1020 = vld [vmem:[%s11 + $0x38] sm:$0xf]
        %v1021 = vld [vmem:[%s11 + $0x3c] sm:$0xf]
        %v1024 = vunpack.c.l.b16 %v1004
        %v1025 = vunpack.c.l.b16 %v1005
        %v1026 = vpack.c.b16 %v1025, %v1024
        %v1044 = vunpack.c.l.b16 %v1006
        %v1045 = vunpack.c.l.b16 %v1007
        %v1046 = vunpack.c.l.b16 %v1008
        %v1047 = vunpack.c.l.b16 %v1009
        %v1048 = vunpack.c.l.b16 %v1010
        %v1049 = vunpack.c.l.b16 %v1011
        %v1050 = vunpack.c.l.b16 %v1012
        %v1051 = vunpack.c.l.b16 %v1013
        %v1052 = vunpack.c.l.b16 %v1014
        %v1053 = vunpack.c.l.b16 %v1015
        %v1054 = vunpack.c.l.b16 %v1016
        %v1055 = vunpack.c.l.b16 %v1017
        %v1056 = vunpack.c.l.b16 %v1018
        %v1057 = vunpack.c.l.b16 %v1019
        %v1058 = vunpack.c.l.b16 %v1020
        %v1059 = vunpack.c.l.b16 %v1021
        %v1060 = vpack.c.b16 %v1045, %v1044
        %v1061 = vpack.c.b16 %v1047, %v1046
        %v1062 = vpack.c.b16 %v1049, %v1048
        %v1063 = vpack.c.b16 %v1051, %v1050
        %v1064 = vpack.c.b16 %v1053, %v1052
        %v1065 = vpack.c.b16 %v1055, %v1054
        %v1066 = vpack.c.b16 %v1057, %v1056
        %v1067 = vpack.c.b16 %v1059, %v1058
        %1076 = vmatprep.subr.bf16.mxu0 0
        %1077 = vmatpush1.bf16.msra.mxu0 %v1060
        %1078 = vmatprep.subr.bf16.mxu0 0
        %1079 = vmatpush1.bf16.msra.mxu0 %v1061
        %1080 = vmatprep.subr.bf16.mxu0 0
        %1081 = vmatpush1.bf16.msra.mxu0 %v1062
        %1082 = vmatprep.subr.bf16.mxu0 0
        %1083 = vmatpush1.bf16.msra.mxu0 %v1063
        %1084 = vmatprep.subr.bf16.mxu0 0
        %1085 = vmatpush1.bf16.msra.mxu0 %v1064
        %1086 = vmatprep.subr.bf16.mxu0 0
        %1087 = vmatpush1.bf16.msra.mxu0 %v1065
        %1088 = vmatprep.subr.bf16.mxu0 0
        %1089 = vmatpush1.bf16.msra.mxu0 %v1066
        %1090 = vmatprep.subr.bf16.mxu0 0
        %1091 = vmatpush1.bf16.msra.mxu0 %v1067
        %1092 = vmatprep.subr.bf16.mxu0 0
        %1093 = vmatpush1.bf16.msra.mxu0 0
        %1094 = vmatprep.subr.bf16.mxu0 0
        %1095 = vmatpush1.bf16.msra.mxu0 0
        %1096 = vmatprep.subr.bf16.mxu0 0
        %1097 = vmatpush1.bf16.msra.mxu0 0
        %1098 = vmatprep.subr.bf16.mxu0 0
        %1099 = vmatpush1.bf16.msra.mxu0 0
        %1100 = vmatprep.subr.bf16.mxu0 0
        %1101 = vmatpush1.bf16.msra.mxu0 0
        %1102 = vmatprep.subr.bf16.mxu0 0
        %1103 = vmatpush1.bf16.msra.mxu0 0
        %1104 = vmatprep.subr.bf16.mxu0 0
        %1105 = vmatpush1.bf16.msra.mxu0 0
        %1106 = vmatprep.subr.bf16.mxu0 0
        %1107 = vmatpush1.bf16.msra.mxu0 0
        %1108 = vmatprep.mubr.bf16.mxu0 0
        %1109 = vmatmul.mubr.bf16.gmra.mrb[0].mxu0 %v1026
        %v1110 = vpop.f32.mrb[0].mxu0
        %v1111 = vadd.f32 0.0, %v1110
        %v1112 = vpop.f32.mrb[0].mxu0
        %v1113 = vpop.f32.mrb[0].mxu0
        %v1114 = vadd.f32 0.0, %v1113
        %v1115 = vpop.f32.mrb[0].mxu0
        %1116 = vdwg.mxu0
        %v1117 = vpack.c.bf16 %v1114, %v1111
        %1118 = vst [vmem:[#allocation4] sm:$0xff] %v1117
        %v1119 = vld [vmem:[%s12] sm:$0xf]
        %v1120 = vld [vmem:[%s12 + $0x4] sm:$0xf]
        %v1121 = vld [vmem:[%s12 + $0x8] sm:$0xf]
        %v1122 = vld [vmem:[%s12 + $0xc] sm:$0xf]
        %v1123 = vld [vmem:[%s12 + $0x10] sm:$0xf]
        %v1124 = vld [vmem:[%s12 + $0x14] sm:$0xf]
        %v1125 = vld [vmem:[%s12 + $0x18] sm:$0xf]
        %v1126 = vld [vmem:[%s12 + $0x1c] sm:$0xf]
        %v1127 = vld [vmem:[%s12 + $0x20] sm:$0xf]
        %v1128 = vld [vmem:[%s12 + $0x24] sm:$0xf]
        %v1129 = vld [vmem:[%s12 + $0x28] sm:$0xf]
        %v1130 = vld [vmem:[%s12 + $0x2c] sm:$0xf]
        %v1131 = vld [vmem:[%s12 + $0x30] sm:$0xf]
        %v1132 = vld [vmem:[%s12 + $0x34] sm:$0xf]
        %v1133 = vld [vmem:[%s12 + $0x38] sm:$0xf]
        %v1134 = vld [vmem:[%s12 + $0x3c] sm:$0xf]
        %v1151 = vunpack.c.l.b16 %v1119
        %v1152 = vunpack.c.l.b16 %v1120
        %v1153 = vunpack.c.l.b16 %v1121
        %v1154 = vunpack.c.l.b16 %v1122
        %v1155 = vunpack.c.l.b16 %v1123
        %v1156 = vunpack.c.l.b16 %v1124
        %v1157 = vunpack.c.l.b16 %v1125
        %v1158 = vunpack.c.l.b16 %v1126
        %v1159 = vunpack.c.l.b16 %v1127
        %v1160 = vunpack.c.l.b16 %v1128
        %v1161 = vunpack.c.l.b16 %v1129
        %v1162 = vunpack.c.l.b16 %v1130
        %v1163 = vunpack.c.l.b16 %v1131
        %v1164 = vunpack.c.l.b16 %v1132
        %v1165 = vunpack.c.l.b16 %v1133
        %v1166 = vunpack.c.l.b16 %v1134
        %v1167 = vpack.c.b16 %v1152, %v1151
        %v1168 = vpack.c.b16 %v1154, %v1153
        %v1169 = vpack.c.b16 %v1156, %v1155
        %v1170 = vpack.c.b16 %v1158, %v1157
        %v1171 = vpack.c.b16 %v1160, %v1159
        %v1172 = vpack.c.b16 %v1162, %v1161
        %v1173 = vpack.c.b16 %v1164, %v1163
        %v1174 = vpack.c.b16 %v1166, %v1165
        %1183 = vmatprep.subr.bf16.mxu0 0
        %1184 = vmatpush1.bf16.msra.mxu0 %v1167
        %1185 = vmatprep.subr.bf16.mxu0 0
        %1186 = vmatpush1.bf16.msra.mxu0 %v1168
        %1187 = vmatprep.subr.bf16.mxu0 0
        %1188 = vmatpush1.bf16.msra.mxu0 %v1169
        %1189 = vmatprep.subr.bf16.mxu0 0
        %1190 = vmatpush1.bf16.msra.mxu0 %v1170
        %1191 = vmatprep.subr.bf16.mxu0 0
        %1192 = vmatpush1.bf16.msra.mxu0 %v1171
        %1193 = vmatprep.subr.bf16.mxu0 0
        %1194 = vmatpush1.bf16.msra.mxu0 %v1172
        %1195 = vmatprep.subr.bf16.mxu0 0
        %1196 = vmatpush1.bf16.msra.mxu0 %v1173
        %1197 = vmatprep.subr.bf16.mxu0 0
        %1198 = vmatpush1.bf16.msra.mxu0 %v1174
        %1199 = vmatprep.subr.bf16.mxu0 0
        %1200 = vmatpush1.bf16.msra.mxu0 0
        %1201 = vmatprep.subr.bf16.mxu0 0
        %1202 = vmatpush1.bf16.msra.mxu0 0
        %1203 = vmatprep.subr.bf16.mxu0 0
        %1204 = vmatpush1.bf16.msra.mxu0 0
        %1205 = vmatprep.subr.bf16.mxu0 0
        %1206 = vmatpush1.bf16.msra.mxu0 0
        %1207 = vmatprep.subr.bf16.mxu0 0
        %1208 = vmatpush1.bf16.msra.mxu0 0
        %1209 = vmatprep.subr.bf16.mxu0 0
        %1210 = vmatpush1.bf16.msra.mxu0 0
        %1211 = vmatprep.subr.bf16.mxu0 0
        %1212 = vmatpush1.bf16.msra.mxu0 0
        %1213 = vmatprep.subr.bf16.mxu0 0
        %1214 = vmatpush1.bf16.msra.mxu0 0
        %1215 = vmatprep.mubr.bf16.mxu0 0
        %1216 = vmatmul.mubr.bf16.gmra.mrb[0].mxu0 %v1026
        %v1217 = vpop.f32.mrb[0].mxu0
        %v1218 = vadd.f32 0.0, %v1217
        %v1219 = vpop.f32.mrb[0].mxu0
        %v1220 = vpop.f32.mrb[0].mxu0
        %v1221 = vadd.f32 0.0, %v1220
        %v1222 = vpop.f32.mrb[0].mxu0
        %1223 = vdwg.mxu0
        %v1224 = vpack.c.bf16 %v1221, %v1218
        %1225 = vst [vmem:[#allocation5] sm:$0xff] %v1224
      $region112: #{decoder_forward.3} parent=107 // pred_fallthru
        _
      %s1226 = smul.u32 %s38, 16
      %s1227 = sshra.s32 %s1226, 3
      %s1228 = sand.u32 %s1226, 7
      %s1229 = smul.addr %s1227, 4
      %s1230 = scalar_lea.vmem %s748, %s1229
      %v1231 = vld [vmem:[%s1230] sm:$0xf]
      %v1232 = vld [vmem:[%s1230 + $0x4] sm:$0xf]
      %v1233 = vunpack.c.l.bf16 %v1231
      %v1234 = vunpack.c.l.bf16 %v1232
      %v1235 = vld [vmem:[%s762] sm:$0xf]
      %v1236 = vld [vmem:[%s762 + $0x4] sm:$0xf]
      %v1237 = vunpack.c.l.bf16 %v1235
      %v1238 = vunpack.c.l.bf16 %v1236
      %v1239 = vld [vmem:[%s766] sm:$0x1]
      %v1240 = vunpack.c.l.bf16 %v1239
      %v1241 = vld [vmem:[%s4] sm:$0xf]
      %v1242 = vld [vmem:[%s4 + $0x4] sm:$0xf]
      %v1243 = vld [vmem:[%s4 + $0x8] sm:$0xf]
      %v1244 = vld [vmem:[%s4 + $0xc] sm:$0xf]
      %v1245 = vld [vmem:[%s4 + $0x10] sm:$0xf]
      %v1246 = vld [vmem:[%s4 + $0x14] sm:$0xf]
      %v1247 = vld [vmem:[%s4 + $0x18] sm:$0xf]
      %v1248 = vld [vmem:[%s4 + $0x1c] sm:$0xf]
      %v1249 = vld [vmem:[%s4 + $0x20] sm:$0xf]
      %v1250 = vld [vmem:[%s4 + $0x24] sm:$0xf]
      %v1251 = vld [vmem:[%s4 + $0x28] sm:$0xf]
      %v1252 = vld [vmem:[%s4 + $0x2c] sm:$0xf]
      %v1253 = vld [vmem:[%s4 + $0x30] sm:$0xf]
      %v1254 = vld [vmem:[%s4 + $0x34] sm:$0xf]
      %v1255 = vld [vmem:[%s4 + $0x38] sm:$0xf]
      %v1256 = vld [vmem:[%s4 + $0x3c] sm:$0xf]
      %v1259 = vunpack.c.l.b16 %v1231
      %v1260 = vunpack.c.l.b16 %v1232
      %v1261 = vpack.c.b16 %v1260, %v1259
      %v1279 = vunpack.c.l.b16 %v1241
      %v1280 = vunpack.c.l.b16 %v1242
      %v1281 = vunpack.c.l.b16 %v1243
      %v1282 = vunpack.c.l.b16 %v1244
      %v1283 = vunpack.c.l.b16 %v1245
      %v1284 = vunpack.c.l.b16 %v1246
      %v1285 = vunpack.c.l.b16 %v1247
      %v1286 = vunpack.c.l.b16 %v1248
      %v1287 = vunpack.c.l.b16 %v1249
      %v1288 = vunpack.c.l.b16 %v1250
      %v1289 = vunpack.c.l.b16 %v1251
      %v1290 = vunpack.c.l.b16 %v1252
      %v1291 = vunpack.c.l.b16 %v1253
      %v1292 = vunpack.c.l.b16 %v1254
      %v1293 = vunpack.c.l.b16 %v1255
      %v1294 = vunpack.c.l.b16 %v1256
      %v1295 = vpack.c.b16 %v1280, %v1279
      %v1296 = vpack.c.b16 %v1282, %v1281
      %v1297 = vpack.c.b16 %v1284, %v1283
      %v1298 = vpack.c.b16 %v1286, %v1285
      %v1299 = vpack.c.b16 %v1288, %v1287
      %v1300 = vpack.c.b16 %v1290, %v1289
      %v1301 = vpack.c.b16 %v1292, %v1291
      %v1302 = vpack.c.b16 %v1294, %v1293
      %1311 = vmatprep.subr.bf16.mxu0 0
      %1312 = vmatpush1.bf16.msra.mxu0 %v1295
      %1313 = vmatprep.subr.bf16.mxu0 0
      %1314 = vmatpush1.bf16.msra.mxu0 %v1296
      %1315 = vmatprep.subr.bf16.mxu0 0
      %1316 = vmatpush1.bf16.msra.mxu0 %v1297
      %1317 = vmatprep.subr.bf16.mxu0 0
      %1318 = vmatpush1.bf16.msra.mxu0 %v1298
      %1319 = vmatprep.subr.bf16.mxu0 0
      %1320 = vmatpush1.bf16.msra.mxu0 %v1299
      %1321 = vmatprep.subr.bf16.mxu0 0
      %1322 = vmatpush1.bf16.msra.mxu0 %v1300
      %1323 = vmatprep.subr.bf16.mxu0 0
      %1324 = vmatpush1.bf16.msra.mxu0 %v1301
      %1325 = vmatprep.subr.bf16.mxu0 0
      %1326 = vmatpush1.bf16.msra.mxu0 %v1302
      %1327 = vmatprep.subr.bf16.mxu0 0
      %1328 = vmatpush1.bf16.msra.mxu0 0
      %1329 = vmatprep.subr.bf16.mxu0 0
      %1330 = vmatpush1.bf16.msra.mxu0 0
      %1331 = vmatprep.subr.bf16.mxu0 0
      %1332 = vmatpush1.bf16.msra.mxu0 0
      %1333 = vmatprep.subr.bf16.mxu0 0
      %1334 = vmatpush1.bf16.msra.mxu0 0
      %1335 = vmatprep.subr.bf16.mxu0 0
      %1336 = vmatpush1.bf16.msra.mxu0 0
      %1337 = vmatprep.subr.bf16.mxu0 0
      %1338 = vmatpush1.bf16.msra.mxu0 0
      %1339 = vmatprep.subr.bf16.mxu0 0
      %1340 = vmatpush1.bf16.msra.mxu0 0
      %1341 = vmatprep.subr.bf16.mxu0 0
      %1342 = vmatpush1.bf16.msra.mxu0 0
      %1343 = vmatprep.mubr.bf16.mxu0 0
      %1344 = vmatmul.mubr.bf16.gmra.mrb[0].mxu0 %v1261
      %v1345 = vpop.f32.mrb[0].mxu0
      %v1346 = vadd.f32 0.0, %v1345
      %v1347 = vpop.f32.mrb[0].mxu0
      %v1348 = vpop.f32.mrb[0].mxu0
      %v1349 = vadd.f32 0.0, %v1348
      %v1350 = vpop.f32.mrb[0].mxu0
      %1351 = vdwg.mxu0
      %v1352 = vpack.c.bf16 %v1349, %v1346
      %v1353 = vld [vmem:[#allocation2] sm:$0xff]
      %v1354 = vld [vmem:[#allocation3] sm:$0xff]
      %vm1355 = vcmask 261120
      %v1357 = vsel %vm1355, %v1352, 0
      %v1360 = vsel %vm1355, %v1353, 0
      %1362 = vmatprep.subr.bf16.mxu0 0
      %1363 = vmatpush1.bf16.xpose.msra.mxu0 %v1360
      %1364 = vmatprep.subr.bf16.mxu0 0
      %1365 = vmatpush1.bf16.xpose.msra.mxu0 0
      %1366 = vmatprep.subr.bf16.mxu0 0
      %1367 = vmatpush1.bf16.xpose.msra.mxu0 0
      %1368 = vmatprep.subr.bf16.mxu0 0
      %1369 = vmatpush1.bf16.xpose.msra.mxu0 0
      %1370 = vmatprep.subr.bf16.mxu0 0
      %1371 = vmatpush1.bf16.xpose.msra.mxu0 0
      %1372 = vmatprep.subr.bf16.mxu0 0
      %1373 = vmatpush1.bf16.xpose.msra.mxu0 0
      %1374 = vmatprep.subr.bf16.mxu0 0
      %1375 = vmatpush1.bf16.xpose.msra.mxu0 0
      %1376 = vmatprep.subr.bf16.mxu0 0
      %1377 = vmatpush1.bf16.xpose.msra.mxu0 0
      %1378 = vmatprep.subr.bf16.mxu0 0
      %1379 = vmatpush1.bf16.xpose.msra.mxu0 0
      %1380 = vmatprep.subr.bf16.mxu0 0
      %1381 = vmatpush1.bf16.xpose.msra.mxu0 0
      %1382 = vmatprep.subr.bf16.mxu0 0
      %1383 = vmatpush1.bf16.xpose.msra.mxu0 0
      %1384 = vmatprep.subr.bf16.mxu0 0
      %1385 = vmatpush1.bf16.xpose.msra.mxu0 0
      %1386 = vmatprep.subr.bf16.mxu0 0
      %1387 = vmatpush1.bf16.xpose.msra.mxu0 0
      %1388 = vmatprep.subr.bf16.mxu0 0
      %1389 = vmatpush1.bf16.xpose.msra.mxu0 0
      %1390 = vmatprep.subr.bf16.mxu0 0
      %1391 = vmatpush1.bf16.xpose.msra.mxu0 0
      %1392 = vmatprep.subr.bf16.mxu0 0
      %1393 = vmatpush1.bf16.xpose.msra.mxu0 0
      %1394 = vmatprep.mubr.bf16.mxu0 0
      %1395 = vmatmul.mubr.bf16.gmra.mrb[0].mxu0 %v1357
      %v1396 = vpop.f32.mrb[0].mxu0
      %v1397 = vadd.f32 %v1237, %v1396
      %v1398 = vpop.f32.mrb[0].mxu0
      %v1399 = vpop.f32.mrb[0].mxu0
      %v1400 = vadd.f32 %v1238, %v1399
      %v1401 = vpop.f32.mrb[0].mxu0
      %1402 = vdwg.mxu0
      %vm1403 = vcmask 130048
      %v1404 = vsel %vm1403, %v1397, -inf
      %1405 = vmax.xlane.f32.xlu0 %v1404
      %v1406 = vpop.xlane.xlu0 %1405
      %v1407 = vsel %vm1403, %v1400, -inf
      %1408 = vmax.xlane.f32.xlu0 %v1407
      %v1409 = vpop.xlane.xlu0 %1408
      %v1410 = vsub.f32 %v1397, %v1406
      %v1411 = vsub.f32 %v1400, %v1409
      %v1412 = vmul.f32 %v1410, 1.442695
      %v1413 = vpow.pop %v1412
      %v1414 = vmul.f32 %v1411, 1.442695
      %v1415 = vpow.pop %v1414
      %v1416 = vsel %vm1403, %v1413, 0.0
      %1417 = vadd.xlane.f32.xlu0 %v1416
      %v1418 = vpop.xlane.xlu0 %1417
      %v1419 = vsel %vm1403, %v1415, 0.0
      %1420 = vadd.xlane.f32.xlu0 %v1419
      %v1421 = vpop.xlane.xlu0 %1420
      %v1422 = vrcp.pop %v1418
      %v1423 = vrcp.pop %v1421
      %v1424 = vmul.f32 %v1413, %v1422
      %v1425 = vmul.f32 %v1415, %v1423
      %v1426 = vpack.c.bf16 %v1425, %v1424
      %v1428 = vsel %vm1403, %v1426, 0
      %1430 = vmatprep.subr.bf16.mxu0 0
      %1431 = vmatpush1.bf16.msra.mxu0 %v1354
      %1432 = vmatprep.subr.bf16.mxu0 0
      %1433 = vmatpush1.bf16.msra.mxu0 0
      %1434 = vmatprep.subr.bf16.mxu0 0
      %1435 = vmatpush1.bf16.msra.mxu0 0
      %1436 = vmatprep.subr.bf16.mxu0 0
      %1437 = vmatpush1.bf16.msra.mxu0 0
      %1438 = vmatprep.subr.bf16.mxu0 0
      %1439 = vmatpush1.bf16.msra.mxu0 0
      %1440 = vmatprep.subr.bf16.mxu0 0
      %1441 = vmatpush1.bf16.msra.mxu0 0
      %1442 = vmatprep.subr.bf16.mxu0 0
      %1443 = vmatpush1.bf16.msra.mxu0 0
      %1444 = vmatprep.subr.bf16.mxu0 0
      %1445 = vmatpush1.bf16.msra.mxu0 0
      %1446 = vmatprep.subr.bf16.mxu0 0
      %1447 = vmatpush1.bf16.msra.mxu0 0
      %1448 = vmatprep.subr.bf16.mxu0 0
      %1449 = vmatpush1.bf16.msra.mxu0 0
      %1450 = vmatprep.subr.bf16.mxu0 0
      %1451 = vmatpush1.bf16.msra.mxu0 0
      %1452 = vmatprep.subr.bf16.mxu0 0
      %1453 = vmatpush1.bf16.msra.mxu0 0
      %1454 = vmatprep.subr.bf16.mxu0 0
      %1455 = vmatpush1.bf16.msra.mxu0 0
      %1456 = vmatprep.subr.bf16.mxu0 0
      %1457 = vmatpush1.bf16.msra.mxu0 0
      %1458 = vmatprep.subr.bf16.mxu0 0
      %1459 = vmatpush1.bf16.msra.mxu0 0
      %1460 = vmatprep.subr.bf16.mxu0 0
      %1461 = vmatpush1.bf16.msra.mxu0 0
      %1462 = vmatprep.mubr.bf16.mxu0 0
      %1463 = vmatmul.mubr.bf16.gmra.mrb[0].mxu0 %v1428
      %v1464 = vpop.f32.mrb[0].mxu0
      %v1465 = vadd.f32 0.0, %v1464
      %v1466 = vpop.f32.mrb[0].mxu0
      %v1467 = vpop.f32.mrb[0].mxu0
      %v1468 = vadd.f32 0.0, %v1467
      %v1469 = vpop.f32.mrb[0].mxu0
      %1470 = vdwg.mxu0
      %v1471 = vld [vmem:[#allocation2] sm:$0xff]
      %v1472 = vld [vmem:[#allocation3] sm:$0xff]
      %1474 = vrot.lane.b32.xlu0 %v1352, 96
      %v1475 = vpop.permute.xlu0 %1474
      %1477 = vrot.lane.b32.xlu0 %v1471, 96
      %v1478 = vpop.permute.xlu0 %1477
      %v1480 = vsel %vm1355, %v1475, 0
      %v1483 = vsel %vm1355, %v1478, 0
      %1485 = vmatprep.subr.bf16.mxu0 0
      %1486 = vmatpush1.bf16.xpose.msra.mxu0 %v1483
      %1487 = vmatprep.subr.bf16.mxu0 0
      %1488 = vmatpush1.bf16.xpose.msra.mxu0 0
      %1489 = vmatprep.subr.bf16.mxu0 0
      %1490 = vmatpush1.bf16.xpose.msra.mxu0 0
      %1491 = vmatprep.subr.bf16.mxu0 0
      %1492 = vmatpush1.bf16.xpose.msra.mxu0 0
      %1493 = vmatprep.subr.bf16.mxu0 0
      %1494 = vmatpush1.bf16.xpose.msra.mxu0 0
      %1495 = vmatprep.subr.bf16.mxu0 0
      %1496 = vmatpush1.bf16.xpose.msra.mxu0 0
      %1497 = vmatprep.subr.bf16.mxu0 0
      %1498 = vmatpush1.bf16.xpose.msra.mxu0 0
      %1499 = vmatprep.subr.bf16.mxu0 0
      %1500 = vmatpush1.bf16.xpose.msra.mxu0 0
      %1501 = vmatprep.subr.bf16.mxu0 0
      %1502 = vmatpush1.bf16.xpose.msra.mxu0 0
      %1503 = vmatprep.subr.bf16.mxu0 0
      %1504 = vmatpush1.bf16.xpose.msra.mxu0 0
      %1505 = vmatprep.subr.bf16.mxu0 0
      %1506 = vmatpush1.bf16.xpose.msra.mxu0 0
      %1507 = vmatprep.subr.bf16.mxu0 0
      %1508 = vmatpush1.bf16.xpose.msra.mxu0 0
      %1509 = vmatprep.subr.bf16.mxu0 0
      %1510 = vmatpush1.bf16.xpose.msra.mxu0 0
      %1511 = vmatprep.subr.bf16.mxu0 0
      %1512 = vmatpush1.bf16.xpose.msra.mxu0 0
      %1513 = vmatprep.subr.bf16.mxu0 0
      %1514 = vmatpush1.bf16.xpose.msra.mxu0 0
      %1515 = vmatprep.subr.bf16.mxu0 0
      %1516 = vmatpush1.bf16.xpose.msra.mxu0 0
      %1517 = vmatprep.mubr.bf16.mxu0 0
      %1518 = vmatmul.mubr.bf16.gmra.mrb[0].mxu0 %v1480
      %v1519 = vpop.f32.mrb[0].mxu0
      %v1520 = vadd.f32 %v1237, %v1519
      %v1521 = vpop.f32.mrb[0].mxu0
      %v1522 = vpop.f32.mrb[0].mxu0
      %v1523 = vadd.f32 %v1238, %v1522
      %v1524 = vpop.f32.mrb[0].mxu0
      %1525 = vdwg.mxu0
      %v1526 = vsel %vm1403, %v1520, -inf
      %1527 = vmax.xlane.f32.xlu0 %v1526
      %v1528 = vpop.xlane.xlu0 %1527
      %v1529 = vsel %vm1403, %v1523, -inf
      %1530 = vmax.xlane.f32.xlu0 %v1529
      %v1531 = vpop.xlane.xlu0 %1530
      %v1532 = vsub.f32 %v1520, %v1528
      %v1533 = vsub.f32 %v1523, %v1531
      %v1534 = vmul.f32 %v1532, 1.442695
      %v1535 = vpow.pop %v1534
      %v1536 = vmul.f32 %v1533, 1.442695
      %v1537 = vpow.pop %v1536
      %v1538 = vsel %vm1403, %v1535, 0.0
      %1539 = vadd.xlane.f32.xlu0 %v1538
      %v1540 = vpop.xlane.xlu0 %1539
      %v1541 = vsel %vm1403, %v1537, 0.0
      %1542 = vadd.xlane.f32.xlu0 %v1541
      %v1543 = vpop.xlane.xlu0 %1542
      %v1544 = vrcp.pop %v1540
      %v1545 = vrcp.pop %v1543
      %v1546 = vmul.f32 %v1535, %v1544
      %v1547 = vmul.f32 %v1537, %v1545
      %v1548 = vpack.c.bf16 %v1547, %v1546
      %1550 = vrot.lane.b32.xlu0 %v1472, 96
      %v1551 = vpop.permute.xlu0 %1550
      %v1554 = vsel %vm1403, %v1548, 0
      %1556 = vmatprep.subr.bf16.mxu0 0
      %1557 = vmatpush1.bf16.msra.mxu0 %v1551
      %1558 = vmatprep.subr.bf16.mxu0 0
      %1559 = vmatpush1.bf16.msra.mxu0 0
      %1560 = vmatprep.subr.bf16.mxu0 0
      %1561 = vmatpush1.bf16.msra.mxu0 0
      %1562 = vmatprep.subr.bf16.mxu0 0
      %1563 = vmatpush1.bf16.msra.mxu0 0
      %1564 = vmatprep.subr.bf16.mxu0 0
      %1565 = vmatpush1.bf16.msra.mxu0 0
      %1566 = vmatprep.subr.bf16.mxu0 0
      %1567 = vmatpush1.bf16.msra.mxu0 0
      %1568 = vmatprep.subr.bf16.mxu0 0
      %1569 = vmatpush1.bf16.msra.mxu0 0
      %1570 = vmatprep.subr.bf16.mxu0 0
      %1571 = vmatpush1.bf16.msra.mxu0 0
      %1572 = vmatprep.subr.bf16.mxu0 0
      %1573 = vmatpush1.bf16.msra.mxu0 0
      %1574 = vmatprep.subr.bf16.mxu0 0
      %1575 = vmatpush1.bf16.msra.mxu0 0
      %1576 = vmatprep.subr.bf16.mxu0 0
      %1577 = vmatpush1.bf16.msra.mxu0 0
      %1578 = vmatprep.subr.bf16.mxu0 0
      %1579 = vmatpush1.bf16.msra.mxu0 0
      %1580 = vmatprep.subr.bf16.mxu0 0
      %1581 = vmatpush1.bf16.msra.mxu0 0
      %1582 = vmatprep.subr.bf16.mxu0 0
      %1583 = vmatpush1.bf16.msra.mxu0 0
      %1584 = vmatprep.subr.bf16.mxu0 0
      %1585 = vmatpush1.bf16.msra.mxu0 0
      %1586 = vmatprep.subr.bf16.mxu0 0
      %1587 = vmatpush1.bf16.msra.mxu0 0
      %1588 = vmatprep.mubr.bf16.mxu0 0
      %1589 = vmatmul.mubr.bf16.gmra.mrb[0].mxu0 %v1554
      %v1590 = vpop.f32.mrb[0].mxu0
      %v1591 = vadd.f32 0.0, %v1590
      %v1592 = vpop.f32.mrb[0].mxu0
      %v1593 = vpop.f32.mrb[0].mxu0
      %v1594 = vadd.f32 0.0, %v1593
      %v1595 = vpop.f32.mrb[0].mxu0
      %1596 = vdwg.mxu0
      %v1597 = vld [vmem:[#allocation2] sm:$0xff]
      %v1598 = vld [vmem:[#allocation3] sm:$0xff]
      %1599 = vrot.lane.b32.xlu0 %v1352, 64
      %v1600 = vpop.permute.xlu0 %1599
      %1602 = vrot.lane.b32.xlu0 %v1597, 64
      %v1603 = vpop.permute.xlu0 %1602
      %v1605 = vsel %vm1355, %v1600, 0
      %v1608 = vsel %vm1355, %v1603, 0
      %1610 = vmatprep.subr.bf16.mxu0 0
      %1611 = vmatpush1.bf16.xpose.msra.mxu0 %v1608
      %1612 = vmatprep.subr.bf16.mxu0 0
      %1613 = vmatpush1.bf16.xpose.msra.mxu0 0
      %1614 = vmatprep.subr.bf16.mxu0 0
      %1615 = vmatpush1.bf16.xpose.msra.mxu0 0
      %1616 = vmatprep.subr.bf16.mxu0 0
      %1617 = vmatpush1.bf16.xpose.msra.mxu0 0
      %1618 = vmatprep.subr.bf16.mxu0 0
      %1619 = vmatpush1.bf16.xpose.msra.mxu0 0
      %1620 = vmatprep.subr.bf16.mxu0 0
      %1621 = vmatpush1.bf16.xpose.msra.mxu0 0
      %1622 = vmatprep.subr.bf16.mxu0 0
      %1623 = vmatpush1.bf16.xpose.msra.mxu0 0
      %1624 = vmatprep.subr.bf16.mxu0 0
      %1625 = vmatpush1.bf16.xpose.msra.mxu0 0
      %1626 = vmatprep.subr.bf16.mxu0 0
      %1627 = vmatpush1.bf16.xpose.msra.mxu0 0
      %1628 = vmatprep.subr.bf16.mxu0 0
      %1629 = vmatpush1.bf16.xpose.msra.mxu0 0
      %1630 = vmatprep.subr.bf16.mxu0 0
      %1631 = vmatpush1.bf16.xpose.msra.mxu0 0
      %1632 = vmatprep.subr.bf16.mxu0 0
      %1633 = vmatpush1.bf16.xpose.msra.mxu0 0
      %1634 = vmatprep.subr.bf16.mxu0 0
      %1635 = vmatpush1.bf16.xpose.msra.mxu0 0
      %1636 = vmatprep.subr.bf16.mxu0 0
      %1637 = vmatpush1.bf16.xpose.msra.mxu0 0
      %1638 = vmatprep.subr.bf16.mxu0 0
      %1639 = vmatpush1.bf16.xpose.msra.mxu0 0
      %1640 = vmatprep.subr.bf16.mxu0 0
      %1641 = vmatpush1.bf16.xpose.msra.mxu0 0
      %1642 = vmatprep.mubr.bf16.mxu0 0
      %1643 = vmatmul.mubr.bf16.gmra.mrb[0].mxu0 %v1605
      %v1644 = vpop.f32.mrb[0].mxu0
      %v1645 = vadd.f32 %v1237, %v1644
      %v1646 = vpop.f32.mrb[0].mxu0
      %v1647 = vpop.f32.mrb[0].mxu0
      %v1648 = vadd.f32 %v1238, %v1647
      %v1649 = vpop.f32.mrb[0].mxu0
      %1650 = vdwg.mxu0
      %v1651 = vsel %vm1403, %v1645, -inf
      %1652 = vmax.xlane.f32.xlu0 %v1651
      %v1653 = vpop.xlane.xlu0 %1652
      %v1654 = vsel %vm1403, %v1648, -inf
      %1655 = vmax.xlane.f32.xlu0 %v1654
      %v1656 = vpop.xlane.xlu0 %1655
      %v1657 = vsub.f32 %v1645, %v1653
      %v1658 = vsub.f32 %v1648, %v1656
      %v1659 = vmul.f32 %v1657, 1.442695
      %v1660 = vpow.pop %v1659
      %v1661 = vmul.f32 %v1658, 1.442695
      %v1662 = vpow.pop %v1661
      %v1663 = vsel %vm1403, %v1660, 0.0
      %1664 = vadd.xlane.f32.xlu0 %v1663
      %v1665 = vpop.xlane.xlu0 %1664
      %v1666 = vsel %vm1403, %v1662, 0.0
      %1667 = vadd.xlane.f32.xlu0 %v1666
      %v1668 = vpop.xlane.xlu0 %1667
      %v1669 = vrcp.pop %v1665
      %v1670 = vrcp.pop %v1668
      %v1671 = vmul.f32 %v1660, %v1669
      %v1672 = vmul.f32 %v1662, %v1670
      %v1673 = vpack.c.bf16 %v1672, %v1671
      %1675 = vrot.lane.b32.xlu0 %v1598, 64
      %v1676 = vpop.permute.xlu0 %1675
      %v1679 = vsel %vm1403, %v1673, 0
      %1681 = vmatprep.subr.bf16.mxu0 0
      %1682 = vmatpush1.bf16.msra.mxu0 %v1676
      %1683 = vmatprep.subr.bf16.mxu0 0
      %1684 = vmatpush1.bf16.msra.mxu0 0
      %1685 = vmatprep.subr.bf16.mxu0 0
      %1686 = vmatpush1.bf16.msra.mxu0 0
      %1687 = vmatprep.subr.bf16.mxu0 0
      %1688 = vmatpush1.bf16.msra.mxu0 0
      %1689 = vmatprep.subr.bf16.mxu0 0
      %1690 = vmatpush1.bf16.msra.mxu0 0
      %1691 = vmatprep.subr.bf16.mxu0 0
      %1692 = vmatpush1.bf16.msra.mxu0 0
      %1693 = vmatprep.subr.bf16.mxu0 0
      %1694 = vmatpush1.bf16.msra.mxu0 0
      %1695 = vmatprep.subr.bf16.mxu0 0
      %1696 = vmatpush1.bf16.msra.mxu0 0
      %1697 = vmatprep.subr.bf16.mxu0 0
      %1698 = vmatpush1.bf16.msra.mxu0 0
      %1699 = vmatprep.subr.bf16.mxu0 0
      %1700 = vmatpush1.bf16.msra.mxu0 0
      %1701 = vmatprep.subr.bf16.mxu0 0
      %1702 = vmatpush1.bf16.msra.mxu0 0
      %1703 = vmatprep.subr.bf16.mxu0 0
      %1704 = vmatpush1.bf16.msra.mxu0 0
      %1705 = vmatprep.subr.bf16.mxu0 0
      %1706 = vmatpush1.bf16.msra.mxu0 0
      %1707 = vmatprep.subr.bf16.mxu0 0
      %1708 = vmatpush1.bf16.msra.mxu0 0
      %1709 = vmatprep.subr.bf16.mxu0 0
      %1710 = vmatpush1.bf16.msra.mxu0 0
      %1711 = vmatprep.subr.bf16.mxu0 0
      %1712 = vmatpush1.bf16.msra.mxu0 0
      %1713 = vmatprep.mubr.bf16.mxu0 0
      %1714 = vmatmul.mubr.bf16.gmra.mrb[0].mxu0 %v1679
      %v1715 = vpop.f32.mrb[0].mxu0
      %v1716 = vadd.f32 0.0, %v1715
      %v1717 = vpop.f32.mrb[0].mxu0
      %v1718 = vpop.f32.mrb[0].mxu0
      %v1719 = vadd.f32 0.0, %v1718
      %v1720 = vpop.f32.mrb[0].mxu0
      %1721 = vdwg.mxu0
      %v1722 = vld [vmem:[#allocation2] sm:$0xff]
      %v1723 = vld [vmem:[#allocation3] sm:$0xff]
      %1724 = vrot.lane.b32.xlu0 %v1352, 32
      %v1725 = vpop.permute.xlu0 %1724
      %1727 = vrot.lane.b32.xlu0 %v1722, 32
      %v1728 = vpop.permute.xlu0 %1727
      %v1730 = vsel %vm1355, %v1725, 0
      %v1733 = vsel %vm1355, %v1728, 0
      %1735 = vmatprep.subr.bf16.mxu0 0
      %1736 = vmatpush1.bf16.xpose.msra.mxu0 %v1733
      %1737 = vmatprep.subr.bf16.mxu0 0
      %1738 = vmatpush1.bf16.xpose.msra.mxu0 0
      %1739 = vmatprep.subr.bf16.mxu0 0
      %1740 = vmatpush1.bf16.xpose.msra.mxu0 0
      %1741 = vmatprep.subr.bf16.mxu0 0
      %1742 = vmatpush1.bf16.xpose.msra.mxu0 0
      %1743 = vmatprep.subr.bf16.mxu0 0
      %1744 = vmatpush1.bf16.xpose.msra.mxu0 0
      %1745 = vmatprep.subr.bf16.mxu0 0
      %1746 = vmatpush1.bf16.xpose.msra.mxu0 0
      %1747 = vmatprep.subr.bf16.mxu0 0
      %1748 = vmatpush1.bf16.xpose.msra.mxu0 0
      %1749 = vmatprep.subr.bf16.mxu0 0
      %1750 = vmatpush1.bf16.xpose.msra.mxu0 0
      %1751 = vmatprep.subr.bf16.mxu0 0
      %1752 = vmatpush1.bf16.xpose.msra.mxu0 0
      %1753 = vmatprep.subr.bf16.mxu0 0
      %1754 = vmatpush1.bf16.xpose.msra.mxu0 0
      %1755 = vmatprep.subr.bf16.mxu0 0
      %1756 = vmatpush1.bf16.xpose.msra.mxu0 0
      %1757 = vmatprep.subr.bf16.mxu0 0
      %1758 = vmatpush1.bf16.xpose.msra.mxu0 0
      %1759 = vmatprep.subr.bf16.mxu0 0
      %1760 = vmatpush1.bf16.xpose.msra.mxu0 0
      %1761 = vmatprep.subr.bf16.mxu0 0
      %1762 = vmatpush1.bf16.xpose.msra.mxu0 0
      %1763 = vmatprep.subr.bf16.mxu0 0
      %1764 = vmatpush1.bf16.xpose.msra.mxu0 0
      %1765 = vmatprep.subr.bf16.mxu0 0
      %1766 = vmatpush1.bf16.xpose.msra.mxu0 0
      %1767 = vmatprep.mubr.bf16.mxu0 0
      %1768 = vmatmul.mubr.bf16.gmra.mrb[0].mxu0 %v1730
      %v1769 = vpop.f32.mrb[0].mxu0
      %v1770 = vadd.f32 %v1237, %v1769
      %v1771 = vpop.f32.mrb[0].mxu0
      %v1772 = vpop.f32.mrb[0].mxu0
      %v1773 = vadd.f32 %v1238, %v1772
      %v1774 = vpop.f32.mrb[0].mxu0
      %1775 = vdwg.mxu0
      %v1776 = vsel %vm1403, %v1770, -inf
      %1777 = vmax.xlane.f32.xlu0 %v1776
      %v1778 = vpop.xlane.xlu0 %1777
      %v1779 = vsel %vm1403, %v1773, -inf
      %1780 = vmax.xlane.f32.xlu0 %v1779
      %v1781 = vpop.xlane.xlu0 %1780
      %v1782 = vsub.f32 %v1770, %v1778
      %v1783 = vsub.f32 %v1773, %v1781
      %v1784 = vmul.f32 %v1782, 1.442695
      %v1785 = vpow.pop %v1784
      %v1786 = vmul.f32 %v1783, 1.442695
      %v1787 = vpow.pop %v1786
      %v1788 = vsel %vm1403, %v1785, 0.0
      %1789 = vadd.xlane.f32.xlu0 %v1788
      %v1790 = vpop.xlane.xlu0 %1789
      %v1791 = vsel %vm1403, %v1787, 0.0
      %1792 = vadd.xlane.f32.xlu0 %v1791
      %v1793 = vpop.xlane.xlu0 %1792
      %v1794 = vrcp.pop %v1790
      %v1795 = vrcp.pop %v1793
      %v1796 = vmul.f32 %v1785, %v1794
      %v1797 = vmul.f32 %v1787, %v1795
      %v1798 = vpack.c.bf16 %v1797, %v1796
      %1800 = vrot.lane.b32.xlu0 %v1723, 32
      %v1801 = vpop.permute.xlu0 %1800
      %v1804 = vsel %vm1403, %v1798, 0
      %1806 = vmatprep.subr.bf16.mxu0 0
      %1807 = vmatpush1.bf16.msra.mxu0 %v1801
      %1808 = vmatprep.subr.bf16.mxu0 0
      %1809 = vmatpush1.bf16.msra.mxu0 0
      %1810 = vmatprep.subr.bf16.mxu0 0
      %1811 = vmatpush1.bf16.msra.mxu0 0
      %1812 = vmatprep.subr.bf16.mxu0 0
      %1813 = vmatpush1.bf16.msra.mxu0 0
      %1814 = vmatprep.subr.bf16.mxu0 0
      %1815 = vmatpush1.bf16.msra.mxu0 0
      %1816 = vmatprep.subr.bf16.mxu0 0
      %1817 = vmatpush1.bf16.msra.mxu0 0
      %1818 = vmatprep.subr.bf16.mxu0 0
      %1819 = vmatpush1.bf16.msra.mxu0 0
      %1820 = vmatprep.subr.bf16.mxu0 0
      %1821 = vmatpush1.bf16.msra.mxu0 0
      %1822 = vmatprep.subr.bf16.mxu0 0
      %1823 = vmatpush1.bf16.msra.mxu0 0
      %1824 = vmatprep.subr.bf16.mxu0 0
      %1825 = vmatpush1.bf16.msra.mxu0 0
      %1826 = vmatprep.subr.bf16.mxu0 0
      %1827 = vmatpush1.bf16.msra.mxu0 0
      %1828 = vmatprep.subr.bf16.mxu0 0
      %1829 = vmatpush1.bf16.msra.mxu0 0
      %1830 = vmatprep.subr.bf16.mxu0 0
      %1831 = vmatpush1.bf16.msra.mxu0 0
      %1832 = vmatprep.subr.bf16.mxu0 0
      %1833 = vmatpush1.bf16.msra.mxu0 0
      %1834 = vmatprep.subr.bf16.mxu0 0
      %1835 = vmatpush1.bf16.msra.mxu0 0
      %1836 = vmatprep.subr.bf16.mxu0 0
      %1837 = vmatpush1.bf16.msra.mxu0 0
      %1838 = vmatprep.mubr.bf16.mxu0 0
      %1839 = vmatmul.mubr.bf16.gmra.mrb[0].mxu0 %v1804
      %v1840 = vpop.f32.mrb[0].mxu0
      %v1841 = vadd.f32 0.0, %v1840
      %v1842 = vpop.f32.mrb[0].mxu0
      %v1843 = vpop.f32.mrb[0].mxu0
      %v1844 = vadd.f32 0.0, %v1843
      %v1845 = vpop.f32.mrb[0].mxu0
      %1846 = vdwg.mxu0
      %1849 = vrot.lane.b32.xlu0 %v1591, 32
      %v1850 = vpop.permute.xlu0 %1849
      %1851 = vrot.lane.b32.xlu0 %v1594, 32
      %v1852 = vpop.permute.xlu0 %1851
      %1857 = vrot.lane.b32.xlu0 %v1716, 64
      %v1858 = vpop.permute.xlu0 %1857
      %1859 = vrot.lane.b32.xlu0 %v1719, 64
      %v1860 = vpop.permute.xlu0 %1859
      %1865 = vrot.lane.b32.xlu0 %v1841, 96
      %v1866 = vpop.permute.xlu0 %1865
      %1867 = vrot.lane.b32.xlu0 %v1844, 96
      %v1868 = vpop.permute.xlu0 %1867
      %v1871 = vsel %vm1355, %v1465, %v1850
      %v1872 = vsel %vm1355, %v1468, %v1852
      %vm1873 = vcmask 523264
      %v1874 = vsel %vm1873, %v1871, %v1858
      %v1875 = vsel %vm1873, %v1872, %v1860
      %vm1876 = vcmask 785408
      %v1877 = vsel %vm1876, %v1874, %v1866
      %v1878 = vsel %vm1876, %v1875, %v1868
      %v1879 = vpack.c.bf16 %v1878, %v1877
      %v1880 = vld [vmem:[%s7] sm:$0xf]
      %v1881 = vld [vmem:[%s7 + $0x4] sm:$0xf]
      %v1882 = vld [vmem:[%s7 + $0x8] sm:$0xf]
      %v1883 = vld [vmem:[%s7 + $0xc] sm:$0xf]
      %v1884 = vld [vmem:[%s7 + $0x10] sm:$0xf]
      %v1885 = vld [vmem:[%s7 + $0x14] sm:$0xf]
      %v1886 = vld [vmem:[%s7 + $0x18] sm:$0xf]
      %v1887 = vld [vmem:[%s7 + $0x1c] sm:$0xf]
      %v1888 = vld [vmem:[%s7 + $0x20] sm:$0xf]
      %v1889 = vld [vmem:[%s7 + $0x24] sm:$0xf]
      %v1890 = vld [vmem:[%s7 + $0x28] sm:$0xf]
      %v1891 = vld [vmem:[%s7 + $0x2c] sm:$0xf]
      %v1892 = vld [vmem:[%s7 + $0x30] sm:$0xf]
      %v1893 = vld [vmem:[%s7 + $0x34] sm:$0xf]
      %v1894 = vld [vmem:[%s7 + $0x38] sm:$0xf]
      %v1895 = vld [vmem:[%s7 + $0x3c] sm:$0xf]
      %v1912 = vunpack.c.l.b16 %v1880
      %v1913 = vunpack.c.l.b16 %v1881
      %v1914 = vunpack.c.l.b16 %v1882
      %v1915 = vunpack.c.l.b16 %v1883
      %v1916 = vunpack.c.l.b16 %v1884
      %v1917 = vunpack.c.l.b16 %v1885
      %v1918 = vunpack.c.l.b16 %v1886
      %v1919 = vunpack.c.l.b16 %v1887
      %v1920 = vunpack.c.l.b16 %v1888
      %v1921 = vunpack.c.l.b16 %v1889
      %v1922 = vunpack.c.l.b16 %v1890
      %v1923 = vunpack.c.l.b16 %v1891
      %v1924 = vunpack.c.l.b16 %v1892
      %v1925 = vunpack.c.l.b16 %v1893
      %v1926 = vunpack.c.l.b16 %v1894
      %v1927 = vunpack.c.l.b16 %v1895
      %v1928 = vpack.c.b16 %v1913, %v1912
      %v1929 = vpack.c.b16 %v1915, %v1914
      %v1930 = vpack.c.b16 %v1917, %v1916
      %v1931 = vpack.c.b16 %v1919, %v1918
      %v1932 = vpack.c.b16 %v1921, %v1920
      %v1933 = vpack.c.b16 %v1923, %v1922
      %v1934 = vpack.c.b16 %v1925, %v1924
      %v1935 = vpack.c.b16 %v1927, %v1926
      %1944 = vmatprep.subr.bf16.mxu0 0
      %1945 = vmatpush1.bf16.msra.mxu0 %v1928
      %1946 = vmatprep.subr.bf16.mxu0 0
      %1947 = vmatpush1.bf16.msra.mxu0 %v1929
      %1948 = vmatprep.subr.bf16.mxu0 0
      %1949 = vmatpush1.bf16.msra.mxu0 %v1930
      %1950 = vmatprep.subr.bf16.mxu0 0
      %1951 = vmatpush1.bf16.msra.mxu0 %v1931
      %1952 = vmatprep.subr.bf16.mxu0 0
      %1953 = vmatpush1.bf16.msra.mxu0 %v1932
      %1954 = vmatprep.subr.bf16.mxu0 0
      %1955 = vmatpush1.bf16.msra.mxu0 %v1933
      %1956 = vmatprep.subr.bf16.mxu0 0
      %1957 = vmatpush1.bf16.msra.mxu0 %v1934
      %1958 = vmatprep.subr.bf16.mxu0 0
      %1959 = vmatpush1.bf16.msra.mxu0 %v1935
      %1960 = vmatprep.subr.bf16.mxu0 0
      %1961 = vmatpush1.bf16.msra.mxu0 0
      %1962 = vmatprep.subr.bf16.mxu0 0
      %1963 = vmatpush1.bf16.msra.mxu0 0
      %1964 = vmatprep.subr.bf16.mxu0 0
      %1965 = vmatpush1.bf16.msra.mxu0 0
      %1966 = vmatprep.subr.bf16.mxu0 0
      %1967 = vmatpush1.bf16.msra.mxu0 0
      %1968 = vmatprep.subr.bf16.mxu0 0
      %1969 = vmatpush1.bf16.msra.mxu0 0
      %1970 = vmatprep.subr.bf16.mxu0 0
      %1971 = vmatpush1.bf16.msra.mxu0 0
      %1972 = vmatprep.subr.bf16.mxu0 0
      %1973 = vmatpush1.bf16.msra.mxu0 0
      %1974 = vmatprep.subr.bf16.mxu0 0
      %1975 = vmatpush1.bf16.msra.mxu0 0
      %1976 = vmatprep.mubr.bf16.mxu0 0
      %1977 = vmatmul.mubr.bf16.gmra.mrb[0].mxu0 %v1879
      %v1978 = vpop.f32.mrb[0].mxu0
      %v1979 = vadd.f32 %v1233, %v1978
      %v1980 = vpop.f32.mrb[0].mxu0
      %v1981 = vpop.f32.mrb[0].mxu0
      %v1982 = vadd.f32 %v1234, %v1981
      %v1983 = vpop.f32.mrb[0].mxu0
      %1984 = vdwg.mxu0
      %v1985 = vld [vmem:[%s8] sm:$0x1]
      %v1986 = vld [vmem:[%s9] sm:$0x1]
      %1987 = vadd.xlane.f32.xlu0 %v1979
      %v1988 = vpop.xlane.xlu0 %1987
      %1989 = vadd.xlane.f32.xlu0 %v1982
      %v1990 = vpop.xlane.xlu0 %1989
      %v1991 = vrcp.pop 128.0
      %v1992 = vmul.f32 %v1988, %v1991
      %v1993 = vmul.f32 %v1990, %v1991
      %v1994 = vsub.f32 %v1979, %v1992
      %v1995 = vsub.f32 %v1982, %v1993
      %v1996 = vmul.f32 %v1994, %v1994
      %v1997 = vmul.f32 %v1995, %v1995
      %1998 = vadd.xlane.f32.xlu0 %v1996
      %v1999 = vpop.xlane.xlu0 %1998
      %2000 = vadd.xlane.f32.xlu0 %v1997
      %v2001 = vpop.xlane.xlu0 %2000
      %v2002 = vmul.f32 %v1999, %v1991
      %v2003 = vmul.f32 %v2001, %v1991
      %v2004 = vadd.f32 %v2002, 1e-06
      %v2005 = vadd.f32 %v2003, 1e-06
      %v2006 = vrsqrt.pop %v2004
      %v2007 = vrsqrt.pop %v2005
      %v2008 = vmul.f32 %v1994, %v2006
      %v2009 = vmul.f32 %v1995, %v2007
      %v2011 = vlaneseq
      %v2012 = vshrl.u32 %v2011, 7
      %v2013 = vsub.s32 0, %v2012
      %v2014 = vrot.slane %v1985, %v2013
      %v2016 = vmul.f32 %v2008, %v2014
      %v2017 = vmul.f32 %v2009, %v2014
      %v2019 = vlaneseq
      %v2020 = vshrl.u32 %v2019, 7
      %v2021 = vsub.s32 0, %v2020
      %v2022 = vrot.slane %v1986, %v2021
      %v2024 = vadd.f32 %v2016, %v2022
      %v2025 = vadd.f32 %v2017, %v2022
      %v2026 = vpack.c.bf16 %v2025, %v2024
      %v2027 = vld [vmem:[%s10] sm:$0xf]
      %v2028 = vld [vmem:[%s10 + $0x4] sm:$0xf]
      %v2029 = vld [vmem:[%s10 + $0x8] sm:$0xf]
      %v2030 = vld [vmem:[%s10 + $0xc] sm:$0xf]
      %v2031 = vld [vmem:[%s10 + $0x10] sm:$0xf]
      %v2032 = vld [vmem:[%s10 + $0x14] sm:$0xf]
      %v2033 = vld [vmem:[%s10 + $0x18] sm:$0xf]
      %v2034 = vld [vmem:[%s10 + $0x1c] sm:$0xf]
      %v2035 = vld [vmem:[%s10 + $0x20] sm:$0xf]
      %v2036 = vld [vmem:[%s10 + $0x24] sm:$0xf]
      %v2037 = vld [vmem:[%s10 + $0x28] sm:$0xf]
      %v2038 = vld [vmem:[%s10 + $0x2c] sm:$0xf]
      %v2039 = vld [vmem:[%s10 + $0x30] sm:$0xf]
      %v2040 = vld [vmem:[%s10 + $0x34] sm:$0xf]
      %v2041 = vld [vmem:[%s10 + $0x38] sm:$0xf]
      %v2042 = vld [vmem:[%s10 + $0x3c] sm:$0xf]
      %v2059 = vunpack.c.l.b16 %v2027
      %v2060 = vunpack.c.l.b16 %v2028
      %v2061 = vunpack.c.l.b16 %v2029
      %v2062 = vunpack.c.l.b16 %v2030
      %v2063 = vunpack.c.l.b16 %v2031
      %v2064 = vunpack.c.l.b16 %v2032
      %v2065 = vunpack.c.l.b16 %v2033
      %v2066 = vunpack.c.l.b16 %v2034
      %v2067 = vunpack.c.l.b16 %v2035
      %v2068 = vunpack.c.l.b16 %v2036
      %v2069 = vunpack.c.l.b16 %v2037
      %v2070 = vunpack.c.l.b16 %v2038
      %v2071 = vunpack.c.l.b16 %v2039
      %v2072 = vunpack.c.l.b16 %v2040
      %v2073 = vunpack.c.l.b16 %v2041
      %v2074 = vunpack.c.l.b16 %v2042
      %v2075 = vpack.c.b16 %v2060, %v2059
      %v2076 = vpack.c.b16 %v2062, %v2061
      %v2077 = vpack.c.b16 %v2064, %v2063
      %v2078 = vpack.c.b16 %v2066, %v2065
      %v2079 = vpack.c.b16 %v2068, %v2067
      %v2080 = vpack.c.b16 %v2070, %v2069
      %v2081 = vpack.c.b16 %v2072, %v2071
      %v2082 = vpack.c.b16 %v2074, %v2073
      %2091 = vmatprep.subr.bf16.mxu0 0
      %2092 = vmatpush1.bf16.msra.mxu0 %v2075
      %2093 = vmatprep.subr.bf16.mxu0 0
      %2094 = vmatpush1.bf16.msra.mxu0 %v2076
      %2095 = vmatprep.subr.bf16.mxu0 0
      %2096 = vmatpush1.bf16.msra.mxu0 %v2077
      %2097 = vmatprep.subr.bf16.mxu0 0
      %2098 = vmatpush1.bf16.msra.mxu0 %v2078
      %2099 = vmatprep.subr.bf16.mxu0 0
      %2100 = vmatpush1.bf16.msra.mxu0 %v2079
      %2101 = vmatprep.subr.bf16.mxu0 0
      %2102 = vmatpush1.bf16.msra.mxu0 %v2080
      %2103 = vmatprep.subr.bf16.mxu0 0
      %2104 = vmatpush1.bf16.msra.mxu0 %v2081
      %2105 = vmatprep.subr.bf16.mxu0 0
      %2106 = vmatpush1.bf16.msra.mxu0 %v2082
      %2107 = vmatprep.subr.bf16.mxu0 0
      %2108 = vmatpush1.bf16.msra.mxu0 0
      %2109 = vmatprep.subr.bf16.mxu0 0
      %2110 = vmatpush1.bf16.msra.mxu0 0
      %2111 = vmatprep.subr.bf16.mxu0 0
      %2112 = vmatpush1.bf16.msra.mxu0 0
      %2113 = vmatprep.subr.bf16.mxu0 0
      %2114 = vmatpush1.bf16.msra.mxu0 0
      %2115 = vmatprep.subr.bf16.mxu0 0
      %2116 = vmatpush1.bf16.msra.mxu0 0
      %2117 = vmatprep.subr.bf16.mxu0 0
      %2118 = vmatpush1.bf16.msra.mxu0 0
      %2119 = vmatprep.subr.bf16.mxu0 0
      %2120 = vmatpush1.bf16.msra.mxu0 0
      %2121 = vmatprep.subr.bf16.mxu0 0
      %2122 = vmatpush1.bf16.msra.mxu0 0
      %2123 = vmatprep.mubr.bf16.mxu0 0
      %2124 = vmatmul.mubr.bf16.gmra.mrb[0].mxu0 %v2026
      %v2125 = vpop.f32.mrb[0].mxu0
      %v2126 = vadd.f32 0.0, %v2125
      %v2127 = vpop.f32.mrb[0].mxu0
      %v2128 = vpop.f32.mrb[0].mxu0
      %v2129 = vadd.f32 0.0, %v2128
      %v2130 = vpop.f32.mrb[0].mxu0
      %2131 = vdwg.mxu0
      %v2132 = vpack.c.bf16 %v2129, %v2126
      %v2133 = vld [vmem:[#allocation4] sm:$0xff]
      %v2134 = vld [vmem:[#allocation5] sm:$0xff]
      %v2135 = vlaneseq
      %v2136 = vshrl.u32 %v2135, 7
      %v2137 = vsub.s32 0, %v2136
      %v2138 = vrot.slane %v1240, %v2137
      %v2140 = vsel %vm1355, %v2132, 0
      %v2143 = vsel %vm1355, %v2133, 0
      %2145 = vmatprep.subr.bf16.mxu0 0
      %2146 = vmatpush1.bf16.xpose.msra.mxu0 %v2143
      %2147 = vmatprep.subr.bf16.mxu0 0
      %2148 = vmatpush1.bf16.xpose.msra.mxu0 0
      %2149 = vmatprep.subr.bf16.mxu0 0
      %2150 = vmatpush1.bf16.xpose.msra.mxu0 0
      %2151 = vmatprep.subr.bf16.mxu0 0
      %2152 = vmatpush1.bf16.xpose.msra.mxu0 0
      %2153 = vmatprep.subr.bf16.mxu0 0
      %2154 = vmatpush1.bf16.xpose.msra.mxu0 0
      %2155 = vmatprep.subr.bf16.mxu0 0
      %2156 = vmatpush1.bf16.xpose.msra.mxu0 0
      %2157 = vmatprep.subr.bf16.mxu0 0
      %2158 = vmatpush1.bf16.xpose.msra.mxu0 0
      %2159 = vmatprep.subr.bf16.mxu0 0
      %2160 = vmatpush1.bf16.xpose.msra.mxu0 0
      %2161 = vmatprep.subr.bf16.mxu0 0
      %2162 = vmatpush1.bf16.xpose.msra.mxu0 0
      %2163 = vmatprep.subr.bf16.mxu0 0
      %2164 = vmatpush1.bf16.xpose.msra.mxu0 0
      %2165 = vmatprep.subr.bf16.mxu0 0
      %2166 = vmatpush1.bf16.xpose.msra.mxu0 0
      %2167 = vmatprep.subr.bf16.mxu0 0
      %2168 = vmatpush1.bf16.xpose.msra.mxu0 0
      %2169 = vmatprep.subr.bf16.mxu0 0
      %2170 = vmatpush1.bf16.xpose.msra.mxu0 0
      %2171 = vmatprep.subr.bf16.mxu0 0
      %2172 = vmatpush1.bf16.xpose.msra.mxu0 0
      %2173 = vmatprep.subr.bf16.mxu0 0
      %2174 = vmatpush1.bf16.xpose.msra.mxu0 0
      %2175 = vmatprep.subr.bf16.mxu0 0
      %2176 = vmatpush1.bf16.xpose.msra.mxu0 0
      %2177 = vmatprep.mubr.bf16.mxu0 0
      %2178 = vmatmul.mubr.bf16.gmra.mrb[0].mxu0 %v2140
      %v2179 = vpop.f32.mrb[0].mxu0
      %v2180 = vadd.f32 %v2138, %v2179
      %v2181 = vpop.f32.mrb[0].mxu0
      %v2182 = vpop.f32.mrb[0].mxu0
      %v2183 = vadd.f32 %v2138, %v2182
      %v2184 = vpop.f32.mrb[0].mxu0
      %2185 = vdwg.mxu0
      %v2186 = vsel %vm1403, %v2180, -inf
      %2187 = vmax.xlane.f32.xlu0 %v2186
      %v2188 = vpop.xlane.xlu0 %2187
      %v2189 = vsel %vm1403, %v2183, -inf
      %2190 = vmax.xlane.f32.xlu0 %v2189
      %v2191 = vpop.xlane.xlu0 %2190
      %v2192 = vsub.f32 %v2180, %v2188
      %v2193 = vsub.f32 %v2183, %v2191
      %v2194 = vmul.f32 %v2192, 1.442695
      %v2195 = vpow.pop %v2194
      %v2196 = vmul.f32 %v2193, 1.442695
      %v2197 = vpow.pop %v2196
      %v2198 = vsel %vm1403, %v2195, 0.0
      %2199 = vadd.xlane.f32.xlu0 %v2198
      %v2200 = vpop.xlane.xlu0 %2199
      %v2201 = vsel %vm1403, %v2197, 0.0
      %2202 = vadd.xlane.f32.xlu0 %v2201
      %v2203 = vpop.xlane.xlu0 %2202
      %v2204 = vrcp.pop %v2200
      %v2205 = vrcp.pop %v2203
      %v2206 = vmul.f32 %v2195, %v2204
      %v2207 = vmul.f32 %v2197, %v2205
      %v2208 = vpack.c.bf16 %v2207, %v2206
      %v2210 = vsel %vm1403, %v2208, 0
      %2212 = vmatprep.subr.bf16.mxu0 0
      %2213 = vmatpush1.bf16.msra.mxu0 %v2134
      %2214 = vmatprep.subr.bf16.mxu0 0
      %2215 = vmatpush1.bf16.msra.mxu0 0
      %2216 = vmatprep.subr.bf16.mxu0 0
      %2217 = vmatpush1.bf16.msra.mxu0 0
      %2218 = vmatprep.subr.bf16.mxu0 0
      %2219 = vmatpush1.bf16.msra.mxu0 0
      %2220 = vmatprep.subr.bf16.mxu0 0
      %2221 = vmatpush1.bf16.msra.mxu0 0
      %2222 = vmatprep.subr.bf16.mxu0 0
      %2223 = vmatpush1.bf16.msra.mxu0 0
      %2224 = vmatprep.subr.bf16.mxu0 0
      %2225 = vmatpush1.bf16.msra.mxu0 0
      %2226 = vmatprep.subr.bf16.mxu0 0
      %2227 = vmatpush1.bf16.msra.mxu0 0
      %2228 = vmatprep.subr.bf16.mxu0 0
      %2229 = vmatpush1.bf16.msra.mxu0 0
      %2230 = vmatprep.subr.bf16.mxu0 0
      %2231 = vmatpush1.bf16.msra.mxu0 0
      %2232 = vmatprep.subr.bf16.mxu0 0
      %2233 = vmatpush1.bf16.msra.mxu0 0
      %2234 = vmatprep.subr.bf16.mxu0 0
      %2235 = vmatpush1.bf16.msra.mxu0 0
      %2236 = vmatprep.subr.bf16.mxu0 0
      %2237 = vmatpush1.bf16.msra.mxu0 0
      %2238 = vmatprep.subr.bf16.mxu0 0
      %2239 = vmatpush1.bf16.msra.mxu0 0
      %2240 = vmatprep.subr.bf16.mxu0 0
      %2241 = vmatpush1.bf16.msra.mxu0 0
      %2242 = vmatprep.subr.bf16.mxu0 0
      %2243 = vmatpush1.bf16.msra.mxu0 0
      %2244 = vmatprep.mubr.bf16.mxu0 0
      %2245 = vmatmul.mubr.bf16.gmra.mrb[0].mxu0 %v2210
      %v2246 = vpop.f32.mrb[0].mxu0
      %v2247 = vadd.f32 0.0, %v2246
      %v2248 = vpop.f32.mrb[0].mxu0
      %v2249 = vpop.f32.mrb[0].mxu0
      %v2250 = vadd.f32 0.0, %v2249
      %v2251 = vpop.f32.mrb[0].mxu0
      %2252 = vdwg.mxu0
      %v2253 = vld [vmem:[#allocation4] sm:$0xff]
      %v2254 = vld [vmem:[#allocation5] sm:$0xff]
      %2256 = vrot.lane.b32.xlu0 %v2132, 96
      %v2257 = vpop.permute.xlu0 %2256
      %2259 = vrot.lane.b32.xlu0 %v2253, 96
      %v2260 = vpop.permute.xlu0 %2259
      %v2262 = vsel %vm1355, %v2257, 0
      %v2265 = vsel %vm1355, %v2260, 0
      %2267 = vmatprep.subr.bf16.mxu0 0
      %2268 = vmatpush1.bf16.xpose.msra.mxu0 %v2265
      %2269 = vmatprep.subr.bf16.mxu0 0
      %2270 = vmatpush1.bf16.xpose.msra.mxu0 0
      %2271 = vmatprep.subr.bf16.mxu0 0
      %2272 = vmatpush1.bf16.xpose.msra.mxu0 0
      %2273 = vmatprep.subr.bf16.mxu0 0
      %2274 = vmatpush1.bf16.xpose.msra.mxu0 0
      %2275 = vmatprep.subr.bf16.mxu0 0
      %2276 = vmatpush1.bf16.xpose.msra.mxu0 0
      %2277 = vmatprep.subr.bf16.mxu0 0
      %2278 = vmatpush1.bf16.xpose.msra.mxu0 0
      %2279 = vmatprep.subr.bf16.mxu0 0
      %2280 = vmatpush1.bf16.xpose.msra.mxu0 0
      %2281 = vmatprep.subr.bf16.mxu0 0
      %2282 = vmatpush1.bf16.xpose.msra.mxu0 0
      %2283 = vmatprep.subr.bf16.mxu0 0
      %2284 = vmatpush1.bf16.xpose.msra.mxu0 0
      %2285 = vmatprep.subr.bf16.mxu0 0
      %2286 = vmatpush1.bf16.xpose.msra.mxu0 0
      %2287 = vmatprep.subr.bf16.mxu0 0
      %2288 = vmatpush1.bf16.xpose.msra.mxu0 0
      %2289 = vmatprep.subr.bf16.mxu0 0
      %2290 = vmatpush1.bf16.xpose.msra.mxu0 0
      %2291 = vmatprep.subr.bf16.mxu0 0
      %2292 = vmatpush1.bf16.xpose.msra.mxu0 0
      %2293 = vmatprep.subr.bf16.mxu0 0
      %2294 = vmatpush1.bf16.xpose.msra.mxu0 0
      %2295 = vmatprep.subr.bf16.mxu0 0
      %2296 = vmatpush1.bf16.xpose.msra.mxu0 0
      %2297 = vmatprep.subr.bf16.mxu0 0
      %2298 = vmatpush1.bf16.xpose.msra.mxu0 0
      %2299 = vmatprep.mubr.bf16.mxu0 0
      %2300 = vmatmul.mubr.bf16.gmra.mrb[0].mxu0 %v2262
      %v2301 = vpop.f32.mrb[0].mxu0
      %v2302 = vadd.f32 %v2138, %v2301
      %v2303 = vpop.f32.mrb[0].mxu0
      %v2304 = vpop.f32.mrb[0].mxu0
      %v2305 = vadd.f32 %v2138, %v2304
      %v2306 = vpop.f32.mrb[0].mxu0
      %2307 = vdwg.mxu0
      %v2308 = vsel %vm1403, %v2302, -inf
      %2309 = vmax.xlane.f32.xlu0 %v2308
      %v2310 = vpop.xlane.xlu0 %2309
      %v2311 = vsel %vm1403, %v2305, -inf
      %2312 = vmax.xlane.f32.xlu0 %v2311
      %v2313 = vpop.xlane.xlu0 %2312
      %v2314 = vsub.f32 %v2302, %v2310
      %v2315 = vsub.f32 %v2305, %v2313
      %v2316 = vmul.f32 %v2314, 1.442695
      %v2317 = vpow.pop %v2316
      %v2318 = vmul.f32 %v2315, 1.442695
      %v2319 = vpow.pop %v2318
      %v2320 = vsel %vm1403, %v2317, 0.0
      %2321 = vadd.xlane.f32.xlu0 %v2320
      %v2322 = vpop.xlane.xlu0 %2321
      %v2323 = vsel %vm1403, %v2319, 0.0
      %2324 = vadd.xlane.f32.xlu0 %v2323
      %v2325 = vpop.xlane.xlu0 %2324
      %v2326 = vrcp.pop %v2322
      %v2327 = vrcp.pop %v2325
      %v2328 = vmul.f32 %v2317, %v2326
      %v2329 = vmul.f32 %v2319, %v2327
      %v2330 = vpack.c.bf16 %v2329, %v2328
      %2332 = vrot.lane.b32.xlu0 %v2254, 96
      %v2333 = vpop.permute.xlu0 %2332
      %v2336 = vsel %vm1403, %v2330, 0
      %2338 = vmatprep.subr.bf16.mxu0 0
      %2339 = vmatpush1.bf16.msra.mxu0 %v2333
      %2340 = vmatprep.subr.bf16.mxu0 0
      %2341 = vmatpush1.bf16.msra.mxu0 0
      %2342 = vmatprep.subr.bf16.mxu0 0
      %2343 = vmatpush1.bf16.msra.mxu0 0
      %2344 = vmatprep.subr.bf16.mxu0 0
      %2345 = vmatpush1.bf16.msra.mxu0 0
      %2346 = vmatprep.subr.bf16.mxu0 0
      %2347 = vmatpush1.bf16.msra.mxu0 0
      %2348 = vmatprep.subr.bf16.mxu0 0
      %2349 = vmatpush1.bf16.msra.mxu0 0
      %2350 = vmatprep.subr.bf16.mxu0 0
      %2351 = vmatpush1.bf16.msra.mxu0 0
      %2352 = vmatprep.subr.bf16.mxu0 0
      %2353 = vmatpush1.bf16.msra.mxu0 0
      %2354 = vmatprep.subr.bf16.mxu0 0
      %2355 = vmatpush1.bf16.msra.mxu0 0
      %2356 = vmatprep.subr.bf16.mxu0 0
      %2357 = vmatpush1.bf16.msra.mxu0 0
      %2358 = vmatprep.subr.bf16.mxu0 0
      %2359 = vmatpush1.bf16.msra.mxu0 0
      %2360 = vmatprep.subr.bf16.mxu0 0
      %2361 = vmatpush1.bf16.msra.mxu0 0
      %2362 = vmatprep.subr.bf16.mxu0 0
      %2363 = vmatpush1.bf16.msra.mxu0 0
      %2364 = vmatprep.subr.bf16.mxu0 0
      %2365 = vmatpush1.bf16.msra.mxu0 0
      %2366 = vmatprep.subr.bf16.mxu0 0
      %2367 = vmatpush1.bf16.msra.mxu0 0
      %2368 = vmatprep.subr.bf16.mxu0 0
      %2369 = vmatpush1.bf16.msra.mxu0 0
      %2370 = vmatprep.mubr.bf16.mxu0 0
      %2371 = vmatmul.mubr.bf16.gmra.mrb[0].mxu0 %v2336
      %v2372 = vpop.f32.mrb[0].mxu0
      %v2373 = vadd.f32 0.0, %v2372
      %v2374 = vpop.f32.mrb[0].mxu0
      %v2375 = vpop.f32.mrb[0].mxu0
      %v2376 = vadd.f32 0.0, %v2375
      %v2377 = vpop.f32.mrb[0].mxu0
      %2378 = vdwg.mxu0
      %v2379 = vld [vmem:[#allocation4] sm:$0xff]
      %v2380 = vld [vmem:[#allocation5] sm:$0xff]
      %2381 = vrot.lane.b32.xlu0 %v2132, 64
      %v2382 = vpop.permute.xlu0 %2381
      %2384 = vrot.lane.b32.xlu0 %v2379, 64
      %v2385 = vpop.permute.xlu0 %2384
      %v2387 = vsel %vm1355, %v2382, 0
      %v2390 = vsel %vm1355, %v2385, 0
      %2392 = vmatprep.subr.bf16.mxu0 0
      %2393 = vmatpush1.bf16.xpose.msra.mxu0 %v2390
      %2394 = vmatprep.subr.bf16.mxu0 0
      %2395 = vmatpush1.bf16.xpose.msra.mxu0 0
      %2396 = vmatprep.subr.bf16.mxu0 0
      %2397 = vmatpush1.bf16.xpose.msra.mxu0 0
      %2398 = vmatprep.subr.bf16.mxu0 0
      %2399 = vmatpush1.bf16.xpose.msra.mxu0 0
      %2400 = vmatprep.subr.bf16.mxu0 0
      %2401 = vmatpush1.bf16.xpose.msra.mxu0 0
      %2402 = vmatprep.subr.bf16.mxu0 0
      %2403 = vmatpush1.bf16.xpose.msra.mxu0 0
      %2404 = vmatprep.subr.bf16.mxu0 0
      %2405 = vmatpush1.bf16.xpose.msra.mxu0 0
      %2406 = vmatprep.subr.bf16.mxu0 0
      %2407 = vmatpush1.bf16.xpose.msra.mxu0 0
      %2408 = vmatprep.subr.bf16.mxu0 0
      %2409 = vmatpush1.bf16.xpose.msra.mxu0 0
      %2410 = vmatprep.subr.bf16.mxu0 0
      %2411 = vmatpush1.bf16.xpose.msra.mxu0 0
      %2412 = vmatprep.subr.bf16.mxu0 0
      %2413 = vmatpush1.bf16.xpose.msra.mxu0 0
      %2414 = vmatprep.subr.bf16.mxu0 0
      %2415 = vmatpush1.bf16.xpose.msra.mxu0 0
      %2416 = vmatprep.subr.bf16.mxu0 0
      %2417 = vmatpush1.bf16.xpose.msra.mxu0 0
      %2418 = vmatprep.subr.bf16.mxu0 0
      %2419 = vmatpush1.bf16.xpose.msra.mxu0 0
      %2420 = vmatprep.subr.bf16.mxu0 0
      %2421 = vmatpush1.bf16.xpose.msra.mxu0 0
      %2422 = vmatprep.subr.bf16.mxu0 0
      %2423 = vmatpush1.bf16.xpose.msra.mxu0 0
      %2424 = vmatprep.mubr.bf16.mxu0 0
      %2425 = vmatmul.mubr.bf16.gmra.mrb[0].mxu0 %v2387
      %v2426 = vpop.f32.mrb[0].mxu0
      %v2427 = vadd.f32 %v2138, %v2426
      %v2428 = vpop.f32.mrb[0].mxu0
      %v2429 = vpop.f32.mrb[0].mxu0
      %v2430 = vadd.f32 %v2138, %v2429
      %v2431 = vpop.f32.mrb[0].mxu0
      %2432 = vdwg.mxu0
      %v2433 = vsel %vm1403, %v2427, -inf
      %2434 = vmax.xlane.f32.xlu0 %v2433
      %v2435 = vpop.xlane.xlu0 %2434
      %v2436 = vsel %vm1403, %v2430, -inf
      %2437 = vmax.xlane.f32.xlu0 %v2436
      %v2438 = vpop.xlane.xlu0 %2437
      %v2439 = vsub.f32 %v2427, %v2435
      %v2440 = vsub.f32 %v2430, %v2438
      %v2441 = vmul.f32 %v2439, 1.442695
      %v2442 = vpow.pop %v2441
      %v2443 = vmul.f32 %v2440, 1.442695
      %v2444 = vpow.pop %v2443
      %v2445 = vsel %vm1403, %v2442, 0.0
      %2446 = vadd.xlane.f32.xlu0 %v2445
      %v2447 = vpop.xlane.xlu0 %2446
      %v2448 = vsel %vm1403, %v2444, 0.0
      %2449 = vadd.xlane.f32.xlu0 %v2448
      %v2450 = vpop.xlane.xlu0 %2449
      %v2451 = vrcp.pop %v2447
      %v2452 = vrcp.pop %v2450
      %v2453 = vmul.f32 %v2442, %v2451
      %v2454 = vmul.f32 %v2444, %v2452
      %v2455 = vpack.c.bf16 %v2454, %v2453
      %2457 = vrot.lane.b32.xlu0 %v2380, 64
      %v2458 = vpop.permute.xlu0 %2457
      %v2461 = vsel %vm1403, %v2455, 0
      %2463 = vmatprep.subr.bf16.mxu0 0
      %2464 = vmatpush1.bf16.msra.mxu0 %v2458
      %2465 = vmatprep.subr.bf16.mxu0 0
      %2466 = vmatpush1.bf16.msra.mxu0 0
      %2467 = vmatprep.subr.bf16.mxu0 0
      %2468 = vmatpush1.bf16.msra.mxu0 0
      %2469 = vmatprep.subr.bf16.mxu0 0
      %2470 = vmatpush1.bf16.msra.mxu0 0
      %2471 = vmatprep.subr.bf16.mxu0 0
      %2472 = vmatpush1.bf16.msra.mxu0 0
      %2473 = vmatprep.subr.bf16.mxu0 0
      %2474 = vmatpush1.bf16.msra.mxu0 0
      %2475 = vmatprep.subr.bf16.mxu0 0
      %2476 = vmatpush1.bf16.msra.mxu0 0
      %2477 = vmatprep.subr.bf16.mxu0 0
      %2478 = vmatpush1.bf16.msra.mxu0 0
      %2479 = vmatprep.subr.bf16.mxu0 0
      %2480 = vmatpush1.bf16.msra.mxu0 0
      %2481 = vmatprep.subr.bf16.mxu0 0
      %2482 = vmatpush1.bf16.msra.mxu0 0
      %2483 = vmatprep.subr.bf16.mxu0 0
      %2484 = vmatpush1.bf16.msra.mxu0 0
      %2485 = vmatprep.subr.bf16.mxu0 0
      %2486 = vmatpush1.bf16.msra.mxu0 0
      %2487 = vmatprep.subr.bf16.mxu0 0
      %2488 = vmatpush1.bf16.msra.mxu0 0
      %2489 = vmatprep.subr.bf16.mxu0 0
      %2490 = vmatpush1.bf16.msra.mxu0 0
      %2491 = vmatprep.subr.bf16.mxu0 0
      %2492 = vmatpush1.bf16.msra.mxu0 0
      %2493 = vmatprep.subr.bf16.mxu0 0
      %2494 = vmatpush1.bf16.msra.mxu0 0
      %2495 = vmatprep.mubr.bf16.mxu0 0
      %2496 = vmatmul.mubr.bf16.gmra.mrb[0].mxu0 %v2461
      %v2497 = vpop.f32.mrb[0].mxu0
      %v2498 = vadd.f32 0.0, %v2497
      %v2499 = vpop.f32.mrb[0].mxu0
      %v2500 = vpop.f32.mrb[0].mxu0
      %v2501 = vadd.f32 0.0, %v2500
      %v2502 = vpop.f32.mrb[0].mxu0
      %2503 = vdwg.mxu0
      %v2504 = vld [vmem:[#allocation4] sm:$0xff]
      %v2505 = vld [vmem:[#allocation5] sm:$0xff]
      %2506 = vrot.lane.b32.xlu0 %v2132, 32
      %v2507 = vpop.permute.xlu0 %2506
      %2509 = vrot.lane.b32.xlu0 %v2504, 32
      %v2510 = vpop.permute.xlu0 %2509
      %v2512 = vsel %vm1355, %v2507, 0
      %v2515 = vsel %vm1355, %v2510, 0
      %2517 = vmatprep.subr.bf16.mxu0 0
      %2518 = vmatpush1.bf16.xpose.msra.mxu0 %v2515
      %2519 = vmatprep.subr.bf16.mxu0 0
      %2520 = vmatpush1.bf16.xpose.msra.mxu0 0
      %2521 = vmatprep.subr.bf16.mxu0 0
      %2522 = vmatpush1.bf16.xpose.msra.mxu0 0
      %2523 = vmatprep.subr.bf16.mxu0 0
      %2524 = vmatpush1.bf16.xpose.msra.mxu0 0
      %2525 = vmatprep.subr.bf16.mxu0 0
      %2526 = vmatpush1.bf16.xpose.msra.mxu0 0
      %2527 = vmatprep.subr.bf16.mxu0 0
      %2528 = vmatpush1.bf16.xpose.msra.mxu0 0
      %2529 = vmatprep.subr.bf16.mxu0 0
      %2530 = vmatpush1.bf16.xpose.msra.mxu0 0
      %2531 = vmatprep.subr.bf16.mxu0 0
      %2532 = vmatpush1.bf16.xpose.msra.mxu0 0
      %2533 = vmatprep.subr.bf16.mxu0 0
      %2534 = vmatpush1.bf16.xpose.msra.mxu0 0
      %2535 = vmatprep.subr.bf16.mxu0 0
      %2536 = vmatpush1.bf16.xpose.msra.mxu0 0
      %2537 = vmatprep.subr.bf16.mxu0 0
      %2538 = vmatpush1.bf16.xpose.msra.mxu0 0
      %2539 = vmatprep.subr.bf16.mxu0 0
      %2540 = vmatpush1.bf16.xpose.msra.mxu0 0
      %2541 = vmatprep.subr.bf16.mxu0 0
      %2542 = vmatpush1.bf16.xpose.msra.mxu0 0
      %2543 = vmatprep.subr.bf16.mxu0 0
      %2544 = vmatpush1.bf16.xpose.msra.mxu0 0
      %2545 = vmatprep.subr.bf16.mxu0 0
      %2546 = vmatpush1.bf16.xpose.msra.mxu0 0
      %2547 = vmatprep.subr.bf16.mxu0 0
      %2548 = vmatpush1.bf16.xpose.msra.mxu0 0
      %2549 = vmatprep.mubr.bf16.mxu0 0
      %2550 = vmatmul.mubr.bf16.gmra.mrb[0].mxu0 %v2512
      %v2551 = vpop.f32.mrb[0].mxu0
      %v2552 = vadd.f32 %v2138, %v2551
      %v2553 = vpop.f32.mrb[0].mxu0
      %v2554 = vpop.f32.mrb[0].mxu0
      %v2555 = vadd.f32 %v2138, %v2554
      %v2556 = vpop.f32.mrb[0].mxu0
      %2557 = vdwg.mxu0
      %v2558 = vsel %vm1403, %v2552, -inf
      %2559 = vmax.xlane.f32.xlu0 %v2558
      %v2560 = vpop.xlane.xlu0 %2559
      %v2561 = vsel %vm1403, %v2555, -inf
      %2562 = vmax.xlane.f32.xlu0 %v2561
      %v2563 = vpop.xlane.xlu0 %2562
      %v2564 = vsub.f32 %v2552, %v2560
      %v2565 = vsub.f32 %v2555, %v2563
      %v2566 = vmul.f32 %v2564, 1.442695
      %v2567 = vpow.pop %v2566
      %v2568 = vmul.f32 %v2565, 1.442695
      %v2569 = vpow.pop %v2568
      %v2570 = vsel %vm1403, %v2567, 0.0
      %2571 = vadd.xlane.f32.xlu0 %v2570
      %v2572 = vpop.xlane.xlu0 %2571
      %v2573 = vsel %vm1403, %v2569, 0.0
      %2574 = vadd.xlane.f32.xlu0 %v2573
      %v2575 = vpop.xlane.xlu0 %2574
      %v2576 = vrcp.pop %v2572
      %v2577 = vrcp.pop %v2575
      %v2578 = vmul.f32 %v2567, %v2576
      %v2579 = vmul.f32 %v2569, %v2577
      %v2580 = vpack.c.bf16 %v2579, %v2578
      %2582 = vrot.lane.b32.xlu0 %v2505, 32
      %v2583 = vpop.permute.xlu0 %2582
      %v2586 = vsel %vm1403, %v2580, 0
      %2588 = vmatprep.subr.bf16.mxu0 0
      %2589 = vmatpush1.bf16.msra.mxu0 %v2583
      %2590 = vmatprep.subr.bf16.mxu0 0
      %2591 = vmatpush1.bf16.msra.mxu0 0
      %2592 = vmatprep.subr.bf16.mxu0 0
      %2593 = vmatpush1.bf16.msra.mxu0 0
      %2594 = vmatprep.subr.bf16.mxu0 0
      %2595 = vmatpush1.bf16.msra.mxu0 0
      %2596 = vmatprep.subr.bf16.mxu0 0
      %2597 = vmatpush1.bf16.msra.mxu0 0
      %2598 = vmatprep.subr.bf16.mxu0 0
      %2599 = vmatpush1.bf16.msra.mxu0 0
      %2600 = vmatprep.subr.bf16.mxu0 0
      %2601 = vmatpush1.bf16.msra.mxu0 0
      %2602 = vmatprep.subr.bf16.mxu0 0
      %2603 = vmatpush1.bf16.msra.mxu0 0
      %2604 = vmatprep.subr.bf16.mxu0 0
      %2605 = vmatpush1.bf16.msra.mxu0 0
      %2606 = vmatprep.subr.bf16.mxu0 0
      %2607 = vmatpush1.bf16.msra.mxu0 0
      %2608 = vmatprep.subr.bf16.mxu0 0
      %2609 = vmatpush1.bf16.msra.mxu0 0
      %2610 = vmatprep.subr.bf16.mxu0 0
      %2611 = vmatpush1.bf16.msra.mxu0 0
      %2612 = vmatprep.subr.bf16.mxu0 0
      %2613 = vmatpush1.bf16.msra.mxu0 0
      %2614 = vmatprep.subr.bf16.mxu0 0
      %2615 = vmatpush1.bf16.msra.mxu0 0
      %2616 = vmatprep.subr.bf16.mxu0 0
      %2617 = vmatpush1.bf16.msra.mxu0 0
      %2618 = vmatprep.subr.bf16.mxu0 0
      %2619 = vmatpush1.bf16.msra.mxu0 0
      %2620 = vmatprep.mubr.bf16.mxu0 0
      %2621 = vmatmul.mubr.bf16.gmra.mrb[0].mxu0 %v2586
      %v2622 = vpop.f32.mrb[0].mxu0
      %v2623 = vadd.f32 0.0, %v2622
      %v2624 = vpop.f32.mrb[0].mxu0
      %v2625 = vpop.f32.mrb[0].mxu0
      %v2626 = vadd.f32 0.0, %v2625
      %v2627 = vpop.f32.mrb[0].mxu0
      %2628 = vdwg.mxu0
      %2631 = vrot.lane.b32.xlu0 %v2373, 32
      %v2632 = vpop.permute.xlu0 %2631
      %2633 = vrot.lane.b32.xlu0 %v2376, 32
      %v2634 = vpop.permute.xlu0 %2633
      %2639 = vrot.lane.b32.xlu0 %v2498, 64
      %v2640 = vpop.permute.xlu0 %2639
      %2641 = vrot.lane.b32.xlu0 %v2501, 64
      %v2642 = vpop.permute.xlu0 %2641
      %2647 = vrot.lane.b32.xlu0 %v2623, 96
      %v2648 = vpop.permute.xlu0 %2647
      %2649 = vrot.lane.b32.xlu0 %v2626, 96
      %v2650 = vpop.permute.xlu0 %2649
      %v2653 = vsel %vm1355, %v2247, %v2632
      %v2654 = vsel %vm1355, %v2250, %v2634
      %v2655 = vsel %vm1873, %v2653, %v2640
      %v2656 = vsel %vm1873, %v2654, %v2642
      %v2657 = vsel %vm1876, %v2655, %v2648
      %v2658 = vsel %vm1876, %v2656, %v2650
      %v2659 = vpack.c.bf16 %v2658, %v2657
      %v2660 = vld [vmem:[%s13] sm:$0xf]
      %v2661 = vld [vmem:[%s13 + $0x4] sm:$0xf]
      %v2662 = vld [vmem:[%s13 + $0x8] sm:$0xf]
      %v2663 = vld [vmem:[%s13 + $0xc] sm:$0xf]
      %v2664 = vld [vmem:[%s13 + $0x10] sm:$0xf]
      %v2665 = vld [vmem:[%s13 + $0x14] sm:$0xf]
      %v2666 = vld [vmem:[%s13 + $0x18] sm:$0xf]
      %v2667 = vld [vmem:[%s13 + $0x1c] sm:$0xf]
      %v2668 = vld [vmem:[%s13 + $0x20] sm:$0xf]
      %v2669 = vld [vmem:[%s13 + $0x24] sm:$0xf]
      %v2670 = vld [vmem:[%s13 + $0x28] sm:$0xf]
      %v2671 = vld [vmem:[%s13 + $0x2c] sm:$0xf]
      %v2672 = vld [vmem:[%s13 + $0x30] sm:$0xf]
      %v2673 = vld [vmem:[%s13 + $0x34] sm:$0xf]
      %v2674 = vld [vmem:[%s13 + $0x38] sm:$0xf]
      %v2675 = vld [vmem:[%s13 + $0x3c] sm:$0xf]
      %v2692 = vunpack.c.l.b16 %v2660
      %v2693 = vunpack.c.l.b16 %v2661
      %v2694 = vunpack.c.l.b16 %v2662
      %v2695 = vunpack.c.l.b16 %v2663
      %v2696 = vunpack.c.l.b16 %v2664
      %v2697 = vunpack.c.l.b16 %v2665
      %v2698 = vunpack.c.l.b16 %v2666
      %v2699 = vunpack.c.l.b16 %v2667
      %v2700 = vunpack.c.l.b16 %v2668
      %v2701 = vunpack.c.l.b16 %v2669
      %v2702 = vunpack.c.l.b16 %v2670
      %v2703 = vunpack.c.l.b16 %v2671
      %v2704 = vunpack.c.l.b16 %v2672
      %v2705 = vunpack.c.l.b16 %v2673
      %v2706 = vunpack.c.l.b16 %v2674
      %v2707 = vunpack.c.l.b16 %v2675
      %v2708 = vpack.c.b16 %v2693, %v2692
      %v2709 = vpack.c.b16 %v2695, %v2694
      %v2710 = vpack.c.b16 %v2697, %v2696
      %v2711 = vpack.c.b16 %v2699, %v2698
      %v2712 = vpack.c.b16 %v2701, %v2700
      %v2713 = vpack.c.b16 %v2703, %v2702
      %v2714 = vpack.c.b16 %v2705, %v2704
      %v2715 = vpack.c.b16 %v2707, %v2706
      %2724 = vmatprep.subr.bf16.mxu0 0
      %2725 = vmatpush1.bf16.msra.mxu0 %v2708
      %2726 = vmatprep.subr.bf16.mxu0 0
      %2727 = vmatpush1.bf16.msra.mxu0 %v2709
      %2728 = vmatprep.subr.bf16.mxu0 0
      %2729 = vmatpush1.bf16.msra.mxu0 %v2710
      %2730 = vmatprep.subr.bf16.mxu0 0
      %2731 = vmatpush1.bf16.msra.mxu0 %v2711
      %2732 = vmatprep.subr.bf16.mxu0 0
      %2733 = vmatpush1.bf16.msra.mxu0 %v2712
      %2734 = vmatprep.subr.bf16.mxu0 0
      %2735 = vmatpush1.bf16.msra.mxu0 %v2713
      %2736 = vmatprep.subr.bf16.mxu0 0
      %2737 = vmatpush1.bf16.msra.mxu0 %v2714
      %2738 = vmatprep.subr.bf16.mxu0 0
      %2739 = vmatpush1.bf16.msra.mxu0 %v2715
      %2740 = vmatprep.subr.bf16.mxu0 0
      %2741 = vmatpush1.bf16.msra.mxu0 0
      %2742 = vmatprep.subr.bf16.mxu0 0
      %2743 = vmatpush1.bf16.msra.mxu0 0
      %2744 = vmatprep.subr.bf16.mxu0 0
      %2745 = vmatpush1.bf16.msra.mxu0 0
      %2746 = vmatprep.subr.bf16.mxu0 0
      %2747 = vmatpush1.bf16.msra.mxu0 0
      %2748 = vmatprep.subr.bf16.mxu0 0
      %2749 = vmatpush1.bf16.msra.mxu0 0
      %2750 = vmatprep.subr.bf16.mxu0 0
      %2751 = vmatpush1.bf16.msra.mxu0 0
      %2752 = vmatprep.subr.bf16.mxu0 0
      %2753 = vmatpush1.bf16.msra.mxu0 0
      %2754 = vmatprep.subr.bf16.mxu0 0
      %2755 = vmatpush1.bf16.msra.mxu0 0
      %2756 = vmatprep.mubr.bf16.mxu0 0
      %2757 = vmatmul.mubr.bf16.gmra.mrb[0].mxu0 %v2659
      %v2758 = vpop.f32.mrb[0].mxu0
      %v2759 = vadd.f32 %v2024, %v2758
      %v2760 = vpop.f32.mrb[0].mxu0
      %v2761 = vpop.f32.mrb[0].mxu0
      %v2762 = vadd.f32 %v2025, %v2761
      %v2763 = vpop.f32.mrb[0].mxu0
      %2764 = vdwg.mxu0
      %v2765 = vld [vmem:[%s14] sm:$0x1]
      %v2766 = vld [vmem:[%s15] sm:$0x1]
      %2767 = vadd.xlane.f32.xlu0 %v2759
      %v2768 = vpop.xlane.xlu0 %2767
      %2769 = vadd.xlane.f32.xlu0 %v2762
      %v2770 = vpop.xlane.xlu0 %2769
      %v2771 = vmul.f32 %v2768, %v1991
      %v2772 = vmul.f32 %v2770, %v1991
      %v2773 = vsub.f32 %v2759, %v2771
      %v2774 = vsub.f32 %v2762, %v2772
      %v2775 = vmul.f32 %v2773, %v2773
      %v2776 = vmul.f32 %v2774, %v2774
      %2777 = vadd.xlane.f32.xlu0 %v2775
      %v2778 = vpop.xlane.xlu0 %2777
      %2779 = vadd.xlane.f32.xlu0 %v2776
      %v2780 = vpop.xlane.xlu0 %2779
      %v2781 = vmul.f32 %v2778, %v1991
      %v2782 = vmul.f32 %v2780, %v1991
      %v2783 = vadd.f32 %v2781, 1e-06
      %v2784 = vadd.f32 %v2782, 1e-06
      %v2785 = vrsqrt.pop %v2783
      %v2786 = vrsqrt.pop %v2784
      %v2787 = vmul.f32 %v2773, %v2785
      %v2788 = vmul.f32 %v2774, %v2786
      %v2790 = vlaneseq
      %v2791 = vshrl.u32 %v2790, 7
      %v2792 = vsub.s32 0, %v2791
      %v2793 = vrot.slane %v2765, %v2792
      %v2795 = vmul.f32 %v2787, %v2793
      %v2796 = vmul.f32 %v2788, %v2793
      %v2798 = vlaneseq
      %v2799 = vshrl.u32 %v2798, 7
      %v2800 = vsub.s32 0, %v2799
      %v2801 = vrot.slane %v2766, %v2800
      %v2803 = vadd.f32 %v2795, %v2801
      %v2804 = vadd.f32 %v2796, %v2801
      %v2805 = vpack.c.bf16 %v2804, %v2803
      %v2806 = vld [vmem:[%s16] sm:$0xff]
      %v2807 = vld [vmem:[%s16 + $0x8] sm:$0xff]
      %v2808 = vld [vmem:[%s16 + $0x10] sm:$0xff]
      %v2809 = vld [vmem:[%s16 + $0x18] sm:$0xff]
      %v2810 = vld [vmem:[%s16 + $0x20] sm:$0xff]
      %v2811 = vld [vmem:[%s16 + $0x28] sm:$0xff]
      %v2812 = vld [vmem:[%s16 + $0x30] sm:$0xff]
      %v2813 = vld [vmem:[%s16 + $0x38] sm:$0xff]
      %v2814 = vld [vmem:[%s16 + $0x40] sm:$0xff]
      %v2815 = vld [vmem:[%s16 + $0x48] sm:$0xff]
      %v2816 = vld [vmem:[%s16 + $0x50] sm:$0xff]
      %v2817 = vld [vmem:[%s16 + $0x58] sm:$0xff]
      %v2818 = vld [vmem:[%s16 + $0x60] sm:$0xff]
      %v2819 = vld [vmem:[%s16 + $0x68] sm:$0xff]
      %v2820 = vld [vmem:[%s16 + $0x70] sm:$0xff]
      %v2821 = vld [vmem:[%s16 + $0x78] sm:$0xff]
      %v2822 = vld [vmem:[%s17] sm:$0x3]
      %v2824 = vlaneseq
      %v2825 = vshrl.u32 %v2824, 7
      %v2826 = vsub.s32 0, %v2825
      %v2827 = vrot.slane %v2822, %v2826
      %v2828 = vlaneseq
      %v2829 = vshrl.u32 %v2828, 7
      %v2830 = vsub.s32 1, %v2829
      %v2831 = vrot.slane %v2822, %v2830
      %v2850 = vunpack.c.l.b16 %v2806
      %v2851 = vunpack.c.h.b16 %v2806
      %v2852 = vunpack.c.l.b16 %v2807
      %v2853 = vunpack.c.h.b16 %v2807
      %v2854 = vunpack.c.l.b16 %v2808
      %v2855 = vunpack.c.h.b16 %v2808
      %v2856 = vunpack.c.l.b16 %v2809
      %v2857 = vunpack.c.h.b16 %v2809
      %v2858 = vunpack.c.l.b16 %v2810
      %v2859 = vunpack.c.h.b16 %v2810
      %v2860 = vunpack.c.l.b16 %v2811
      %v2861 = vunpack.c.h.b16 %v2811
      %v2862 = vunpack.c.l.b16 %v2812
      %v2863 = vunpack.c.h.b16 %v2812
      %v2864 = vunpack.c.l.b16 %v2813
      %v2865 = vunpack.c.h.b16 %v2813
      %v2866 = vunpack.c.l.b16 %v2814
      %v2867 = vunpack.c.h.b16 %v2814
      %v2868 = vunpack.c.l.b16 %v2815
      %v2869 = vunpack.c.h.b16 %v2815
      %v2870 = vunpack.c.l.b16 %v2816
      %v2871 = vunpack.c.h.b16 %v2816
      %v2872 = vunpack.c.l.b16 %v2817
      %v2873 = vunpack.c.h.b16 %v2817
      %v2874 = vunpack.c.l.b16 %v2818
      %v2875 = vunpack.c.h.b16 %v2818
      %v2876 = vunpack.c.l.b16 %v2819
      %v2877 = vunpack.c.h.b16 %v2819
      %v2878 = vunpack.c.l.b16 %v2820
      %v2879 = vunpack.c.h.b16 %v2820
      %v2880 = vunpack.c.l.b16 %v2821
      %v2881 = vunpack.c.h.b16 %v2821
      %v2882 = vpack.c.b16 %v2852, %v2850
      %v2883 = vpack.c.b16 %v2853, %v2851
      %v2884 = vpack.c.b16 %v2856, %v2854
      %v2885 = vpack.c.b16 %v2857, %v2855
      %v2886 = vpack.c.b16 %v2860, %v2858
      %v2887 = vpack.c.b16 %v2861, %v2859
      %v2888 = vpack.c.b16 %v2864, %v2862
      %v2889 = vpack.c.b16 %v2865, %v2863
      %v2890 = vpack.c.b16 %v2868, %v2866
      %v2891 = vpack.c.b16 %v2869, %v2867
      %v2892 = vpack.c.b16 %v2872, %v2870
      %v2893 = vpack.c.b16 %v2873, %v2871
      %v2894 = vpack.c.b16 %v2876, %v2874
      %v2895 = vpack.c.b16 %v2877, %v2875
      %v2896 = vpack.c.b16 %v2880, %v2878
      %v2897 = vpack.c.b16 %v2881, %v2879
      %2914 = vmatprep.subr.bf16.mxu0 %v2883
      %2915 = vmatpush1.bf16.msra.mxu0 %v2882
      %2916 = vmatprep.subr.bf16.mxu0 %v2885
      %2917 = vmatpush1.bf16.msra.mxu0 %v2884
      %2918 = vmatprep.subr.bf16.mxu0 %v2887
      %2919 = vmatpush1.bf16.msra.mxu0 %v2886
      %2920 = vmatprep.subr.bf16.mxu0 %v2889
      %2921 = vmatpush1.bf16.msra.mxu0 %v2888
      %2922 = vmatprep.subr.bf16.mxu0 %v2891
      %2923 = vmatpush1.bf16.msra.mxu0 %v2890
      %2924 = vmatprep.subr.bf16.mxu0 %v2893
      %2925 = vmatpush1.bf16.msra.mxu0 %v2892
      %2926 = vmatprep.subr.bf16.mxu0 %v2895
      %2927 = vmatpush1.bf16.msra.mxu0 %v2894
      %2928 = vmatprep.subr.bf16.mxu0 %v2897
      %2929 = vmatpush1.bf16.msra.mxu0 %v2896
      %2930 = vmatprep.subr.bf16.mxu0 0
      %2931 = vmatpush1.bf16.msra.mxu0 0
      %2932 = vmatprep.subr.bf16.mxu0 0
      %2933 = vmatpush1.bf16.msra.mxu0 0
      %2934 = vmatprep.subr.bf16.mxu0 0
      %2935 = vmatpush1.bf16.msra.mxu0 0
      %2936 = vmatprep.subr.bf16.mxu0 0
      %2937 = vmatpush1.bf16.msra.mxu0 0
      %2938 = vmatprep.subr.bf16.mxu0 0
      %2939 = vmatpush1.bf16.msra.mxu0 0
      %2940 = vmatprep.subr.bf16.mxu0 0
      %2941 = vmatpush1.bf16.msra.mxu0 0
      %2942 = vmatprep.subr.bf16.mxu0 0
      %2943 = vmatpush1.bf16.msra.mxu0 0
      %2944 = vmatprep.subr.bf16.mxu0 0
      %2945 = vmatpush1.bf16.msra.mxu0 0
      %2946 = vmatprep.mubr.bf16.mxu0 0
      %2947 = vmatmul.mubr.bf16.gmra.mrb[0].mxu0 %v2805
      %v2948 = vpop.f32.mrb[0].mxu0
      %v2949 = vadd.f32 %v2827, %v2948
      %v2950 = vpop.f32.mrb[0].mxu0
      %v2951 = vadd.f32 %v2831, %v2950
      %v2952 = vpop.f32.mrb[0].mxu0
      %v2953 = vadd.f32 %v2827, %v2952
      %v2954 = vpop.f32.mrb[0].mxu0
      %v2955 = vadd.f32 %v2831, %v2954
      %2956 = vdwg.mxu0
      %v2957 = vmax.f32 %v2949, 0.0
      %v2958 = vmax.f32 %v2951, 0.0
      %v2959 = vmax.f32 %v2953, 0.0
      %v2960 = vmax.f32 %v2955, 0.0
      %v2961 = vpack.c.bf16 %v2959, %v2957
      %v2962 = vpack.c.bf16 %v2960, %v2958
      %v2963 = vld [vmem:[%s18] sm:$0xf]
      %v2964 = vld [vmem:[%s18 + $0x4] sm:$0xf]
      %v2965 = vld [vmem:[%s18 + $0x8] sm:$0xf]
      %v2966 = vld [vmem:[%s18 + $0xc] sm:$0xf]
      %v2967 = vld [vmem:[%s18 + $0x10] sm:$0xf]
      %v2968 = vld [vmem:[%s18 + $0x14] sm:$0xf]
      %v2969 = vld [vmem:[%s18 + $0x18] sm:$0xf]
      %v2970 = vld [vmem:[%s18 + $0x1c] sm:$0xf]
      %v2971 = vld [vmem:[%s18 + $0x20] sm:$0xf]
      %v2972 = vld [vmem:[%s18 + $0x24] sm:$0xf]
      %v2973 = vld [vmem:[%s18 + $0x28] sm:$0xf]
      %v2974 = vld [vmem:[%s18 + $0x2c] sm:$0xf]
      %v2975 = vld [vmem:[%s18 + $0x30] sm:$0xf]
      %v2976 = vld [vmem:[%s18 + $0x34] sm:$0xf]
      %v2977 = vld [vmem:[%s18 + $0x38] sm:$0xf]
      %v2978 = vld [vmem:[%s18 + $0x3c] sm:$0xf]
      %v2979 = vld [vmem:[%s18 + $0x40] sm:$0xf]
      %v2980 = vld [vmem:[%s18 + $0x44] sm:$0xf]
      %v2981 = vld [vmem:[%s18 + $0x48] sm:$0xf]
      %v2982 = vld [vmem:[%s18 + $0x4c] sm:$0xf]
      %v2983 = vld [vmem:[%s18 + $0x50] sm:$0xf]
      %v2984 = vld [vmem:[%s18 + $0x54] sm:$0xf]
      %v2985 = vld [vmem:[%s18 + $0x58] sm:$0xf]
      %v2986 = vld [vmem:[%s18 + $0x5c] sm:$0xf]
      %v2987 = vld [vmem:[%s18 + $0x60] sm:$0xf]
      %v2988 = vld [vmem:[%s18 + $0x64] sm:$0xf]
      %v2989 = vld [vmem:[%s18 + $0x68] sm:$0xf]
      %v2990 = vld [vmem:[%s18 + $0x6c] sm:$0xf]
      %v2991 = vld [vmem:[%s18 + $0x70] sm:$0xf]
      %v2992 = vld [vmem:[%s18 + $0x74] sm:$0xf]
      %v2993 = vld [vmem:[%s18 + $0x78] sm:$0xf]
      %v2994 = vld [vmem:[%s18 + $0x7c] sm:$0xf]
      %v2995 = vld [vmem:[%s19] sm:$0x1]
      %v2997 = vlaneseq
      %v2998 = vshrl.u32 %v2997, 7
      %v2999 = vsub.s32 0, %v2998
      %v3000 = vrot.slane %v2995, %v2999
      %v3034 = vunpack.c.l.b16 %v2963
      %v3035 = vunpack.c.l.b16 %v2964
      %v3036 = vunpack.c.l.b16 %v2965
      %v3037 = vunpack.c.l.b16 %v2966
      %v3038 = vunpack.c.l.b16 %v2967
      %v3039 = vunpack.c.l.b16 %v2968
      %v3040 = vunpack.c.l.b16 %v2969
      %v3041 = vunpack.c.l.b16 %v2970
      %v3042 = vunpack.c.l.b16 %v2971
      %v3043 = vunpack.c.l.b16 %v2972
      %v3044 = vunpack.c.l.b16 %v2973
      %v3045 = vunpack.c.l.b16 %v2974
      %v3046 = vunpack.c.l.b16 %v2975
      %v3047 = vunpack.c.l.b16 %v2976
      %v3048 = vunpack.c.l.b16 %v2977
      %v3049 = vunpack.c.l.b16 %v2978
      %v3050 = vunpack.c.l.b16 %v2979
      %v3051 = vunpack.c.l.b16 %v2980
      %v3052 = vunpack.c.l.b16 %v2981
      %v3053 = vunpack.c.l.b16 %v2982
      %v3054 = vunpack.c.l.b16 %v2983
      %v3055 = vunpack.c.l.b16 %v2984
      %v3056 = vunpack.c.l.b16 %v2985
      %v3057 = vunpack.c.l.b16 %v2986
      %v3058 = vunpack.c.l.b16 %v2987
      %v3059 = vunpack.c.l.b16 %v2988
      %v3060 = vunpack.c.l.b16 %v2989
      %v3061 = vunpack.c.l.b16 %v2990
      %v3062 = vunpack.c.l.b16 %v2991
      %v3063 = vunpack.c.l.b16 %v2992
      %v3064 = vunpack.c.l.b16 %v2993
      %v3065 = vunpack.c.l.b16 %v2994
      %v3066 = vpack.c.b16 %v3035, %v3034
      %v3067 = vpack.c.b16 %v3037, %v3036
      %v3068 = vpack.c.b16 %v3039, %v3038
      %v3069 = vpack.c.b16 %v3041, %v3040
      %v3070 = vpack.c.b16 %v3043, %v3042
      %v3071 = vpack.c.b16 %v3045, %v3044
      %v3072 = vpack.c.b16 %v3047, %v3046
      %v3073 = vpack.c.b16 %v3049, %v3048
      %v3074 = vpack.c.b16 %v3051, %v3050
      %v3075 = vpack.c.b16 %v3053, %v3052
      %v3076 = vpack.c.b16 %v3055, %v3054
      %v3077 = vpack.c.b16 %v3057, %v3056
      %v3078 = vpack.c.b16 %v3059, %v3058
      %v3079 = vpack.c.b16 %v3061, %v3060
      %v3080 = vpack.c.b16 %v3063, %v3062
      %v3081 = vpack.c.b16 %v3065, %v3064
      %3098 = vmatprep.subr.bf16.mxu0 0
      %3099 = vmatpush1.bf16.msra.mxu0 %v3066
      %3100 = vmatprep.subr.bf16.mxu0 0
      %3101 = vmatpush1.bf16.msra.mxu0 %v3067
      %3102 = vmatprep.subr.bf16.mxu0 0
      %3103 = vmatpush1.bf16.msra.mxu0 %v3068
      %3104 = vmatprep.subr.bf16.mxu0 0
      %3105 = vmatpush1.bf16.msra.mxu0 %v3069
      %3106 = vmatprep.subr.bf16.mxu0 0
      %3107 = vmatpush1.bf16.msra.mxu0 %v3070
      %3108 = vmatprep.subr.bf16.mxu0 0
      %3109 = vmatpush1.bf16.msra.mxu0 %v3071
      %3110 = vmatprep.subr.bf16.mxu0 0
      %3111 = vmatpush1.bf16.msra.mxu0 %v3072
      %3112 = vmatprep.subr.bf16.mxu0 0
      %3113 = vmatpush1.bf16.msra.mxu0 %v3073
      %3114 = vmatprep.subr.bf16.mxu0 0
      %3115 = vmatpush1.bf16.msra.mxu0 %v3074
      %3116 = vmatprep.subr.bf16.mxu0 0
      %3117 = vmatpush1.bf16.msra.mxu0 %v3075
      %3118 = vmatprep.subr.bf16.mxu0 0
      %3119 = vmatpush1.bf16.msra.mxu0 %v3076
      %3120 = vmatprep.subr.bf16.mxu0 0
      %3121 = vmatpush1.bf16.msra.mxu0 %v3077
      %3122 = vmatprep.subr.bf16.mxu0 0
      %3123 = vmatpush1.bf16.msra.mxu0 %v3078
      %3124 = vmatprep.subr.bf16.mxu0 0
      %3125 = vmatpush1.bf16.msra.mxu0 %v3079
      %3126 = vmatprep.subr.bf16.mxu0 0
      %3127 = vmatpush1.bf16.msra.mxu0 %v3080
      %3128 = vmatprep.subr.bf16.mxu0 0
      %3129 = vmatpush1.bf16.msra.mxu0 %v3081
      %3130 = vmatprep.mubr.bf16.mxu0 %v2962
      %3131 = vmatmul.mubr.bf16.gmra.mrb[0].mxu0 %v2961
      %v3132 = vpop.f32.mrb[0].mxu0
      %v3133 = vadd.f32 %v3000, %v3132
      %v3134 = vpop.f32.mrb[0].mxu0
      %v3135 = vpop.f32.mrb[0].mxu0
      %v3136 = vadd.f32 %v3000, %v3135
      %v3137 = vpop.f32.mrb[0].mxu0
      %3138 = vdwg.mxu0
      %v3139 = vadd.f32 %v3133, %v2803
      %v3140 = vadd.f32 %v3136, %v2804
      %v3141 = vld [vmem:[%s20] sm:$0x1]
      %v3142 = vld [vmem:[%s21] sm:$0x1]
      %3143 = vadd.xlane.f32.xlu0 %v3139
      %v3144 = vpop.xlane.xlu0 %3143
      %3145 = vadd.xlane.f32.xlu0 %v3140
      %v3146 = vpop.xlane.xlu0 %3145
      %v3147 = vmul.f32 %v3144, %v1991
      %v3148 = vmul.f32 %v3146, %v1991
      %v3149 = vsub.f32 %v3139, %v3147
      %v3150 = vsub.f32 %v3140, %v3148
      %v3151 = vmul.f32 %v3149, %v3149
      %v3152 = vmul.f32 %v3150, %v3150
      %3153 = vadd.xlane.f32.xlu0 %v3151
      %v3154 = vpop.xlane.xlu0 %3153
      %3155 = vadd.xlane.f32.xlu0 %v3152
      %v3156 = vpop.xlane.xlu0 %3155
      %v3157 = vmul.f32 %v3154, %v1991
      %v3158 = vmul.f32 %v3156, %v1991
      %v3159 = vadd.f32 %v3157, 1e-06
      %v3160 = vadd.f32 %v3158, 1e-06
      %v3161 = vrsqrt.pop %v3159
      %v3162 = vrsqrt.pop %v3160
      %v3163 = vmul.f32 %v3149, %v3161
      %v3164 = vmul.f32 %v3150, %v3162
      %v3166 = vlaneseq
      %v3167 = vshrl.u32 %v3166, 7
      %v3168 = vsub.s32 0, %v3167
      %v3169 = vrot.slane %v3141, %v3168
      %v3171 = vmul.f32 %v3163, %v3169
      %v3172 = vmul.f32 %v3164, %v3169
      %v3174 = vlaneseq
      %v3175 = vshrl.u32 %v3174, 7
      %v3176 = vsub.s32 0, %v3175
      %v3177 = vrot.slane %v3142, %v3176
      %v3179 = vadd.f32 %v3171, %v3177
      %v3180 = vadd.f32 %v3172, %v3177
      %v3181 = vpack.c.bf16 %v3180, %v3179
      %v3183 = vunpack.c.l.b16 %v3181
      %v3184 = vunpack.c.h.b16 %v3181
      %v3185 = vpack.c.b16 %v3183, %v3183
      %v3186 = vpack.c.b16 %v3184, %v3184
      %3189 = vst [vmem:[%s775] sm:$0xf] %v3185
      %3190 = vst [vmem:[%s775 + $0x4] sm:$0xf] %v3186
      %s3191 = smul.u32 2, %s38
      %p3192 = scmp.lt.s32.totalorder %s37, 1
      %s3193 = scalar_select %p3192, %s37, 1
      %p3194 = scmp.lt.s32.totalorder %s3191, 1
      %s3195 = scalar_select %p3194, %s3191, 1
      %s3196 = smul.addr %s3193, 2
      %s3197 = sadd.s32 %s3195, %s3196
      %s3198 = smul.addr %s3197, 4
      %s3199 = scalar_lea.vmem %s22, %s3198
      // Predicated region
      $region113: #{decoder_forward.3} parent=107 // pred_check
        %p3200 = pneg %p549
      $region114: #{decoder_forward.3} parent=107 // pred_check_branch
        %3202 = sbr.rel (%p3200) target = $region116
      $region115: #{decoder_forward.3} parent=107 // pred_region
        %s3203 = smul.u32 2, %s38
      $region116: #{decoder_forward.3} parent=107 // pred_fallthru
        _
    $region108: #{decoder_forward.3} parent=5 // pred_fallthru
      _
    %p3204 = scmp.le.s32.totalorder 2, %s28
    // Predicated region
    $region117: #{decoder_forward.3} parent=5 // pred_check
      %p3205 = pneg %p3204
    $region118: #{decoder_forward.3} parent=5 // pred_check_branch
      %3207 = sbr.rel (%p3205) target = $region120
    $region119: #{decoder_forward.3} parent=5 // pred_region
      %s3208 = ssub.s32 %s28, 2
      // Predicated region
      $region121: #{decoder_forward.3} parent=119 // pred_check
        %p3209 = pneg %p555
      $region122: #{decoder_forward.3} parent=119 // pred_check_branch
        %3211 = sbr.rel (%p3209) target = $region124
      $region123: #{decoder_forward.3} parent=119 // pred_region
        %s3212 = smul.u32 2, %s40
        %p3213 = scmp.lt.s32.totalorder %s39, 1
        %s3214 = scalar_select %p3213, %s39, 1
        %p3215 = scmp.lt.s32.totalorder %s3212, 1
        %s3216 = scalar_select %p3215, %s3212, 1
        %s3217 = smul.addr %s3214, 2
        %s3218 = sadd.s32 %s3216, %s3217
        %s3219 = smul.addr %s3218, 4
        %s3220 = scalar_lea.vmem %s22, %s3219
      $region124: #{decoder_forward.3} parent=119 // pred_fallthru
        _
    $region120: #{decoder_forward.3} parent=5 // pred_fallthru
      _
  $region6: #{decoder_forward.3} parent=0 // loop_footer
    %s32 = sadd.s32 1, %s28
  $region7: #{decoder_forward.3} parent=0 // loop_footer_branch
    %27 = sbr.rel target = $region3
  $region8: #{decoder_forward.3} parent=0 // loop_exit
    _

</llo_original>
